<compile_context>
chip_gen: v7x
topology: tpu7x:2x2x1
jax: 0.10.0
libtpu: 0.0.40
codegen_flags: <defaults>
</compile_context>

<pallas_src>
import functools

import numpy as np

import jax
import jax.numpy as jnp
from jax import lax
from jax.experimental import pallas as pl
from jax.experimental.pallas import tpu as pltpu

# PyTorch bicubic (a = -0.75) kernel weights at the fractional offset t = 0.5
# that arises for every integer downsampling factor used here (2, 4, 8).
_CUBIC_W = (-0.09375, 0.59375, 0.59375, -0.09375)


# ----------------------------------------------------------------------------
# small in-kernel helpers (operate on rank-3 (h, w, c) values)
# ----------------------------------------------------------------------------
def _first(a, axis):
    return lax.slice_in_dim(a, 0, 1, axis=axis)


def _last(a, axis):
    n = a.shape[axis]
    return lax.slice_in_dim(a, n - 1, n, axis=axis)


def _shift_fwd(a, fill, axis):
    """out[k] = a[k-1] for k>=1, out[0] = fill (a length-1 slab)."""
    n = a.shape[axis]
    return jnp.concatenate([fill, lax.slice_in_dim(a, 0, n - 1, axis=axis)], axis=axis)


def _shift_bwd(a, fill, axis):
    """out[k] = a[k+1] for k<n-1, out[n-1] = fill."""
    n = a.shape[axis]
    return jnp.concatenate([lax.slice_in_dim(a, 1, n, axis=axis), fill], axis=axis)


def _cubic_p4_to_p2(p, axis):
    """s=2 bicubic (taps 2o-1..2o+2, edge-clamped) along `axis` of a length-4n
    signal given as its 4 parity groups; returns the length-2n output as its
    2 parity groups (even, odd)."""
    w0, w1, w2, w3 = _CUBIC_W
    even = (w0 * _shift_fwd(p[3], _first(p[0], axis), axis)
            + w1 * p[0] + w2 * p[1] + w3 * p[2])
    odd = (w0 * p[1] + w1 * p[2] + w2 * p[3]
           + w3 * _shift_bwd(p[0], _last(p[3], axis), axis))
    return even, odd


def _cubic_p2_to_full(p, axis):
    """s=2 bicubic along `axis` of a length-2n signal given as 2 parity groups."""
    w0, w1, w2, w3 = _CUBIC_W
    return (w0 * _shift_fwd(p[1], _first(p[0], axis), axis)
            + w1 * p[0] + w2 * p[1]
            + w3 * _shift_bwd(p[0], _last(p[1], axis), axis))


def _cubic_p4_to_full(p):
    """s=4 bicubic (taps 4o..4o+3, never clamped) given 4 parity groups."""
    w0, w1, w2, w3 = _CUBIC_W
    return w0 * p[0] + w1 * p[1] + w2 * p[2] + w3 * p[3]


def _max3_p4_to_p2(p, axis):
    """MaxPool(kernel=3, stride=2, pad=1) along `axis`: parity-4 input groups
    of a length-4n signal -> parity-2 groups of the length-2n output."""
    neg = jnp.full_like(_first(p[0], axis), -jnp.inf)
    even = jnp.maximum(jnp.maximum(_shift_fwd(p[3], neg, axis), p[0]), p[1])
    odd = jnp.maximum(jnp.maximum(p[1], p[2]), p[3])
    return even, odd


def _zero_pad_hw(a, rpad, cpad):
    """Zero-pad a (h, w, c) value along h (axis 0) and w (axis 1)."""
    h, w, c = a.shape
    dt = a.dtype
    a = jnp.concatenate(
        [jnp.zeros((h, cpad[0], c), dt), a, jnp.zeros((h, cpad[1], c), dt)], axis=1)
    wp = w + cpad[0] + cpad[1]
    a = jnp.concatenate(
        [jnp.zeros((rpad[0], wp, c), dt), a, jnp.zeros((rpad[1], wp, c), dt)], axis=0)
    return a


# ----------------------------------------------------------------------------
# fused DSnet kernel: one grid step == one (batch, sequence) image
# ----------------------------------------------------------------------------
def _dsnet_kernel(p1_ref, xi_ref,
                  wf1_ref, bf1_ref,
                  wd2_ref, bd2_ref, wp2_ref, bp2_ref,
                  wd3_ref, bd3_ref, wp3_ref, bp3_ref,
                  r32_ref, r32t_ref, r16_ref, r16t_ref, r8_ref, r8t_ref,
                  o_ref):
    f32 = jnp.float32
    dot = functools.partial(jnp.dot, preferred_element_type=f32)

    # ---- conv1: depthwise(7x7,s2,p3)+pointwise(1x1)+ReLU folded into one GEMM
    # over im2col patches whose rows are ordered by output-pixel parity-4.
    x1f = jnp.maximum(dot(p1_ref[0], wf1_ref[...]) + bf1_ref[...], 0.0)   # (1024, 31)
    x1r = x1f.reshape(4, 4, 8, 8, 31)
    # x1q[qy][qx][u, v, c] == x1[4u+qy, 4v+qx, c]
    x1q = [[x1r[qy, qx] for qx in range(4)] for qy in range(4)]

    # ---- bicubic pyramid of the raw input via separable interpolation
    # matrices (rows pre-permuted into parity order in glue).
    xi = xi_ref[0]                                                        # (64, 64)
    xr1p4 = dot(dot(r32_ref[...], xi), r32t_ref[...])                     # (32,32) parity-4 blocks
    xr3p2 = dot(dot(r16_ref[...], xi), r16t_ref[...])                     # (16,16) parity-2 blocks
    xr5 = dot(dot(r8_ref[...], xi), r8t_ref[...])                         # (8,8)
    xr1q = [[xr1p4[8 * qy:8 * qy + 8, 8 * qx:8 * qx + 8] for qx in range(4)]
            for qy in range(4)]
    xr3p = [[xr3p2[8 * ry:8 * ry + 8, 8 * rx:8 * rx + 8] for rx in range(2)]
            for ry in range(2)]

    # ---- x2 = cat(xr1, x1); x3 = MaxPool2d(3,2,1)(x2), kept as parity-2 planes.
    x2q = [[jnp.concatenate([xr1q[qy][qx][:, :, None], x1q[qy][qx]], axis=-1)
            for qx in range(4)] for qy in range(4)]                       # (8,8,32)
    cm = [_max3_p4_to_p2([x2q[qy][qx] for qx in range(4)], axis=1)
          for qy in range(4)]                                             # cols first
    x3p = [[None, None], [None, None]]
    for rx in range(2):
        even, odd = _max3_p4_to_p2([cm[qy][rx] for qy in range(4)], axis=0)
        x3p[0][rx], x3p[1][rx] = even, odd                                # (8,8,32)

    # ---- x1r3 = bicubic(x1: 32 -> 16), as output parity-2 planes.
    c1 = [_cubic_p4_to_p2([x1q[qy][qx] for qx in range(4)], axis=1)
          for qy in range(4)]
    x1r3p = [[None, None], [None, None]]
    for rx in range(2):
        even, odd = _cubic_p4_to_p2([c1[qy][rx] for qy in range(4)], axis=0)
        x1r3p[0][rx], x1r3p[1][rx] = even, odd                            # (8,8,31)

    # ---- conv2 on x4 = cat(xr3, x1r3, x3): depthwise taps read zero-padded
    # parity planes of x4 (pad=3, stride=2); pointwise is one MXU matmul.
    x4p = [[jnp.concatenate(
                [xr3p[ry][rx][:, :, None], x1r3p[ry][rx], x3p[ry][rx]], axis=-1)
            for rx in range(2)] for ry in range(2)]                       # (8,8,64)
    pads = ((2, 1), (1, 2))   # padded-parity placement for pad=3, stride=2
    x4pp = [[_zero_pad_hw(x4p[1 - py][1 - px], pads[py], pads[px])
             for px in range(2)] for py in range(2)]                      # (11,11,64)
    acc2 = jnp.zeros((8, 8, 64), f32) + bd2_ref[...]
    for ky in range(7):
        for kx in range(7):
            src = x4pp[ky % 2][kx % 2]
            patch = src[ky // 2:ky // 2 + 8, kx // 2:kx // 2 + 8, :]
            t = ky * 7 + kx
            acc2 = acc2 + patch * wd2_ref[t:t + 1, :]
    x5 = jnp.maximum(dot(acc2.reshape(64, 64), wp2_ref[...]) + bp2_ref[...], 0.0)
    x5 = x5.reshape(8, 8, 128)

    # ---- remaining bicubics feeding x6.
    t1 = [_cubic_p4_to_full([x1q[qy][qx] for qx in range(4)]) for qy in range(4)]
    x1r5 = _cubic_p4_to_full(t1)                                          # (8,8,31)
    t3 = [_cubic_p2_to_full([x3p[ry][0], x3p[ry][1]], axis=1) for ry in range(2)]
    x3r5 = _cubic_p2_to_full(t3, axis=0)                                  # (8,8,32)

    # ---- conv3: depthwise 7x7 (s2, pad 0) on 8x8 -> 1x1, pointwise, ReLU.
    x6 = jnp.concatenate([xr5[:, :, None], x1r5, x3r5, x5], axis=-1)      # (8,8,192)
    prod = x6[0:7, 0:7, :] * wd3_ref[...]                                 # (7,7,192)
    dw3 = jnp.sum(jnp.sum(prod, axis=0), axis=0, keepdims=True) + bd3_ref[...]  # (1,192)
    out = jnp.maximum(dot(dw3, wp3_ref[...]) + bp3_ref[...], 0.0)         # (1,256)
    o_ref[...] = out.reshape(1, 1, 256)


# ----------------------------------------------------------------------------
# host-side constants (bicubic interpolation matrices)
# ----------------------------------------------------------------------------
def _cubic_matrix(n_in, n_out):
    """(n_out, n_in) matrix of F.interpolate(..., mode='bicubic',
    align_corners=False) for an integer downsampling factor (edge-clamped)."""
    s = n_in // n_out
    m = np.zeros((n_out, n_in), np.float64)
    for d in range(n_out):
        src = (d + 0.5) * s - 0.5
        f = int(np.floor(src))
        for k, w in enumerate(_CUBIC_W):
            idx = min(max(f - 1 + k, 0), n_in - 1)
            m[d, idx] += w
    return m.astype(np.float32)


def _parity_rows(m, s):
    """Reorder rows so that row (k*blk + u) of the result is row (s*u + k) of m."""
    return np.concatenate([m[k::s] for k in range(s)], axis=0)


def _const_spec(shape):
    nd = len(shape)
    return pl.BlockSpec(shape, lambda b, _nd=nd: (0,) * _nd)


# ----------------------------------------------------------------------------
# DSnet forward
# ----------------------------------------------------------------------------
def dsnet_forward(x, params):
    """x: (B, S, 64, 64) float32, S == sequence_len.  Returns (B, S, 256)."""
    B, S, H, W = x.shape
    assert (H, W) == (64, 64), "reference hard-codes 32x32 after conv1 -> 64x64 input"
    BS = B * S
    xi = x.reshape(BS, H, W).astype(jnp.float32)

    # conv1 im2col patches, rows ordered by output-pixel parity-4 (qy, qx, u, v).
    xp = jnp.pad(xi, ((0, 0), (3, 3), (3, 3)))                            # (BS,70,70)
    taps = [xp[:, ty:ty + 64:2, tx:tx + 64:2] for ty in range(7) for tx in range(7)]
    pat = jnp.stack(taps, axis=-1)                                        # (BS,32,32,49)
    pat = pat.reshape(BS, 8, 4, 8, 4, 49).transpose(0, 2, 4, 1, 3, 5)
    pat = pat.reshape(BS, 1024, 49)

    # conv1: fold depthwise + pointwise into a single (49,31) weight / (1,31) bias.
    wd1, bd1, wp1, bp1 = params["conv1"]          # (49,1),(1,1),(1,31),(1,31)
    wf1 = wd1 @ wp1                               # (49,31)
    bf1 = bd1 @ wp1 + bp1                         # (1,31)
    wd2, bd2, wp2, bp2 = params["conv2"]          # (49,64),(1,64),(64,128),(1,128)
    wd3, bd3, wp3, bp3 = params["conv3"]          # (49,192),(1,192),(192,256),(1,256)
    wd3 = wd3.reshape(7, 7, 192)

    # bicubic interpolation matrices (constants), rows permuted into parity order.
    r32 = jnp.asarray(_parity_rows(_cubic_matrix(64, 32), 4))             # (32,64)
    r16 = jnp.asarray(_parity_rows(_cubic_matrix(64, 16), 2))             # (16,64)
    r8 = jnp.asarray(_cubic_matrix(64, 8))                                # (8,64)

    out = pl.pallas_call(
        _dsnet_kernel,
        out_shape=jax.ShapeDtypeStruct((BS, 1, 256), jnp.float32),
        grid=(BS,),
        in_specs=[
            pl.BlockSpec((1, 1024, 49), lambda b: (b, 0, 0)),   # im2col patches
            pl.BlockSpec((1, 64, 64), lambda b: (b, 0, 0)),     # raw image
            _const_spec((49, 31)), _const_spec((1, 31)),        # conv1 (folded)
            _const_spec((49, 64)), _const_spec((1, 64)),        # conv2 depthwise
            _const_spec((64, 128)), _const_spec((1, 128)),      # conv2 pointwise
            _const_spec((7, 7, 192)), _const_spec((1, 192)),    # conv3 depthwise
            _const_spec((192, 256)), _const_spec((1, 256)),     # conv3 pointwise
            _const_spec((32, 64)), _const_spec((64, 32)),       # bicubic 64->32
            _const_spec((16, 64)), _const_spec((64, 16)),       # bicubic 64->16
            _const_spec((8, 64)), _const_spec((64, 8)),         # bicubic 64->8
        ],
        out_specs=pl.BlockSpec((1, 1, 256), lambda b: (b, 0, 0)),
        compiler_params=pltpu.CompilerParams(dimension_semantics=("parallel",)),
    )(pat, xi, wf1, bf1, wd2, bd2, wp2, bp2, wd3, bd3, wp3, bp3,
      r32, r32.T, r16, r16.T, r8, r8.T)

    return out.reshape(B, S, 256)


# ----------------------------------------------------------------------------
# deterministic synthetic parameters (PyTorch-Conv2d-like init, kernel layouts:
# depthwise (49, C) = flattened (C,1,7,7); pointwise (Cin, Cout) = transposed
# (Cout, Cin, 1, 1); biases (1, C))
# ----------------------------------------------------------------------------
def init_params(key):
    def conv_params(k, cin, cout):
        k1, k2, k3, k4 = jax.random.split(k, 4)
        b_dw = 1.0 / (49.0 ** 0.5)                 # depthwise fan_in = 1*7*7
        wd = jax.random.uniform(k1, (49, cin), jnp.float32, -b_dw, b_dw)
        bd = jax.random.uniform(k2, (1, cin), jnp.float32, -b_dw, b_dw)
        b_pw = 1.0 / (cin ** 0.5)                  # pointwise fan_in = cin*1*1
        wp = jax.random.uniform(k3, (cin, cout), jnp.float32, -b_pw, b_pw)
        bp = jax.random.uniform(k4, (1, cout), jnp.float32, -b_pw, b_pw)
        return (wd, bd, wp, bp)

    k1, k2, k3 = jax.random.split(key, 3)
    return {
        "conv1": conv_params(k1, 1, 31),
        "conv2": conv_params(k2, 64, 128),
        "conv3": conv_params(k3, 192, 256),
    }


if __name__ == "__main__":
    key = jax.random.PRNGKey(0)
    kx, kp = jax.random.split(key)
    # sequence_len = 4; spatial must be 64x64 so conv1 output matches the
    # hard-coded 32x32 interpolation in the reference forward.
    x = jax.random.normal(kx, (2, 4, 64, 64), dtype=jnp.float32)
    params = init_params(kp)

    fwd = jax.jit(dsnet_forward)
    out = jax.block_until_ready(fwd(x, params))

    assert out.shape == (2, 4, 256), out.shape
    assert out.dtype == jnp.float32
    assert bool(jnp.all(jnp.isfinite(out)))
    print("KERNEL_OK")
</pallas_src>

<mosaic_0001>
module attributes {stable_mosaic.version = 11 : i64} {
  func.func @_dsnet_kernel(%arg0: i32, %arg1: memref<1x1024x49xf32, #tpu.memory_space<vmem>>, %arg2: memref<1x64x64xf32, #tpu.memory_space<vmem>>, %arg3: memref<49x31xf32, #tpu.memory_space<vmem>>, %arg4: memref<1x31xf32, #tpu.memory_space<vmem>>, %arg5: memref<49x64xf32, #tpu.memory_space<vmem>>, %arg6: memref<1x64xf32, #tpu.memory_space<vmem>>, %arg7: memref<64x128xf32, #tpu.memory_space<vmem>>, %arg8: memref<1x128xf32, #tpu.memory_space<vmem>>, %arg9: memref<7x7x192xf32, #tpu.memory_space<vmem>>, %arg10: memref<1x192xf32, #tpu.memory_space<vmem>>, %arg11: memref<192x256xf32, #tpu.memory_space<vmem>>, %arg12: memref<1x256xf32, #tpu.memory_space<vmem>>, %arg13: memref<32x64xf32, #tpu.memory_space<vmem>>, %arg14: memref<64x32xf32, #tpu.memory_space<vmem>>, %arg15: memref<16x64xf32, #tpu.memory_space<vmem>>, %arg16: memref<64x16xf32, #tpu.memory_space<vmem>>, %arg17: memref<8x64xf32, #tpu.memory_space<vmem>>, %arg18: memref<64x8xf32, #tpu.memory_space<vmem>>, %arg19: memref<1x1x256xf32, #tpu.memory_space<vmem>>) attributes {dimension_semantics = [#tpu.dimension_semantics<parallel>], iteration_bounds = array<i64: 8>, scalar_prefetch = 0 : i64, scratch_operands = 0 : i64, tpu.core_type = #tpu.core_type<tc>, window_params = [{transform_indices = @transform_0, window_bounds = array<i64: 1, 1024, 49>}, {transform_indices = @transform_1, window_bounds = array<i64: 1, 64, 64>}, {pipeline_mode = #tpu.pipeline_mode<synchronous>, transform_indices = @transform_2, window_bounds = array<i64: 49, 31>}, {pipeline_mode = #tpu.pipeline_mode<synchronous>, transform_indices = @transform_3, window_bounds = array<i64: 1, 31>}, {pipeline_mode = #tpu.pipeline_mode<synchronous>, transform_indices = @transform_4, window_bounds = array<i64: 49, 64>}, {pipeline_mode = #tpu.pipeline_mode<synchronous>, transform_indices = @transform_5, window_bounds = array<i64: 1, 64>}, {pipeline_mode = #tpu.pipeline_mode<synchronous>, transform_indices = @transform_6, window_bounds = array<i64: 64, 128>}, {pipeline_mode = #tpu.pipeline_mode<synchronous>, transform_indices = @transform_7, window_bounds = array<i64: 1, 128>}, {pipeline_mode = #tpu.pipeline_mode<synchronous>, transform_indices = @transform_8, window_bounds = array<i64: 7, 7, 192>}, {pipeline_mode = #tpu.pipeline_mode<synchronous>, transform_indices = @transform_9, window_bounds = array<i64: 1, 192>}, {pipeline_mode = #tpu.pipeline_mode<synchronous>, transform_indices = @transform_10, window_bounds = array<i64: 192, 256>}, {pipeline_mode = #tpu.pipeline_mode<synchronous>, transform_indices = @transform_11, window_bounds = array<i64: 1, 256>}, {pipeline_mode = #tpu.pipeline_mode<synchronous>, transform_indices = @transform_12, window_bounds = array<i64: 32, 64>}, {pipeline_mode = #tpu.pipeline_mode<synchronous>, transform_indices = @transform_13, window_bounds = array<i64: 64, 32>}, {pipeline_mode = #tpu.pipeline_mode<synchronous>, transform_indices = @transform_14, window_bounds = array<i64: 16, 64>}, {pipeline_mode = #tpu.pipeline_mode<synchronous>, transform_indices = @transform_15, window_bounds = array<i64: 64, 16>}, {pipeline_mode = #tpu.pipeline_mode<synchronous>, transform_indices = @transform_16, window_bounds = array<i64: 8, 64>}, {pipeline_mode = #tpu.pipeline_mode<synchronous>, transform_indices = @transform_17, window_bounds = array<i64: 64, 8>}, {transform_indices = @transform_18, window_bounds = array<i64: 1, 1, 256>}]} {
    %c0 = arith.constant 0 : index
    %c0_0 = arith.constant 0 : index
    %c0_1 = arith.constant 0 : index
    %0 = vector.load %arg1[%c0, %c0_0, %c0_1] : memref<1x1024x49xf32, #tpu.memory_space<vmem>>, vector<1x1024x49xf32>
    %1 = vector.shape_cast %0 : vector<1x1024x49xf32> to vector<1024x49xf32>
    %c0_2 = arith.constant 0 : index
    %c0_3 = arith.constant 0 : index
    %2 = vector.load %arg3[%c0_2, %c0_3] : memref<49x31xf32, #tpu.memory_space<vmem>>, vector<49x31xf32>
    %cst = arith.constant dense<0.000000e+00> : vector<1024x31xf32>
    %3 = tpu.matmul %1, %2, %cst {dimension_numbers = #tpu.dot_dimension_numbers<[1], [0], [0], [1], [0, 0, 1, 1], [], []>} : vector<1024x49xf32>, vector<49x31xf32>, vector<1024x31xf32> -> vector<1024x31xf32>
    %c0_4 = arith.constant 0 : index
    %c0_5 = arith.constant 0 : index
    %4 = vector.load %arg4[%c0_4, %c0_5] : memref<1x31xf32, #tpu.memory_space<vmem>>, vector<1x31xf32>
    %5 = vector.broadcast %4 : vector<1x31xf32> to vector<1024x31xf32>
    %6 = arith.addf %3, %5 : vector<1024x31xf32>
    %cst_6 = arith.constant 0.000000e+00 : f32
    %7 = vector.broadcast %cst_6 : f32 to vector<1024x31xf32>
    %8 = arith.maximumf %6, %7 : vector<1024x31xf32>
    %9 = vector.shape_cast %8 : vector<1024x31xf32> to vector<4x4x8x8x31xf32>
    %10 = vector.extract_strided_slice %9 {offsets = [0, 0, 0, 0, 0], sizes = [1, 1, 8, 8, 31], strides = [1, 1, 1, 1, 1]} : vector<4x4x8x8x31xf32> to vector<1x1x8x8x31xf32>
    %11 = vector.shape_cast %10 : vector<1x1x8x8x31xf32> to vector<8x8x31xf32>
    %12 = vector.extract_strided_slice %9 {offsets = [0, 1, 0, 0, 0], sizes = [1, 1, 8, 8, 31], strides = [1, 1, 1, 1, 1]} : vector<4x4x8x8x31xf32> to vector<1x1x8x8x31xf32>
    %13 = vector.shape_cast %12 : vector<1x1x8x8x31xf32> to vector<8x8x31xf32>
    %14 = vector.extract_strided_slice %9 {offsets = [0, 2, 0, 0, 0], sizes = [1, 1, 8, 8, 31], strides = [1, 1, 1, 1, 1]} : vector<4x4x8x8x31xf32> to vector<1x1x8x8x31xf32>
    %15 = vector.shape_cast %14 : vector<1x1x8x8x31xf32> to vector<8x8x31xf32>
    %16 = vector.extract_strided_slice %9 {offsets = [0, 3, 0, 0, 0], sizes = [1, 1, 8, 8, 31], strides = [1, 1, 1, 1, 1]} : vector<4x4x8x8x31xf32> to vector<1x1x8x8x31xf32>
    %17 = vector.shape_cast %16 : vector<1x1x8x8x31xf32> to vector<8x8x31xf32>
    %18 = vector.extract_strided_slice %9 {offsets = [1, 0, 0, 0, 0], sizes = [1, 1, 8, 8, 31], strides = [1, 1, 1, 1, 1]} : vector<4x4x8x8x31xf32> to vector<1x1x8x8x31xf32>
    %19 = vector.shape_cast %18 : vector<1x1x8x8x31xf32> to vector<8x8x31xf32>
    %20 = vector.extract_strided_slice %9 {offsets = [1, 1, 0, 0, 0], sizes = [1, 1, 8, 8, 31], strides = [1, 1, 1, 1, 1]} : vector<4x4x8x8x31xf32> to vector<1x1x8x8x31xf32>
    %21 = vector.shape_cast %20 : vector<1x1x8x8x31xf32> to vector<8x8x31xf32>
    %22 = vector.extract_strided_slice %9 {offsets = [1, 2, 0, 0, 0], sizes = [1, 1, 8, 8, 31], strides = [1, 1, 1, 1, 1]} : vector<4x4x8x8x31xf32> to vector<1x1x8x8x31xf32>
    %23 = vector.shape_cast %22 : vector<1x1x8x8x31xf32> to vector<8x8x31xf32>
    %24 = vector.extract_strided_slice %9 {offsets = [1, 3, 0, 0, 0], sizes = [1, 1, 8, 8, 31], strides = [1, 1, 1, 1, 1]} : vector<4x4x8x8x31xf32> to vector<1x1x8x8x31xf32>
    %25 = vector.shape_cast %24 : vector<1x1x8x8x31xf32> to vector<8x8x31xf32>
    %26 = vector.extract_strided_slice %9 {offsets = [2, 0, 0, 0, 0], sizes = [1, 1, 8, 8, 31], strides = [1, 1, 1, 1, 1]} : vector<4x4x8x8x31xf32> to vector<1x1x8x8x31xf32>
    %27 = vector.shape_cast %26 : vector<1x1x8x8x31xf32> to vector<8x8x31xf32>
    %28 = vector.extract_strided_slice %9 {offsets = [2, 1, 0, 0, 0], sizes = [1, 1, 8, 8, 31], strides = [1, 1, 1, 1, 1]} : vector<4x4x8x8x31xf32> to vector<1x1x8x8x31xf32>
    %29 = vector.shape_cast %28 : vector<1x1x8x8x31xf32> to vector<8x8x31xf32>
    %30 = vector.extract_strided_slice %9 {offsets = [2, 2, 0, 0, 0], sizes = [1, 1, 8, 8, 31], strides = [1, 1, 1, 1, 1]} : vector<4x4x8x8x31xf32> to vector<1x1x8x8x31xf32>
    %31 = vector.shape_cast %30 : vector<1x1x8x8x31xf32> to vector<8x8x31xf32>
    %32 = vector.extract_strided_slice %9 {offsets = [2, 3, 0, 0, 0], sizes = [1, 1, 8, 8, 31], strides = [1, 1, 1, 1, 1]} : vector<4x4x8x8x31xf32> to vector<1x1x8x8x31xf32>
    %33 = vector.shape_cast %32 : vector<1x1x8x8x31xf32> to vector<8x8x31xf32>
    %34 = vector.extract_strided_slice %9 {offsets = [3, 0, 0, 0, 0], sizes = [1, 1, 8, 8, 31], strides = [1, 1, 1, 1, 1]} : vector<4x4x8x8x31xf32> to vector<1x1x8x8x31xf32>
    %35 = vector.shape_cast %34 : vector<1x1x8x8x31xf32> to vector<8x8x31xf32>
    %36 = vector.extract_strided_slice %9 {offsets = [3, 1, 0, 0, 0], sizes = [1, 1, 8, 8, 31], strides = [1, 1, 1, 1, 1]} : vector<4x4x8x8x31xf32> to vector<1x1x8x8x31xf32>
    %37 = vector.shape_cast %36 : vector<1x1x8x8x31xf32> to vector<8x8x31xf32>
    %38 = vector.extract_strided_slice %9 {offsets = [3, 2, 0, 0, 0], sizes = [1, 1, 8, 8, 31], strides = [1, 1, 1, 1, 1]} : vector<4x4x8x8x31xf32> to vector<1x1x8x8x31xf32>
    %39 = vector.shape_cast %38 : vector<1x1x8x8x31xf32> to vector<8x8x31xf32>
    %40 = vector.extract_strided_slice %9 {offsets = [3, 3, 0, 0, 0], sizes = [1, 1, 8, 8, 31], strides = [1, 1, 1, 1, 1]} : vector<4x4x8x8x31xf32> to vector<1x1x8x8x31xf32>
    %41 = vector.shape_cast %40 : vector<1x1x8x8x31xf32> to vector<8x8x31xf32>
    %c0_7 = arith.constant 0 : index
    %c0_8 = arith.constant 0 : index
    %c0_9 = arith.constant 0 : index
    %42 = vector.load %arg2[%c0_7, %c0_8, %c0_9] : memref<1x64x64xf32, #tpu.memory_space<vmem>>, vector<1x64x64xf32>
    %43 = vector.shape_cast %42 : vector<1x64x64xf32> to vector<64x64xf32>
    %c0_10 = arith.constant 0 : index
    %c0_11 = arith.constant 0 : index
    %44 = vector.load %arg13[%c0_10, %c0_11] : memref<32x64xf32, #tpu.memory_space<vmem>>, vector<32x64xf32>
    %cst_12 = arith.constant dense<0.000000e+00> : vector<32x64xf32>
    %45 = tpu.matmul %44, %43, %cst_12 {dimension_numbers = #tpu.dot_dimension_numbers<[1], [0], [0], [1], [0, 0, 1, 1], [], []>} : vector<32x64xf32>, vector<64x64xf32>, vector<32x64xf32> -> vector<32x64xf32>
    %c0_13 = arith.constant 0 : index
    %c0_14 = arith.constant 0 : index
    %46 = vector.load %arg14[%c0_13, %c0_14] : memref<64x32xf32, #tpu.memory_space<vmem>>, vector<64x32xf32>
    %cst_15 = arith.constant dense<0.000000e+00> : vector<32x32xf32>
    %47 = tpu.matmul %45, %46, %cst_15 {dimension_numbers = #tpu.dot_dimension_numbers<[1], [0], [0], [1], [0, 0, 1, 1], [], []>} : vector<32x64xf32>, vector<64x32xf32>, vector<32x32xf32> -> vector<32x32xf32>
    %c0_16 = arith.constant 0 : index
    %c0_17 = arith.constant 0 : index
    %48 = vector.load %arg15[%c0_16, %c0_17] : memref<16x64xf32, #tpu.memory_space<vmem>>, vector<16x64xf32>
    %cst_18 = arith.constant dense<0.000000e+00> : vector<16x64xf32>
    %49 = tpu.matmul %48, %43, %cst_18 {dimension_numbers = #tpu.dot_dimension_numbers<[1], [0], [0], [1], [0, 0, 1, 1], [], []>} : vector<16x64xf32>, vector<64x64xf32>, vector<16x64xf32> -> vector<16x64xf32>
    %c0_19 = arith.constant 0 : index
    %c0_20 = arith.constant 0 : index
    %50 = vector.load %arg16[%c0_19, %c0_20] : memref<64x16xf32, #tpu.memory_space<vmem>>, vector<64x16xf32>
    %cst_21 = arith.constant dense<0.000000e+00> : vector<16x16xf32>
    %51 = tpu.matmul %49, %50, %cst_21 {dimension_numbers = #tpu.dot_dimension_numbers<[1], [0], [0], [1], [0, 0, 1, 1], [], []>} : vector<16x64xf32>, vector<64x16xf32>, vector<16x16xf32> -> vector<16x16xf32>
    %c0_22 = arith.constant 0 : index
    %c0_23 = arith.constant 0 : index
    %52 = vector.load %arg17[%c0_22, %c0_23] : memref<8x64xf32, #tpu.memory_space<vmem>>, vector<8x64xf32>
    %cst_24 = arith.constant dense<0.000000e+00> : vector<8x64xf32>
    %53 = tpu.matmul %52, %43, %cst_24 {dimension_numbers = #tpu.dot_dimension_numbers<[1], [0], [0], [1], [0, 0, 1, 1], [], []>} : vector<8x64xf32>, vector<64x64xf32>, vector<8x64xf32> -> vector<8x64xf32>
    %c0_25 = arith.constant 0 : index
    %c0_26 = arith.constant 0 : index
    %54 = vector.load %arg18[%c0_25, %c0_26] : memref<64x8xf32, #tpu.memory_space<vmem>>, vector<64x8xf32>
    %cst_27 = arith.constant dense<0.000000e+00> : vector<8x8xf32>
    %55 = tpu.matmul %53, %54, %cst_27 {dimension_numbers = #tpu.dot_dimension_numbers<[1], [0], [0], [1], [0, 0, 1, 1], [], []>} : vector<8x64xf32>, vector<64x8xf32>, vector<8x8xf32> -> vector<8x8xf32>
    %56 = vector.extract_strided_slice %47 {offsets = [0, 0], sizes = [8, 8], strides = [1, 1]} : vector<32x32xf32> to vector<8x8xf32>
    %57 = vector.extract_strided_slice %47 {offsets = [0, 8], sizes = [8, 8], strides = [1, 1]} : vector<32x32xf32> to vector<8x8xf32>
    %58 = vector.extract_strided_slice %47 {offsets = [0, 16], sizes = [8, 8], strides = [1, 1]} : vector<32x32xf32> to vector<8x8xf32>
    %59 = vector.extract_strided_slice %47 {offsets = [0, 24], sizes = [8, 8], strides = [1, 1]} : vector<32x32xf32> to vector<8x8xf32>
    %60 = vector.extract_strided_slice %47 {offsets = [8, 0], sizes = [8, 8], strides = [1, 1]} : vector<32x32xf32> to vector<8x8xf32>
    %61 = vector.extract_strided_slice %47 {offsets = [8, 8], sizes = [8, 8], strides = [1, 1]} : vector<32x32xf32> to vector<8x8xf32>
    %62 = vector.extract_strided_slice %47 {offsets = [8, 16], sizes = [8, 8], strides = [1, 1]} : vector<32x32xf32> to vector<8x8xf32>
    %63 = vector.extract_strided_slice %47 {offsets = [8, 24], sizes = [8, 8], strides = [1, 1]} : vector<32x32xf32> to vector<8x8xf32>
    %64 = vector.extract_strided_slice %47 {offsets = [16, 0], sizes = [8, 8], strides = [1, 1]} : vector<32x32xf32> to vector<8x8xf32>
    %65 = vector.extract_strided_slice %47 {offsets = [16, 8], sizes = [8, 8], strides = [1, 1]} : vector<32x32xf32> to vector<8x8xf32>
    %66 = vector.extract_strided_slice %47 {offsets = [16, 16], sizes = [8, 8], strides = [1, 1]} : vector<32x32xf32> to vector<8x8xf32>
    %67 = vector.extract_strided_slice %47 {offsets = [16, 24], sizes = [8, 8], strides = [1, 1]} : vector<32x32xf32> to vector<8x8xf32>
    %68 = vector.extract_strided_slice %47 {offsets = [24, 0], sizes = [8, 8], strides = [1, 1]} : vector<32x32xf32> to vector<8x8xf32>
    %69 = vector.extract_strided_slice %47 {offsets = [24, 8], sizes = [8, 8], strides = [1, 1]} : vector<32x32xf32> to vector<8x8xf32>
    %70 = vector.extract_strided_slice %47 {offsets = [24, 16], sizes = [8, 8], strides = [1, 1]} : vector<32x32xf32> to vector<8x8xf32>
    %71 = vector.extract_strided_slice %47 {offsets = [24, 24], sizes = [8, 8], strides = [1, 1]} : vector<32x32xf32> to vector<8x8xf32>
    %72 = vector.extract_strided_slice %51 {offsets = [0, 0], sizes = [8, 8], strides = [1, 1]} : vector<16x16xf32> to vector<8x8xf32>
    %73 = vector.extract_strided_slice %51 {offsets = [0, 8], sizes = [8, 8], strides = [1, 1]} : vector<16x16xf32> to vector<8x8xf32>
    %74 = vector.extract_strided_slice %51 {offsets = [8, 0], sizes = [8, 8], strides = [1, 1]} : vector<16x16xf32> to vector<8x8xf32>
    %75 = vector.extract_strided_slice %51 {offsets = [8, 8], sizes = [8, 8], strides = [1, 1]} : vector<16x16xf32> to vector<8x8xf32>
    %76 = vector.shape_cast %56 : vector<8x8xf32> to vector<8x8x1xf32>
    %77 = tpu.concatenate %76, %11 in 2 : vector<8x8x1xf32>, vector<8x8x31xf32> -> vector<8x8x32xf32>
    %78 = vector.shape_cast %57 : vector<8x8xf32> to vector<8x8x1xf32>
    %79 = tpu.concatenate %78, %13 in 2 : vector<8x8x1xf32>, vector<8x8x31xf32> -> vector<8x8x32xf32>
    %80 = vector.shape_cast %58 : vector<8x8xf32> to vector<8x8x1xf32>
    %81 = tpu.concatenate %80, %15 in 2 : vector<8x8x1xf32>, vector<8x8x31xf32> -> vector<8x8x32xf32>
    %82 = vector.shape_cast %59 : vector<8x8xf32> to vector<8x8x1xf32>
    %83 = tpu.concatenate %82, %17 in 2 : vector<8x8x1xf32>, vector<8x8x31xf32> -> vector<8x8x32xf32>
    %84 = vector.shape_cast %60 : vector<8x8xf32> to vector<8x8x1xf32>
    %85 = tpu.concatenate %84, %19 in 2 : vector<8x8x1xf32>, vector<8x8x31xf32> -> vector<8x8x32xf32>
    %86 = vector.shape_cast %61 : vector<8x8xf32> to vector<8x8x1xf32>
    %87 = tpu.concatenate %86, %21 in 2 : vector<8x8x1xf32>, vector<8x8x31xf32> -> vector<8x8x32xf32>
    %88 = vector.shape_cast %62 : vector<8x8xf32> to vector<8x8x1xf32>
    %89 = tpu.concatenate %88, %23 in 2 : vector<8x8x1xf32>, vector<8x8x31xf32> -> vector<8x8x32xf32>
    %90 = vector.shape_cast %63 : vector<8x8xf32> to vector<8x8x1xf32>
    %91 = tpu.concatenate %90, %25 in 2 : vector<8x8x1xf32>, vector<8x8x31xf32> -> vector<8x8x32xf32>
    %92 = vector.shape_cast %64 : vector<8x8xf32> to vector<8x8x1xf32>
    %93 = tpu.concatenate %92, %27 in 2 : vector<8x8x1xf32>, vector<8x8x31xf32> -> vector<8x8x32xf32>
    %94 = vector.shape_cast %65 : vector<8x8xf32> to vector<8x8x1xf32>
    %95 = tpu.concatenate %94, %29 in 2 : vector<8x8x1xf32>, vector<8x8x31xf32> -> vector<8x8x32xf32>
    %96 = vector.shape_cast %66 : vector<8x8xf32> to vector<8x8x1xf32>
    %97 = tpu.concatenate %96, %31 in 2 : vector<8x8x1xf32>, vector<8x8x31xf32> -> vector<8x8x32xf32>
    %98 = vector.shape_cast %67 : vector<8x8xf32> to vector<8x8x1xf32>
    %99 = tpu.concatenate %98, %33 in 2 : vector<8x8x1xf32>, vector<8x8x31xf32> -> vector<8x8x32xf32>
    %100 = vector.shape_cast %68 : vector<8x8xf32> to vector<8x8x1xf32>
    %101 = tpu.concatenate %100, %35 in 2 : vector<8x8x1xf32>, vector<8x8x31xf32> -> vector<8x8x32xf32>
    %102 = vector.shape_cast %69 : vector<8x8xf32> to vector<8x8x1xf32>
    %103 = tpu.concatenate %102, %37 in 2 : vector<8x8x1xf32>, vector<8x8x31xf32> -> vector<8x8x32xf32>
    %104 = vector.shape_cast %70 : vector<8x8xf32> to vector<8x8x1xf32>
    %105 = tpu.concatenate %104, %39 in 2 : vector<8x8x1xf32>, vector<8x8x31xf32> -> vector<8x8x32xf32>
    %106 = vector.shape_cast %71 : vector<8x8xf32> to vector<8x8x1xf32>
    %107 = tpu.concatenate %106, %41 in 2 : vector<8x8x1xf32>, vector<8x8x31xf32> -> vector<8x8x32xf32>
    %cst_28 = arith.constant 0xFF800000 : f32
    %108 = vector.broadcast %cst_28 : f32 to vector<8x1x32xf32>
    %109 = vector.extract_strided_slice %83 {offsets = [0, 0, 0], sizes = [8, 7, 32], strides = [1, 1, 1]} : vector<8x8x32xf32> to vector<8x7x32xf32>
    %110 = tpu.concatenate %108, %109 in 1 : vector<8x1x32xf32>, vector<8x7x32xf32> -> vector<8x8x32xf32>
    %111 = arith.maximumf %110, %77 : vector<8x8x32xf32>
    %112 = arith.maximumf %111, %79 : vector<8x8x32xf32>
    %113 = arith.maximumf %79, %81 : vector<8x8x32xf32>
    %114 = arith.maximumf %113, %83 : vector<8x8x32xf32>
    %cst_29 = arith.constant 0xFF800000 : f32
    %115 = vector.broadcast %cst_29 : f32 to vector<8x1x32xf32>
    %116 = vector.extract_strided_slice %91 {offsets = [0, 0, 0], sizes = [8, 7, 32], strides = [1, 1, 1]} : vector<8x8x32xf32> to vector<8x7x32xf32>
    %117 = tpu.concatenate %115, %116 in 1 : vector<8x1x32xf32>, vector<8x7x32xf32> -> vector<8x8x32xf32>
    %118 = arith.maximumf %117, %85 : vector<8x8x32xf32>
    %119 = arith.maximumf %118, %87 : vector<8x8x32xf32>
    %120 = arith.maximumf %87, %89 : vector<8x8x32xf32>
    %121 = arith.maximumf %120, %91 : vector<8x8x32xf32>
    %cst_30 = arith.constant 0xFF800000 : f32
    %122 = vector.broadcast %cst_30 : f32 to vector<8x1x32xf32>
    %123 = vector.extract_strided_slice %99 {offsets = [0, 0, 0], sizes = [8, 7, 32], strides = [1, 1, 1]} : vector<8x8x32xf32> to vector<8x7x32xf32>
    %124 = tpu.concatenate %122, %123 in 1 : vector<8x1x32xf32>, vector<8x7x32xf32> -> vector<8x8x32xf32>
    %125 = arith.maximumf %124, %93 : vector<8x8x32xf32>
    %126 = arith.maximumf %125, %95 : vector<8x8x32xf32>
    %127 = arith.maximumf %95, %97 : vector<8x8x32xf32>
    %128 = arith.maximumf %127, %99 : vector<8x8x32xf32>
    %cst_31 = arith.constant 0xFF800000 : f32
    %129 = vector.broadcast %cst_31 : f32 to vector<8x1x32xf32>
    %130 = vector.extract_strided_slice %107 {offsets = [0, 0, 0], sizes = [8, 7, 32], strides = [1, 1, 1]} : vector<8x8x32xf32> to vector<8x7x32xf32>
    %131 = tpu.concatenate %129, %130 in 1 : vector<8x1x32xf32>, vector<8x7x32xf32> -> vector<8x8x32xf32>
    %132 = arith.maximumf %131, %101 : vector<8x8x32xf32>
    %133 = arith.maximumf %132, %103 : vector<8x8x32xf32>
    %134 = arith.maximumf %103, %105 : vector<8x8x32xf32>
    %135 = arith.maximumf %134, %107 : vector<8x8x32xf32>
    %cst_32 = arith.constant 0xFF800000 : f32
    %136 = vector.broadcast %cst_32 : f32 to vector<1x8x32xf32>
    %137 = vector.extract_strided_slice %133 {offsets = [0, 0, 0], sizes = [7, 8, 32], strides = [1, 1, 1]} : vector<8x8x32xf32> to vector<7x8x32xf32>
    %138 = tpu.concatenate %136, %137 in 0 : vector<1x8x32xf32>, vector<7x8x32xf32> -> vector<8x8x32xf32>
    %139 = arith.maximumf %138, %112 : vector<8x8x32xf32>
    %140 = arith.maximumf %139, %119 : vector<8x8x32xf32>
    %141 = arith.maximumf %119, %126 : vector<8x8x32xf32>
    %142 = arith.maximumf %141, %133 : vector<8x8x32xf32>
    %cst_33 = arith.constant 0xFF800000 : f32
    %143 = vector.broadcast %cst_33 : f32 to vector<1x8x32xf32>
    %144 = vector.extract_strided_slice %135 {offsets = [0, 0, 0], sizes = [7, 8, 32], strides = [1, 1, 1]} : vector<8x8x32xf32> to vector<7x8x32xf32>
    %145 = tpu.concatenate %143, %144 in 0 : vector<1x8x32xf32>, vector<7x8x32xf32> -> vector<8x8x32xf32>
    %146 = arith.maximumf %145, %114 : vector<8x8x32xf32>
    %147 = arith.maximumf %146, %121 : vector<8x8x32xf32>
    %148 = arith.maximumf %121, %128 : vector<8x8x32xf32>
    %149 = arith.maximumf %148, %135 : vector<8x8x32xf32>
    %150 = vector.extract_strided_slice %11 {offsets = [0, 0, 0], sizes = [8, 1, 31], strides = [1, 1, 1]} : vector<8x8x31xf32> to vector<8x1x31xf32>
    %151 = vector.extract_strided_slice %17 {offsets = [0, 0, 0], sizes = [8, 7, 31], strides = [1, 1, 1]} : vector<8x8x31xf32> to vector<8x7x31xf32>
    %152 = tpu.concatenate %150, %151 in 1 : vector<8x1x31xf32>, vector<8x7x31xf32> -> vector<8x8x31xf32>
    %cst_34 = arith.constant -9.375000e-02 : f32
    %153 = vector.broadcast %cst_34 : f32 to vector<8x8x31xf32>
    %154 = arith.mulf %153, %152 : vector<8x8x31xf32>
    %cst_35 = arith.constant 5.937500e-01 : f32
    %155 = vector.broadcast %cst_35 : f32 to vector<8x8x31xf32>
    %156 = arith.mulf %155, %11 : vector<8x8x31xf32>
    %157 = arith.addf %154, %156 : vector<8x8x31xf32>
    %cst_36 = arith.constant 5.937500e-01 : f32
    %158 = vector.broadcast %cst_36 : f32 to vector<8x8x31xf32>
    %159 = arith.mulf %158, %13 : vector<8x8x31xf32>
    %160 = arith.addf %157, %159 : vector<8x8x31xf32>
    %cst_37 = arith.constant -9.375000e-02 : f32
    %161 = vector.broadcast %cst_37 : f32 to vector<8x8x31xf32>
    %162 = arith.mulf %161, %15 : vector<8x8x31xf32>
    %163 = arith.addf %160, %162 : vector<8x8x31xf32>
    %cst_38 = arith.constant -9.375000e-02 : f32
    %164 = vector.broadcast %cst_38 : f32 to vector<8x8x31xf32>
    %165 = arith.mulf %164, %13 : vector<8x8x31xf32>
    %cst_39 = arith.constant 5.937500e-01 : f32
    %166 = vector.broadcast %cst_39 : f32 to vector<8x8x31xf32>
    %167 = arith.mulf %166, %15 : vector<8x8x31xf32>
    %168 = arith.addf %165, %167 : vector<8x8x31xf32>
    %cst_40 = arith.constant 5.937500e-01 : f32
    %169 = vector.broadcast %cst_40 : f32 to vector<8x8x31xf32>
    %170 = arith.mulf %169, %17 : vector<8x8x31xf32>
    %171 = arith.addf %168, %170 : vector<8x8x31xf32>
    %172 = vector.extract_strided_slice %17 {offsets = [0, 7, 0], sizes = [8, 1, 31], strides = [1, 1, 1]} : vector<8x8x31xf32> to vector<8x1x31xf32>
    %173 = vector.extract_strided_slice %11 {offsets = [0, 1, 0], sizes = [8, 7, 31], strides = [1, 1, 1]} : vector<8x8x31xf32> to vector<8x7x31xf32>
    %174 = tpu.concatenate %173, %172 in 1 : vector<8x7x31xf32>, vector<8x1x31xf32> -> vector<8x8x31xf32>
    %cst_41 = arith.constant -9.375000e-02 : f32
    %175 = vector.broadcast %cst_41 : f32 to vector<8x8x31xf32>
    %176 = arith.mulf %175, %174 : vector<8x8x31xf32>
    %177 = arith.addf %171, %176 : vector<8x8x31xf32>
    %178 = vector.extract_strided_slice %19 {offsets = [0, 0, 0], sizes = [8, 1, 31], strides = [1, 1, 1]} : vector<8x8x31xf32> to vector<8x1x31xf32>
    %179 = vector.extract_strided_slice %25 {offsets = [0, 0, 0], sizes = [8, 7, 31], strides = [1, 1, 1]} : vector<8x8x31xf32> to vector<8x7x31xf32>
    %180 = tpu.concatenate %178, %179 in 1 : vector<8x1x31xf32>, vector<8x7x31xf32> -> vector<8x8x31xf32>
    %cst_42 = arith.constant -9.375000e-02 : f32
    %181 = vector.broadcast %cst_42 : f32 to vector<8x8x31xf32>
    %182 = arith.mulf %181, %180 : vector<8x8x31xf32>
    %cst_43 = arith.constant 5.937500e-01 : f32
    %183 = vector.broadcast %cst_43 : f32 to vector<8x8x31xf32>
    %184 = arith.mulf %183, %19 : vector<8x8x31xf32>
    %185 = arith.addf %182, %184 : vector<8x8x31xf32>
    %cst_44 = arith.constant 5.937500e-01 : f32
    %186 = vector.broadcast %cst_44 : f32 to vector<8x8x31xf32>
    %187 = arith.mulf %186, %21 : vector<8x8x31xf32>
    %188 = arith.addf %185, %187 : vector<8x8x31xf32>
    %cst_45 = arith.constant -9.375000e-02 : f32
    %189 = vector.broadcast %cst_45 : f32 to vector<8x8x31xf32>
    %190 = arith.mulf %189, %23 : vector<8x8x31xf32>
    %191 = arith.addf %188, %190 : vector<8x8x31xf32>
    %cst_46 = arith.constant -9.375000e-02 : f32
    %192 = vector.broadcast %cst_46 : f32 to vector<8x8x31xf32>
    %193 = arith.mulf %192, %21 : vector<8x8x31xf32>
    %cst_47 = arith.constant 5.937500e-01 : f32
    %194 = vector.broadcast %cst_47 : f32 to vector<8x8x31xf32>
    %195 = arith.mulf %194, %23 : vector<8x8x31xf32>
    %196 = arith.addf %193, %195 : vector<8x8x31xf32>
    %cst_48 = arith.constant 5.937500e-01 : f32
    %197 = vector.broadcast %cst_48 : f32 to vector<8x8x31xf32>
    %198 = arith.mulf %197, %25 : vector<8x8x31xf32>
    %199 = arith.addf %196, %198 : vector<8x8x31xf32>
    %200 = vector.extract_strided_slice %25 {offsets = [0, 7, 0], sizes = [8, 1, 31], strides = [1, 1, 1]} : vector<8x8x31xf32> to vector<8x1x31xf32>
    %201 = vector.extract_strided_slice %19 {offsets = [0, 1, 0], sizes = [8, 7, 31], strides = [1, 1, 1]} : vector<8x8x31xf32> to vector<8x7x31xf32>
    %202 = tpu.concatenate %201, %200 in 1 : vector<8x7x31xf32>, vector<8x1x31xf32> -> vector<8x8x31xf32>
    %cst_49 = arith.constant -9.375000e-02 : f32
    %203 = vector.broadcast %cst_49 : f32 to vector<8x8x31xf32>
    %204 = arith.mulf %203, %202 : vector<8x8x31xf32>
    %205 = arith.addf %199, %204 : vector<8x8x31xf32>
    %206 = vector.extract_strided_slice %27 {offsets = [0, 0, 0], sizes = [8, 1, 31], strides = [1, 1, 1]} : vector<8x8x31xf32> to vector<8x1x31xf32>
    %207 = vector.extract_strided_slice %33 {offsets = [0, 0, 0], sizes = [8, 7, 31], strides = [1, 1, 1]} : vector<8x8x31xf32> to vector<8x7x31xf32>
    %208 = tpu.concatenate %206, %207 in 1 : vector<8x1x31xf32>, vector<8x7x31xf32> -> vector<8x8x31xf32>
    %cst_50 = arith.constant -9.375000e-02 : f32
    %209 = vector.broadcast %cst_50 : f32 to vector<8x8x31xf32>
    %210 = arith.mulf %209, %208 : vector<8x8x31xf32>
    %cst_51 = arith.constant 5.937500e-01 : f32
    %211 = vector.broadcast %cst_51 : f32 to vector<8x8x31xf32>
    %212 = arith.mulf %211, %27 : vector<8x8x31xf32>
    %213 = arith.addf %210, %212 : vector<8x8x31xf32>
    %cst_52 = arith.constant 5.937500e-01 : f32
    %214 = vector.broadcast %cst_52 : f32 to vector<8x8x31xf32>
    %215 = arith.mulf %214, %29 : vector<8x8x31xf32>
    %216 = arith.addf %213, %215 : vector<8x8x31xf32>
    %cst_53 = arith.constant -9.375000e-02 : f32
    %217 = vector.broadcast %cst_53 : f32 to vector<8x8x31xf32>
    %218 = arith.mulf %217, %31 : vector<8x8x31xf32>
    %219 = arith.addf %216, %218 : vector<8x8x31xf32>
    %cst_54 = arith.constant -9.375000e-02 : f32
    %220 = vector.broadcast %cst_54 : f32 to vector<8x8x31xf32>
    %221 = arith.mulf %220, %29 : vector<8x8x31xf32>
    %cst_55 = arith.constant 5.937500e-01 : f32
    %222 = vector.broadcast %cst_55 : f32 to vector<8x8x31xf32>
    %223 = arith.mulf %222, %31 : vector<8x8x31xf32>
    %224 = arith.addf %221, %223 : vector<8x8x31xf32>
    %cst_56 = arith.constant 5.937500e-01 : f32
    %225 = vector.broadcast %cst_56 : f32 to vector<8x8x31xf32>
    %226 = arith.mulf %225, %33 : vector<8x8x31xf32>
    %227 = arith.addf %224, %226 : vector<8x8x31xf32>
    %228 = vector.extract_strided_slice %33 {offsets = [0, 7, 0], sizes = [8, 1, 31], strides = [1, 1, 1]} : vector<8x8x31xf32> to vector<8x1x31xf32>
    %229 = vector.extract_strided_slice %27 {offsets = [0, 1, 0], sizes = [8, 7, 31], strides = [1, 1, 1]} : vector<8x8x31xf32> to vector<8x7x31xf32>
    %230 = tpu.concatenate %229, %228 in 1 : vector<8x7x31xf32>, vector<8x1x31xf32> -> vector<8x8x31xf32>
    %cst_57 = arith.constant -9.375000e-02 : f32
    %231 = vector.broadcast %cst_57 : f32 to vector<8x8x31xf32>
    %232 = arith.mulf %231, %230 : vector<8x8x31xf32>
    %233 = arith.addf %227, %232 : vector<8x8x31xf32>
    %234 = vector.extract_strided_slice %35 {offsets = [0, 0, 0], sizes = [8, 1, 31], strides = [1, 1, 1]} : vector<8x8x31xf32> to vector<8x1x31xf32>
    %235 = vector.extract_strided_slice %41 {offsets = [0, 0, 0], sizes = [8, 7, 31], strides = [1, 1, 1]} : vector<8x8x31xf32> to vector<8x7x31xf32>
    %236 = tpu.concatenate %234, %235 in 1 : vector<8x1x31xf32>, vector<8x7x31xf32> -> vector<8x8x31xf32>
    %cst_58 = arith.constant -9.375000e-02 : f32
    %237 = vector.broadcast %cst_58 : f32 to vector<8x8x31xf32>
    %238 = arith.mulf %237, %236 : vector<8x8x31xf32>
    %cst_59 = arith.constant 5.937500e-01 : f32
    %239 = vector.broadcast %cst_59 : f32 to vector<8x8x31xf32>
    %240 = arith.mulf %239, %35 : vector<8x8x31xf32>
    %241 = arith.addf %238, %240 : vector<8x8x31xf32>
    %cst_60 = arith.constant 5.937500e-01 : f32
    %242 = vector.broadcast %cst_60 : f32 to vector<8x8x31xf32>
    %243 = arith.mulf %242, %37 : vector<8x8x31xf32>
    %244 = arith.addf %241, %243 : vector<8x8x31xf32>
    %cst_61 = arith.constant -9.375000e-02 : f32
    %245 = vector.broadcast %cst_61 : f32 to vector<8x8x31xf32>
    %246 = arith.mulf %245, %39 : vector<8x8x31xf32>
    %247 = arith.addf %244, %246 : vector<8x8x31xf32>
    %cst_62 = arith.constant -9.375000e-02 : f32
    %248 = vector.broadcast %cst_62 : f32 to vector<8x8x31xf32>
    %249 = arith.mulf %248, %37 : vector<8x8x31xf32>
    %cst_63 = arith.constant 5.937500e-01 : f32
    %250 = vector.broadcast %cst_63 : f32 to vector<8x8x31xf32>
    %251 = arith.mulf %250, %39 : vector<8x8x31xf32>
    %252 = arith.addf %249, %251 : vector<8x8x31xf32>
    %cst_64 = arith.constant 5.937500e-01 : f32
    %253 = vector.broadcast %cst_64 : f32 to vector<8x8x31xf32>
    %254 = arith.mulf %253, %41 : vector<8x8x31xf32>
    %255 = arith.addf %252, %254 : vector<8x8x31xf32>
    %256 = vector.extract_strided_slice %41 {offsets = [0, 7, 0], sizes = [8, 1, 31], strides = [1, 1, 1]} : vector<8x8x31xf32> to vector<8x1x31xf32>
    %257 = vector.extract_strided_slice %35 {offsets = [0, 1, 0], sizes = [8, 7, 31], strides = [1, 1, 1]} : vector<8x8x31xf32> to vector<8x7x31xf32>
    %258 = tpu.concatenate %257, %256 in 1 : vector<8x7x31xf32>, vector<8x1x31xf32> -> vector<8x8x31xf32>
    %cst_65 = arith.constant -9.375000e-02 : f32
    %259 = vector.broadcast %cst_65 : f32 to vector<8x8x31xf32>
    %260 = arith.mulf %259, %258 : vector<8x8x31xf32>
    %261 = arith.addf %255, %260 : vector<8x8x31xf32>
    %262 = vector.extract_strided_slice %163 {offsets = [0, 0, 0], sizes = [1, 8, 31], strides = [1, 1, 1]} : vector<8x8x31xf32> to vector<1x8x31xf32>
    %263 = vector.extract_strided_slice %247 {offsets = [0, 0, 0], sizes = [7, 8, 31], strides = [1, 1, 1]} : vector<8x8x31xf32> to vector<7x8x31xf32>
    %264 = tpu.concatenate %262, %263 in 0 : vector<1x8x31xf32>, vector<7x8x31xf32> -> vector<8x8x31xf32>
    %cst_66 = arith.constant -9.375000e-02 : f32
    %265 = vector.broadcast %cst_66 : f32 to vector<8x8x31xf32>
    %266 = arith.mulf %265, %264 : vector<8x8x31xf32>
    %cst_67 = arith.constant 5.937500e-01 : f32
    %267 = vector.broadcast %cst_67 : f32 to vector<8x8x31xf32>
    %268 = arith.mulf %267, %163 : vector<8x8x31xf32>
    %269 = arith.addf %266, %268 : vector<8x8x31xf32>
    %cst_68 = arith.constant 5.937500e-01 : f32
    %270 = vector.broadcast %cst_68 : f32 to vector<8x8x31xf32>
    %271 = arith.mulf %270, %191 : vector<8x8x31xf32>
    %272 = arith.addf %269, %271 : vector<8x8x31xf32>
    %cst_69 = arith.constant -9.375000e-02 : f32
    %273 = vector.broadcast %cst_69 : f32 to vector<8x8x31xf32>
    %274 = arith.mulf %273, %219 : vector<8x8x31xf32>
    %275 = arith.addf %272, %274 : vector<8x8x31xf32>
    %cst_70 = arith.constant -9.375000e-02 : f32
    %276 = vector.broadcast %cst_70 : f32 to vector<8x8x31xf32>
    %277 = arith.mulf %276, %191 : vector<8x8x31xf32>
    %cst_71 = arith.constant 5.937500e-01 : f32
    %278 = vector.broadcast %cst_71 : f32 to vector<8x8x31xf32>
    %279 = arith.mulf %278, %219 : vector<8x8x31xf32>
    %280 = arith.addf %277, %279 : vector<8x8x31xf32>
    %cst_72 = arith.constant 5.937500e-01 : f32
    %281 = vector.broadcast %cst_72 : f32 to vector<8x8x31xf32>
    %282 = arith.mulf %281, %247 : vector<8x8x31xf32>
    %283 = arith.addf %280, %282 : vector<8x8x31xf32>
    %284 = vector.extract_strided_slice %247 {offsets = [7, 0, 0], sizes = [1, 8, 31], strides = [1, 1, 1]} : vector<8x8x31xf32> to vector<1x8x31xf32>
    %285 = vector.extract_strided_slice %163 {offsets = [1, 0, 0], sizes = [7, 8, 31], strides = [1, 1, 1]} : vector<8x8x31xf32> to vector<7x8x31xf32>
    %286 = tpu.concatenate %285, %284 in 0 : vector<7x8x31xf32>, vector<1x8x31xf32> -> vector<8x8x31xf32>
    %cst_73 = arith.constant -9.375000e-02 : f32
    %287 = vector.broadcast %cst_73 : f32 to vector<8x8x31xf32>
    %288 = arith.mulf %287, %286 : vector<8x8x31xf32>
    %289 = arith.addf %283, %288 : vector<8x8x31xf32>
    %290 = vector.extract_strided_slice %177 {offsets = [0, 0, 0], sizes = [1, 8, 31], strides = [1, 1, 1]} : vector<8x8x31xf32> to vector<1x8x31xf32>
    %291 = vector.extract_strided_slice %261 {offsets = [0, 0, 0], sizes = [7, 8, 31], strides = [1, 1, 1]} : vector<8x8x31xf32> to vector<7x8x31xf32>
    %292 = tpu.concatenate %290, %291 in 0 : vector<1x8x31xf32>, vector<7x8x31xf32> -> vector<8x8x31xf32>
    %cst_74 = arith.constant -9.375000e-02 : f32
    %293 = vector.broadcast %cst_74 : f32 to vector<8x8x31xf32>
    %294 = arith.mulf %293, %292 : vector<8x8x31xf32>
    %cst_75 = arith.constant 5.937500e-01 : f32
    %295 = vector.broadcast %cst_75 : f32 to vector<8x8x31xf32>
    %296 = arith.mulf %295, %177 : vector<8x8x31xf32>
    %297 = arith.addf %294, %296 : vector<8x8x31xf32>
    %cst_76 = arith.constant 5.937500e-01 : f32
    %298 = vector.broadcast %cst_76 : f32 to vector<8x8x31xf32>
    %299 = arith.mulf %298, %205 : vector<8x8x31xf32>
    %300 = arith.addf %297, %299 : vector<8x8x31xf32>
    %cst_77 = arith.constant -9.375000e-02 : f32
    %301 = vector.broadcast %cst_77 : f32 to vector<8x8x31xf32>
    %302 = arith.mulf %301, %233 : vector<8x8x31xf32>
    %303 = arith.addf %300, %302 : vector<8x8x31xf32>
    %cst_78 = arith.constant -9.375000e-02 : f32
    %304 = vector.broadcast %cst_78 : f32 to vector<8x8x31xf32>
    %305 = arith.mulf %304, %205 : vector<8x8x31xf32>
    %cst_79 = arith.constant 5.937500e-01 : f32
    %306 = vector.broadcast %cst_79 : f32 to vector<8x8x31xf32>
    %307 = arith.mulf %306, %233 : vector<8x8x31xf32>
    %308 = arith.addf %305, %307 : vector<8x8x31xf32>
    %cst_80 = arith.constant 5.937500e-01 : f32
    %309 = vector.broadcast %cst_80 : f32 to vector<8x8x31xf32>
    %310 = arith.mulf %309, %261 : vector<8x8x31xf32>
    %311 = arith.addf %308, %310 : vector<8x8x31xf32>
    %312 = vector.extract_strided_slice %261 {offsets = [7, 0, 0], sizes = [1, 8, 31], strides = [1, 1, 1]} : vector<8x8x31xf32> to vector<1x8x31xf32>
    %313 = vector.extract_strided_slice %177 {offsets = [1, 0, 0], sizes = [7, 8, 31], strides = [1, 1, 1]} : vector<8x8x31xf32> to vector<7x8x31xf32>
    %314 = tpu.concatenate %313, %312 in 0 : vector<7x8x31xf32>, vector<1x8x31xf32> -> vector<8x8x31xf32>
    %cst_81 = arith.constant -9.375000e-02 : f32
    %315 = vector.broadcast %cst_81 : f32 to vector<8x8x31xf32>
    %316 = arith.mulf %315, %314 : vector<8x8x31xf32>
    %317 = arith.addf %311, %316 : vector<8x8x31xf32>
    %318 = vector.shape_cast %72 : vector<8x8xf32> to vector<8x8x1xf32>
    %319 = tpu.concatenate %318, %275, %140 in 2 : vector<8x8x1xf32>, vector<8x8x31xf32>, vector<8x8x32xf32> -> vector<8x8x64xf32>
    %320 = vector.shape_cast %73 : vector<8x8xf32> to vector<8x8x1xf32>
    %321 = tpu.concatenate %320, %303, %147 in 2 : vector<8x8x1xf32>, vector<8x8x31xf32>, vector<8x8x32xf32> -> vector<8x8x64xf32>
    %322 = vector.shape_cast %74 : vector<8x8xf32> to vector<8x8x1xf32>
    %323 = tpu.concatenate %322, %289, %142 in 2 : vector<8x8x1xf32>, vector<8x8x31xf32>, vector<8x8x32xf32> -> vector<8x8x64xf32>
    %324 = vector.shape_cast %75 : vector<8x8xf32> to vector<8x8x1xf32>
    %325 = tpu.concatenate %324, %317, %149 in 2 : vector<8x8x1xf32>, vector<8x8x31xf32>, vector<8x8x32xf32> -> vector<8x8x64xf32>
    %cst_82 = arith.constant 0.000000e+00 : f32
    %326 = vector.broadcast %cst_82 : f32 to vector<8x2x64xf32>
    %cst_83 = arith.constant 0.000000e+00 : f32
    %327 = vector.broadcast %cst_83 : f32 to vector<8x1x64xf32>
    %328 = tpu.concatenate %326, %325, %327 in 1 : vector<8x2x64xf32>, vector<8x8x64xf32>, vector<8x1x64xf32> -> vector<8x11x64xf32>
    %cst_84 = arith.constant 0.000000e+00 : f32
    %329 = vector.broadcast %cst_84 : f32 to vector<2x11x64xf32>
    %cst_85 = arith.constant 0.000000e+00 : f32
    %330 = vector.broadcast %cst_85 : f32 to vector<1x11x64xf32>
    %331 = tpu.concatenate %329, %328, %330 in 0 : vector<2x11x64xf32>, vector<8x11x64xf32>, vector<1x11x64xf32> -> vector<11x11x64xf32>
    %cst_86 = arith.constant 0.000000e+00 : f32
    %332 = vector.broadcast %cst_86 : f32 to vector<8x1x64xf32>
    %cst_87 = arith.constant 0.000000e+00 : f32
    %333 = vector.broadcast %cst_87 : f32 to vector<8x2x64xf32>
    %334 = tpu.concatenate %332, %323, %333 in 1 : vector<8x1x64xf32>, vector<8x8x64xf32>, vector<8x2x64xf32> -> vector<8x11x64xf32>
    %cst_88 = arith.constant 0.000000e+00 : f32
    %335 = vector.broadcast %cst_88 : f32 to vector<2x11x64xf32>
    %cst_89 = arith.constant 0.000000e+00 : f32
    %336 = vector.broadcast %cst_89 : f32 to vector<1x11x64xf32>
    %337 = tpu.concatenate %335, %334, %336 in 0 : vector<2x11x64xf32>, vector<8x11x64xf32>, vector<1x11x64xf32> -> vector<11x11x64xf32>
    %cst_90 = arith.constant 0.000000e+00 : f32
    %338 = vector.broadcast %cst_90 : f32 to vector<8x2x64xf32>
    %cst_91 = arith.constant 0.000000e+00 : f32
    %339 = vector.broadcast %cst_91 : f32 to vector<8x1x64xf32>
    %340 = tpu.concatenate %338, %321, %339 in 1 : vector<8x2x64xf32>, vector<8x8x64xf32>, vector<8x1x64xf32> -> vector<8x11x64xf32>
    %cst_92 = arith.constant 0.000000e+00 : f32
    %341 = vector.broadcast %cst_92 : f32 to vector<1x11x64xf32>
    %cst_93 = arith.constant 0.000000e+00 : f32
    %342 = vector.broadcast %cst_93 : f32 to vector<2x11x64xf32>
    %343 = tpu.concatenate %341, %340, %342 in 0 : vector<1x11x64xf32>, vector<8x11x64xf32>, vector<2x11x64xf32> -> vector<11x11x64xf32>
    %cst_94 = arith.constant 0.000000e+00 : f32
    %344 = vector.broadcast %cst_94 : f32 to vector<8x1x64xf32>
    %cst_95 = arith.constant 0.000000e+00 : f32
    %345 = vector.broadcast %cst_95 : f32 to vector<8x2x64xf32>
    %346 = tpu.concatenate %344, %319, %345 in 1 : vector<8x1x64xf32>, vector<8x8x64xf32>, vector<8x2x64xf32> -> vector<8x11x64xf32>
    %cst_96 = arith.constant 0.000000e+00 : f32
    %347 = vector.broadcast %cst_96 : f32 to vector<1x11x64xf32>
    %cst_97 = arith.constant 0.000000e+00 : f32
    %348 = vector.broadcast %cst_97 : f32 to vector<2x11x64xf32>
    %349 = tpu.concatenate %347, %346, %348 in 0 : vector<1x11x64xf32>, vector<8x11x64xf32>, vector<2x11x64xf32> -> vector<11x11x64xf32>
    %cst_98 = arith.constant 0.000000e+00 : f32
    %350 = vector.broadcast %cst_98 : f32 to vector<8x8x64xf32>
    %c0_99 = arith.constant 0 : index
    %c0_100 = arith.constant 0 : index
    %351 = vector.load %arg6[%c0_99, %c0_100] : memref<1x64xf32, #tpu.memory_space<vmem>>, vector<1x64xf32>
    %352 = vector.shape_cast %351 : vector<1x64xf32> to vector<1x1x64xf32>
    %353 = vector.broadcast %352 : vector<1x1x64xf32> to vector<8x8x64xf32>
    %354 = arith.addf %350, %353 : vector<8x8x64xf32>
    %355 = vector.extract_strided_slice %331 {offsets = [0, 0, 0], sizes = [8, 8, 64], strides = [1, 1, 1]} : vector<11x11x64xf32> to vector<8x8x64xf32>
    %c0_101 = arith.constant 0 : index
    %c0_102 = arith.constant 0 : index
    %356 = vector.load %arg5[%c0_101, %c0_102] : memref<49x64xf32, #tpu.memory_space<vmem>>, vector<1x64xf32>
    %357 = vector.shape_cast %356 : vector<1x64xf32> to vector<1x1x64xf32>
    %358 = vector.broadcast %357 : vector<1x1x64xf32> to vector<8x8x64xf32>
    %359 = arith.mulf %355, %358 : vector<8x8x64xf32>
    %360 = arith.addf %354, %359 : vector<8x8x64xf32>
    %361 = vector.extract_strided_slice %337 {offsets = [0, 0, 0], sizes = [8, 8, 64], strides = [1, 1, 1]} : vector<11x11x64xf32> to vector<8x8x64xf32>
    %c1 = arith.constant 1 : index
    %c0_103 = arith.constant 0 : index
    %362 = vector.load %arg5[%c1, %c0_103] : memref<49x64xf32, #tpu.memory_space<vmem>>, vector<1x64xf32>
    %363 = vector.shape_cast %362 : vector<1x64xf32> to vector<1x1x64xf32>
    %364 = vector.broadcast %363 : vector<1x1x64xf32> to vector<8x8x64xf32>
    %365 = arith.mulf %361, %364 : vector<8x8x64xf32>
    %366 = arith.addf %360, %365 : vector<8x8x64xf32>
    %367 = vector.extract_strided_slice %331 {offsets = [0, 1, 0], sizes = [8, 8, 64], strides = [1, 1, 1]} : vector<11x11x64xf32> to vector<8x8x64xf32>
    %c2 = arith.constant 2 : index
    %c0_104 = arith.constant 0 : index
    %368 = vector.load %arg5[%c2, %c0_104] : memref<49x64xf32, #tpu.memory_space<vmem>>, vector<1x64xf32>
    %369 = vector.shape_cast %368 : vector<1x64xf32> to vector<1x1x64xf32>
    %370 = vector.broadcast %369 : vector<1x1x64xf32> to vector<8x8x64xf32>
    %371 = arith.mulf %367, %370 : vector<8x8x64xf32>
    %372 = arith.addf %366, %371 : vector<8x8x64xf32>
    %373 = vector.extract_strided_slice %337 {offsets = [0, 1, 0], sizes = [8, 8, 64], strides = [1, 1, 1]} : vector<11x11x64xf32> to vector<8x8x64xf32>
    %c3 = arith.constant 3 : index
    %c0_105 = arith.constant 0 : index
    %374 = vector.load %arg5[%c3, %c0_105] : memref<49x64xf32, #tpu.memory_space<vmem>>, vector<1x64xf32>
    %375 = vector.shape_cast %374 : vector<1x64xf32> to vector<1x1x64xf32>
    %376 = vector.broadcast %375 : vector<1x1x64xf32> to vector<8x8x64xf32>
    %377 = arith.mulf %373, %376 : vector<8x8x64xf32>
    %378 = arith.addf %372, %377 : vector<8x8x64xf32>
    %379 = vector.extract_strided_slice %331 {offsets = [0, 2, 0], sizes = [8, 8, 64], strides = [1, 1, 1]} : vector<11x11x64xf32> to vector<8x8x64xf32>
    %c4 = arith.constant 4 : index
    %c0_106 = arith.constant 0 : index
    %380 = vector.load %arg5[%c4, %c0_106] : memref<49x64xf32, #tpu.memory_space<vmem>>, vector<1x64xf32>
    %381 = vector.shape_cast %380 : vector<1x64xf32> to vector<1x1x64xf32>
    %382 = vector.broadcast %381 : vector<1x1x64xf32> to vector<8x8x64xf32>
    %383 = arith.mulf %379, %382 : vector<8x8x64xf32>
    %384 = arith.addf %378, %383 : vector<8x8x64xf32>
    %385 = vector.extract_strided_slice %337 {offsets = [0, 2, 0], sizes = [8, 8, 64], strides = [1, 1, 1]} : vector<11x11x64xf32> to vector<8x8x64xf32>
    %c5 = arith.constant 5 : index
    %c0_107 = arith.constant 0 : index
    %386 = vector.load %arg5[%c5, %c0_107] : memref<49x64xf32, #tpu.memory_space<vmem>>, vector<1x64xf32>
    %387 = vector.shape_cast %386 : vector<1x64xf32> to vector<1x1x64xf32>
    %388 = vector.broadcast %387 : vector<1x1x64xf32> to vector<8x8x64xf32>
    %389 = arith.mulf %385, %388 : vector<8x8x64xf32>
    %390 = arith.addf %384, %389 : vector<8x8x64xf32>
    %391 = vector.extract_strided_slice %331 {offsets = [0, 3, 0], sizes = [8, 8, 64], strides = [1, 1, 1]} : vector<11x11x64xf32> to vector<8x8x64xf32>
    %c6 = arith.constant 6 : index
    %c0_108 = arith.constant 0 : index
    %392 = vector.load %arg5[%c6, %c0_108] : memref<49x64xf32, #tpu.memory_space<vmem>>, vector<1x64xf32>
    %393 = vector.shape_cast %392 : vector<1x64xf32> to vector<1x1x64xf32>
    %394 = vector.broadcast %393 : vector<1x1x64xf32> to vector<8x8x64xf32>
    %395 = arith.mulf %391, %394 : vector<8x8x64xf32>
    %396 = arith.addf %390, %395 : vector<8x8x64xf32>
    %397 = vector.extract_strided_slice %343 {offsets = [0, 0, 0], sizes = [8, 8, 64], strides = [1, 1, 1]} : vector<11x11x64xf32> to vector<8x8x64xf32>
    %c7 = arith.constant 7 : index
    %c0_109 = arith.constant 0 : index
    %398 = vector.load %arg5[%c7, %c0_109] : memref<49x64xf32, #tpu.memory_space<vmem>>, vector<1x64xf32>
    %399 = vector.shape_cast %398 : vector<1x64xf32> to vector<1x1x64xf32>
    %400 = vector.broadcast %399 : vector<1x1x64xf32> to vector<8x8x64xf32>
    %401 = arith.mulf %397, %400 : vector<8x8x64xf32>
    %402 = arith.addf %396, %401 : vector<8x8x64xf32>
    %403 = vector.extract_strided_slice %349 {offsets = [0, 0, 0], sizes = [8, 8, 64], strides = [1, 1, 1]} : vector<11x11x64xf32> to vector<8x8x64xf32>
    %c8 = arith.constant 8 : index
    %c0_110 = arith.constant 0 : index
    %404 = vector.load %arg5[%c8, %c0_110] : memref<49x64xf32, #tpu.memory_space<vmem>>, vector<1x64xf32>
    %405 = vector.shape_cast %404 : vector<1x64xf32> to vector<1x1x64xf32>
    %406 = vector.broadcast %405 : vector<1x1x64xf32> to vector<8x8x64xf32>
    %407 = arith.mulf %403, %406 : vector<8x8x64xf32>
    %408 = arith.addf %402, %407 : vector<8x8x64xf32>
    %409 = vector.extract_strided_slice %343 {offsets = [0, 1, 0], sizes = [8, 8, 64], strides = [1, 1, 1]} : vector<11x11x64xf32> to vector<8x8x64xf32>
    %c9 = arith.constant 9 : index
    %c0_111 = arith.constant 0 : index
    %410 = vector.load %arg5[%c9, %c0_111] : memref<49x64xf32, #tpu.memory_space<vmem>>, vector<1x64xf32>
    %411 = vector.shape_cast %410 : vector<1x64xf32> to vector<1x1x64xf32>
    %412 = vector.broadcast %411 : vector<1x1x64xf32> to vector<8x8x64xf32>
    %413 = arith.mulf %409, %412 : vector<8x8x64xf32>
    %414 = arith.addf %408, %413 : vector<8x8x64xf32>
    %415 = vector.extract_strided_slice %349 {offsets = [0, 1, 0], sizes = [8, 8, 64], strides = [1, 1, 1]} : vector<11x11x64xf32> to vector<8x8x64xf32>
    %c10 = arith.constant 10 : index
    %c0_112 = arith.constant 0 : index
    %416 = vector.load %arg5[%c10, %c0_112] : memref<49x64xf32, #tpu.memory_space<vmem>>, vector<1x64xf32>
    %417 = vector.shape_cast %416 : vector<1x64xf32> to vector<1x1x64xf32>
    %418 = vector.broadcast %417 : vector<1x1x64xf32> to vector<8x8x64xf32>
    %419 = arith.mulf %415, %418 : vector<8x8x64xf32>
    %420 = arith.addf %414, %419 : vector<8x8x64xf32>
    %421 = vector.extract_strided_slice %343 {offsets = [0, 2, 0], sizes = [8, 8, 64], strides = [1, 1, 1]} : vector<11x11x64xf32> to vector<8x8x64xf32>
    %c11 = arith.constant 11 : index
    %c0_113 = arith.constant 0 : index
    %422 = vector.load %arg5[%c11, %c0_113] : memref<49x64xf32, #tpu.memory_space<vmem>>, vector<1x64xf32>
    %423 = vector.shape_cast %422 : vector<1x64xf32> to vector<1x1x64xf32>
    %424 = vector.broadcast %423 : vector<1x1x64xf32> to vector<8x8x64xf32>
    %425 = arith.mulf %421, %424 : vector<8x8x64xf32>
    %426 = arith.addf %420, %425 : vector<8x8x64xf32>
    %427 = vector.extract_strided_slice %349 {offsets = [0, 2, 0], sizes = [8, 8, 64], strides = [1, 1, 1]} : vector<11x11x64xf32> to vector<8x8x64xf32>
    %c12 = arith.constant 12 : index
    %c0_114 = arith.constant 0 : index
    %428 = vector.load %arg5[%c12, %c0_114] : memref<49x64xf32, #tpu.memory_space<vmem>>, vector<1x64xf32>
    %429 = vector.shape_cast %428 : vector<1x64xf32> to vector<1x1x64xf32>
    %430 = vector.broadcast %429 : vector<1x1x64xf32> to vector<8x8x64xf32>
    %431 = arith.mulf %427, %430 : vector<8x8x64xf32>
    %432 = arith.addf %426, %431 : vector<8x8x64xf32>
    %433 = vector.extract_strided_slice %343 {offsets = [0, 3, 0], sizes = [8, 8, 64], strides = [1, 1, 1]} : vector<11x11x64xf32> to vector<8x8x64xf32>
    %c13 = arith.constant 13 : index
    %c0_115 = arith.constant 0 : index
    %434 = vector.load %arg5[%c13, %c0_115] : memref<49x64xf32, #tpu.memory_space<vmem>>, vector<1x64xf32>
    %435 = vector.shape_cast %434 : vector<1x64xf32> to vector<1x1x64xf32>
    %436 = vector.broadcast %435 : vector<1x1x64xf32> to vector<8x8x64xf32>
    %437 = arith.mulf %433, %436 : vector<8x8x64xf32>
    %438 = arith.addf %432, %437 : vector<8x8x64xf32>
    %439 = vector.extract_strided_slice %331 {offsets = [1, 0, 0], sizes = [8, 8, 64], strides = [1, 1, 1]} : vector<11x11x64xf32> to vector<8x8x64xf32>
    %c14 = arith.constant 14 : index
    %c0_116 = arith.constant 0 : index
    %440 = vector.load %arg5[%c14, %c0_116] : memref<49x64xf32, #tpu.memory_space<vmem>>, vector<1x64xf32>
    %441 = vector.shape_cast %440 : vector<1x64xf32> to vector<1x1x64xf32>
    %442 = vector.broadcast %441 : vector<1x1x64xf32> to vector<8x8x64xf32>
    %443 = arith.mulf %439, %442 : vector<8x8x64xf32>
    %444 = arith.addf %438, %443 : vector<8x8x64xf32>
    %445 = vector.extract_strided_slice %337 {offsets = [1, 0, 0], sizes = [8, 8, 64], strides = [1, 1, 1]} : vector<11x11x64xf32> to vector<8x8x64xf32>
    %c15 = arith.constant 15 : index
    %c0_117 = arith.constant 0 : index
    %446 = vector.load %arg5[%c15, %c0_117] : memref<49x64xf32, #tpu.memory_space<vmem>>, vector<1x64xf32>
    %447 = vector.shape_cast %446 : vector<1x64xf32> to vector<1x1x64xf32>
    %448 = vector.broadcast %447 : vector<1x1x64xf32> to vector<8x8x64xf32>
    %449 = arith.mulf %445, %448 : vector<8x8x64xf32>
    %450 = arith.addf %444, %449 : vector<8x8x64xf32>
    %451 = vector.extract_strided_slice %331 {offsets = [1, 1, 0], sizes = [8, 8, 64], strides = [1, 1, 1]} : vector<11x11x64xf32> to vector<8x8x64xf32>
    %c16 = arith.constant 16 : index
    %c0_118 = arith.constant 0 : index
    %452 = vector.load %arg5[%c16, %c0_118] : memref<49x64xf32, #tpu.memory_space<vmem>>, vector<1x64xf32>
    %453 = vector.shape_cast %452 : vector<1x64xf32> to vector<1x1x64xf32>
    %454 = vector.broadcast %453 : vector<1x1x64xf32> to vector<8x8x64xf32>
    %455 = arith.mulf %451, %454 : vector<8x8x64xf32>
    %456 = arith.addf %450, %455 : vector<8x8x64xf32>
    %457 = vector.extract_strided_slice %337 {offsets = [1, 1, 0], sizes = [8, 8, 64], strides = [1, 1, 1]} : vector<11x11x64xf32> to vector<8x8x64xf32>
    %c17 = arith.constant 17 : index
    %c0_119 = arith.constant 0 : index
    %458 = vector.load %arg5[%c17, %c0_119] : memref<49x64xf32, #tpu.memory_space<vmem>>, vector<1x64xf32>
    %459 = vector.shape_cast %458 : vector<1x64xf32> to vector<1x1x64xf32>
    %460 = vector.broadcast %459 : vector<1x1x64xf32> to vector<8x8x64xf32>
    %461 = arith.mulf %457, %460 : vector<8x8x64xf32>
    %462 = arith.addf %456, %461 : vector<8x8x64xf32>
    %463 = vector.extract_strided_slice %331 {offsets = [1, 2, 0], sizes = [8, 8, 64], strides = [1, 1, 1]} : vector<11x11x64xf32> to vector<8x8x64xf32>
    %c18 = arith.constant 18 : index
    %c0_120 = arith.constant 0 : index
    %464 = vector.load %arg5[%c18, %c0_120] : memref<49x64xf32, #tpu.memory_space<vmem>>, vector<1x64xf32>
    %465 = vector.shape_cast %464 : vector<1x64xf32> to vector<1x1x64xf32>
    %466 = vector.broadcast %465 : vector<1x1x64xf32> to vector<8x8x64xf32>
    %467 = arith.mulf %463, %466 : vector<8x8x64xf32>
    %468 = arith.addf %462, %467 : vector<8x8x64xf32>
    %469 = vector.extract_strided_slice %337 {offsets = [1, 2, 0], sizes = [8, 8, 64], strides = [1, 1, 1]} : vector<11x11x64xf32> to vector<8x8x64xf32>
    %c19 = arith.constant 19 : index
    %c0_121 = arith.constant 0 : index
    %470 = vector.load %arg5[%c19, %c0_121] : memref<49x64xf32, #tpu.memory_space<vmem>>, vector<1x64xf32>
    %471 = vector.shape_cast %470 : vector<1x64xf32> to vector<1x1x64xf32>
    %472 = vector.broadcast %471 : vector<1x1x64xf32> to vector<8x8x64xf32>
    %473 = arith.mulf %469, %472 : vector<8x8x64xf32>
    %474 = arith.addf %468, %473 : vector<8x8x64xf32>
    %475 = vector.extract_strided_slice %331 {offsets = [1, 3, 0], sizes = [8, 8, 64], strides = [1, 1, 1]} : vector<11x11x64xf32> to vector<8x8x64xf32>
    %c20 = arith.constant 20 : index
    %c0_122 = arith.constant 0 : index
    %476 = vector.load %arg5[%c20, %c0_122] : memref<49x64xf32, #tpu.memory_space<vmem>>, vector<1x64xf32>
    %477 = vector.shape_cast %476 : vector<1x64xf32> to vector<1x1x64xf32>
    %478 = vector.broadcast %477 : vector<1x1x64xf32> to vector<8x8x64xf32>
    %479 = arith.mulf %475, %478 : vector<8x8x64xf32>
    %480 = arith.addf %474, %479 : vector<8x8x64xf32>
    %481 = vector.extract_strided_slice %343 {offsets = [1, 0, 0], sizes = [8, 8, 64], strides = [1, 1, 1]} : vector<11x11x64xf32> to vector<8x8x64xf32>
    %c21 = arith.constant 21 : index
    %c0_123 = arith.constant 0 : index
    %482 = vector.load %arg5[%c21, %c0_123] : memref<49x64xf32, #tpu.memory_space<vmem>>, vector<1x64xf32>
    %483 = vector.shape_cast %482 : vector<1x64xf32> to vector<1x1x64xf32>
    %484 = vector.broadcast %483 : vector<1x1x64xf32> to vector<8x8x64xf32>
    %485 = arith.mulf %481, %484 : vector<8x8x64xf32>
    %486 = arith.addf %480, %485 : vector<8x8x64xf32>
    %487 = vector.extract_strided_slice %349 {offsets = [1, 0, 0], sizes = [8, 8, 64], strides = [1, 1, 1]} : vector<11x11x64xf32> to vector<8x8x64xf32>
    %c22 = arith.constant 22 : index
    %c0_124 = arith.constant 0 : index
    %488 = vector.load %arg5[%c22, %c0_124] : memref<49x64xf32, #tpu.memory_space<vmem>>, vector<1x64xf32>
    %489 = vector.shape_cast %488 : vector<1x64xf32> to vector<1x1x64xf32>
    %490 = vector.broadcast %489 : vector<1x1x64xf32> to vector<8x8x64xf32>
    %491 = arith.mulf %487, %490 : vector<8x8x64xf32>
    %492 = arith.addf %486, %491 : vector<8x8x64xf32>
    %493 = vector.extract_strided_slice %343 {offsets = [1, 1, 0], sizes = [8, 8, 64], strides = [1, 1, 1]} : vector<11x11x64xf32> to vector<8x8x64xf32>
    %c23 = arith.constant 23 : index
    %c0_125 = arith.constant 0 : index
    %494 = vector.load %arg5[%c23, %c0_125] : memref<49x64xf32, #tpu.memory_space<vmem>>, vector<1x64xf32>
    %495 = vector.shape_cast %494 : vector<1x64xf32> to vector<1x1x64xf32>
    %496 = vector.broadcast %495 : vector<1x1x64xf32> to vector<8x8x64xf32>
    %497 = arith.mulf %493, %496 : vector<8x8x64xf32>
    %498 = arith.addf %492, %497 : vector<8x8x64xf32>
    %499 = vector.extract_strided_slice %349 {offsets = [1, 1, 0], sizes = [8, 8, 64], strides = [1, 1, 1]} : vector<11x11x64xf32> to vector<8x8x64xf32>
    %c24 = arith.constant 24 : index
    %c0_126 = arith.constant 0 : index
    %500 = vector.load %arg5[%c24, %c0_126] : memref<49x64xf32, #tpu.memory_space<vmem>>, vector<1x64xf32>
    %501 = vector.shape_cast %500 : vector<1x64xf32> to vector<1x1x64xf32>
    %502 = vector.broadcast %501 : vector<1x1x64xf32> to vector<8x8x64xf32>
    %503 = arith.mulf %499, %502 : vector<8x8x64xf32>
    %504 = arith.addf %498, %503 : vector<8x8x64xf32>
    %505 = vector.extract_strided_slice %343 {offsets = [1, 2, 0], sizes = [8, 8, 64], strides = [1, 1, 1]} : vector<11x11x64xf32> to vector<8x8x64xf32>
    %c25 = arith.constant 25 : index
    %c0_127 = arith.constant 0 : index
    %506 = vector.load %arg5[%c25, %c0_127] : memref<49x64xf32, #tpu.memory_space<vmem>>, vector<1x64xf32>
    %507 = vector.shape_cast %506 : vector<1x64xf32> to vector<1x1x64xf32>
    %508 = vector.broadcast %507 : vector<1x1x64xf32> to vector<8x8x64xf32>
    %509 = arith.mulf %505, %508 : vector<8x8x64xf32>
    %510 = arith.addf %504, %509 : vector<8x8x64xf32>
    %511 = vector.extract_strided_slice %349 {offsets = [1, 2, 0], sizes = [8, 8, 64], strides = [1, 1, 1]} : vector<11x11x64xf32> to vector<8x8x64xf32>
    %c26 = arith.constant 26 : index
    %c0_128 = arith.constant 0 : index
    %512 = vector.load %arg5[%c26, %c0_128] : memref<49x64xf32, #tpu.memory_space<vmem>>, vector<1x64xf32>
    %513 = vector.shape_cast %512 : vector<1x64xf32> to vector<1x1x64xf32>
    %514 = vector.broadcast %513 : vector<1x1x64xf32> to vector<8x8x64xf32>
    %515 = arith.mulf %511, %514 : vector<8x8x64xf32>
    %516 = arith.addf %510, %515 : vector<8x8x64xf32>
    %517 = vector.extract_strided_slice %343 {offsets = [1, 3, 0], sizes = [8, 8, 64], strides = [1, 1, 1]} : vector<11x11x64xf32> to vector<8x8x64xf32>
    %c27 = arith.constant 27 : index
    %c0_129 = arith.constant 0 : index
    %518 = vector.load %arg5[%c27, %c0_129] : memref<49x64xf32, #tpu.memory_space<vmem>>, vector<1x64xf32>
    %519 = vector.shape_cast %518 : vector<1x64xf32> to vector<1x1x64xf32>
    %520 = vector.broadcast %519 : vector<1x1x64xf32> to vector<8x8x64xf32>
    %521 = arith.mulf %517, %520 : vector<8x8x64xf32>
    %522 = arith.addf %516, %521 : vector<8x8x64xf32>
    %523 = vector.extract_strided_slice %331 {offsets = [2, 0, 0], sizes = [8, 8, 64], strides = [1, 1, 1]} : vector<11x11x64xf32> to vector<8x8x64xf32>
    %c28 = arith.constant 28 : index
    %c0_130 = arith.constant 0 : index
    %524 = vector.load %arg5[%c28, %c0_130] : memref<49x64xf32, #tpu.memory_space<vmem>>, vector<1x64xf32>
    %525 = vector.shape_cast %524 : vector<1x64xf32> to vector<1x1x64xf32>
    %526 = vector.broadcast %525 : vector<1x1x64xf32> to vector<8x8x64xf32>
    %527 = arith.mulf %523, %526 : vector<8x8x64xf32>
    %528 = arith.addf %522, %527 : vector<8x8x64xf32>
    %529 = vector.extract_strided_slice %337 {offsets = [2, 0, 0], sizes = [8, 8, 64], strides = [1, 1, 1]} : vector<11x11x64xf32> to vector<8x8x64xf32>
    %c29 = arith.constant 29 : index
    %c0_131 = arith.constant 0 : index
    %530 = vector.load %arg5[%c29, %c0_131] : memref<49x64xf32, #tpu.memory_space<vmem>>, vector<1x64xf32>
    %531 = vector.shape_cast %530 : vector<1x64xf32> to vector<1x1x64xf32>
    %532 = vector.broadcast %531 : vector<1x1x64xf32> to vector<8x8x64xf32>
    %533 = arith.mulf %529, %532 : vector<8x8x64xf32>
    %534 = arith.addf %528, %533 : vector<8x8x64xf32>
    %535 = vector.extract_strided_slice %331 {offsets = [2, 1, 0], sizes = [8, 8, 64], strides = [1, 1, 1]} : vector<11x11x64xf32> to vector<8x8x64xf32>
    %c30 = arith.constant 30 : index
    %c0_132 = arith.constant 0 : index
    %536 = vector.load %arg5[%c30, %c0_132] : memref<49x64xf32, #tpu.memory_space<vmem>>, vector<1x64xf32>
    %537 = vector.shape_cast %536 : vector<1x64xf32> to vector<1x1x64xf32>
    %538 = vector.broadcast %537 : vector<1x1x64xf32> to vector<8x8x64xf32>
    %539 = arith.mulf %535, %538 : vector<8x8x64xf32>
    %540 = arith.addf %534, %539 : vector<8x8x64xf32>
    %541 = vector.extract_strided_slice %337 {offsets = [2, 1, 0], sizes = [8, 8, 64], strides = [1, 1, 1]} : vector<11x11x64xf32> to vector<8x8x64xf32>
    %c31 = arith.constant 31 : index
    %c0_133 = arith.constant 0 : index
    %542 = vector.load %arg5[%c31, %c0_133] : memref<49x64xf32, #tpu.memory_space<vmem>>, vector<1x64xf32>
    %543 = vector.shape_cast %542 : vector<1x64xf32> to vector<1x1x64xf32>
    %544 = vector.broadcast %543 : vector<1x1x64xf32> to vector<8x8x64xf32>
    %545 = arith.mulf %541, %544 : vector<8x8x64xf32>
    %546 = arith.addf %540, %545 : vector<8x8x64xf32>
    %547 = vector.extract_strided_slice %331 {offsets = [2, 2, 0], sizes = [8, 8, 64], strides = [1, 1, 1]} : vector<11x11x64xf32> to vector<8x8x64xf32>
    %c32 = arith.constant 32 : index
    %c0_134 = arith.constant 0 : index
    %548 = vector.load %arg5[%c32, %c0_134] : memref<49x64xf32, #tpu.memory_space<vmem>>, vector<1x64xf32>
    %549 = vector.shape_cast %548 : vector<1x64xf32> to vector<1x1x64xf32>
    %550 = vector.broadcast %549 : vector<1x1x64xf32> to vector<8x8x64xf32>
    %551 = arith.mulf %547, %550 : vector<8x8x64xf32>
    %552 = arith.addf %546, %551 : vector<8x8x64xf32>
    %553 = vector.extract_strided_slice %337 {offsets = [2, 2, 0], sizes = [8, 8, 64], strides = [1, 1, 1]} : vector<11x11x64xf32> to vector<8x8x64xf32>
    %c33 = arith.constant 33 : index
    %c0_135 = arith.constant 0 : index
    %554 = vector.load %arg5[%c33, %c0_135] : memref<49x64xf32, #tpu.memory_space<vmem>>, vector<1x64xf32>
    %555 = vector.shape_cast %554 : vector<1x64xf32> to vector<1x1x64xf32>
    %556 = vector.broadcast %555 : vector<1x1x64xf32> to vector<8x8x64xf32>
    %557 = arith.mulf %553, %556 : vector<8x8x64xf32>
    %558 = arith.addf %552, %557 : vector<8x8x64xf32>
    %559 = vector.extract_strided_slice %331 {offsets = [2, 3, 0], sizes = [8, 8, 64], strides = [1, 1, 1]} : vector<11x11x64xf32> to vector<8x8x64xf32>
    %c34 = arith.constant 34 : index
    %c0_136 = arith.constant 0 : index
    %560 = vector.load %arg5[%c34, %c0_136] : memref<49x64xf32, #tpu.memory_space<vmem>>, vector<1x64xf32>
    %561 = vector.shape_cast %560 : vector<1x64xf32> to vector<1x1x64xf32>
    %562 = vector.broadcast %561 : vector<1x1x64xf32> to vector<8x8x64xf32>
    %563 = arith.mulf %559, %562 : vector<8x8x64xf32>
    %564 = arith.addf %558, %563 : vector<8x8x64xf32>
    %565 = vector.extract_strided_slice %343 {offsets = [2, 0, 0], sizes = [8, 8, 64], strides = [1, 1, 1]} : vector<11x11x64xf32> to vector<8x8x64xf32>
    %c35 = arith.constant 35 : index
    %c0_137 = arith.constant 0 : index
    %566 = vector.load %arg5[%c35, %c0_137] : memref<49x64xf32, #tpu.memory_space<vmem>>, vector<1x64xf32>
    %567 = vector.shape_cast %566 : vector<1x64xf32> to vector<1x1x64xf32>
    %568 = vector.broadcast %567 : vector<1x1x64xf32> to vector<8x8x64xf32>
    %569 = arith.mulf %565, %568 : vector<8x8x64xf32>
    %570 = arith.addf %564, %569 : vector<8x8x64xf32>
    %571 = vector.extract_strided_slice %349 {offsets = [2, 0, 0], sizes = [8, 8, 64], strides = [1, 1, 1]} : vector<11x11x64xf32> to vector<8x8x64xf32>
    %c36 = arith.constant 36 : index
    %c0_138 = arith.constant 0 : index
    %572 = vector.load %arg5[%c36, %c0_138] : memref<49x64xf32, #tpu.memory_space<vmem>>, vector<1x64xf32>
    %573 = vector.shape_cast %572 : vector<1x64xf32> to vector<1x1x64xf32>
    %574 = vector.broadcast %573 : vector<1x1x64xf32> to vector<8x8x64xf32>
    %575 = arith.mulf %571, %574 : vector<8x8x64xf32>
    %576 = arith.addf %570, %575 : vector<8x8x64xf32>
    %577 = vector.extract_strided_slice %343 {offsets = [2, 1, 0], sizes = [8, 8, 64], strides = [1, 1, 1]} : vector<11x11x64xf32> to vector<8x8x64xf32>
    %c37 = arith.constant 37 : index
    %c0_139 = arith.constant 0 : index
    %578 = vector.load %arg5[%c37, %c0_139] : memref<49x64xf32, #tpu.memory_space<vmem>>, vector<1x64xf32>
    %579 = vector.shape_cast %578 : vector<1x64xf32> to vector<1x1x64xf32>
    %580 = vector.broadcast %579 : vector<1x1x64xf32> to vector<8x8x64xf32>
    %581 = arith.mulf %577, %580 : vector<8x8x64xf32>
    %582 = arith.addf %576, %581 : vector<8x8x64xf32>
    %583 = vector.extract_strided_slice %349 {offsets = [2, 1, 0], sizes = [8, 8, 64], strides = [1, 1, 1]} : vector<11x11x64xf32> to vector<8x8x64xf32>
    %c38 = arith.constant 38 : index
    %c0_140 = arith.constant 0 : index
    %584 = vector.load %arg5[%c38, %c0_140] : memref<49x64xf32, #tpu.memory_space<vmem>>, vector<1x64xf32>
    %585 = vector.shape_cast %584 : vector<1x64xf32> to vector<1x1x64xf32>
    %586 = vector.broadcast %585 : vector<1x1x64xf32> to vector<8x8x64xf32>
    %587 = arith.mulf %583, %586 : vector<8x8x64xf32>
    %588 = arith.addf %582, %587 : vector<8x8x64xf32>
    %589 = vector.extract_strided_slice %343 {offsets = [2, 2, 0], sizes = [8, 8, 64], strides = [1, 1, 1]} : vector<11x11x64xf32> to vector<8x8x64xf32>
    %c39 = arith.constant 39 : index
    %c0_141 = arith.constant 0 : index
    %590 = vector.load %arg5[%c39, %c0_141] : memref<49x64xf32, #tpu.memory_space<vmem>>, vector<1x64xf32>
    %591 = vector.shape_cast %590 : vector<1x64xf32> to vector<1x1x64xf32>
    %592 = vector.broadcast %591 : vector<1x1x64xf32> to vector<8x8x64xf32>
    %593 = arith.mulf %589, %592 : vector<8x8x64xf32>
    %594 = arith.addf %588, %593 : vector<8x8x64xf32>
    %595 = vector.extract_strided_slice %349 {offsets = [2, 2, 0], sizes = [8, 8, 64], strides = [1, 1, 1]} : vector<11x11x64xf32> to vector<8x8x64xf32>
    %c40 = arith.constant 40 : index
    %c0_142 = arith.constant 0 : index
    %596 = vector.load %arg5[%c40, %c0_142] : memref<49x64xf32, #tpu.memory_space<vmem>>, vector<1x64xf32>
    %597 = vector.shape_cast %596 : vector<1x64xf32> to vector<1x1x64xf32>
    %598 = vector.broadcast %597 : vector<1x1x64xf32> to vector<8x8x64xf32>
    %599 = arith.mulf %595, %598 : vector<8x8x64xf32>
    %600 = arith.addf %594, %599 : vector<8x8x64xf32>
    %601 = vector.extract_strided_slice %343 {offsets = [2, 3, 0], sizes = [8, 8, 64], strides = [1, 1, 1]} : vector<11x11x64xf32> to vector<8x8x64xf32>
    %c41 = arith.constant 41 : index
    %c0_143 = arith.constant 0 : index
    %602 = vector.load %arg5[%c41, %c0_143] : memref<49x64xf32, #tpu.memory_space<vmem>>, vector<1x64xf32>
    %603 = vector.shape_cast %602 : vector<1x64xf32> to vector<1x1x64xf32>
    %604 = vector.broadcast %603 : vector<1x1x64xf32> to vector<8x8x64xf32>
    %605 = arith.mulf %601, %604 : vector<8x8x64xf32>
    %606 = arith.addf %600, %605 : vector<8x8x64xf32>
    %607 = vector.extract_strided_slice %331 {offsets = [3, 0, 0], sizes = [8, 8, 64], strides = [1, 1, 1]} : vector<11x11x64xf32> to vector<8x8x64xf32>
    %c42 = arith.constant 42 : index
    %c0_144 = arith.constant 0 : index
    %608 = vector.load %arg5[%c42, %c0_144] : memref<49x64xf32, #tpu.memory_space<vmem>>, vector<1x64xf32>
    %609 = vector.shape_cast %608 : vector<1x64xf32> to vector<1x1x64xf32>
    %610 = vector.broadcast %609 : vector<1x1x64xf32> to vector<8x8x64xf32>
    %611 = arith.mulf %607, %610 : vector<8x8x64xf32>
    %612 = arith.addf %606, %611 : vector<8x8x64xf32>
    %613 = vector.extract_strided_slice %337 {offsets = [3, 0, 0], sizes = [8, 8, 64], strides = [1, 1, 1]} : vector<11x11x64xf32> to vector<8x8x64xf32>
    %c43 = arith.constant 43 : index
    %c0_145 = arith.constant 0 : index
    %614 = vector.load %arg5[%c43, %c0_145] : memref<49x64xf32, #tpu.memory_space<vmem>>, vector<1x64xf32>
    %615 = vector.shape_cast %614 : vector<1x64xf32> to vector<1x1x64xf32>
    %616 = vector.broadcast %615 : vector<1x1x64xf32> to vector<8x8x64xf32>
    %617 = arith.mulf %613, %616 : vector<8x8x64xf32>
    %618 = arith.addf %612, %617 : vector<8x8x64xf32>
    %619 = vector.extract_strided_slice %331 {offsets = [3, 1, 0], sizes = [8, 8, 64], strides = [1, 1, 1]} : vector<11x11x64xf32> to vector<8x8x64xf32>
    %c44 = arith.constant 44 : index
    %c0_146 = arith.constant 0 : index
    %620 = vector.load %arg5[%c44, %c0_146] : memref<49x64xf32, #tpu.memory_space<vmem>>, vector<1x64xf32>
    %621 = vector.shape_cast %620 : vector<1x64xf32> to vector<1x1x64xf32>
    %622 = vector.broadcast %621 : vector<1x1x64xf32> to vector<8x8x64xf32>
    %623 = arith.mulf %619, %622 : vector<8x8x64xf32>
    %624 = arith.addf %618, %623 : vector<8x8x64xf32>
    %625 = vector.extract_strided_slice %337 {offsets = [3, 1, 0], sizes = [8, 8, 64], strides = [1, 1, 1]} : vector<11x11x64xf32> to vector<8x8x64xf32>
    %c45 = arith.constant 45 : index
    %c0_147 = arith.constant 0 : index
    %626 = vector.load %arg5[%c45, %c0_147] : memref<49x64xf32, #tpu.memory_space<vmem>>, vector<1x64xf32>
    %627 = vector.shape_cast %626 : vector<1x64xf32> to vector<1x1x64xf32>
    %628 = vector.broadcast %627 : vector<1x1x64xf32> to vector<8x8x64xf32>
    %629 = arith.mulf %625, %628 : vector<8x8x64xf32>
    %630 = arith.addf %624, %629 : vector<8x8x64xf32>
    %631 = vector.extract_strided_slice %331 {offsets = [3, 2, 0], sizes = [8, 8, 64], strides = [1, 1, 1]} : vector<11x11x64xf32> to vector<8x8x64xf32>
    %c46 = arith.constant 46 : index
    %c0_148 = arith.constant 0 : index
    %632 = vector.load %arg5[%c46, %c0_148] : memref<49x64xf32, #tpu.memory_space<vmem>>, vector<1x64xf32>
    %633 = vector.shape_cast %632 : vector<1x64xf32> to vector<1x1x64xf32>
    %634 = vector.broadcast %633 : vector<1x1x64xf32> to vector<8x8x64xf32>
    %635 = arith.mulf %631, %634 : vector<8x8x64xf32>
    %636 = arith.addf %630, %635 : vector<8x8x64xf32>
    %637 = vector.extract_strided_slice %337 {offsets = [3, 2, 0], sizes = [8, 8, 64], strides = [1, 1, 1]} : vector<11x11x64xf32> to vector<8x8x64xf32>
    %c47 = arith.constant 47 : index
    %c0_149 = arith.constant 0 : index
    %638 = vector.load %arg5[%c47, %c0_149] : memref<49x64xf32, #tpu.memory_space<vmem>>, vector<1x64xf32>
    %639 = vector.shape_cast %638 : vector<1x64xf32> to vector<1x1x64xf32>
    %640 = vector.broadcast %639 : vector<1x1x64xf32> to vector<8x8x64xf32>
    %641 = arith.mulf %637, %640 : vector<8x8x64xf32>
    %642 = arith.addf %636, %641 : vector<8x8x64xf32>
    %643 = vector.extract_strided_slice %331 {offsets = [3, 3, 0], sizes = [8, 8, 64], strides = [1, 1, 1]} : vector<11x11x64xf32> to vector<8x8x64xf32>
    %c48 = arith.constant 48 : index
    %c0_150 = arith.constant 0 : index
    %644 = vector.load %arg5[%c48, %c0_150] : memref<49x64xf32, #tpu.memory_space<vmem>>, vector<1x64xf32>
    %645 = vector.shape_cast %644 : vector<1x64xf32> to vector<1x1x64xf32>
    %646 = vector.broadcast %645 : vector<1x1x64xf32> to vector<8x8x64xf32>
    %647 = arith.mulf %643, %646 : vector<8x8x64xf32>
    %648 = arith.addf %642, %647 : vector<8x8x64xf32>
    %649 = vector.shape_cast %648 : vector<8x8x64xf32> to vector<64x64xf32>
    %c0_151 = arith.constant 0 : index
    %c0_152 = arith.constant 0 : index
    %650 = vector.load %arg7[%c0_151, %c0_152] : memref<64x128xf32, #tpu.memory_space<vmem>>, vector<64x128xf32>
    %cst_153 = arith.constant dense<0.000000e+00> : vector<64x128xf32>
    %651 = tpu.matmul %649, %650, %cst_153 {dimension_numbers = #tpu.dot_dimension_numbers<[1], [0], [0], [1], [0, 0, 1, 1], [], []>} : vector<64x64xf32>, vector<64x128xf32>, vector<64x128xf32> -> vector<64x128xf32>
    %c0_154 = arith.constant 0 : index
    %c0_155 = arith.constant 0 : index
    %652 = vector.load %arg8[%c0_154, %c0_155] : memref<1x128xf32, #tpu.memory_space<vmem>>, vector<1x128xf32>
    %653 = vector.broadcast %652 : vector<1x128xf32> to vector<64x128xf32>
    %654 = arith.addf %651, %653 : vector<64x128xf32>
    %cst_156 = arith.constant 0.000000e+00 : f32
    %655 = vector.broadcast %cst_156 : f32 to vector<64x128xf32>
    %656 = arith.maximumf %654, %655 : vector<64x128xf32>
    %657 = vector.shape_cast %656 : vector<64x128xf32> to vector<8x8x128xf32>
    %cst_157 = arith.constant -9.375000e-02 : f32
    %658 = vector.broadcast %cst_157 : f32 to vector<8x8x31xf32>
    %659 = arith.mulf %658, %11 : vector<8x8x31xf32>
    %cst_158 = arith.constant 5.937500e-01 : f32
    %660 = vector.broadcast %cst_158 : f32 to vector<8x8x31xf32>
    %661 = arith.mulf %660, %13 : vector<8x8x31xf32>
    %662 = arith.addf %659, %661 : vector<8x8x31xf32>
    %cst_159 = arith.constant 5.937500e-01 : f32
    %663 = vector.broadcast %cst_159 : f32 to vector<8x8x31xf32>
    %664 = arith.mulf %663, %15 : vector<8x8x31xf32>
    %665 = arith.addf %662, %664 : vector<8x8x31xf32>
    %cst_160 = arith.constant -9.375000e-02 : f32
    %666 = vector.broadcast %cst_160 : f32 to vector<8x8x31xf32>
    %667 = arith.mulf %666, %17 : vector<8x8x31xf32>
    %668 = arith.addf %665, %667 : vector<8x8x31xf32>
    %cst_161 = arith.constant -9.375000e-02 : f32
    %669 = vector.broadcast %cst_161 : f32 to vector<8x8x31xf32>
    %670 = arith.mulf %669, %19 : vector<8x8x31xf32>
    %cst_162 = arith.constant 5.937500e-01 : f32
    %671 = vector.broadcast %cst_162 : f32 to vector<8x8x31xf32>
    %672 = arith.mulf %671, %21 : vector<8x8x31xf32>
    %673 = arith.addf %670, %672 : vector<8x8x31xf32>
    %cst_163 = arith.constant 5.937500e-01 : f32
    %674 = vector.broadcast %cst_163 : f32 to vector<8x8x31xf32>
    %675 = arith.mulf %674, %23 : vector<8x8x31xf32>
    %676 = arith.addf %673, %675 : vector<8x8x31xf32>
    %cst_164 = arith.constant -9.375000e-02 : f32
    %677 = vector.broadcast %cst_164 : f32 to vector<8x8x31xf32>
    %678 = arith.mulf %677, %25 : vector<8x8x31xf32>
    %679 = arith.addf %676, %678 : vector<8x8x31xf32>
    %cst_165 = arith.constant -9.375000e-02 : f32
    %680 = vector.broadcast %cst_165 : f32 to vector<8x8x31xf32>
    %681 = arith.mulf %680, %27 : vector<8x8x31xf32>
    %cst_166 = arith.constant 5.937500e-01 : f32
    %682 = vector.broadcast %cst_166 : f32 to vector<8x8x31xf32>
    %683 = arith.mulf %682, %29 : vector<8x8x31xf32>
    %684 = arith.addf %681, %683 : vector<8x8x31xf32>
    %cst_167 = arith.constant 5.937500e-01 : f32
    %685 = vector.broadcast %cst_167 : f32 to vector<8x8x31xf32>
    %686 = arith.mulf %685, %31 : vector<8x8x31xf32>
    %687 = arith.addf %684, %686 : vector<8x8x31xf32>
    %cst_168 = arith.constant -9.375000e-02 : f32
    %688 = vector.broadcast %cst_168 : f32 to vector<8x8x31xf32>
    %689 = arith.mulf %688, %33 : vector<8x8x31xf32>
    %690 = arith.addf %687, %689 : vector<8x8x31xf32>
    %cst_169 = arith.constant -9.375000e-02 : f32
    %691 = vector.broadcast %cst_169 : f32 to vector<8x8x31xf32>
    %692 = arith.mulf %691, %35 : vector<8x8x31xf32>
    %cst_170 = arith.constant 5.937500e-01 : f32
    %693 = vector.broadcast %cst_170 : f32 to vector<8x8x31xf32>
    %694 = arith.mulf %693, %37 : vector<8x8x31xf32>
    %695 = arith.addf %692, %694 : vector<8x8x31xf32>
    %cst_171 = arith.constant 5.937500e-01 : f32
    %696 = vector.broadcast %cst_171 : f32 to vector<8x8x31xf32>
    %697 = arith.mulf %696, %39 : vector<8x8x31xf32>
    %698 = arith.addf %695, %697 : vector<8x8x31xf32>
    %cst_172 = arith.constant -9.375000e-02 : f32
    %699 = vector.broadcast %cst_172 : f32 to vector<8x8x31xf32>
    %700 = arith.mulf %699, %41 : vector<8x8x31xf32>
    %701 = arith.addf %698, %700 : vector<8x8x31xf32>
    %cst_173 = arith.constant -9.375000e-02 : f32
    %702 = vector.broadcast %cst_173 : f32 to vector<8x8x31xf32>
    %703 = arith.mulf %702, %668 : vector<8x8x31xf32>
    %cst_174 = arith.constant 5.937500e-01 : f32
    %704 = vector.broadcast %cst_174 : f32 to vector<8x8x31xf32>
    %705 = arith.mulf %704, %679 : vector<8x8x31xf32>
    %706 = arith.addf %703, %705 : vector<8x8x31xf32>
    %cst_175 = arith.constant 5.937500e-01 : f32
    %707 = vector.broadcast %cst_175 : f32 to vector<8x8x31xf32>
    %708 = arith.mulf %707, %690 : vector<8x8x31xf32>
    %709 = arith.addf %706, %708 : vector<8x8x31xf32>
    %cst_176 = arith.constant -9.375000e-02 : f32
    %710 = vector.broadcast %cst_176 : f32 to vector<8x8x31xf32>
    %711 = arith.mulf %710, %701 : vector<8x8x31xf32>
    %712 = arith.addf %709, %711 : vector<8x8x31xf32>
    %713 = vector.extract_strided_slice %140 {offsets = [0, 0, 0], sizes = [8, 1, 32], strides = [1, 1, 1]} : vector<8x8x32xf32> to vector<8x1x32xf32>
    %714 = vector.extract_strided_slice %147 {offsets = [0, 0, 0], sizes = [8, 7, 32], strides = [1, 1, 1]} : vector<8x8x32xf32> to vector<8x7x32xf32>
    %715 = tpu.concatenate %713, %714 in 1 : vector<8x1x32xf32>, vector<8x7x32xf32> -> vector<8x8x32xf32>
    %cst_177 = arith.constant -9.375000e-02 : f32
    %716 = vector.broadcast %cst_177 : f32 to vector<8x8x32xf32>
    %717 = arith.mulf %716, %715 : vector<8x8x32xf32>
    %cst_178 = arith.constant 5.937500e-01 : f32
    %718 = vector.broadcast %cst_178 : f32 to vector<8x8x32xf32>
    %719 = arith.mulf %718, %140 : vector<8x8x32xf32>
    %720 = arith.addf %717, %719 : vector<8x8x32xf32>
    %cst_179 = arith.constant 5.937500e-01 : f32
    %721 = vector.broadcast %cst_179 : f32 to vector<8x8x32xf32>
    %722 = arith.mulf %721, %147 : vector<8x8x32xf32>
    %723 = arith.addf %720, %722 : vector<8x8x32xf32>
    %724 = vector.extract_strided_slice %147 {offsets = [0, 7, 0], sizes = [8, 1, 32], strides = [1, 1, 1]} : vector<8x8x32xf32> to vector<8x1x32xf32>
    %725 = vector.extract_strided_slice %140 {offsets = [0, 1, 0], sizes = [8, 7, 32], strides = [1, 1, 1]} : vector<8x8x32xf32> to vector<8x7x32xf32>
    %726 = tpu.concatenate %725, %724 in 1 : vector<8x7x32xf32>, vector<8x1x32xf32> -> vector<8x8x32xf32>
    %cst_180 = arith.constant -9.375000e-02 : f32
    %727 = vector.broadcast %cst_180 : f32 to vector<8x8x32xf32>
    %728 = arith.mulf %727, %726 : vector<8x8x32xf32>
    %729 = arith.addf %723, %728 : vector<8x8x32xf32>
    %730 = vector.extract_strided_slice %142 {offsets = [0, 0, 0], sizes = [8, 1, 32], strides = [1, 1, 1]} : vector<8x8x32xf32> to vector<8x1x32xf32>
    %731 = vector.extract_strided_slice %149 {offsets = [0, 0, 0], sizes = [8, 7, 32], strides = [1, 1, 1]} : vector<8x8x32xf32> to vector<8x7x32xf32>
    %732 = tpu.concatenate %730, %731 in 1 : vector<8x1x32xf32>, vector<8x7x32xf32> -> vector<8x8x32xf32>
    %cst_181 = arith.constant -9.375000e-02 : f32
    %733 = vector.broadcast %cst_181 : f32 to vector<8x8x32xf32>
    %734 = arith.mulf %733, %732 : vector<8x8x32xf32>
    %cst_182 = arith.constant 5.937500e-01 : f32
    %735 = vector.broadcast %cst_182 : f32 to vector<8x8x32xf32>
    %736 = arith.mulf %735, %142 : vector<8x8x32xf32>
    %737 = arith.addf %734, %736 : vector<8x8x32xf32>
    %cst_183 = arith.constant 5.937500e-01 : f32
    %738 = vector.broadcast %cst_183 : f32 to vector<8x8x32xf32>
    %739 = arith.mulf %738, %149 : vector<8x8x32xf32>
    %740 = arith.addf %737, %739 : vector<8x8x32xf32>
    %741 = vector.extract_strided_slice %149 {offsets = [0, 7, 0], sizes = [8, 1, 32], strides = [1, 1, 1]} : vector<8x8x32xf32> to vector<8x1x32xf32>
    %742 = vector.extract_strided_slice %142 {offsets = [0, 1, 0], sizes = [8, 7, 32], strides = [1, 1, 1]} : vector<8x8x32xf32> to vector<8x7x32xf32>
    %743 = tpu.concatenate %742, %741 in 1 : vector<8x7x32xf32>, vector<8x1x32xf32> -> vector<8x8x32xf32>
    %cst_184 = arith.constant -9.375000e-02 : f32
    %744 = vector.broadcast %cst_184 : f32 to vector<8x8x32xf32>
    %745 = arith.mulf %744, %743 : vector<8x8x32xf32>
    %746 = arith.addf %740, %745 : vector<8x8x32xf32>
    %747 = vector.extract_strided_slice %729 {offsets = [0, 0, 0], sizes = [1, 8, 32], strides = [1, 1, 1]} : vector<8x8x32xf32> to vector<1x8x32xf32>
    %748 = vector.extract_strided_slice %746 {offsets = [0, 0, 0], sizes = [7, 8, 32], strides = [1, 1, 1]} : vector<8x8x32xf32> to vector<7x8x32xf32>
    %749 = tpu.concatenate %747, %748 in 0 : vector<1x8x32xf32>, vector<7x8x32xf32> -> vector<8x8x32xf32>
    %cst_185 = arith.constant -9.375000e-02 : f32
    %750 = vector.broadcast %cst_185 : f32 to vector<8x8x32xf32>
    %751 = arith.mulf %750, %749 : vector<8x8x32xf32>
    %cst_186 = arith.constant 5.937500e-01 : f32
    %752 = vector.broadcast %cst_186 : f32 to vector<8x8x32xf32>
    %753 = arith.mulf %752, %729 : vector<8x8x32xf32>
    %754 = arith.addf %751, %753 : vector<8x8x32xf32>
    %cst_187 = arith.constant 5.937500e-01 : f32
    %755 = vector.broadcast %cst_187 : f32 to vector<8x8x32xf32>
    %756 = arith.mulf %755, %746 : vector<8x8x32xf32>
    %757 = arith.addf %754, %756 : vector<8x8x32xf32>
    %758 = vector.extract_strided_slice %746 {offsets = [7, 0, 0], sizes = [1, 8, 32], strides = [1, 1, 1]} : vector<8x8x32xf32> to vector<1x8x32xf32>
    %759 = vector.extract_strided_slice %729 {offsets = [1, 0, 0], sizes = [7, 8, 32], strides = [1, 1, 1]} : vector<8x8x32xf32> to vector<7x8x32xf32>
    %760 = tpu.concatenate %759, %758 in 0 : vector<7x8x32xf32>, vector<1x8x32xf32> -> vector<8x8x32xf32>
    %cst_188 = arith.constant -9.375000e-02 : f32
    %761 = vector.broadcast %cst_188 : f32 to vector<8x8x32xf32>
    %762 = arith.mulf %761, %760 : vector<8x8x32xf32>
    %763 = arith.addf %757, %762 : vector<8x8x32xf32>
    %764 = vector.shape_cast %55 : vector<8x8xf32> to vector<8x8x1xf32>
    %765 = tpu.concatenate %764, %712, %763, %657 in 2 : vector<8x8x1xf32>, vector<8x8x31xf32>, vector<8x8x32xf32>, vector<8x8x128xf32> -> vector<8x8x192xf32>
    %766 = vector.extract_strided_slice %765 {offsets = [0, 0, 0], sizes = [7, 7, 192], strides = [1, 1, 1]} : vector<8x8x192xf32> to vector<7x7x192xf32>
    %c0_189 = arith.constant 0 : index
    %c0_190 = arith.constant 0 : index
    %c0_191 = arith.constant 0 : index
    %767 = vector.load %arg9[%c0_189, %c0_190, %c0_191] : memref<7x7x192xf32, #tpu.memory_space<vmem>>, vector<7x7x192xf32>
    %768 = arith.mulf %766, %767 : vector<7x7x192xf32>
    %cst_192 = arith.constant dense<0.000000e+00> : vector<7x192xf32>
    %769 = vector.multi_reduction <add>, %768, %cst_192 [0] : vector<7x7x192xf32> to vector<7x192xf32>
    %cst_193 = arith.constant dense<0.000000e+00> : vector<192xf32>
    %770 = vector.multi_reduction <add>, %769, %cst_193 [0] : vector<7x192xf32> to vector<192xf32>
    %771 = vector.shape_cast %770 : vector<192xf32> to vector<1x192xf32>
    %c0_194 = arith.constant 0 : index
    %c0_195 = arith.constant 0 : index
    %772 = vector.load %arg10[%c0_194, %c0_195] : memref<1x192xf32, #tpu.memory_space<vmem>>, vector<1x192xf32>
    %773 = arith.addf %771, %772 : vector<1x192xf32>
    %c0_196 = arith.constant 0 : index
    %c0_197 = arith.constant 0 : index
    %774 = vector.load %arg11[%c0_196, %c0_197] : memref<192x256xf32, #tpu.memory_space<vmem>>, vector<192x256xf32>
    %cst_198 = arith.constant dense<0.000000e+00> : vector<1x256xf32>
    %775 = tpu.matmul %773, %774, %cst_198 {dimension_numbers = #tpu.dot_dimension_numbers<[1], [0], [0], [1], [0, 0, 1, 1], [], []>} : vector<1x192xf32>, vector<192x256xf32>, vector<1x256xf32> -> vector<1x256xf32>
    %c0_199 = arith.constant 0 : index
    %c0_200 = arith.constant 0 : index
    %776 = vector.load %arg12[%c0_199, %c0_200] : memref<1x256xf32, #tpu.memory_space<vmem>>, vector<1x256xf32>
    %777 = arith.addf %775, %776 : vector<1x256xf32>
    %cst_201 = arith.constant 0.000000e+00 : f32
    %778 = vector.broadcast %cst_201 : f32 to vector<1x256xf32>
    %779 = arith.maximumf %777, %778 : vector<1x256xf32>
    %780 = vector.shape_cast %779 : vector<1x256xf32> to vector<1x1x256xf32>
    %c0_202 = arith.constant 0 : index
    %c0_203 = arith.constant 0 : index
    %c0_204 = arith.constant 0 : index
    %781 = vector.load %arg19[%c0_202, %c0_203, %c0_204] : memref<1x1x256xf32, #tpu.memory_space<vmem>>, vector<1x1x256xf32>
    tpu.vector_store %arg19[%c0_202, %c0_203, %c0_204], %780 {strides = array<i32>} : memref<1x1x256xf32, #tpu.memory_space<vmem>>, vector<1x1x256xf32>,
    return
  }
  func.func @transform_0(%arg0: i32) -> (i32, i32, i32) {
    %c0_i32 = arith.constant 0 : i32
    %c0_i32_0 = arith.constant 0 : i32
    %c0_i32_1 = arith.constant 0 : i32
    return %arg0, %c0_i32, %c0_i32_0 : i32, i32, i32
  }
  func.func @transform_1(%arg0: i32) -> (i32, i32, i32) {
    %c0_i32 = arith.constant 0 : i32
    %c0_i32_0 = arith.constant 0 : i32
    %c0_i32_1 = arith.constant 0 : i32
    return %arg0, %c0_i32, %c0_i32_0 : i32, i32, i32
  }
  func.func @transform_2(%arg0: i32) -> (i32, i32) {
    %c0_i32 = arith.constant 0 : i32
    %c0_i32_0 = arith.constant 0 : i32
    %c0_i32_1 = arith.constant 0 : i32
    return %c0_i32, %c0_i32_0 : i32, i32
  }
  func.func @transform_3(%arg0: i32) -> (i32, i32) {
    %c0_i32 = arith.constant 0 : i32
    %c0_i32_0 = arith.constant 0 : i32
    %c0_i32_1 = arith.constant 0 : i32
    return %c0_i32, %c0_i32_0 : i32, i32
  }
  func.func @transform_4(%arg0: i32) -> (i32, i32) {
    %c0_i32 = arith.constant 0 : i32
    %c0_i32_0 = arith.constant 0 : i32
    %c0_i32_1 = arith.constant 0 : i32
    return %c0_i32, %c0_i32_0 : i32, i32
  }
  func.func @transform_5(%arg0: i32) -> (i32, i32) {
    %c0_i32 = arith.constant 0 : i32
    %c0_i32_0 = arith.constant 0 : i32
    %c0_i32_1 = arith.constant 0 : i32
    return %c0_i32, %c0_i32_0 : i32, i32
  }
  func.func @transform_6(%arg0: i32) -> (i32, i32) {
    %c0_i32 = arith.constant 0 : i32
    %c0_i32_0 = arith.constant 0 : i32
    %c0_i32_1 = arith.constant 0 : i32
    return %c0_i32, %c0_i32_0 : i32, i32
  }
  func.func @transform_7(%arg0: i32) -> (i32, i32) {
    %c0_i32 = arith.constant 0 : i32
    %c0_i32_0 = arith.constant 0 : i32
    %c0_i32_1 = arith.constant 0 : i32
    return %c0_i32, %c0_i32_0 : i32, i32
  }
  func.func @transform_8(%arg0: i32) -> (i32, i32, i32) {
    %c0_i32 = arith.constant 0 : i32
    %c0_i32_0 = arith.constant 0 : i32
    %c0_i32_1 = arith.constant 0 : i32
    %c0_i32_2 = arith.constant 0 : i32
    return %c0_i32, %c0_i32_0, %c0_i32_1 : i32, i32, i32
  }
  func.func @transform_9(%arg0: i32) -> (i32, i32) {
    %c0_i32 = arith.constant 0 : i32
    %c0_i32_0 = arith.constant 0 : i32
    %c0_i32_1 = arith.constant 0 : i32
    return %c0_i32, %c0_i32_0 : i32, i32
  }
  func.func @transform_10(%arg0: i32) -> (i32, i32) {
    %c0_i32 = arith.constant 0 : i32
    %c0_i32_0 = arith.constant 0 : i32
    %c0_i32_1 = arith.constant 0 : i32
    return %c0_i32, %c0_i32_0 : i32, i32
  }
  func.func @transform_11(%arg0: i32) -> (i32, i32) {
    %c0_i32 = arith.constant 0 : i32
    %c0_i32_0 = arith.constant 0 : i32
    %c0_i32_1 = arith.constant 0 : i32
    return %c0_i32, %c0_i32_0 : i32, i32
  }
  func.func @transform_12(%arg0: i32) -> (i32, i32) {
    %c0_i32 = arith.constant 0 : i32
    %c0_i32_0 = arith.constant 0 : i32
    %c0_i32_1 = arith.constant 0 : i32
    return %c0_i32, %c0_i32_0 : i32, i32
  }
  func.func @transform_13(%arg0: i32) -> (i32, i32) {
    %c0_i32 = arith.constant 0 : i32
    %c0_i32_0 = arith.constant 0 : i32
    %c0_i32_1 = arith.constant 0 : i32
    return %c0_i32, %c0_i32_0 : i32, i32
  }
  func.func @transform_14(%arg0: i32) -> (i32, i32) {
    %c0_i32 = arith.constant 0 : i32
    %c0_i32_0 = arith.constant 0 : i32
    %c0_i32_1 = arith.constant 0 : i32
    return %c0_i32, %c0_i32_0 : i32, i32
  }
  func.func @transform_15(%arg0: i32) -> (i32, i32) {
    %c0_i32 = arith.constant 0 : i32
    %c0_i32_0 = arith.constant 0 : i32
    %c0_i32_1 = arith.constant 0 : i32
    return %c0_i32, %c0_i32_0 : i32, i32
  }
  func.func @transform_16(%arg0: i32) -> (i32, i32) {
    %c0_i32 = arith.constant 0 : i32
    %c0_i32_0 = arith.constant 0 : i32
    %c0_i32_1 = arith.constant 0 : i32
    return %c0_i32, %c0_i32_0 : i32, i32
  }
  func.func @transform_17(%arg0: i32) -> (i32, i32) {
    %c0_i32 = arith.constant 0 : i32
    %c0_i32_0 = arith.constant 0 : i32
    %c0_i32_1 = arith.constant 0 : i32
    return %c0_i32, %c0_i32_0 : i32, i32
  }
  func.func @transform_18(%arg0: i32) -> (i32, i32, i32) {
    %c0_i32 = arith.constant 0 : i32
    %c0_i32_0 = arith.constant 0 : i32
    %c0_i32_1 = arith.constant 0 : i32
    return %arg0, %c0_i32, %c0_i32_0 : i32, i32, i32
  }
}

</mosaic_0001>

<llo_original>
// kernel: dsnet_forward.1
$region0: #{dsnet_forward.1}
  #allocation0 [shape = 'u32[]', space=smem, size = 0x4, offset = 0x4, fixed_abs, tag = 'smem constant byte address 0x4 - core index']
  #allocation1 [shape = 'u32[144,128]{1,0:T(1,128)}', space=vmem, size = 0x12000, scoped, tag = 'internal scratch']
  %s0 = inlined_call_operand.vmem [shape: f32[8,1024,49], index: 0, kind: input, shape index: {}]
  %s1 = inlined_call_operand.vmem [shape: f32[8,64,64], index: 1, kind: input, shape index: {}]
  %s2 = inlined_call_operand.vmem [shape: f32[49,31], index: 2, kind: input, shape index: {}]
  %s3 = inlined_call_operand.vmem [shape: f32[1,31], index: 3, kind: input, shape index: {}]
  %s4 = inlined_call_operand.vmem [shape: f32[49,64], index: 4, kind: input, shape index: {}]
  %s5 = inlined_call_operand.vmem [shape: f32[1,64], index: 5, kind: input, shape index: {}]
  %s6 = inlined_call_operand.vmem [shape: f32[64,128], index: 6, kind: input, shape index: {}]
  %s7 = inlined_call_operand.vmem [shape: f32[1,128], index: 7, kind: input, shape index: {}]
  %s8 = inlined_call_operand.vmem [shape: f32[7,7,192], index: 8, kind: input, shape index: {}]
  %s9 = inlined_call_operand.vmem [shape: f32[1,192], index: 9, kind: input, shape index: {}]
  %s10 = inlined_call_operand.vmem [shape: f32[192,256], index: 10, kind: input, shape index: {}]
  %s11 = inlined_call_operand.vmem [shape: f32[1,256], index: 11, kind: input, shape index: {}]
  %s12 = inlined_call_operand.vmem [shape: f32[32,64], index: 12, kind: input, shape index: {}]
  %s13 = inlined_call_operand.vmem [shape: f32[64,32], index: 13, kind: input, shape index: {}]
  %s14 = inlined_call_operand.vmem [shape: f32[16,64], index: 14, kind: input, shape index: {}]
  %s15 = inlined_call_operand.vmem [shape: f32[64,16], index: 15, kind: input, shape index: {}]
  %s16 = inlined_call_operand.vmem [shape: f32[8,64], index: 16, kind: input, shape index: {}]
  %s17 = inlined_call_operand.vmem [shape: f32[64,8], index: 17, kind: input, shape index: {}]
  %s18 = inlined_call_operand.vmem [shape: f32[8,1,256], index: 18, kind: output, shape index: {}]
  %s19 = sld [smem:[#allocation0]]
  $region105: #{dsnet_forward.1} parent=0
    _
  %s21 = ssub.s32 1, %s19
  %s22 = scalar_select 0, %s21, %s19
  loop: start=0, step=1, limit=10
  $region2: #{dsnet_forward.1} parent=0 // loop_pre_header
    _
  $region3: #{dsnet_forward.1} parent=0 // loop_header
    %s24 = sphi 0, %s28
    %p25 = scmp.ge.s32.totalorder %s24, 10
    %s34 = sphi 0, %s36
    %s37 = sphi 0, %s34
    %s38 = sphi 0, %s37
    %s54 = sphi 0, %s38
    %s60 = sphi 0, %s62
    %s63 = sphi 0, %s60
    %s64 = sphi 0, %s63
    %s80 = sphi 0, %s64
    %s84 = sphi 0, %s84
    %s86 = sphi 0, %s84
    %s87 = sphi 0, %s86
    %s101 = sphi 0, %s87
    %s105 = sphi 0, %s105
    %s107 = sphi 0, %s105
    %s108 = sphi 0, %s107
    %s122 = sphi 0, %s108
    %s126 = sphi 0, %s126
    %s128 = sphi 0, %s126
    %s129 = sphi 0, %s128
    %s143 = sphi 0, %s129
    %s147 = sphi 0, %s147
    %s149 = sphi 0, %s147
    %s150 = sphi 0, %s149
    %s164 = sphi 0, %s150
    %s168 = sphi 0, %s168
    %s170 = sphi 0, %s168
    %s171 = sphi 0, %s170
    %s185 = sphi 0, %s171
    %s189 = sphi 0, %s189
    %s191 = sphi 0, %s189
    %s192 = sphi 0, %s191
    %s206 = sphi 0, %s192
    %s210 = sphi 0, %s210
    %s212 = sphi 0, %s210
    %s213 = sphi 0, %s212
    %s227 = sphi 0, %s213
    %s231 = sphi 0, %s231
    %s233 = sphi 0, %s231
    %s234 = sphi 0, %s233
    %s248 = sphi 0, %s234
    %s252 = sphi 0, %s252
    %s254 = sphi 0, %s252
    %s255 = sphi 0, %s254
    %s269 = sphi 0, %s255
    %s273 = sphi 0, %s273
    %s275 = sphi 0, %s273
    %s276 = sphi 0, %s275
    %s290 = sphi 0, %s276
    %s294 = sphi 0, %s294
    %s296 = sphi 0, %s294
    %s297 = sphi 0, %s296
    %s311 = sphi 0, %s297
    %s315 = sphi 0, %s315
    %s317 = sphi 0, %s315
    %s318 = sphi 0, %s317
    %s332 = sphi 0, %s318
    %s336 = sphi 0, %s336
    %s338 = sphi 0, %s336
    %s339 = sphi 0, %s338
    %s353 = sphi 0, %s339
    %s357 = sphi 0, %s357
    %s359 = sphi 0, %s357
    %s360 = sphi 0, %s359
    %s374 = sphi 0, %s360
    %s378 = sphi 0, %s378
    %s380 = sphi 0, %s378
    %s381 = sphi 0, %s380
    %s395 = sphi 0, %s381
    %s399 = sphi 0, %s399
    %s401 = sphi 0, %s399
    %s402 = sphi 0, %s401
    %s416 = sphi 0, %s402
    %s422 = sphi 0, %s424
    %s425 = sphi 0, %s422
    %s426 = sphi 0, %s425
    %s442 = sphi 0, %s426
  $region4: #{dsnet_forward.1} parent=0 // loop_header_branch
    %27 = sbr.rel (%p25) target = $region8
  $region5: #{dsnet_forward.1} parent=0 // loop_body
    %s29 = ssub.s32 %s24, 1
    %s30 = ssub.s32 %s24, 2
    %s31 = sadd.s32 %s24, 1
    %s32 = ssub.s32 %s24, %s31
    %p33 = scmp.eq.s32.totalorder %s32, 0
    %s35 = sadd.s32 %s34, 1
    %s36 = scalar_select %p33, %s34, %s35
    %p39 = pneg %p33
    %p40 = scmp.eq.s32.totalorder %s24, 7
    %p41 = por %p39, %p40
    %p42 = scmp.ne.s32.totalorder %s34, %s37
    %p43 = scmp.eq.s32.totalorder %s24, 0
    %p44 = por %p42, %p43
    %p45 = scmp.ne.s32.totalorder %s34, %s37
    %p46 = scmp.eq.s32.totalorder %s29, 7
    %p47 = por %p45, %p46
    %p48 = scmp.ne.s32.totalorder %s37, %s38
    %p49 = scmp.eq.s32.totalorder %s29, 0
    %p50 = por %p48, %p49
    %p51 = scmp.ne.s32.totalorder %s37, %s38
    %p52 = scmp.eq.s32.totalorder %s30, 7
    %p53 = por %p51, %p52
    %p55 = scmp.ne.s32.totalorder %s38, %s54
    %p56 = scmp.eq.s32.totalorder %s30, 0
    %p57 = por %p55, %p56
    %s58 = ssub.s32 %s24, %s31
    %p59 = scmp.eq.s32.totalorder %s58, 0
    %s61 = sadd.s32 %s60, 1
    %s62 = scalar_select %p59, %s60, %s61
    %p65 = pneg %p59
    %p66 = scmp.eq.s32.totalorder %s24, 7
    %p67 = por %p65, %p66
    %p68 = scmp.ne.s32.totalorder %s60, %s63
    %p69 = scmp.eq.s32.totalorder %s24, 0
    %p70 = por %p68, %p69
    %p71 = scmp.ne.s32.totalorder %s60, %s63
    %p72 = scmp.eq.s32.totalorder %s29, 7
    %p73 = por %p71, %p72
    %p74 = scmp.ne.s32.totalorder %s63, %s64
    %p75 = scmp.eq.s32.totalorder %s29, 0
    %p76 = por %p74, %p75
    %p77 = scmp.ne.s32.totalorder %s63, %s64
    %p78 = scmp.eq.s32.totalorder %s30, 7
    %p79 = por %p77, %p78
    %p81 = scmp.ne.s32.totalorder %s64, %s80
    %p82 = scmp.eq.s32.totalorder %s30, 0
    %p83 = por %p81, %p82
    %s85 = sadd.s32 %s84, 1
    %p88 = scmp.eq.s32.totalorder %s24, 7
    %p89 = scmp.ne.s32.totalorder %s84, %s86
    %p90 = scmp.eq.s32.totalorder %s24, 0
    %p91 = por %p89, %p90
    %p92 = scmp.ne.s32.totalorder %s84, %s86
    %p93 = scmp.eq.s32.totalorder %s29, 7
    %p94 = por %p92, %p93
    %p95 = scmp.ne.s32.totalorder %s86, %s87
    %p96 = scmp.eq.s32.totalorder %s29, 0
    %p97 = por %p95, %p96
    %p98 = scmp.ne.s32.totalorder %s86, %s87
    %p99 = scmp.eq.s32.totalorder %s30, 7
    %p100 = por %p98, %p99
    %p102 = scmp.ne.s32.totalorder %s87, %s101
    %p103 = scmp.eq.s32.totalorder %s30, 0
    %p104 = por %p102, %p103
    %s106 = sadd.s32 %s105, 1
    %p109 = scmp.eq.s32.totalorder %s24, 7
    %p110 = scmp.ne.s32.totalorder %s105, %s107
    %p111 = scmp.eq.s32.totalorder %s24, 0
    %p112 = por %p110, %p111
    %p113 = scmp.ne.s32.totalorder %s105, %s107
    %p114 = scmp.eq.s32.totalorder %s29, 7
    %p115 = por %p113, %p114
    %p116 = scmp.ne.s32.totalorder %s107, %s108
    %p117 = scmp.eq.s32.totalorder %s29, 0
    %p118 = por %p116, %p117
    %p119 = scmp.ne.s32.totalorder %s107, %s108
    %p120 = scmp.eq.s32.totalorder %s30, 7
    %p121 = por %p119, %p120
    %p123 = scmp.ne.s32.totalorder %s108, %s122
    %p124 = scmp.eq.s32.totalorder %s30, 0
    %p125 = por %p123, %p124
    %s127 = sadd.s32 %s126, 1
    %p130 = scmp.eq.s32.totalorder %s24, 7
    %p131 = scmp.ne.s32.totalorder %s126, %s128
    %p132 = scmp.eq.s32.totalorder %s24, 0
    %p133 = por %p131, %p132
    %p134 = scmp.ne.s32.totalorder %s126, %s128
    %p135 = scmp.eq.s32.totalorder %s29, 7
    %p136 = por %p134, %p135
    %p137 = scmp.ne.s32.totalorder %s128, %s129
    %p138 = scmp.eq.s32.totalorder %s29, 0
    %p139 = por %p137, %p138
    %p140 = scmp.ne.s32.totalorder %s128, %s129
    %p141 = scmp.eq.s32.totalorder %s30, 7
    %p142 = por %p140, %p141
    %p144 = scmp.ne.s32.totalorder %s129, %s143
    %p145 = scmp.eq.s32.totalorder %s30, 0
    %p146 = por %p144, %p145
    %s148 = sadd.s32 %s147, 1
    %p151 = scmp.eq.s32.totalorder %s24, 7
    %p152 = scmp.ne.s32.totalorder %s147, %s149
    %p153 = scmp.eq.s32.totalorder %s24, 0
    %p154 = por %p152, %p153
    %p155 = scmp.ne.s32.totalorder %s147, %s149
    %p156 = scmp.eq.s32.totalorder %s29, 7
    %p157 = por %p155, %p156
    %p158 = scmp.ne.s32.totalorder %s149, %s150
    %p159 = scmp.eq.s32.totalorder %s29, 0
    %p160 = por %p158, %p159
    %p161 = scmp.ne.s32.totalorder %s149, %s150
    %p162 = scmp.eq.s32.totalorder %s30, 7
    %p163 = por %p161, %p162
    %p165 = scmp.ne.s32.totalorder %s150, %s164
    %p166 = scmp.eq.s32.totalorder %s30, 0
    %p167 = por %p165, %p166
    %s169 = sadd.s32 %s168, 1
    %p172 = scmp.eq.s32.totalorder %s24, 7
    %p173 = scmp.ne.s32.totalorder %s168, %s170
    %p174 = scmp.eq.s32.totalorder %s24, 0
    %p175 = por %p173, %p174
    %p176 = scmp.ne.s32.totalorder %s168, %s170
    %p177 = scmp.eq.s32.totalorder %s29, 7
    %p178 = por %p176, %p177
    %p179 = scmp.ne.s32.totalorder %s170, %s171
    %p180 = scmp.eq.s32.totalorder %s29, 0
    %p181 = por %p179, %p180
    %p182 = scmp.ne.s32.totalorder %s170, %s171
    %p183 = scmp.eq.s32.totalorder %s30, 7
    %p184 = por %p182, %p183
    %p186 = scmp.ne.s32.totalorder %s171, %s185
    %p187 = scmp.eq.s32.totalorder %s30, 0
    %p188 = por %p186, %p187
    %s190 = sadd.s32 %s189, 1
    %p193 = scmp.eq.s32.totalorder %s24, 7
    %p194 = scmp.ne.s32.totalorder %s189, %s191
    %p195 = scmp.eq.s32.totalorder %s24, 0
    %p196 = por %p194, %p195
    %p197 = scmp.ne.s32.totalorder %s189, %s191
    %p198 = scmp.eq.s32.totalorder %s29, 7
    %p199 = por %p197, %p198
    %p200 = scmp.ne.s32.totalorder %s191, %s192
    %p201 = scmp.eq.s32.totalorder %s29, 0
    %p202 = por %p200, %p201
    %p203 = scmp.ne.s32.totalorder %s191, %s192
    %p204 = scmp.eq.s32.totalorder %s30, 7
    %p205 = por %p203, %p204
    %p207 = scmp.ne.s32.totalorder %s192, %s206
    %p208 = scmp.eq.s32.totalorder %s30, 0
    %p209 = por %p207, %p208
    %s211 = sadd.s32 %s210, 1
    %p214 = scmp.eq.s32.totalorder %s24, 7
    %p215 = scmp.ne.s32.totalorder %s210, %s212
    %p216 = scmp.eq.s32.totalorder %s24, 0
    %p217 = por %p215, %p216
    %p218 = scmp.ne.s32.totalorder %s210, %s212
    %p219 = scmp.eq.s32.totalorder %s29, 7
    %p220 = por %p218, %p219
    %p221 = scmp.ne.s32.totalorder %s212, %s213
    %p222 = scmp.eq.s32.totalorder %s29, 0
    %p223 = por %p221, %p222
    %p224 = scmp.ne.s32.totalorder %s212, %s213
    %p225 = scmp.eq.s32.totalorder %s30, 7
    %p226 = por %p224, %p225
    %p228 = scmp.ne.s32.totalorder %s213, %s227
    %p229 = scmp.eq.s32.totalorder %s30, 0
    %p230 = por %p228, %p229
    %s232 = sadd.s32 %s231, 1
    %p235 = scmp.eq.s32.totalorder %s24, 7
    %p236 = scmp.ne.s32.totalorder %s231, %s233
    %p237 = scmp.eq.s32.totalorder %s24, 0
    %p238 = por %p236, %p237
    %p239 = scmp.ne.s32.totalorder %s231, %s233
    %p240 = scmp.eq.s32.totalorder %s29, 7
    %p241 = por %p239, %p240
    %p242 = scmp.ne.s32.totalorder %s233, %s234
    %p243 = scmp.eq.s32.totalorder %s29, 0
    %p244 = por %p242, %p243
    %p245 = scmp.ne.s32.totalorder %s233, %s234
    %p246 = scmp.eq.s32.totalorder %s30, 7
    %p247 = por %p245, %p246
    %p249 = scmp.ne.s32.totalorder %s234, %s248
    %p250 = scmp.eq.s32.totalorder %s30, 0
    %p251 = por %p249, %p250
    %s253 = sadd.s32 %s252, 1
    %p256 = scmp.eq.s32.totalorder %s24, 7
    %p257 = scmp.ne.s32.totalorder %s252, %s254
    %p258 = scmp.eq.s32.totalorder %s24, 0
    %p259 = por %p257, %p258
    %p260 = scmp.ne.s32.totalorder %s252, %s254
    %p261 = scmp.eq.s32.totalorder %s29, 7
    %p262 = por %p260, %p261
    %p263 = scmp.ne.s32.totalorder %s254, %s255
    %p264 = scmp.eq.s32.totalorder %s29, 0
    %p265 = por %p263, %p264
    %p266 = scmp.ne.s32.totalorder %s254, %s255
    %p267 = scmp.eq.s32.totalorder %s30, 7
    %p268 = por %p266, %p267
    %p270 = scmp.ne.s32.totalorder %s255, %s269
    %p271 = scmp.eq.s32.totalorder %s30, 0
    %p272 = por %p270, %p271
    %s274 = sadd.s32 %s273, 1
    %p277 = scmp.eq.s32.totalorder %s24, 7
    %p278 = scmp.ne.s32.totalorder %s273, %s275
    %p279 = scmp.eq.s32.totalorder %s24, 0
    %p280 = por %p278, %p279
    %p281 = scmp.ne.s32.totalorder %s273, %s275
    %p282 = scmp.eq.s32.totalorder %s29, 7
    %p283 = por %p281, %p282
    %p284 = scmp.ne.s32.totalorder %s275, %s276
    %p285 = scmp.eq.s32.totalorder %s29, 0
    %p286 = por %p284, %p285
    %p287 = scmp.ne.s32.totalorder %s275, %s276
    %p288 = scmp.eq.s32.totalorder %s30, 7
    %p289 = por %p287, %p288
    %p291 = scmp.ne.s32.totalorder %s276, %s290
    %p292 = scmp.eq.s32.totalorder %s30, 0
    %p293 = por %p291, %p292
    %s295 = sadd.s32 %s294, 1
    %p298 = scmp.eq.s32.totalorder %s24, 7
    %p299 = scmp.ne.s32.totalorder %s294, %s296
    %p300 = scmp.eq.s32.totalorder %s24, 0
    %p301 = por %p299, %p300
    %p302 = scmp.ne.s32.totalorder %s294, %s296
    %p303 = scmp.eq.s32.totalorder %s29, 7
    %p304 = por %p302, %p303
    %p305 = scmp.ne.s32.totalorder %s296, %s297
    %p306 = scmp.eq.s32.totalorder %s29, 0
    %p307 = por %p305, %p306
    %p308 = scmp.ne.s32.totalorder %s296, %s297
    %p309 = scmp.eq.s32.totalorder %s30, 7
    %p310 = por %p308, %p309
    %p312 = scmp.ne.s32.totalorder %s297, %s311
    %p313 = scmp.eq.s32.totalorder %s30, 0
    %p314 = por %p312, %p313
    %s316 = sadd.s32 %s315, 1
    %p319 = scmp.eq.s32.totalorder %s24, 7
    %p320 = scmp.ne.s32.totalorder %s315, %s317
    %p321 = scmp.eq.s32.totalorder %s24, 0
    %p322 = por %p320, %p321
    %p323 = scmp.ne.s32.totalorder %s315, %s317
    %p324 = scmp.eq.s32.totalorder %s29, 7
    %p325 = por %p323, %p324
    %p326 = scmp.ne.s32.totalorder %s317, %s318
    %p327 = scmp.eq.s32.totalorder %s29, 0
    %p328 = por %p326, %p327
    %p329 = scmp.ne.s32.totalorder %s317, %s318
    %p330 = scmp.eq.s32.totalorder %s30, 7
    %p331 = por %p329, %p330
    %p333 = scmp.ne.s32.totalorder %s318, %s332
    %p334 = scmp.eq.s32.totalorder %s30, 0
    %p335 = por %p333, %p334
    %s337 = sadd.s32 %s336, 1
    %p340 = scmp.eq.s32.totalorder %s24, 7
    %p341 = scmp.ne.s32.totalorder %s336, %s338
    %p342 = scmp.eq.s32.totalorder %s24, 0
    %p343 = por %p341, %p342
    %p344 = scmp.ne.s32.totalorder %s336, %s338
    %p345 = scmp.eq.s32.totalorder %s29, 7
    %p346 = por %p344, %p345
    %p347 = scmp.ne.s32.totalorder %s338, %s339
    %p348 = scmp.eq.s32.totalorder %s29, 0
    %p349 = por %p347, %p348
    %p350 = scmp.ne.s32.totalorder %s338, %s339
    %p351 = scmp.eq.s32.totalorder %s30, 7
    %p352 = por %p350, %p351
    %p354 = scmp.ne.s32.totalorder %s339, %s353
    %p355 = scmp.eq.s32.totalorder %s30, 0
    %p356 = por %p354, %p355
    %s358 = sadd.s32 %s357, 1
    %p361 = scmp.eq.s32.totalorder %s24, 7
    %p362 = scmp.ne.s32.totalorder %s357, %s359
    %p363 = scmp.eq.s32.totalorder %s24, 0
    %p364 = por %p362, %p363
    %p365 = scmp.ne.s32.totalorder %s357, %s359
    %p366 = scmp.eq.s32.totalorder %s29, 7
    %p367 = por %p365, %p366
    %p368 = scmp.ne.s32.totalorder %s359, %s360
    %p369 = scmp.eq.s32.totalorder %s29, 0
    %p370 = por %p368, %p369
    %p371 = scmp.ne.s32.totalorder %s359, %s360
    %p372 = scmp.eq.s32.totalorder %s30, 7
    %p373 = por %p371, %p372
    %p375 = scmp.ne.s32.totalorder %s360, %s374
    %p376 = scmp.eq.s32.totalorder %s30, 0
    %p377 = por %p375, %p376
    %s379 = sadd.s32 %s378, 1
    %p382 = scmp.eq.s32.totalorder %s24, 7
    %p383 = scmp.ne.s32.totalorder %s378, %s380
    %p384 = scmp.eq.s32.totalorder %s24, 0
    %p385 = por %p383, %p384
    %p386 = scmp.ne.s32.totalorder %s378, %s380
    %p387 = scmp.eq.s32.totalorder %s29, 7
    %p388 = por %p386, %p387
    %p389 = scmp.ne.s32.totalorder %s380, %s381
    %p390 = scmp.eq.s32.totalorder %s29, 0
    %p391 = por %p389, %p390
    %p392 = scmp.ne.s32.totalorder %s380, %s381
    %p393 = scmp.eq.s32.totalorder %s30, 7
    %p394 = por %p392, %p393
    %p396 = scmp.ne.s32.totalorder %s381, %s395
    %p397 = scmp.eq.s32.totalorder %s30, 0
    %p398 = por %p396, %p397
    %s400 = sadd.s32 %s399, 1
    %p403 = scmp.eq.s32.totalorder %s24, 7
    %p404 = scmp.ne.s32.totalorder %s399, %s401
    %p405 = scmp.eq.s32.totalorder %s24, 0
    %p406 = por %p404, %p405
    %p407 = scmp.ne.s32.totalorder %s399, %s401
    %p408 = scmp.eq.s32.totalorder %s29, 7
    %p409 = por %p407, %p408
    %p410 = scmp.ne.s32.totalorder %s401, %s402
    %p411 = scmp.eq.s32.totalorder %s29, 0
    %p412 = por %p410, %p411
    %p413 = scmp.ne.s32.totalorder %s401, %s402
    %p414 = scmp.eq.s32.totalorder %s30, 7
    %p415 = por %p413, %p414
    %p417 = scmp.ne.s32.totalorder %s402, %s416
    %p418 = scmp.eq.s32.totalorder %s30, 0
    %p419 = por %p417, %p418
    %s420 = ssub.s32 %s24, %s31
    %p421 = scmp.eq.s32.totalorder %s420, 0
    %s423 = sadd.s32 %s422, 1
    %s424 = scalar_select %p421, %s422, %s423
    %p427 = pneg %p421
    %p428 = scmp.eq.s32.totalorder %s24, 7
    %p429 = por %p427, %p428
    %p430 = scmp.ne.s32.totalorder %s422, %s425
    %p431 = scmp.eq.s32.totalorder %s24, 0
    %p432 = por %p430, %p431
    %p433 = scmp.ne.s32.totalorder %s422, %s425
    %p434 = scmp.eq.s32.totalorder %s29, 7
    %p435 = por %p433, %p434
    %p436 = scmp.ne.s32.totalorder %s425, %s426
    %p437 = scmp.eq.s32.totalorder %s29, 0
    %p438 = por %p436, %p437
    %p439 = scmp.ne.s32.totalorder %s425, %s426
    %p440 = scmp.eq.s32.totalorder %s30, 7
    %p441 = por %p439, %p440
    %p443 = scmp.ne.s32.totalorder %s426, %s442
    %p444 = scmp.eq.s32.totalorder %s30, 0
    %p445 = por %p443, %p444
    %p446 = scmp.le.s32.totalorder 1, %s24
    %p447 = scmp.lt.s32.totalorder %s24, 9
    %p448 = pnand %p446, %p447
    %p449 = pneg %p448
    // Predicated region
    $region9: #{dsnet_forward.1} parent=5 // pred_check
      _
    $region10: #{dsnet_forward.1} parent=5 // pred_check_branch
      %451 = sbr.rel (%p448) target = $region12
    $region11: #{dsnet_forward.1} parent=5 // pred_region
      %s452 = ssub.s32 %s24, 1
      // Predicated region
      $region13: #{dsnet_forward.1} parent=11 // pred_check
        %p453 = pneg %p97
      $region14: #{dsnet_forward.1} parent=11 // pred_check_branch
        %455 = sbr.rel (%p453) target = $region16
      $region15: #{dsnet_forward.1} parent=11 // pred_region
        _
      $region16: #{dsnet_forward.1} parent=11 // pred_fallthru
        _
      // Predicated region
      $region17: #{dsnet_forward.1} parent=11 // pred_check
        %p456 = pneg %p118
      $region18: #{dsnet_forward.1} parent=11 // pred_check_branch
        %458 = sbr.rel (%p456) target = $region20
      $region19: #{dsnet_forward.1} parent=11 // pred_region
        _
      $region20: #{dsnet_forward.1} parent=11 // pred_fallthru
        _
      // Predicated region
      $region21: #{dsnet_forward.1} parent=11 // pred_check
        %p459 = pneg %p139
      $region22: #{dsnet_forward.1} parent=11 // pred_check_branch
        %461 = sbr.rel (%p459) target = $region24
      $region23: #{dsnet_forward.1} parent=11 // pred_region
        _
      $region24: #{dsnet_forward.1} parent=11 // pred_fallthru
        _
      // Predicated region
      $region25: #{dsnet_forward.1} parent=11 // pred_check
        %p462 = pneg %p160
      $region26: #{dsnet_forward.1} parent=11 // pred_check_branch
        %464 = sbr.rel (%p462) target = $region28
      $region27: #{dsnet_forward.1} parent=11 // pred_region
        _
      $region28: #{dsnet_forward.1} parent=11 // pred_fallthru
        _
      // Predicated region
      $region29: #{dsnet_forward.1} parent=11 // pred_check
        %p465 = pneg %p181
      $region30: #{dsnet_forward.1} parent=11 // pred_check_branch
        %467 = sbr.rel (%p465) target = $region32
      $region31: #{dsnet_forward.1} parent=11 // pred_region
        _
      $region32: #{dsnet_forward.1} parent=11 // pred_fallthru
        _
      // Predicated region
      $region33: #{dsnet_forward.1} parent=11 // pred_check
        %p468 = pneg %p202
      $region34: #{dsnet_forward.1} parent=11 // pred_check_branch
        %470 = sbr.rel (%p468) target = $region36
      $region35: #{dsnet_forward.1} parent=11 // pred_region
        _
      $region36: #{dsnet_forward.1} parent=11 // pred_fallthru
        _
      // Predicated region
      $region37: #{dsnet_forward.1} parent=11 // pred_check
        %p471 = pneg %p223
      $region38: #{dsnet_forward.1} parent=11 // pred_check_branch
        %473 = sbr.rel (%p471) target = $region40
      $region39: #{dsnet_forward.1} parent=11 // pred_region
        _
      $region40: #{dsnet_forward.1} parent=11 // pred_fallthru
        _
      // Predicated region
      $region41: #{dsnet_forward.1} parent=11 // pred_check
        %p474 = pneg %p244
      $region42: #{dsnet_forward.1} parent=11 // pred_check_branch
        %476 = sbr.rel (%p474) target = $region44
      $region43: #{dsnet_forward.1} parent=11 // pred_region
        _
      $region44: #{dsnet_forward.1} parent=11 // pred_fallthru
        _
      // Predicated region
      $region45: #{dsnet_forward.1} parent=11 // pred_check
        %p477 = pneg %p265
      $region46: #{dsnet_forward.1} parent=11 // pred_check_branch
        %479 = sbr.rel (%p477) target = $region48
      $region47: #{dsnet_forward.1} parent=11 // pred_region
        _
      $region48: #{dsnet_forward.1} parent=11 // pred_fallthru
        _
      // Predicated region
      $region49: #{dsnet_forward.1} parent=11 // pred_check
        %p480 = pneg %p286
      $region50: #{dsnet_forward.1} parent=11 // pred_check_branch
        %482 = sbr.rel (%p480) target = $region52
      $region51: #{dsnet_forward.1} parent=11 // pred_region
        _
      $region52: #{dsnet_forward.1} parent=11 // pred_fallthru
        _
      // Predicated region
      $region53: #{dsnet_forward.1} parent=11 // pred_check
        %p483 = pneg %p307
      $region54: #{dsnet_forward.1} parent=11 // pred_check_branch
        %485 = sbr.rel (%p483) target = $region56
      $region55: #{dsnet_forward.1} parent=11 // pred_region
        _
      $region56: #{dsnet_forward.1} parent=11 // pred_fallthru
        _
      // Predicated region
      $region57: #{dsnet_forward.1} parent=11 // pred_check
        %p486 = pneg %p328
      $region58: #{dsnet_forward.1} parent=11 // pred_check_branch
        %488 = sbr.rel (%p486) target = $region60
      $region59: #{dsnet_forward.1} parent=11 // pred_region
        _
      $region60: #{dsnet_forward.1} parent=11 // pred_fallthru
        _
      // Predicated region
      $region61: #{dsnet_forward.1} parent=11 // pred_check
        %p489 = pneg %p349
      $region62: #{dsnet_forward.1} parent=11 // pred_check_branch
        %491 = sbr.rel (%p489) target = $region64
      $region63: #{dsnet_forward.1} parent=11 // pred_region
        _
      $region64: #{dsnet_forward.1} parent=11 // pred_fallthru
        _
      // Predicated region
      $region65: #{dsnet_forward.1} parent=11 // pred_check
        %p492 = pneg %p370
      $region66: #{dsnet_forward.1} parent=11 // pred_check_branch
        %494 = sbr.rel (%p492) target = $region68
      $region67: #{dsnet_forward.1} parent=11 // pred_region
        _
      $region68: #{dsnet_forward.1} parent=11 // pred_fallthru
        _
      // Predicated region
      $region69: #{dsnet_forward.1} parent=11 // pred_check
        %p495 = pneg %p391
      $region70: #{dsnet_forward.1} parent=11 // pred_check_branch
        %497 = sbr.rel (%p495) target = $region72
      $region71: #{dsnet_forward.1} parent=11 // pred_region
        _
      $region72: #{dsnet_forward.1} parent=11 // pred_fallthru
        _
      // Predicated region
      $region73: #{dsnet_forward.1} parent=11 // pred_check
        %p498 = pneg %p412
      $region74: #{dsnet_forward.1} parent=11 // pred_check_branch
        %500 = sbr.rel (%p498) target = $region76
      $region75: #{dsnet_forward.1} parent=11 // pred_region
        _
      $region76: #{dsnet_forward.1} parent=11 // pred_fallthru
        _
    $region12: #{dsnet_forward.1} parent=5 // pred_fallthru
      _
    %p501 = scmp.lt.s32.totalorder %s24, 8
    // Predicated region
    $region77: #{dsnet_forward.1} parent=5 // pred_check
      %p502 = pneg %p501
    $region78: #{dsnet_forward.1} parent=5 // pred_check_branch
      %504 = sbr.rel (%p502) target = $region80
    $region79: #{dsnet_forward.1} parent=5 // pred_region
      // Predicated region
      $region81: #{dsnet_forward.1} parent=79 // pred_check
        %p505 = pneg %p44
      $region82: #{dsnet_forward.1} parent=79 // pred_check_branch
        %507 = sbr.rel (%p505) target = $region84
      $region83: #{dsnet_forward.1} parent=79 // pred_region
        %p508 = scmp.lt.s32.totalorder %s24, 7
        %s509 = scalar_select %p508, %s24, 7
        %s510 = smul.addr %s509, 128
        %s511 = smul.addr %s510, 8
        %s512 = scalar_lea.vmem %s0, %s511
      $region84: #{dsnet_forward.1} parent=79 // pred_fallthru
        _
      // Predicated region
      $region85: #{dsnet_forward.1} parent=79 // pred_check
        %p513 = pneg %p70
      $region86: #{dsnet_forward.1} parent=79 // pred_check_branch
        %515 = sbr.rel (%p513) target = $region88
      $region87: #{dsnet_forward.1} parent=79 // pred_region
        %p516 = scmp.lt.s32.totalorder %s24, 7
        %s517 = scalar_select %p516, %s24, 7
        %s518 = smul.addr %s517, 8
        %s519 = smul.addr %s518, 8
        %s520 = scalar_lea.vmem %s1, %s519
      $region88: #{dsnet_forward.1} parent=79 // pred_fallthru
        _
    $region80: #{dsnet_forward.1} parent=5 // pred_fallthru
      _
    %p521 = scmp.le.s32.totalorder 1, %s24
    %p522 = scmp.lt.s32.totalorder %s24, 9
    %p523 = pnand %p521, %p522
    %p524 = pneg %p523
    // Predicated region
    $region89: #{dsnet_forward.1} parent=5 // pred_check
      _
    $region90: #{dsnet_forward.1} parent=5 // pred_check_branch
      %526 = sbr.rel (%p523) target = $region92
    $region91: #{dsnet_forward.1} parent=5 // pred_region
      %s527 = ssub.s32 %s24, 1
      %p528 = scmp.lt.s32.totalorder %s29, 7
      %s529 = scalar_select %p528, %s29, 7
      %s530 = smul.addr %s529, 128
      %s531 = smul.addr %s530, 8
      %s532 = scalar_lea.vmem %s0, %s531
      %p533 = pneg %p50
      %p534 = pneg %p47
      %p535 = scmp.lt.s32.totalorder %s29, 7
      %s536 = scalar_select %p535, %s29, 7
      %s537 = smul.addr %s536, 8
      %s538 = smul.addr %s537, 8
      %s539 = scalar_lea.vmem %s1, %s538
      %p540 = pneg %p76
      %p541 = pneg %p73
      %p542 = pneg %p97
      %p543 = pneg %p94
      %p544 = pneg %p118
      %p545 = pneg %p115
      %p546 = pneg %p139
      %p547 = pneg %p136
      %p548 = pneg %p160
      %p549 = pneg %p157
      %p550 = pneg %p181
      %p551 = pneg %p178
      %p552 = pneg %p202
      %p553 = pneg %p199
      %p554 = pneg %p223
      %p555 = pneg %p220
      %p556 = pneg %p244
      %p557 = pneg %p241
      %p558 = pneg %p265
      %p559 = pneg %p262
      %p560 = pneg %p286
      %p561 = pneg %p283
      %p562 = pneg %p307
      %p563 = pneg %p304
      %p564 = pneg %p328
      %p565 = pneg %p325
      %p566 = pneg %p349
      %p567 = pneg %p346
      %p568 = pneg %p370
      %p569 = pneg %p367
      %p570 = pneg %p391
      %p571 = pneg %p388
      %p572 = pneg %p412
      %p573 = pneg %p409
      %p574 = pneg %p438
      %p575 = pneg %p435
      %p576 = scmp.lt.s32.totalorder %s29, 7
      %s577 = scalar_select %p576, %s29, 7
      %s578 = smul.addr %s577, 2
      %s579 = scalar_lea.vmem %s18, %s578
      %p580 = scmp.lt.s32.totalorder %s29, 7
      %s581 = scalar_select %p580, %s29, 7
      %s582 = smul.addr %s581, 128
      %s583 = smul.addr %s582, 8
      %s584 = scalar_lea.vmem %s0, %s583
      %p585 = scmp.lt.s32.totalorder %s29, 7
      %s586 = scalar_select %p585, %s29, 7
      %s587 = smul.addr %s586, 8
      %s588 = smul.addr %s587, 8
      %s589 = scalar_lea.vmem %s1, %s588
      %p590 = scmp.lt.s32.totalorder %s29, 7
      %s591 = scalar_select %p590, %s29, 7
      %s592 = smul.addr %s591, 2
      %s593 = scalar_lea.vmem %s18, %s592
      %v594 = vld [vmem:[%s584] sm:$0xff]
      %v595 = vld [vmem:[%s584 + $0x8] sm:$0xff]
      %v596 = vld [vmem:[%s584 + $0x10] sm:$0xff]
      %v597 = vld [vmem:[%s584 + $0x18] sm:$0xff]
      %v598 = vld [vmem:[%s584 + $0x20] sm:$0xff]
      %v599 = vld [vmem:[%s584 + $0x28] sm:$0xff]
      %v600 = vld [vmem:[%s584 + $0x30] sm:$0xff]
      %v601 = vld [vmem:[%s584 + $0x38] sm:$0xff]
      %v602 = vld [vmem:[%s584 + $0x40] sm:$0xff]
      %v603 = vld [vmem:[%s584 + $0x48] sm:$0xff]
      %v604 = vld [vmem:[%s584 + $0x50] sm:$0xff]
      %v605 = vld [vmem:[%s584 + $0x58] sm:$0xff]
      %v606 = vld [vmem:[%s584 + $0x60] sm:$0xff]
      %v607 = vld [vmem:[%s584 + $0x68] sm:$0xff]
      %v608 = vld [vmem:[%s584 + $0x70] sm:$0xff]
      %v609 = vld [vmem:[%s584 + $0x78] sm:$0xff]
      %v610 = vld [vmem:[%s584 + $0x80] sm:$0xff]
      %v611 = vld [vmem:[%s584 + $0x88] sm:$0xff]
      %v612 = vld [vmem:[%s584 + $0x90] sm:$0xff]
      %v613 = vld [vmem:[%s584 + $0x98] sm:$0xff]
      %v614 = vld [vmem:[%s584 + $0xa0] sm:$0xff]
      %v615 = vld [vmem:[%s584 + $0xa8] sm:$0xff]
      %v616 = vld [vmem:[%s584 + $0xb0] sm:$0xff]
      %v617 = vld [vmem:[%s584 + $0xb8] sm:$0xff]
      %v618 = vld [vmem:[%s584 + $0xc0] sm:$0xff]
      %v619 = vld [vmem:[%s584 + $0xc8] sm:$0xff]
      %v620 = vld [vmem:[%s584 + $0xd0] sm:$0xff]
      %v621 = vld [vmem:[%s584 + $0xd8] sm:$0xff]
      %v622 = vld [vmem:[%s584 + $0xe0] sm:$0xff]
      %v623 = vld [vmem:[%s584 + $0xe8] sm:$0xff]
      %v624 = vld [vmem:[%s584 + $0xf0] sm:$0xff]
      %v625 = vld [vmem:[%s584 + $0xf8] sm:$0xff]
      %v626 = vld [vmem:[%s584 + $0x100] sm:$0xff]
      %v627 = vld [vmem:[%s584 + $0x108] sm:$0xff]
      %v628 = vld [vmem:[%s584 + $0x110] sm:$0xff]
      %v629 = vld [vmem:[%s584 + $0x118] sm:$0xff]
      %v630 = vld [vmem:[%s584 + $0x120] sm:$0xff]
      %v631 = vld [vmem:[%s584 + $0x128] sm:$0xff]
      %v632 = vld [vmem:[%s584 + $0x130] sm:$0xff]
      %v633 = vld [vmem:[%s584 + $0x138] sm:$0xff]
      %v634 = vld [vmem:[%s584 + $0x140] sm:$0xff]
      %v635 = vld [vmem:[%s584 + $0x148] sm:$0xff]
      %v636 = vld [vmem:[%s584 + $0x150] sm:$0xff]
      %v637 = vld [vmem:[%s584 + $0x158] sm:$0xff]
      %v638 = vld [vmem:[%s584 + $0x160] sm:$0xff]
      %v639 = vld [vmem:[%s584 + $0x168] sm:$0xff]
      %v640 = vld [vmem:[%s584 + $0x170] sm:$0xff]
      %v641 = vld [vmem:[%s584 + $0x178] sm:$0xff]
      %v642 = vld [vmem:[%s584 + $0x180] sm:$0xff]
      %v643 = vld [vmem:[%s584 + $0x188] sm:$0xff]
      %v644 = vld [vmem:[%s584 + $0x190] sm:$0xff]
      %v645 = vld [vmem:[%s584 + $0x198] sm:$0xff]
      %v646 = vld [vmem:[%s584 + $0x1a0] sm:$0xff]
      %v647 = vld [vmem:[%s584 + $0x1a8] sm:$0xff]
      %v648 = vld [vmem:[%s584 + $0x1b0] sm:$0xff]
      %v649 = vld [vmem:[%s584 + $0x1b8] sm:$0xff]
      %v650 = vld [vmem:[%s584 + $0x1c0] sm:$0xff]
      %v651 = vld [vmem:[%s584 + $0x1c8] sm:$0xff]
      %v652 = vld [vmem:[%s584 + $0x1d0] sm:$0xff]
      %v653 = vld [vmem:[%s584 + $0x1d8] sm:$0xff]
      %v654 = vld [vmem:[%s584 + $0x1e0] sm:$0xff]
      %v655 = vld [vmem:[%s584 + $0x1e8] sm:$0xff]
      %v656 = vld [vmem:[%s584 + $0x1f0] sm:$0xff]
      %v657 = vld [vmem:[%s584 + $0x1f8] sm:$0xff]
      %v658 = vld [vmem:[%s584 + $0x200] sm:$0xff]
      %v659 = vld [vmem:[%s584 + $0x208] sm:$0xff]
      %v660 = vld [vmem:[%s584 + $0x210] sm:$0xff]
      %v661 = vld [vmem:[%s584 + $0x218] sm:$0xff]
      %v662 = vld [vmem:[%s584 + $0x220] sm:$0xff]
      %v663 = vld [vmem:[%s584 + $0x228] sm:$0xff]
      %v664 = vld [vmem:[%s584 + $0x230] sm:$0xff]
      %v665 = vld [vmem:[%s584 + $0x238] sm:$0xff]
      %v666 = vld [vmem:[%s584 + $0x240] sm:$0xff]
      %v667 = vld [vmem:[%s584 + $0x248] sm:$0xff]
      %v668 = vld [vmem:[%s584 + $0x250] sm:$0xff]
      %v669 = vld [vmem:[%s584 + $0x258] sm:$0xff]
      %v670 = vld [vmem:[%s584 + $0x260] sm:$0xff]
      %v671 = vld [vmem:[%s584 + $0x268] sm:$0xff]
      %v672 = vld [vmem:[%s584 + $0x270] sm:$0xff]
      %v673 = vld [vmem:[%s584 + $0x278] sm:$0xff]
      %v674 = vld [vmem:[%s584 + $0x280] sm:$0xff]
      %v675 = vld [vmem:[%s584 + $0x288] sm:$0xff]
      %v676 = vld [vmem:[%s584 + $0x290] sm:$0xff]
      %v677 = vld [vmem:[%s584 + $0x298] sm:$0xff]
      %v678 = vld [vmem:[%s584 + $0x2a0] sm:$0xff]
      %v679 = vld [vmem:[%s584 + $0x2a8] sm:$0xff]
      %v680 = vld [vmem:[%s584 + $0x2b0] sm:$0xff]
      %v681 = vld [vmem:[%s584 + $0x2b8] sm:$0xff]
      %v682 = vld [vmem:[%s584 + $0x2c0] sm:$0xff]
      %v683 = vld [vmem:[%s584 + $0x2c8] sm:$0xff]
      %v684 = vld [vmem:[%s584 + $0x2d0] sm:$0xff]
      %v685 = vld [vmem:[%s584 + $0x2d8] sm:$0xff]
      %v686 = vld [vmem:[%s584 + $0x2e0] sm:$0xff]
      %v687 = vld [vmem:[%s584 + $0x2e8] sm:$0xff]
      %v688 = vld [vmem:[%s584 + $0x2f0] sm:$0xff]
      %v689 = vld [vmem:[%s584 + $0x2f8] sm:$0xff]
      %v690 = vld [vmem:[%s584 + $0x300] sm:$0xff]
      %v691 = vld [vmem:[%s584 + $0x308] sm:$0xff]
      %v692 = vld [vmem:[%s584 + $0x310] sm:$0xff]
      %v693 = vld [vmem:[%s584 + $0x318] sm:$0xff]
      %v694 = vld [vmem:[%s584 + $0x320] sm:$0xff]
      %v695 = vld [vmem:[%s584 + $0x328] sm:$0xff]
      %v696 = vld [vmem:[%s584 + $0x330] sm:$0xff]
      %v697 = vld [vmem:[%s584 + $0x338] sm:$0xff]
      %v698 = vld [vmem:[%s584 + $0x340] sm:$0xff]
      %v699 = vld [vmem:[%s584 + $0x348] sm:$0xff]
      %v700 = vld [vmem:[%s584 + $0x350] sm:$0xff]
      %v701 = vld [vmem:[%s584 + $0x358] sm:$0xff]
      %v702 = vld [vmem:[%s584 + $0x360] sm:$0xff]
      %v703 = vld [vmem:[%s584 + $0x368] sm:$0xff]
      %v704 = vld [vmem:[%s584 + $0x370] sm:$0xff]
      %v705 = vld [vmem:[%s584 + $0x378] sm:$0xff]
      %v706 = vld [vmem:[%s584 + $0x380] sm:$0xff]
      %v707 = vld [vmem:[%s584 + $0x388] sm:$0xff]
      %v708 = vld [vmem:[%s584 + $0x390] sm:$0xff]
      %v709 = vld [vmem:[%s584 + $0x398] sm:$0xff]
      %v710 = vld [vmem:[%s584 + $0x3a0] sm:$0xff]
      %v711 = vld [vmem:[%s584 + $0x3a8] sm:$0xff]
      %v712 = vld [vmem:[%s584 + $0x3b0] sm:$0xff]
      %v713 = vld [vmem:[%s584 + $0x3b8] sm:$0xff]
      %v714 = vld [vmem:[%s584 + $0x3c0] sm:$0xff]
      %v715 = vld [vmem:[%s584 + $0x3c8] sm:$0xff]
      %v716 = vld [vmem:[%s584 + $0x3d0] sm:$0xff]
      %v717 = vld [vmem:[%s584 + $0x3d8] sm:$0xff]
      %v718 = vld [vmem:[%s584 + $0x3e0] sm:$0xff]
      %v719 = vld [vmem:[%s584 + $0x3e8] sm:$0xff]
      %v720 = vld [vmem:[%s584 + $0x3f0] sm:$0xff]
      %v721 = vld [vmem:[%s584 + $0x3f8] sm:$0xff]
      %v722 = vld [vmem:[%s2] sm:$0xff]
      %v723 = vld [vmem:[%s2 + $0x8] sm:$0xff]
      %v724 = vld [vmem:[%s2 + $0x10] sm:$0xff]
      %v725 = vld [vmem:[%s2 + $0x18] sm:$0xff]
      %v726 = vld [vmem:[%s2 + $0x20] sm:$0xff]
      %v727 = vld [vmem:[%s2 + $0x28] sm:$0xff]
      %v728 = vld [vmem:[%s2 + $0x30] sm:$0x1]
      %v729 = vld [vmem:[%s3] sm:$0x1]
      %v731 = vlaneseq
      %v732 = vshrl.u32 %v731, 7
      %v733 = vsub.s32 0, %v732
      %v734 = vrot.slane %v729, %v733
      %vm736 = vcmask 400384
      %v738 = vsel %vm736, %v594, 0
      %v741 = vsel %vm736, %v595, 0
      %v744 = vsel %vm736, %v596, 0
      %v747 = vsel %vm736, %v597, 0
      %v750 = vsel %vm736, %v598, 0
      %v753 = vsel %vm736, %v599, 0
      %v756 = vsel %vm736, %v600, 0
      %v759 = vsel %vm736, %v601, 0
      %v762 = vsel %vm736, %v602, 0
      %v765 = vsel %vm736, %v603, 0
      %v768 = vsel %vm736, %v604, 0
      %v771 = vsel %vm736, %v605, 0
      %v774 = vsel %vm736, %v606, 0
      %v777 = vsel %vm736, %v607, 0
      %v780 = vsel %vm736, %v608, 0
      %v783 = vsel %vm736, %v609, 0
      %v786 = vsel %vm736, %v610, 0
      %v789 = vsel %vm736, %v611, 0
      %v792 = vsel %vm736, %v612, 0
      %v795 = vsel %vm736, %v613, 0
      %v798 = vsel %vm736, %v614, 0
      %v801 = vsel %vm736, %v615, 0
      %v804 = vsel %vm736, %v616, 0
      %v807 = vsel %vm736, %v617, 0
      %v810 = vsel %vm736, %v618, 0
      %v813 = vsel %vm736, %v619, 0
      %v816 = vsel %vm736, %v620, 0
      %v819 = vsel %vm736, %v621, 0
      %v822 = vsel %vm736, %v622, 0
      %v825 = vsel %vm736, %v623, 0
      %v828 = vsel %vm736, %v624, 0
      %v831 = vsel %vm736, %v625, 0
      %v834 = vsel %vm736, %v626, 0
      %v837 = vsel %vm736, %v627, 0
      %v840 = vsel %vm736, %v628, 0
      %v843 = vsel %vm736, %v629, 0
      %v846 = vsel %vm736, %v630, 0
      %v849 = vsel %vm736, %v631, 0
      %v852 = vsel %vm736, %v632, 0
      %v855 = vsel %vm736, %v633, 0
      %v858 = vsel %vm736, %v634, 0
      %v861 = vsel %vm736, %v635, 0
      %v864 = vsel %vm736, %v636, 0
      %v867 = vsel %vm736, %v637, 0
      %v870 = vsel %vm736, %v638, 0
      %v873 = vsel %vm736, %v639, 0
      %v876 = vsel %vm736, %v640, 0
      %v879 = vsel %vm736, %v641, 0
      %v882 = vsel %vm736, %v642, 0
      %v885 = vsel %vm736, %v643, 0
      %v888 = vsel %vm736, %v644, 0
      %v891 = vsel %vm736, %v645, 0
      %v894 = vsel %vm736, %v646, 0
      %v897 = vsel %vm736, %v647, 0
      %v900 = vsel %vm736, %v648, 0
      %v903 = vsel %vm736, %v649, 0
      %v906 = vsel %vm736, %v650, 0
      %v909 = vsel %vm736, %v651, 0
      %v912 = vsel %vm736, %v652, 0
      %v915 = vsel %vm736, %v653, 0
      %v918 = vsel %vm736, %v654, 0
      %v921 = vsel %vm736, %v655, 0
      %v924 = vsel %vm736, %v656, 0
      %v927 = vsel %vm736, %v657, 0
      %v930 = vsel %vm736, %v658, 0
      %v933 = vsel %vm736, %v659, 0
      %v936 = vsel %vm736, %v660, 0
      %v939 = vsel %vm736, %v661, 0
      %v942 = vsel %vm736, %v662, 0
      %v945 = vsel %vm736, %v663, 0
      %v948 = vsel %vm736, %v664, 0
      %v951 = vsel %vm736, %v665, 0
      %v954 = vsel %vm736, %v666, 0
      %v957 = vsel %vm736, %v667, 0
      %v960 = vsel %vm736, %v668, 0
      %v963 = vsel %vm736, %v669, 0
      %v966 = vsel %vm736, %v670, 0
      %v969 = vsel %vm736, %v671, 0
      %v972 = vsel %vm736, %v672, 0
      %v975 = vsel %vm736, %v673, 0
      %v978 = vsel %vm736, %v674, 0
      %v981 = vsel %vm736, %v675, 0
      %v984 = vsel %vm736, %v676, 0
      %v987 = vsel %vm736, %v677, 0
      %v990 = vsel %vm736, %v678, 0
      %v993 = vsel %vm736, %v679, 0
      %v996 = vsel %vm736, %v680, 0
      %v999 = vsel %vm736, %v681, 0
      %v1002 = vsel %vm736, %v682, 0
      %v1005 = vsel %vm736, %v683, 0
      %v1008 = vsel %vm736, %v684, 0
      %v1011 = vsel %vm736, %v685, 0
      %v1014 = vsel %vm736, %v686, 0
      %v1017 = vsel %vm736, %v687, 0
      %v1020 = vsel %vm736, %v688, 0
      %v1023 = vsel %vm736, %v689, 0
      %v1026 = vsel %vm736, %v690, 0
      %v1029 = vsel %vm736, %v691, 0
      %v1032 = vsel %vm736, %v692, 0
      %v1035 = vsel %vm736, %v693, 0
      %v1038 = vsel %vm736, %v694, 0
      %v1041 = vsel %vm736, %v695, 0
      %v1044 = vsel %vm736, %v696, 0
      %v1047 = vsel %vm736, %v697, 0
      %v1050 = vsel %vm736, %v698, 0
      %v1053 = vsel %vm736, %v699, 0
      %v1056 = vsel %vm736, %v700, 0
      %v1059 = vsel %vm736, %v701, 0
      %v1062 = vsel %vm736, %v702, 0
      %v1065 = vsel %vm736, %v703, 0
      %v1068 = vsel %vm736, %v704, 0
      %v1071 = vsel %vm736, %v705, 0
      %v1074 = vsel %vm736, %v706, 0
      %v1077 = vsel %vm736, %v707, 0
      %v1080 = vsel %vm736, %v708, 0
      %v1083 = vsel %vm736, %v709, 0
      %v1086 = vsel %vm736, %v710, 0
      %v1089 = vsel %vm736, %v711, 0
      %v1092 = vsel %vm736, %v712, 0
      %v1095 = vsel %vm736, %v713, 0
      %v1098 = vsel %vm736, %v714, 0
      %v1101 = vsel %vm736, %v715, 0
      %v1104 = vsel %vm736, %v716, 0
      %v1107 = vsel %vm736, %v717, 0
      %v1110 = vsel %vm736, %v718, 0
      %v1113 = vsel %vm736, %v719, 0
      %v1116 = vsel %vm736, %v720, 0
      %v1119 = vsel %vm736, %v721, 0
      %vm1121 = vcmask 1040384
      %v1123 = vsel %vm1121, %v728, 0
      %1125 = vmatprep.subr.mxu0 0.0
      %1126 = vmatpush1.msra.mxu0 %v722
      %1127 = vmatprep.subr.mxu0 0.0
      %1128 = vmatpush1.msra.mxu0 %v723
      %1129 = vmatprep.subr.mxu0 0.0
      %1130 = vmatpush1.msra.mxu0 %v724
      %1131 = vmatprep.subr.mxu0 0.0
      %1132 = vmatpush1.msra.mxu0 %v725
      %1133 = vmatprep.subr.mxu0 0.0
      %1134 = vmatpush1.msra.mxu0 %v726
      %1135 = vmatprep.subr.mxu0 0.0
      %1136 = vmatpush1.msra.mxu0 %v727
      %1137 = vmatprep.subr.mxu0 0.0
      %1138 = vmatpush1.msra.mxu0 %v1123
      %1139 = vmatprep.subr.mxu0 0.0
      %1140 = vmatpush1.msra.mxu0 0.0
      %1141 = vmatprep.subr.mxu0 0.0
      %1142 = vmatpush1.msra.mxu0 0.0
      %1143 = vmatprep.subr.mxu0 0.0
      %1144 = vmatpush1.msra.mxu0 0.0
      %1145 = vmatprep.subr.mxu0 0.0
      %1146 = vmatpush1.msra.mxu0 0.0
      %1147 = vmatprep.subr.mxu0 0.0
      %1148 = vmatpush1.msra.mxu0 0.0
      %1149 = vmatprep.subr.mxu0 0.0
      %1150 = vmatpush1.msra.mxu0 0.0
      %1151 = vmatprep.subr.mxu0 0.0
      %1152 = vmatpush1.msra.mxu0 0.0
      %1153 = vmatprep.subr.mxu0 0.0
      %1154 = vmatpush1.msra.mxu0 0.0
      %1155 = vmatprep.subr.mxu0 0.0
      %1156 = vmatpush1.msra.mxu0 0.0
      %1157 = vmatprep.subr.mxu0 0.0
      %1158 = vmatpush1.msra.mxu0 0.0
      %1159 = vmatprep.subr.mxu0 0.0
      %1160 = vmatpush1.msra.mxu0 0.0
      %1161 = vmatprep.subr.mxu0 0.0
      %1162 = vmatpush1.msra.mxu0 0.0
      %1163 = vmatprep.subr.mxu0 0.0
      %1164 = vmatpush1.msra.mxu0 0.0
      %1165 = vmatprep.subr.mxu0 0.0
      %1166 = vmatpush1.msra.mxu0 0.0
      %1167 = vmatprep.subr.mxu0 0.0
      %1168 = vmatpush1.msra.mxu0 0.0
      %1169 = vmatprep.subr.mxu0 0.0
      %1170 = vmatpush1.msra.mxu0 0.0
      %1171 = vmatprep.subr.mxu0 0.0
      %1172 = vmatpush1.msra.mxu0 0.0
      %1173 = vmatprep.subr.mxu0 0.0
      %1174 = vmatpush1.msra.mxu0 0.0
      %1175 = vmatprep.subr.mxu0 0.0
      %1176 = vmatpush1.msra.mxu0 0.0
      %1177 = vmatprep.subr.mxu0 0.0
      %1178 = vmatpush1.msra.mxu0 0.0
      %1179 = vmatprep.subr.mxu0 0.0
      %1180 = vmatpush1.msra.mxu0 0.0
      %1181 = vmatprep.subr.mxu0 0.0
      %1182 = vmatpush1.msra.mxu0 0.0
      %1183 = vmatprep.subr.mxu0 0.0
      %1184 = vmatpush1.msra.mxu0 0.0
      %1185 = vmatprep.subr.mxu0 0.0
      %1186 = vmatpush1.msra.mxu0 0.0
      %1187 = vmatprep.subr.mxu0 0.0
      %1188 = vmatpush1.msra.mxu0 0.0
      %1189 = vmatprep.mubr.f32.mxu0 0.0
      %1190 = vmatmul.mubr.f32.gmra.mrb[0].mxu0 %v738
      %v1191 = vpop.f32.mrb[0].mxu0
      %v1192 = vadd.f32 %v734, %v1191
      %v1193 = vpop.f32.mrb[0].mxu0
      %1194 = vmatprep.mubr.f32.mxu0 0.0
      %1195 = vmatmul.mubr.f32.gmra.mrb[0].mxu0 %v741
      %v1196 = vpop.f32.mrb[0].mxu0
      %v1197 = vadd.f32 %v734, %v1196
      %v1198 = vpop.f32.mrb[0].mxu0
      %1199 = vmatprep.mubr.f32.mxu0 0.0
      %1200 = vmatmul.mubr.f32.gmra.mrb[0].mxu0 %v744
      %v1201 = vpop.f32.mrb[0].mxu0
      %v1202 = vadd.f32 %v734, %v1201
      %v1203 = vpop.f32.mrb[0].mxu0
      %1204 = vmatprep.mubr.f32.mxu0 0.0
      %1205 = vmatmul.mubr.f32.gmra.mrb[0].mxu0 %v747
      %v1206 = vpop.f32.mrb[0].mxu0
      %v1207 = vadd.f32 %v734, %v1206
      %v1208 = vpop.f32.mrb[0].mxu0
      %1209 = vmatprep.mubr.f32.mxu0 0.0
      %1210 = vmatmul.mubr.f32.gmra.mrb[0].mxu0 %v750
      %v1211 = vpop.f32.mrb[0].mxu0
      %v1212 = vadd.f32 %v734, %v1211
      %v1213 = vpop.f32.mrb[0].mxu0
      %1214 = vmatprep.mubr.f32.mxu0 0.0
      %1215 = vmatmul.mubr.f32.gmra.mrb[0].mxu0 %v753
      %v1216 = vpop.f32.mrb[0].mxu0
      %v1217 = vadd.f32 %v734, %v1216
      %v1218 = vpop.f32.mrb[0].mxu0
      %1219 = vmatprep.mubr.f32.mxu0 0.0
      %1220 = vmatmul.mubr.f32.gmra.mrb[0].mxu0 %v756
      %v1221 = vpop.f32.mrb[0].mxu0
      %v1222 = vadd.f32 %v734, %v1221
      %v1223 = vpop.f32.mrb[0].mxu0
      %1224 = vmatprep.mubr.f32.mxu0 0.0
      %1225 = vmatmul.mubr.f32.gmra.mrb[0].mxu0 %v759
      %v1226 = vpop.f32.mrb[0].mxu0
      %v1227 = vadd.f32 %v734, %v1226
      %v1228 = vpop.f32.mrb[0].mxu0
      %1229 = vmatprep.mubr.f32.mxu0 0.0
      %1230 = vmatmul.mubr.f32.gmra.mrb[0].mxu0 %v762
      %v1231 = vpop.f32.mrb[0].mxu0
      %v1232 = vadd.f32 %v734, %v1231
      %v1233 = vpop.f32.mrb[0].mxu0
      %1234 = vmatprep.mubr.f32.mxu0 0.0
      %1235 = vmatmul.mubr.f32.gmra.mrb[0].mxu0 %v765
      %v1236 = vpop.f32.mrb[0].mxu0
      %v1237 = vadd.f32 %v734, %v1236
      %v1238 = vpop.f32.mrb[0].mxu0
      %1239 = vmatprep.mubr.f32.mxu0 0.0
      %1240 = vmatmul.mubr.f32.gmra.mrb[0].mxu0 %v768
      %v1241 = vpop.f32.mrb[0].mxu0
      %v1242 = vadd.f32 %v734, %v1241
      %v1243 = vpop.f32.mrb[0].mxu0
      %1244 = vmatprep.mubr.f32.mxu0 0.0
      %1245 = vmatmul.mubr.f32.gmra.mrb[0].mxu0 %v771
      %v1246 = vpop.f32.mrb[0].mxu0
      %v1247 = vadd.f32 %v734, %v1246
      %v1248 = vpop.f32.mrb[0].mxu0
      %1249 = vmatprep.mubr.f32.mxu0 0.0
      %1250 = vmatmul.mubr.f32.gmra.mrb[0].mxu0 %v774
      %v1251 = vpop.f32.mrb[0].mxu0
      %v1252 = vadd.f32 %v734, %v1251
      %v1253 = vpop.f32.mrb[0].mxu0
      %1254 = vmatprep.mubr.f32.mxu0 0.0
      %1255 = vmatmul.mubr.f32.gmra.mrb[0].mxu0 %v777
      %v1256 = vpop.f32.mrb[0].mxu0
      %v1257 = vadd.f32 %v734, %v1256
      %v1258 = vpop.f32.mrb[0].mxu0
      %1259 = vmatprep.mubr.f32.mxu0 0.0
      %1260 = vmatmul.mubr.f32.gmra.mrb[0].mxu0 %v780
      %v1261 = vpop.f32.mrb[0].mxu0
      %v1262 = vadd.f32 %v734, %v1261
      %v1263 = vpop.f32.mrb[0].mxu0
      %1264 = vmatprep.mubr.f32.mxu0 0.0
      %1265 = vmatmul.mubr.f32.gmra.mrb[0].mxu0 %v783
      %v1266 = vpop.f32.mrb[0].mxu0
      %v1267 = vadd.f32 %v734, %v1266
      %v1268 = vpop.f32.mrb[0].mxu0
      %1269 = vmatprep.mubr.f32.mxu0 0.0
      %1270 = vmatmul.mubr.f32.gmra.mrb[0].mxu0 %v786
      %v1271 = vpop.f32.mrb[0].mxu0
      %v1272 = vadd.f32 %v734, %v1271
      %v1273 = vpop.f32.mrb[0].mxu0
      %1274 = vmatprep.mubr.f32.mxu0 0.0
      %1275 = vmatmul.mubr.f32.gmra.mrb[0].mxu0 %v789
      %v1276 = vpop.f32.mrb[0].mxu0
      %v1277 = vadd.f32 %v734, %v1276
      %v1278 = vpop.f32.mrb[0].mxu0
      %1279 = vmatprep.mubr.f32.mxu0 0.0
      %1280 = vmatmul.mubr.f32.gmra.mrb[0].mxu0 %v792
      %v1281 = vpop.f32.mrb[0].mxu0
      %v1282 = vadd.f32 %v734, %v1281
      %v1283 = vpop.f32.mrb[0].mxu0
      %1284 = vmatprep.mubr.f32.mxu0 0.0
      %1285 = vmatmul.mubr.f32.gmra.mrb[0].mxu0 %v795
      %v1286 = vpop.f32.mrb[0].mxu0
      %v1287 = vadd.f32 %v734, %v1286
      %v1288 = vpop.f32.mrb[0].mxu0
      %1289 = vmatprep.mubr.f32.mxu0 0.0
      %1290 = vmatmul.mubr.f32.gmra.mrb[0].mxu0 %v798
      %v1291 = vpop.f32.mrb[0].mxu0
      %v1292 = vadd.f32 %v734, %v1291
      %v1293 = vpop.f32.mrb[0].mxu0
      %1294 = vmatprep.mubr.f32.mxu0 0.0
      %1295 = vmatmul.mubr.f32.gmra.mrb[0].mxu0 %v801
      %v1296 = vpop.f32.mrb[0].mxu0
      %v1297 = vadd.f32 %v734, %v1296
      %v1298 = vpop.f32.mrb[0].mxu0
      %1299 = vmatprep.mubr.f32.mxu0 0.0
      %1300 = vmatmul.mubr.f32.gmra.mrb[0].mxu0 %v804
      %v1301 = vpop.f32.mrb[0].mxu0
      %v1302 = vadd.f32 %v734, %v1301
      %v1303 = vpop.f32.mrb[0].mxu0
      %1304 = vmatprep.mubr.f32.mxu0 0.0
      %1305 = vmatmul.mubr.f32.gmra.mrb[0].mxu0 %v807
      %v1306 = vpop.f32.mrb[0].mxu0
      %v1307 = vadd.f32 %v734, %v1306
      %v1308 = vpop.f32.mrb[0].mxu0
      %1309 = vmatprep.mubr.f32.mxu0 0.0
      %1310 = vmatmul.mubr.f32.gmra.mrb[0].mxu0 %v810
      %v1311 = vpop.f32.mrb[0].mxu0
      %v1312 = vadd.f32 %v734, %v1311
      %v1313 = vpop.f32.mrb[0].mxu0
      %1314 = vmatprep.mubr.f32.mxu0 0.0
      %1315 = vmatmul.mubr.f32.gmra.mrb[0].mxu0 %v813
      %v1316 = vpop.f32.mrb[0].mxu0
      %v1317 = vadd.f32 %v734, %v1316
      %v1318 = vpop.f32.mrb[0].mxu0
      %1319 = vmatprep.mubr.f32.mxu0 0.0
      %1320 = vmatmul.mubr.f32.gmra.mrb[0].mxu0 %v816
      %v1321 = vpop.f32.mrb[0].mxu0
      %v1322 = vadd.f32 %v734, %v1321
      %v1323 = vpop.f32.mrb[0].mxu0
      %1324 = vmatprep.mubr.f32.mxu0 0.0
      %1325 = vmatmul.mubr.f32.gmra.mrb[0].mxu0 %v819
      %v1326 = vpop.f32.mrb[0].mxu0
      %v1327 = vadd.f32 %v734, %v1326
      %v1328 = vpop.f32.mrb[0].mxu0
      %1329 = vmatprep.mubr.f32.mxu0 0.0
      %1330 = vmatmul.mubr.f32.gmra.mrb[0].mxu0 %v822
      %v1331 = vpop.f32.mrb[0].mxu0
      %v1332 = vadd.f32 %v734, %v1331
      %v1333 = vpop.f32.mrb[0].mxu0
      %1334 = vmatprep.mubr.f32.mxu0 0.0
      %1335 = vmatmul.mubr.f32.gmra.mrb[0].mxu0 %v825
      %v1336 = vpop.f32.mrb[0].mxu0
      %v1337 = vadd.f32 %v734, %v1336
      %v1338 = vpop.f32.mrb[0].mxu0
      %1339 = vmatprep.mubr.f32.mxu0 0.0
      %1340 = vmatmul.mubr.f32.gmra.mrb[0].mxu0 %v828
      %v1341 = vpop.f32.mrb[0].mxu0
      %v1342 = vadd.f32 %v734, %v1341
      %v1343 = vpop.f32.mrb[0].mxu0
      %1344 = vmatprep.mubr.f32.mxu0 0.0
      %1345 = vmatmul.mubr.f32.gmra.mrb[0].mxu0 %v831
      %v1346 = vpop.f32.mrb[0].mxu0
      %v1347 = vadd.f32 %v734, %v1346
      %v1348 = vpop.f32.mrb[0].mxu0
      %1349 = vmatprep.mubr.f32.mxu0 0.0
      %1350 = vmatmul.mubr.f32.gmra.mrb[0].mxu0 %v834
      %v1351 = vpop.f32.mrb[0].mxu0
      %v1352 = vadd.f32 %v734, %v1351
      %v1353 = vpop.f32.mrb[0].mxu0
      %1354 = vmatprep.mubr.f32.mxu0 0.0
      %1355 = vmatmul.mubr.f32.gmra.mrb[0].mxu0 %v837
      %v1356 = vpop.f32.mrb[0].mxu0
      %v1357 = vadd.f32 %v734, %v1356
      %v1358 = vpop.f32.mrb[0].mxu0
      %1359 = vmatprep.mubr.f32.mxu0 0.0
      %1360 = vmatmul.mubr.f32.gmra.mrb[0].mxu0 %v840
      %v1361 = vpop.f32.mrb[0].mxu0
      %v1362 = vadd.f32 %v734, %v1361
      %v1363 = vpop.f32.mrb[0].mxu0
      %1364 = vmatprep.mubr.f32.mxu0 0.0
      %1365 = vmatmul.mubr.f32.gmra.mrb[0].mxu0 %v843
      %v1366 = vpop.f32.mrb[0].mxu0
      %v1367 = vadd.f32 %v734, %v1366
      %v1368 = vpop.f32.mrb[0].mxu0
      %1369 = vmatprep.mubr.f32.mxu0 0.0
      %1370 = vmatmul.mubr.f32.gmra.mrb[0].mxu0 %v846
      %v1371 = vpop.f32.mrb[0].mxu0
      %v1372 = vadd.f32 %v734, %v1371
      %v1373 = vpop.f32.mrb[0].mxu0
      %1374 = vmatprep.mubr.f32.mxu0 0.0
      %1375 = vmatmul.mubr.f32.gmra.mrb[0].mxu0 %v849
      %v1376 = vpop.f32.mrb[0].mxu0
      %v1377 = vadd.f32 %v734, %v1376
      %v1378 = vpop.f32.mrb[0].mxu0
      %1379 = vmatprep.mubr.f32.mxu0 0.0
      %1380 = vmatmul.mubr.f32.gmra.mrb[0].mxu0 %v852
      %v1381 = vpop.f32.mrb[0].mxu0
      %v1382 = vadd.f32 %v734, %v1381
      %v1383 = vpop.f32.mrb[0].mxu0
      %1384 = vmatprep.mubr.f32.mxu0 0.0
      %1385 = vmatmul.mubr.f32.gmra.mrb[0].mxu0 %v855
      %v1386 = vpop.f32.mrb[0].mxu0
      %v1387 = vadd.f32 %v734, %v1386
      %v1388 = vpop.f32.mrb[0].mxu0
      %1389 = vmatprep.mubr.f32.mxu0 0.0
      %1390 = vmatmul.mubr.f32.gmra.mrb[0].mxu0 %v858
      %v1391 = vpop.f32.mrb[0].mxu0
      %v1392 = vadd.f32 %v734, %v1391
      %v1393 = vpop.f32.mrb[0].mxu0
      %1394 = vmatprep.mubr.f32.mxu0 0.0
      %1395 = vmatmul.mubr.f32.gmra.mrb[0].mxu0 %v861
      %v1396 = vpop.f32.mrb[0].mxu0
      %v1397 = vadd.f32 %v734, %v1396
      %v1398 = vpop.f32.mrb[0].mxu0
      %1399 = vmatprep.mubr.f32.mxu0 0.0
      %1400 = vmatmul.mubr.f32.gmra.mrb[0].mxu0 %v864
      %v1401 = vpop.f32.mrb[0].mxu0
      %v1402 = vadd.f32 %v734, %v1401
      %v1403 = vpop.f32.mrb[0].mxu0
      %1404 = vmatprep.mubr.f32.mxu0 0.0
      %1405 = vmatmul.mubr.f32.gmra.mrb[0].mxu0 %v867
      %v1406 = vpop.f32.mrb[0].mxu0
      %v1407 = vadd.f32 %v734, %v1406
      %v1408 = vpop.f32.mrb[0].mxu0
      %1409 = vmatprep.mubr.f32.mxu0 0.0
      %1410 = vmatmul.mubr.f32.gmra.mrb[0].mxu0 %v870
      %v1411 = vpop.f32.mrb[0].mxu0
      %v1412 = vadd.f32 %v734, %v1411
      %v1413 = vpop.f32.mrb[0].mxu0
      %1414 = vmatprep.mubr.f32.mxu0 0.0
      %1415 = vmatmul.mubr.f32.gmra.mrb[0].mxu0 %v873
      %v1416 = vpop.f32.mrb[0].mxu0
      %v1417 = vadd.f32 %v734, %v1416
      %v1418 = vpop.f32.mrb[0].mxu0
      %1419 = vmatprep.mubr.f32.mxu0 0.0
      %1420 = vmatmul.mubr.f32.gmra.mrb[0].mxu0 %v876
      %v1421 = vpop.f32.mrb[0].mxu0
      %v1422 = vadd.f32 %v734, %v1421
      %v1423 = vpop.f32.mrb[0].mxu0
      %1424 = vmatprep.mubr.f32.mxu0 0.0
      %1425 = vmatmul.mubr.f32.gmra.mrb[0].mxu0 %v879
      %v1426 = vpop.f32.mrb[0].mxu0
      %v1427 = vadd.f32 %v734, %v1426
      %v1428 = vpop.f32.mrb[0].mxu0
      %1429 = vmatprep.mubr.f32.mxu0 0.0
      %1430 = vmatmul.mubr.f32.gmra.mrb[0].mxu0 %v882
      %v1431 = vpop.f32.mrb[0].mxu0
      %v1432 = vadd.f32 %v734, %v1431
      %v1433 = vpop.f32.mrb[0].mxu0
      %1434 = vmatprep.mubr.f32.mxu0 0.0
      %1435 = vmatmul.mubr.f32.gmra.mrb[0].mxu0 %v885
      %v1436 = vpop.f32.mrb[0].mxu0
      %v1437 = vadd.f32 %v734, %v1436
      %v1438 = vpop.f32.mrb[0].mxu0
      %1439 = vmatprep.mubr.f32.mxu0 0.0
      %1440 = vmatmul.mubr.f32.gmra.mrb[0].mxu0 %v888
      %v1441 = vpop.f32.mrb[0].mxu0
      %v1442 = vadd.f32 %v734, %v1441
      %v1443 = vpop.f32.mrb[0].mxu0
      %1444 = vmatprep.mubr.f32.mxu0 0.0
      %1445 = vmatmul.mubr.f32.gmra.mrb[0].mxu0 %v891
      %v1446 = vpop.f32.mrb[0].mxu0
      %v1447 = vadd.f32 %v734, %v1446
      %v1448 = vpop.f32.mrb[0].mxu0
      %1449 = vmatprep.mubr.f32.mxu0 0.0
      %1450 = vmatmul.mubr.f32.gmra.mrb[0].mxu0 %v894
      %v1451 = vpop.f32.mrb[0].mxu0
      %v1452 = vadd.f32 %v734, %v1451
      %v1453 = vpop.f32.mrb[0].mxu0
      %1454 = vmatprep.mubr.f32.mxu0 0.0
      %1455 = vmatmul.mubr.f32.gmra.mrb[0].mxu0 %v897
      %v1456 = vpop.f32.mrb[0].mxu0
      %v1457 = vadd.f32 %v734, %v1456
      %v1458 = vpop.f32.mrb[0].mxu0
      %1459 = vmatprep.mubr.f32.mxu0 0.0
      %1460 = vmatmul.mubr.f32.gmra.mrb[0].mxu0 %v900
      %v1461 = vpop.f32.mrb[0].mxu0
      %v1462 = vadd.f32 %v734, %v1461
      %v1463 = vpop.f32.mrb[0].mxu0
      %1464 = vmatprep.mubr.f32.mxu0 0.0
      %1465 = vmatmul.mubr.f32.gmra.mrb[0].mxu0 %v903
      %v1466 = vpop.f32.mrb[0].mxu0
      %v1467 = vadd.f32 %v734, %v1466
      %v1468 = vpop.f32.mrb[0].mxu0
      %1469 = vmatprep.mubr.f32.mxu0 0.0
      %1470 = vmatmul.mubr.f32.gmra.mrb[0].mxu0 %v906
      %v1471 = vpop.f32.mrb[0].mxu0
      %v1472 = vadd.f32 %v734, %v1471
      %v1473 = vpop.f32.mrb[0].mxu0
      %1474 = vmatprep.mubr.f32.mxu0 0.0
      %1475 = vmatmul.mubr.f32.gmra.mrb[0].mxu0 %v909
      %v1476 = vpop.f32.mrb[0].mxu0
      %v1477 = vadd.f32 %v734, %v1476
      %v1478 = vpop.f32.mrb[0].mxu0
      %1479 = vmatprep.mubr.f32.mxu0 0.0
      %1480 = vmatmul.mubr.f32.gmra.mrb[0].mxu0 %v912
      %v1481 = vpop.f32.mrb[0].mxu0
      %v1482 = vadd.f32 %v734, %v1481
      %v1483 = vpop.f32.mrb[0].mxu0
      %1484 = vmatprep.mubr.f32.mxu0 0.0
      %1485 = vmatmul.mubr.f32.gmra.mrb[0].mxu0 %v915
      %v1486 = vpop.f32.mrb[0].mxu0
      %v1487 = vadd.f32 %v734, %v1486
      %v1488 = vpop.f32.mrb[0].mxu0
      %1489 = vmatprep.mubr.f32.mxu0 0.0
      %1490 = vmatmul.mubr.f32.gmra.mrb[0].mxu0 %v918
      %v1491 = vpop.f32.mrb[0].mxu0
      %v1492 = vadd.f32 %v734, %v1491
      %v1493 = vpop.f32.mrb[0].mxu0
      %1494 = vmatprep.mubr.f32.mxu0 0.0
      %1495 = vmatmul.mubr.f32.gmra.mrb[0].mxu0 %v921
      %v1496 = vpop.f32.mrb[0].mxu0
      %v1497 = vadd.f32 %v734, %v1496
      %v1498 = vpop.f32.mrb[0].mxu0
      %1499 = vmatprep.mubr.f32.mxu0 0.0
      %1500 = vmatmul.mubr.f32.gmra.mrb[0].mxu0 %v924
      %v1501 = vpop.f32.mrb[0].mxu0
      %v1502 = vadd.f32 %v734, %v1501
      %v1503 = vpop.f32.mrb[0].mxu0
      %1504 = vmatprep.mubr.f32.mxu0 0.0
      %1505 = vmatmul.mubr.f32.gmra.mrb[0].mxu0 %v927
      %v1506 = vpop.f32.mrb[0].mxu0
      %v1507 = vadd.f32 %v734, %v1506
      %v1508 = vpop.f32.mrb[0].mxu0
      %1509 = vmatprep.mubr.f32.mxu0 0.0
      %1510 = vmatmul.mubr.f32.gmra.mrb[0].mxu0 %v930
      %v1511 = vpop.f32.mrb[0].mxu0
      %v1512 = vadd.f32 %v734, %v1511
      %v1513 = vpop.f32.mrb[0].mxu0
      %1514 = vmatprep.mubr.f32.mxu0 0.0
      %1515 = vmatmul.mubr.f32.gmra.mrb[0].mxu0 %v933
      %v1516 = vpop.f32.mrb[0].mxu0
      %v1517 = vadd.f32 %v734, %v1516
      %v1518 = vpop.f32.mrb[0].mxu0
      %1519 = vmatprep.mubr.f32.mxu0 0.0
      %1520 = vmatmul.mubr.f32.gmra.mrb[0].mxu0 %v936
      %v1521 = vpop.f32.mrb[0].mxu0
      %v1522 = vadd.f32 %v734, %v1521
      %v1523 = vpop.f32.mrb[0].mxu0
      %1524 = vmatprep.mubr.f32.mxu0 0.0
      %1525 = vmatmul.mubr.f32.gmra.mrb[0].mxu0 %v939
      %v1526 = vpop.f32.mrb[0].mxu0
      %v1527 = vadd.f32 %v734, %v1526
      %v1528 = vpop.f32.mrb[0].mxu0
      %1529 = vmatprep.mubr.f32.mxu0 0.0
      %1530 = vmatmul.mubr.f32.gmra.mrb[0].mxu0 %v942
      %v1531 = vpop.f32.mrb[0].mxu0
      %v1532 = vadd.f32 %v734, %v1531
      %v1533 = vpop.f32.mrb[0].mxu0
      %1534 = vmatprep.mubr.f32.mxu0 0.0
      %1535 = vmatmul.mubr.f32.gmra.mrb[0].mxu0 %v945
      %v1536 = vpop.f32.mrb[0].mxu0
      %v1537 = vadd.f32 %v734, %v1536
      %v1538 = vpop.f32.mrb[0].mxu0
      %1539 = vmatprep.mubr.f32.mxu0 0.0
      %1540 = vmatmul.mubr.f32.gmra.mrb[0].mxu0 %v948
      %v1541 = vpop.f32.mrb[0].mxu0
      %v1542 = vadd.f32 %v734, %v1541
      %v1543 = vpop.f32.mrb[0].mxu0
      %1544 = vmatprep.mubr.f32.mxu0 0.0
      %1545 = vmatmul.mubr.f32.gmra.mrb[0].mxu0 %v951
      %v1546 = vpop.f32.mrb[0].mxu0
      %v1547 = vadd.f32 %v734, %v1546
      %v1548 = vpop.f32.mrb[0].mxu0
      %1549 = vmatprep.mubr.f32.mxu0 0.0
      %1550 = vmatmul.mubr.f32.gmra.mrb[0].mxu0 %v954
      %v1551 = vpop.f32.mrb[0].mxu0
      %v1552 = vadd.f32 %v734, %v1551
      %v1553 = vpop.f32.mrb[0].mxu0
      %1554 = vmatprep.mubr.f32.mxu0 0.0
      %1555 = vmatmul.mubr.f32.gmra.mrb[0].mxu0 %v957
      %v1556 = vpop.f32.mrb[0].mxu0
      %v1557 = vadd.f32 %v734, %v1556
      %v1558 = vpop.f32.mrb[0].mxu0
      %1559 = vmatprep.mubr.f32.mxu0 0.0
      %1560 = vmatmul.mubr.f32.gmra.mrb[0].mxu0 %v960
      %v1561 = vpop.f32.mrb[0].mxu0
      %v1562 = vadd.f32 %v734, %v1561
      %v1563 = vpop.f32.mrb[0].mxu0
      %1564 = vmatprep.mubr.f32.mxu0 0.0
      %1565 = vmatmul.mubr.f32.gmra.mrb[0].mxu0 %v963
      %v1566 = vpop.f32.mrb[0].mxu0
      %v1567 = vadd.f32 %v734, %v1566
      %v1568 = vpop.f32.mrb[0].mxu0
      %1569 = vmatprep.mubr.f32.mxu0 0.0
      %1570 = vmatmul.mubr.f32.gmra.mrb[0].mxu0 %v966
      %v1571 = vpop.f32.mrb[0].mxu0
      %v1572 = vadd.f32 %v734, %v1571
      %v1573 = vpop.f32.mrb[0].mxu0
      %1574 = vmatprep.mubr.f32.mxu0 0.0
      %1575 = vmatmul.mubr.f32.gmra.mrb[0].mxu0 %v969
      %v1576 = vpop.f32.mrb[0].mxu0
      %v1577 = vadd.f32 %v734, %v1576
      %v1578 = vpop.f32.mrb[0].mxu0
      %1579 = vmatprep.mubr.f32.mxu0 0.0
      %1580 = vmatmul.mubr.f32.gmra.mrb[0].mxu0 %v972
      %v1581 = vpop.f32.mrb[0].mxu0
      %v1582 = vadd.f32 %v734, %v1581
      %v1583 = vpop.f32.mrb[0].mxu0
      %1584 = vmatprep.mubr.f32.mxu0 0.0
      %1585 = vmatmul.mubr.f32.gmra.mrb[0].mxu0 %v975
      %v1586 = vpop.f32.mrb[0].mxu0
      %v1587 = vadd.f32 %v734, %v1586
      %v1588 = vpop.f32.mrb[0].mxu0
      %1589 = vmatprep.mubr.f32.mxu0 0.0
      %1590 = vmatmul.mubr.f32.gmra.mrb[0].mxu0 %v978
      %v1591 = vpop.f32.mrb[0].mxu0
      %v1592 = vadd.f32 %v734, %v1591
      %v1593 = vpop.f32.mrb[0].mxu0
      %1594 = vmatprep.mubr.f32.mxu0 0.0
      %1595 = vmatmul.mubr.f32.gmra.mrb[0].mxu0 %v981
      %v1596 = vpop.f32.mrb[0].mxu0
      %v1597 = vadd.f32 %v734, %v1596
      %v1598 = vpop.f32.mrb[0].mxu0
      %1599 = vmatprep.mubr.f32.mxu0 0.0
      %1600 = vmatmul.mubr.f32.gmra.mrb[0].mxu0 %v984
      %v1601 = vpop.f32.mrb[0].mxu0
      %v1602 = vadd.f32 %v734, %v1601
      %v1603 = vpop.f32.mrb[0].mxu0
      %1604 = vmatprep.mubr.f32.mxu0 0.0
      %1605 = vmatmul.mubr.f32.gmra.mrb[0].mxu0 %v987
      %v1606 = vpop.f32.mrb[0].mxu0
      %v1607 = vadd.f32 %v734, %v1606
      %v1608 = vpop.f32.mrb[0].mxu0
      %1609 = vmatprep.mubr.f32.mxu0 0.0
      %1610 = vmatmul.mubr.f32.gmra.mrb[0].mxu0 %v990
      %v1611 = vpop.f32.mrb[0].mxu0
      %v1612 = vadd.f32 %v734, %v1611
      %v1613 = vpop.f32.mrb[0].mxu0
      %1614 = vmatprep.mubr.f32.mxu0 0.0
      %1615 = vmatmul.mubr.f32.gmra.mrb[0].mxu0 %v993
      %v1616 = vpop.f32.mrb[0].mxu0
      %v1617 = vadd.f32 %v734, %v1616
      %v1618 = vpop.f32.mrb[0].mxu0
      %1619 = vmatprep.mubr.f32.mxu0 0.0
      %1620 = vmatmul.mubr.f32.gmra.mrb[0].mxu0 %v996
      %v1621 = vpop.f32.mrb[0].mxu0
      %v1622 = vadd.f32 %v734, %v1621
      %v1623 = vpop.f32.mrb[0].mxu0
      %1624 = vmatprep.mubr.f32.mxu0 0.0
      %1625 = vmatmul.mubr.f32.gmra.mrb[0].mxu0 %v999
      %v1626 = vpop.f32.mrb[0].mxu0
      %v1627 = vadd.f32 %v734, %v1626
      %v1628 = vpop.f32.mrb[0].mxu0
      %1629 = vmatprep.mubr.f32.mxu0 0.0
      %1630 = vmatmul.mubr.f32.gmra.mrb[0].mxu0 %v1002
      %v1631 = vpop.f32.mrb[0].mxu0
      %v1632 = vadd.f32 %v734, %v1631
      %v1633 = vpop.f32.mrb[0].mxu0
      %1634 = vmatprep.mubr.f32.mxu0 0.0
      %1635 = vmatmul.mubr.f32.gmra.mrb[0].mxu0 %v1005
      %v1636 = vpop.f32.mrb[0].mxu0
      %v1637 = vadd.f32 %v734, %v1636
      %v1638 = vpop.f32.mrb[0].mxu0
      %1639 = vmatprep.mubr.f32.mxu0 0.0
      %1640 = vmatmul.mubr.f32.gmra.mrb[0].mxu0 %v1008
      %v1641 = vpop.f32.mrb[0].mxu0
      %v1642 = vadd.f32 %v734, %v1641
      %v1643 = vpop.f32.mrb[0].mxu0
      %1644 = vmatprep.mubr.f32.mxu0 0.0
      %1645 = vmatmul.mubr.f32.gmra.mrb[0].mxu0 %v1011
      %v1646 = vpop.f32.mrb[0].mxu0
      %v1647 = vadd.f32 %v734, %v1646
      %v1648 = vpop.f32.mrb[0].mxu0
      %1649 = vmatprep.mubr.f32.mxu0 0.0
      %1650 = vmatmul.mubr.f32.gmra.mrb[0].mxu0 %v1014
      %v1651 = vpop.f32.mrb[0].mxu0
      %v1652 = vadd.f32 %v734, %v1651
      %v1653 = vpop.f32.mrb[0].mxu0
      %1654 = vmatprep.mubr.f32.mxu0 0.0
      %1655 = vmatmul.mubr.f32.gmra.mrb[0].mxu0 %v1017
      %v1656 = vpop.f32.mrb[0].mxu0
      %v1657 = vadd.f32 %v734, %v1656
      %v1658 = vpop.f32.mrb[0].mxu0
      %1659 = vmatprep.mubr.f32.mxu0 0.0
      %1660 = vmatmul.mubr.f32.gmra.mrb[0].mxu0 %v1020
      %v1661 = vpop.f32.mrb[0].mxu0
      %v1662 = vadd.f32 %v734, %v1661
      %v1663 = vpop.f32.mrb[0].mxu0
      %1664 = vmatprep.mubr.f32.mxu0 0.0
      %1665 = vmatmul.mubr.f32.gmra.mrb[0].mxu0 %v1023
      %v1666 = vpop.f32.mrb[0].mxu0
      %v1667 = vadd.f32 %v734, %v1666
      %v1668 = vpop.f32.mrb[0].mxu0
      %1669 = vmatprep.mubr.f32.mxu0 0.0
      %1670 = vmatmul.mubr.f32.gmra.mrb[0].mxu0 %v1026
      %v1671 = vpop.f32.mrb[0].mxu0
      %v1672 = vadd.f32 %v734, %v1671
      %v1673 = vpop.f32.mrb[0].mxu0
      %1674 = vmatprep.mubr.f32.mxu0 0.0
      %1675 = vmatmul.mubr.f32.gmra.mrb[0].mxu0 %v1029
      %v1676 = vpop.f32.mrb[0].mxu0
      %v1677 = vadd.f32 %v734, %v1676
      %v1678 = vpop.f32.mrb[0].mxu0
      %1679 = vmatprep.mubr.f32.mxu0 0.0
      %1680 = vmatmul.mubr.f32.gmra.mrb[0].mxu0 %v1032
      %v1681 = vpop.f32.mrb[0].mxu0
      %v1682 = vadd.f32 %v734, %v1681
      %v1683 = vpop.f32.mrb[0].mxu0
      %1684 = vmatprep.mubr.f32.mxu0 0.0
      %1685 = vmatmul.mubr.f32.gmra.mrb[0].mxu0 %v1035
      %v1686 = vpop.f32.mrb[0].mxu0
      %v1687 = vadd.f32 %v734, %v1686
      %v1688 = vpop.f32.mrb[0].mxu0
      %1689 = vmatprep.mubr.f32.mxu0 0.0
      %1690 = vmatmul.mubr.f32.gmra.mrb[0].mxu0 %v1038
      %v1691 = vpop.f32.mrb[0].mxu0
      %v1692 = vadd.f32 %v734, %v1691
      %v1693 = vpop.f32.mrb[0].mxu0
      %1694 = vmatprep.mubr.f32.mxu0 0.0
      %1695 = vmatmul.mubr.f32.gmra.mrb[0].mxu0 %v1041
      %v1696 = vpop.f32.mrb[0].mxu0
      %v1697 = vadd.f32 %v734, %v1696
      %v1698 = vpop.f32.mrb[0].mxu0
      %1699 = vmatprep.mubr.f32.mxu0 0.0
      %1700 = vmatmul.mubr.f32.gmra.mrb[0].mxu0 %v1044
      %v1701 = vpop.f32.mrb[0].mxu0
      %v1702 = vadd.f32 %v734, %v1701
      %v1703 = vpop.f32.mrb[0].mxu0
      %1704 = vmatprep.mubr.f32.mxu0 0.0
      %1705 = vmatmul.mubr.f32.gmra.mrb[0].mxu0 %v1047
      %v1706 = vpop.f32.mrb[0].mxu0
      %v1707 = vadd.f32 %v734, %v1706
      %v1708 = vpop.f32.mrb[0].mxu0
      %1709 = vmatprep.mubr.f32.mxu0 0.0
      %1710 = vmatmul.mubr.f32.gmra.mrb[0].mxu0 %v1050
      %v1711 = vpop.f32.mrb[0].mxu0
      %v1712 = vadd.f32 %v734, %v1711
      %v1713 = vpop.f32.mrb[0].mxu0
      %1714 = vmatprep.mubr.f32.mxu0 0.0
      %1715 = vmatmul.mubr.f32.gmra.mrb[0].mxu0 %v1053
      %v1716 = vpop.f32.mrb[0].mxu0
      %v1717 = vadd.f32 %v734, %v1716
      %v1718 = vpop.f32.mrb[0].mxu0
      %1719 = vmatprep.mubr.f32.mxu0 0.0
      %1720 = vmatmul.mubr.f32.gmra.mrb[0].mxu0 %v1056
      %v1721 = vpop.f32.mrb[0].mxu0
      %v1722 = vadd.f32 %v734, %v1721
      %v1723 = vpop.f32.mrb[0].mxu0
      %1724 = vmatprep.mubr.f32.mxu0 0.0
      %1725 = vmatmul.mubr.f32.gmra.mrb[0].mxu0 %v1059
      %v1726 = vpop.f32.mrb[0].mxu0
      %v1727 = vadd.f32 %v734, %v1726
      %v1728 = vpop.f32.mrb[0].mxu0
      %1729 = vmatprep.mubr.f32.mxu0 0.0
      %1730 = vmatmul.mubr.f32.gmra.mrb[0].mxu0 %v1062
      %v1731 = vpop.f32.mrb[0].mxu0
      %v1732 = vadd.f32 %v734, %v1731
      %v1733 = vpop.f32.mrb[0].mxu0
      %1734 = vmatprep.mubr.f32.mxu0 0.0
      %1735 = vmatmul.mubr.f32.gmra.mrb[0].mxu0 %v1065
      %v1736 = vpop.f32.mrb[0].mxu0
      %v1737 = vadd.f32 %v734, %v1736
      %v1738 = vpop.f32.mrb[0].mxu0
      %1739 = vmatprep.mubr.f32.mxu0 0.0
      %1740 = vmatmul.mubr.f32.gmra.mrb[0].mxu0 %v1068
      %v1741 = vpop.f32.mrb[0].mxu0
      %v1742 = vadd.f32 %v734, %v1741
      %v1743 = vpop.f32.mrb[0].mxu0
      %1744 = vmatprep.mubr.f32.mxu0 0.0
      %1745 = vmatmul.mubr.f32.gmra.mrb[0].mxu0 %v1071
      %v1746 = vpop.f32.mrb[0].mxu0
      %v1747 = vadd.f32 %v734, %v1746
      %v1748 = vpop.f32.mrb[0].mxu0
      %1749 = vmatprep.mubr.f32.mxu0 0.0
      %1750 = vmatmul.mubr.f32.gmra.mrb[0].mxu0 %v1074
      %v1751 = vpop.f32.mrb[0].mxu0
      %v1752 = vadd.f32 %v734, %v1751
      %v1753 = vpop.f32.mrb[0].mxu0
      %1754 = vmatprep.mubr.f32.mxu0 0.0
      %1755 = vmatmul.mubr.f32.gmra.mrb[0].mxu0 %v1077
      %v1756 = vpop.f32.mrb[0].mxu0
      %v1757 = vadd.f32 %v734, %v1756
      %v1758 = vpop.f32.mrb[0].mxu0
      %1759 = vmatprep.mubr.f32.mxu0 0.0
      %1760 = vmatmul.mubr.f32.gmra.mrb[0].mxu0 %v1080
      %v1761 = vpop.f32.mrb[0].mxu0
      %v1762 = vadd.f32 %v734, %v1761
      %v1763 = vpop.f32.mrb[0].mxu0
      %1764 = vmatprep.mubr.f32.mxu0 0.0
      %1765 = vmatmul.mubr.f32.gmra.mrb[0].mxu0 %v1083
      %v1766 = vpop.f32.mrb[0].mxu0
      %v1767 = vadd.f32 %v734, %v1766
      %v1768 = vpop.f32.mrb[0].mxu0
      %1769 = vmatprep.mubr.f32.mxu0 0.0
      %1770 = vmatmul.mubr.f32.gmra.mrb[0].mxu0 %v1086
      %v1771 = vpop.f32.mrb[0].mxu0
      %v1772 = vadd.f32 %v734, %v1771
      %v1773 = vpop.f32.mrb[0].mxu0
      %1774 = vmatprep.mubr.f32.mxu0 0.0
      %1775 = vmatmul.mubr.f32.gmra.mrb[0].mxu0 %v1089
      %v1776 = vpop.f32.mrb[0].mxu0
      %v1777 = vadd.f32 %v734, %v1776
      %v1778 = vpop.f32.mrb[0].mxu0
      %1779 = vmatprep.mubr.f32.mxu0 0.0
      %1780 = vmatmul.mubr.f32.gmra.mrb[0].mxu0 %v1092
      %v1781 = vpop.f32.mrb[0].mxu0
      %v1782 = vadd.f32 %v734, %v1781
      %v1783 = vpop.f32.mrb[0].mxu0
      %1784 = vmatprep.mubr.f32.mxu0 0.0
      %1785 = vmatmul.mubr.f32.gmra.mrb[0].mxu0 %v1095
      %v1786 = vpop.f32.mrb[0].mxu0
      %v1787 = vadd.f32 %v734, %v1786
      %v1788 = vpop.f32.mrb[0].mxu0
      %1789 = vmatprep.mubr.f32.mxu0 0.0
      %1790 = vmatmul.mubr.f32.gmra.mrb[0].mxu0 %v1098
      %v1791 = vpop.f32.mrb[0].mxu0
      %v1792 = vadd.f32 %v734, %v1791
      %v1793 = vpop.f32.mrb[0].mxu0
      %1794 = vmatprep.mubr.f32.mxu0 0.0
      %1795 = vmatmul.mubr.f32.gmra.mrb[0].mxu0 %v1101
      %v1796 = vpop.f32.mrb[0].mxu0
      %v1797 = vadd.f32 %v734, %v1796
      %v1798 = vpop.f32.mrb[0].mxu0
      %1799 = vmatprep.mubr.f32.mxu0 0.0
      %1800 = vmatmul.mubr.f32.gmra.mrb[0].mxu0 %v1104
      %v1801 = vpop.f32.mrb[0].mxu0
      %v1802 = vadd.f32 %v734, %v1801
      %v1803 = vpop.f32.mrb[0].mxu0
      %1804 = vmatprep.mubr.f32.mxu0 0.0
      %1805 = vmatmul.mubr.f32.gmra.mrb[0].mxu0 %v1107
      %v1806 = vpop.f32.mrb[0].mxu0
      %v1807 = vadd.f32 %v734, %v1806
      %v1808 = vpop.f32.mrb[0].mxu0
      %1809 = vmatprep.mubr.f32.mxu0 0.0
      %1810 = vmatmul.mubr.f32.gmra.mrb[0].mxu0 %v1110
      %v1811 = vpop.f32.mrb[0].mxu0
      %v1812 = vadd.f32 %v734, %v1811
      %v1813 = vpop.f32.mrb[0].mxu0
      %1814 = vmatprep.mubr.f32.mxu0 0.0
      %1815 = vmatmul.mubr.f32.gmra.mrb[0].mxu0 %v1113
      %v1816 = vpop.f32.mrb[0].mxu0
      %v1817 = vadd.f32 %v734, %v1816
      %v1818 = vpop.f32.mrb[0].mxu0
      %1819 = vmatprep.mubr.f32.mxu0 0.0
      %1820 = vmatmul.mubr.f32.gmra.mrb[0].mxu0 %v1116
      %v1821 = vpop.f32.mrb[0].mxu0
      %v1822 = vadd.f32 %v734, %v1821
      %v1823 = vpop.f32.mrb[0].mxu0
      %1824 = vmatprep.mubr.f32.mxu0 0.0
      %1825 = vmatmul.mubr.f32.gmra.mrb[0].mxu0 %v1119
      %v1826 = vpop.f32.mrb[0].mxu0
      %v1827 = vadd.f32 %v734, %v1826
      %v1828 = vpop.f32.mrb[0].mxu0
      %1829 = vdwg.mxu0
      %v1830 = vmax.f32 %v1192, 0.0
      %v1831 = vmax.f32 %v1197, 0.0
      %v1832 = vmax.f32 %v1202, 0.0
      %v1833 = vmax.f32 %v1207, 0.0
      %v1834 = vmax.f32 %v1212, 0.0
      %v1835 = vmax.f32 %v1217, 0.0
      %v1836 = vmax.f32 %v1222, 0.0
      %v1837 = vmax.f32 %v1227, 0.0
      %v1838 = vmax.f32 %v1232, 0.0
      %v1839 = vmax.f32 %v1237, 0.0
      %v1840 = vmax.f32 %v1242, 0.0
      %v1841 = vmax.f32 %v1247, 0.0
      %v1842 = vmax.f32 %v1252, 0.0
      %v1843 = vmax.f32 %v1257, 0.0
      %v1844 = vmax.f32 %v1262, 0.0
      %v1845 = vmax.f32 %v1267, 0.0
      %v1846 = vmax.f32 %v1272, 0.0
      %v1847 = vmax.f32 %v1277, 0.0
      %v1848 = vmax.f32 %v1282, 0.0
      %v1849 = vmax.f32 %v1287, 0.0
      %v1850 = vmax.f32 %v1292, 0.0
      %v1851 = vmax.f32 %v1297, 0.0
      %v1852 = vmax.f32 %v1302, 0.0
      %v1853 = vmax.f32 %v1307, 0.0
      %v1854 = vmax.f32 %v1312, 0.0
      %v1855 = vmax.f32 %v1317, 0.0
      %v1856 = vmax.f32 %v1322, 0.0
      %v1857 = vmax.f32 %v1327, 0.0
      %v1858 = vmax.f32 %v1332, 0.0
      %v1859 = vmax.f32 %v1337, 0.0
      %v1860 = vmax.f32 %v1342, 0.0
      %v1861 = vmax.f32 %v1347, 0.0
      %v1862 = vmax.f32 %v1352, 0.0
      %v1863 = vmax.f32 %v1357, 0.0
      %v1864 = vmax.f32 %v1362, 0.0
      %v1865 = vmax.f32 %v1367, 0.0
      %v1866 = vmax.f32 %v1372, 0.0
      %v1867 = vmax.f32 %v1377, 0.0
      %v1868 = vmax.f32 %v1382, 0.0
      %v1869 = vmax.f32 %v1387, 0.0
      %v1870 = vmax.f32 %v1392, 0.0
      %v1871 = vmax.f32 %v1397, 0.0
      %v1872 = vmax.f32 %v1402, 0.0
      %v1873 = vmax.f32 %v1407, 0.0
      %v1874 = vmax.f32 %v1412, 0.0
      %v1875 = vmax.f32 %v1417, 0.0
      %v1876 = vmax.f32 %v1422, 0.0
      %v1877 = vmax.f32 %v1427, 0.0
      %v1878 = vmax.f32 %v1432, 0.0
      %v1879 = vmax.f32 %v1437, 0.0
      %v1880 = vmax.f32 %v1442, 0.0
      %v1881 = vmax.f32 %v1447, 0.0
      %v1882 = vmax.f32 %v1452, 0.0
      %v1883 = vmax.f32 %v1457, 0.0
      %v1884 = vmax.f32 %v1462, 0.0
      %v1885 = vmax.f32 %v1467, 0.0
      %v1886 = vmax.f32 %v1472, 0.0
      %v1887 = vmax.f32 %v1477, 0.0
      %v1888 = vmax.f32 %v1482, 0.0
      %v1889 = vmax.f32 %v1487, 0.0
      %v1890 = vmax.f32 %v1492, 0.0
      %v1891 = vmax.f32 %v1497, 0.0
      %v1892 = vmax.f32 %v1502, 0.0
      %v1893 = vmax.f32 %v1507, 0.0
      %v1894 = vmax.f32 %v1512, 0.0
      %v1895 = vmax.f32 %v1517, 0.0
      %v1896 = vmax.f32 %v1522, 0.0
      %v1897 = vmax.f32 %v1527, 0.0
      %v1898 = vmax.f32 %v1532, 0.0
      %v1899 = vmax.f32 %v1537, 0.0
      %v1900 = vmax.f32 %v1542, 0.0
      %v1901 = vmax.f32 %v1547, 0.0
      %v1902 = vmax.f32 %v1552, 0.0
      %v1903 = vmax.f32 %v1557, 0.0
      %v1904 = vmax.f32 %v1562, 0.0
      %v1905 = vmax.f32 %v1567, 0.0
      %v1906 = vmax.f32 %v1572, 0.0
      %v1907 = vmax.f32 %v1577, 0.0
      %v1908 = vmax.f32 %v1582, 0.0
      %v1909 = vmax.f32 %v1587, 0.0
      %v1910 = vmax.f32 %v1592, 0.0
      %v1911 = vmax.f32 %v1597, 0.0
      %v1912 = vmax.f32 %v1602, 0.0
      %v1913 = vmax.f32 %v1607, 0.0
      %v1914 = vmax.f32 %v1612, 0.0
      %v1915 = vmax.f32 %v1617, 0.0
      %v1916 = vmax.f32 %v1622, 0.0
      %v1917 = vmax.f32 %v1627, 0.0
      %v1918 = vmax.f32 %v1632, 0.0
      %v1919 = vmax.f32 %v1637, 0.0
      %v1920 = vmax.f32 %v1642, 0.0
      %v1921 = vmax.f32 %v1647, 0.0
      %v1922 = vmax.f32 %v1652, 0.0
      %v1923 = vmax.f32 %v1657, 0.0
      %v1924 = vmax.f32 %v1662, 0.0
      %v1925 = vmax.f32 %v1667, 0.0
      %v1926 = vmax.f32 %v1672, 0.0
      %v1927 = vmax.f32 %v1677, 0.0
      %v1928 = vmax.f32 %v1682, 0.0
      %v1929 = vmax.f32 %v1687, 0.0
      %v1930 = vmax.f32 %v1692, 0.0
      %v1931 = vmax.f32 %v1697, 0.0
      %v1932 = vmax.f32 %v1702, 0.0
      %v1933 = vmax.f32 %v1707, 0.0
      %v1934 = vmax.f32 %v1712, 0.0
      %v1935 = vmax.f32 %v1717, 0.0
      %v1936 = vmax.f32 %v1722, 0.0
      %v1937 = vmax.f32 %v1727, 0.0
      %v1938 = vmax.f32 %v1732, 0.0
      %v1939 = vmax.f32 %v1737, 0.0
      %v1940 = vmax.f32 %v1742, 0.0
      %v1941 = vmax.f32 %v1747, 0.0
      %v1942 = vmax.f32 %v1752, 0.0
      %v1943 = vmax.f32 %v1757, 0.0
      %v1944 = vmax.f32 %v1762, 0.0
      %v1945 = vmax.f32 %v1767, 0.0
      %v1946 = vmax.f32 %v1772, 0.0
      %v1947 = vmax.f32 %v1777, 0.0
      %v1948 = vmax.f32 %v1782, 0.0
      %v1949 = vmax.f32 %v1787, 0.0
      %v1950 = vmax.f32 %v1792, 0.0
      %v1951 = vmax.f32 %v1797, 0.0
      %v1952 = vmax.f32 %v1802, 0.0
      %v1953 = vmax.f32 %v1807, 0.0
      %v1954 = vmax.f32 %v1812, 0.0
      %v1955 = vmax.f32 %v1817, 0.0
      %v1956 = vmax.f32 %v1822, 0.0
      %v1957 = vmax.f32 %v1827, 0.0
      %v1958 = vld [vmem:[%s589] sm:$0xff]
      %v1959 = vld [vmem:[%s589 + $0x8] sm:$0xff]
      %v1960 = vld [vmem:[%s589 + $0x10] sm:$0xff]
      %v1961 = vld [vmem:[%s589 + $0x18] sm:$0xff]
      %v1962 = vld [vmem:[%s589 + $0x20] sm:$0xff]
      %v1963 = vld [vmem:[%s589 + $0x28] sm:$0xff]
      %v1964 = vld [vmem:[%s589 + $0x30] sm:$0xff]
      %v1965 = vld [vmem:[%s589 + $0x38] sm:$0xff]
      %v1966 = vld [vmem:[%s12] sm:$0xff]
      %v1967 = vld [vmem:[%s12 + $0x8] sm:$0xff]
      %v1968 = vld [vmem:[%s12 + $0x10] sm:$0xff]
      %v1969 = vld [vmem:[%s12 + $0x18] sm:$0xff]
      %vm1970 = vcmask 523264
      %v1972 = vsel %vm1970, %v1966, 0
      %v1975 = vsel %vm1970, %v1967, 0
      %v1978 = vsel %vm1970, %v1968, 0
      %v1981 = vsel %vm1970, %v1969, 0
      %1983 = vmatprep.subr.mxu0 0.0
      %1984 = vmatpush1.msra.mxu0 %v1958
      %1985 = vmatprep.subr.mxu0 0.0
      %1986 = vmatpush1.msra.mxu0 %v1959
      %1987 = vmatprep.subr.mxu0 0.0
      %1988 = vmatpush1.msra.mxu0 %v1960
      %1989 = vmatprep.subr.mxu0 0.0
      %1990 = vmatpush1.msra.mxu0 %v1961
      %1991 = vmatprep.subr.mxu0 0.0
      %1992 = vmatpush1.msra.mxu0 %v1962
      %1993 = vmatprep.subr.mxu0 0.0
      %1994 = vmatpush1.msra.mxu0 %v1963
      %1995 = vmatprep.subr.mxu0 0.0
      %1996 = vmatpush1.msra.mxu0 %v1964
      %1997 = vmatprep.subr.mxu0 0.0
      %1998 = vmatpush1.msra.mxu0 %v1965
      %1999 = vmatprep.subr.mxu0 0.0
      %2000 = vmatpush1.msra.mxu0 0.0
      %2001 = vmatprep.subr.mxu0 0.0
      %2002 = vmatpush1.msra.mxu0 0.0
      %2003 = vmatprep.subr.mxu0 0.0
      %2004 = vmatpush1.msra.mxu0 0.0
      %2005 = vmatprep.subr.mxu0 0.0
      %2006 = vmatpush1.msra.mxu0 0.0
      %2007 = vmatprep.subr.mxu0 0.0
      %2008 = vmatpush1.msra.mxu0 0.0
      %2009 = vmatprep.subr.mxu0 0.0
      %2010 = vmatpush1.msra.mxu0 0.0
      %2011 = vmatprep.subr.mxu0 0.0
      %2012 = vmatpush1.msra.mxu0 0.0
      %2013 = vmatprep.subr.mxu0 0.0
      %2014 = vmatpush1.msra.mxu0 0.0
      %2015 = vmatprep.subr.mxu0 0.0
      %2016 = vmatpush1.msra.mxu0 0.0
      %2017 = vmatprep.subr.mxu0 0.0
      %2018 = vmatpush1.msra.mxu0 0.0
      %2019 = vmatprep.subr.mxu0 0.0
      %2020 = vmatpush1.msra.mxu0 0.0
      %2021 = vmatprep.subr.mxu0 0.0
      %2022 = vmatpush1.msra.mxu0 0.0
      %2023 = vmatprep.subr.mxu0 0.0
      %2024 = vmatpush1.msra.mxu0 0.0
      %2025 = vmatprep.subr.mxu0 0.0
      %2026 = vmatpush1.msra.mxu0 0.0
      %2027 = vmatprep.subr.mxu0 0.0
      %2028 = vmatpush1.msra.mxu0 0.0
      %2029 = vmatprep.subr.mxu0 0.0
      %2030 = vmatpush1.msra.mxu0 0.0
      %2031 = vmatprep.subr.mxu0 0.0
      %2032 = vmatpush1.msra.mxu0 0.0
      %2033 = vmatprep.subr.mxu0 0.0
      %2034 = vmatpush1.msra.mxu0 0.0
      %2035 = vmatprep.subr.mxu0 0.0
      %2036 = vmatpush1.msra.mxu0 0.0
      %2037 = vmatprep.subr.mxu0 0.0
      %2038 = vmatpush1.msra.mxu0 0.0
      %2039 = vmatprep.subr.mxu0 0.0
      %2040 = vmatpush1.msra.mxu0 0.0
      %2041 = vmatprep.subr.mxu0 0.0
      %2042 = vmatpush1.msra.mxu0 0.0
      %2043 = vmatprep.subr.mxu0 0.0
      %2044 = vmatpush1.msra.mxu0 0.0
      %2045 = vmatprep.subr.mxu0 0.0
      %2046 = vmatpush1.msra.mxu0 0.0
      %2047 = vmatprep.mubr.f32.mxu0 0.0
      %2048 = vmatmul.mubr.f32.gmra.mrb[0].mxu0 %v1972
      %v2049 = vpop.f32.mrb[0].mxu0
      %v2050 = vadd.f32 0.0, %v2049
      %v2051 = vpop.f32.mrb[0].mxu0
      %2052 = vmatprep.mubr.f32.mxu0 0.0
      %2053 = vmatmul.mubr.f32.gmra.mrb[0].mxu0 %v1975
      %v2054 = vpop.f32.mrb[0].mxu0
      %v2055 = vadd.f32 0.0, %v2054
      %v2056 = vpop.f32.mrb[0].mxu0
      %2057 = vmatprep.mubr.f32.mxu0 0.0
      %2058 = vmatmul.mubr.f32.gmra.mrb[0].mxu0 %v1978
      %v2059 = vpop.f32.mrb[0].mxu0
      %v2060 = vadd.f32 0.0, %v2059
      %v2061 = vpop.f32.mrb[0].mxu0
      %2062 = vmatprep.mubr.f32.mxu0 0.0
      %2063 = vmatmul.mubr.f32.gmra.mrb[0].mxu0 %v1981
      %v2064 = vpop.f32.mrb[0].mxu0
      %v2065 = vadd.f32 0.0, %v2064
      %v2066 = vpop.f32.mrb[0].mxu0
      %2067 = vdwg.mxu0
      %v2068 = vld [vmem:[%s13] sm:$0xff]
      %v2069 = vld [vmem:[%s13 + $0x8] sm:$0xff]
      %v2070 = vld [vmem:[%s13 + $0x10] sm:$0xff]
      %v2071 = vld [vmem:[%s13 + $0x18] sm:$0xff]
      %v2072 = vld [vmem:[%s13 + $0x20] sm:$0xff]
      %v2073 = vld [vmem:[%s13 + $0x28] sm:$0xff]
      %v2074 = vld [vmem:[%s13 + $0x30] sm:$0xff]
      %v2075 = vld [vmem:[%s13 + $0x38] sm:$0xff]
      %v2077 = vsel %vm1970, %v2050, 0
      %v2080 = vsel %vm1970, %v2055, 0
      %v2083 = vsel %vm1970, %v2060, 0
      %v2086 = vsel %vm1970, %v2065, 0
      %2088 = vmatprep.subr.mxu0 0.0
      %2089 = vmatpush1.msra.mxu0 %v2068
      %2090 = vmatprep.subr.mxu0 0.0
      %2091 = vmatpush1.msra.mxu0 %v2069
      %2092 = vmatprep.subr.mxu0 0.0
      %2093 = vmatpush1.msra.mxu0 %v2070
      %2094 = vmatprep.subr.mxu0 0.0
      %2095 = vmatpush1.msra.mxu0 %v2071
      %2096 = vmatprep.subr.mxu0 0.0
      %2097 = vmatpush1.msra.mxu0 %v2072
      %2098 = vmatprep.subr.mxu0 0.0
      %2099 = vmatpush1.msra.mxu0 %v2073
      %2100 = vmatprep.subr.mxu0 0.0
      %2101 = vmatpush1.msra.mxu0 %v2074
      %2102 = vmatprep.subr.mxu0 0.0
      %2103 = vmatpush1.msra.mxu0 %v2075
      %2104 = vmatprep.subr.mxu0 0.0
      %2105 = vmatpush1.msra.mxu0 0.0
      %2106 = vmatprep.subr.mxu0 0.0
      %2107 = vmatpush1.msra.mxu0 0.0
      %2108 = vmatprep.subr.mxu0 0.0
      %2109 = vmatpush1.msra.mxu0 0.0
      %2110 = vmatprep.subr.mxu0 0.0
      %2111 = vmatpush1.msra.mxu0 0.0
      %2112 = vmatprep.subr.mxu0 0.0
      %2113 = vmatpush1.msra.mxu0 0.0
      %2114 = vmatprep.subr.mxu0 0.0
      %2115 = vmatpush1.msra.mxu0 0.0
      %2116 = vmatprep.subr.mxu0 0.0
      %2117 = vmatpush1.msra.mxu0 0.0
      %2118 = vmatprep.subr.mxu0 0.0
      %2119 = vmatpush1.msra.mxu0 0.0
      %2120 = vmatprep.subr.mxu0 0.0
      %2121 = vmatpush1.msra.mxu0 0.0
      %2122 = vmatprep.subr.mxu0 0.0
      %2123 = vmatpush1.msra.mxu0 0.0
      %2124 = vmatprep.subr.mxu0 0.0
      %2125 = vmatpush1.msra.mxu0 0.0
      %2126 = vmatprep.subr.mxu0 0.0
      %2127 = vmatpush1.msra.mxu0 0.0
      %2128 = vmatprep.subr.mxu0 0.0
      %2129 = vmatpush1.msra.mxu0 0.0
      %2130 = vmatprep.subr.mxu0 0.0
      %2131 = vmatpush1.msra.mxu0 0.0
      %2132 = vmatprep.subr.mxu0 0.0
      %2133 = vmatpush1.msra.mxu0 0.0
      %2134 = vmatprep.subr.mxu0 0.0
      %2135 = vmatpush1.msra.mxu0 0.0
      %2136 = vmatprep.subr.mxu0 0.0
      %2137 = vmatpush1.msra.mxu0 0.0
      %2138 = vmatprep.subr.mxu0 0.0
      %2139 = vmatpush1.msra.mxu0 0.0
      %2140 = vmatprep.subr.mxu0 0.0
      %2141 = vmatpush1.msra.mxu0 0.0
      %2142 = vmatprep.subr.mxu0 0.0
      %2143 = vmatpush1.msra.mxu0 0.0
      %2144 = vmatprep.subr.mxu0 0.0
      %2145 = vmatpush1.msra.mxu0 0.0
      %2146 = vmatprep.subr.mxu0 0.0
      %2147 = vmatpush1.msra.mxu0 0.0
      %2148 = vmatprep.subr.mxu0 0.0
      %2149 = vmatpush1.msra.mxu0 0.0
      %2150 = vmatprep.subr.mxu0 0.0
      %2151 = vmatpush1.msra.mxu0 0.0
      %2152 = vmatprep.mubr.f32.mxu0 0.0
      %2153 = vmatmul.mubr.f32.gmra.mrb[0].mxu0 %v2077
      %v2154 = vpop.f32.mrb[0].mxu0
      %v2155 = vadd.f32 0.0, %v2154
      %v2156 = vpop.f32.mrb[0].mxu0
      %2157 = vmatprep.mubr.f32.mxu0 0.0
      %2158 = vmatmul.mubr.f32.gmra.mrb[0].mxu0 %v2080
      %v2159 = vpop.f32.mrb[0].mxu0
      %v2160 = vadd.f32 0.0, %v2159
      %v2161 = vpop.f32.mrb[0].mxu0
      %2162 = vmatprep.mubr.f32.mxu0 0.0
      %2163 = vmatmul.mubr.f32.gmra.mrb[0].mxu0 %v2083
      %v2164 = vpop.f32.mrb[0].mxu0
      %v2165 = vadd.f32 0.0, %v2164
      %v2166 = vpop.f32.mrb[0].mxu0
      %2167 = vmatprep.mubr.f32.mxu0 0.0
      %2168 = vmatmul.mubr.f32.gmra.mrb[0].mxu0 %v2086
      %v2169 = vpop.f32.mrb[0].mxu0
      %v2170 = vadd.f32 0.0, %v2169
      %v2171 = vpop.f32.mrb[0].mxu0
      %2172 = vdwg.mxu0
      %v2173 = vld [vmem:[%s14] sm:$0xff]
      %v2174 = vld [vmem:[%s14 + $0x8] sm:$0xff]
      %v2176 = vsel %vm1970, %v2173, 0
      %v2179 = vsel %vm1970, %v2174, 0
      %2181 = vmatprep.subr.mxu0 0.0
      %2182 = vmatpush1.msra.mxu0 %v1958
      %2183 = vmatprep.subr.mxu0 0.0
      %2184 = vmatpush1.msra.mxu0 %v1959
      %2185 = vmatprep.subr.mxu0 0.0
      %2186 = vmatpush1.msra.mxu0 %v1960
      %2187 = vmatprep.subr.mxu0 0.0
      %2188 = vmatpush1.msra.mxu0 %v1961
      %2189 = vmatprep.subr.mxu0 0.0
      %2190 = vmatpush1.msra.mxu0 %v1962
      %2191 = vmatprep.subr.mxu0 0.0
      %2192 = vmatpush1.msra.mxu0 %v1963
      %2193 = vmatprep.subr.mxu0 0.0
      %2194 = vmatpush1.msra.mxu0 %v1964
      %2195 = vmatprep.subr.mxu0 0.0
      %2196 = vmatpush1.msra.mxu0 %v1965
      %2197 = vmatprep.subr.mxu0 0.0
      %2198 = vmatpush1.msra.mxu0 0.0
      %2199 = vmatprep.subr.mxu0 0.0
      %2200 = vmatpush1.msra.mxu0 0.0
      %2201 = vmatprep.subr.mxu0 0.0
      %2202 = vmatpush1.msra.mxu0 0.0
      %2203 = vmatprep.subr.mxu0 0.0
      %2204 = vmatpush1.msra.mxu0 0.0
      %2205 = vmatprep.subr.mxu0 0.0
      %2206 = vmatpush1.msra.mxu0 0.0
      %2207 = vmatprep.subr.mxu0 0.0
      %2208 = vmatpush1.msra.mxu0 0.0
      %2209 = vmatprep.subr.mxu0 0.0
      %2210 = vmatpush1.msra.mxu0 0.0
      %2211 = vmatprep.subr.mxu0 0.0
      %2212 = vmatpush1.msra.mxu0 0.0
      %2213 = vmatprep.subr.mxu0 0.0
      %2214 = vmatpush1.msra.mxu0 0.0
      %2215 = vmatprep.subr.mxu0 0.0
      %2216 = vmatpush1.msra.mxu0 0.0
      %2217 = vmatprep.subr.mxu0 0.0
      %2218 = vmatpush1.msra.mxu0 0.0
      %2219 = vmatprep.subr.mxu0 0.0
      %2220 = vmatpush1.msra.mxu0 0.0
      %2221 = vmatprep.subr.mxu0 0.0
      %2222 = vmatpush1.msra.mxu0 0.0
      %2223 = vmatprep.subr.mxu0 0.0
      %2224 = vmatpush1.msra.mxu0 0.0
      %2225 = vmatprep.subr.mxu0 0.0
      %2226 = vmatpush1.msra.mxu0 0.0
      %2227 = vmatprep.subr.mxu0 0.0
      %2228 = vmatpush1.msra.mxu0 0.0
      %2229 = vmatprep.subr.mxu0 0.0
      %2230 = vmatpush1.msra.mxu0 0.0
      %2231 = vmatprep.subr.mxu0 0.0
      %2232 = vmatpush1.msra.mxu0 0.0
      %2233 = vmatprep.subr.mxu0 0.0
      %2234 = vmatpush1.msra.mxu0 0.0
      %2235 = vmatprep.subr.mxu0 0.0
      %2236 = vmatpush1.msra.mxu0 0.0
      %2237 = vmatprep.subr.mxu0 0.0
      %2238 = vmatpush1.msra.mxu0 0.0
      %2239 = vmatprep.subr.mxu0 0.0
      %2240 = vmatpush1.msra.mxu0 0.0
      %2241 = vmatprep.subr.mxu0 0.0
      %2242 = vmatpush1.msra.mxu0 0.0
      %2243 = vmatprep.subr.mxu0 0.0
      %2244 = vmatpush1.msra.mxu0 0.0
      %2245 = vmatprep.mubr.f32.mxu0 0.0
      %2246 = vmatmul.mubr.f32.gmra.mrb[0].mxu0 %v2176
      %v2247 = vpop.f32.mrb[0].mxu0
      %v2248 = vadd.f32 0.0, %v2247
      %v2249 = vpop.f32.mrb[0].mxu0
      %2250 = vmatprep.mubr.f32.mxu0 0.0
      %2251 = vmatmul.mubr.f32.gmra.mrb[0].mxu0 %v2179
      %v2252 = vpop.f32.mrb[0].mxu0
      %v2253 = vadd.f32 0.0, %v2252
      %v2254 = vpop.f32.mrb[0].mxu0
      %2255 = vdwg.mxu0
      %v2256 = vld [vmem:[%s15] sm:$0xff]
      %v2257 = vld [vmem:[%s15 + $0x8] sm:$0xff]
      %v2258 = vld [vmem:[%s15 + $0x10] sm:$0xff]
      %v2259 = vld [vmem:[%s15 + $0x18] sm:$0xff]
      %v2260 = vld [vmem:[%s15 + $0x20] sm:$0xff]
      %v2261 = vld [vmem:[%s15 + $0x28] sm:$0xff]
      %v2262 = vld [vmem:[%s15 + $0x30] sm:$0xff]
      %v2263 = vld [vmem:[%s15 + $0x38] sm:$0xff]
      %v2265 = vsel %vm1970, %v2248, 0
      %v2268 = vsel %vm1970, %v2253, 0
      %2270 = vmatprep.subr.mxu0 0.0
      %2271 = vmatpush1.msra.mxu0 %v2256
      %2272 = vmatprep.subr.mxu0 0.0
      %2273 = vmatpush1.msra.mxu0 %v2257
      %2274 = vmatprep.subr.mxu0 0.0
      %2275 = vmatpush1.msra.mxu0 %v2258
      %2276 = vmatprep.subr.mxu0 0.0
      %2277 = vmatpush1.msra.mxu0 %v2259
      %2278 = vmatprep.subr.mxu0 0.0
      %2279 = vmatpush1.msra.mxu0 %v2260
      %2280 = vmatprep.subr.mxu0 0.0
      %2281 = vmatpush1.msra.mxu0 %v2261
      %2282 = vmatprep.subr.mxu0 0.0
      %2283 = vmatpush1.msra.mxu0 %v2262
      %2284 = vmatprep.subr.mxu0 0.0
      %2285 = vmatpush1.msra.mxu0 %v2263
      %2286 = vmatprep.subr.mxu0 0.0
      %2287 = vmatpush1.msra.mxu0 0.0
      %2288 = vmatprep.subr.mxu0 0.0
      %2289 = vmatpush1.msra.mxu0 0.0
      %2290 = vmatprep.subr.mxu0 0.0
      %2291 = vmatpush1.msra.mxu0 0.0
      %2292 = vmatprep.subr.mxu0 0.0
      %2293 = vmatpush1.msra.mxu0 0.0
      %2294 = vmatprep.subr.mxu0 0.0
      %2295 = vmatpush1.msra.mxu0 0.0
      %2296 = vmatprep.subr.mxu0 0.0
      %2297 = vmatpush1.msra.mxu0 0.0
      %2298 = vmatprep.subr.mxu0 0.0
      %2299 = vmatpush1.msra.mxu0 0.0
      %2300 = vmatprep.subr.mxu0 0.0
      %2301 = vmatpush1.msra.mxu0 0.0
      %2302 = vmatprep.subr.mxu0 0.0
      %2303 = vmatpush1.msra.mxu0 0.0
      %2304 = vmatprep.subr.mxu0 0.0
      %2305 = vmatpush1.msra.mxu0 0.0
      %2306 = vmatprep.subr.mxu0 0.0
      %2307 = vmatpush1.msra.mxu0 0.0
      %2308 = vmatprep.subr.mxu0 0.0
      %2309 = vmatpush1.msra.mxu0 0.0
      %2310 = vmatprep.subr.mxu0 0.0
      %2311 = vmatpush1.msra.mxu0 0.0
      %2312 = vmatprep.subr.mxu0 0.0
      %2313 = vmatpush1.msra.mxu0 0.0
      %2314 = vmatprep.subr.mxu0 0.0
      %2315 = vmatpush1.msra.mxu0 0.0
      %2316 = vmatprep.subr.mxu0 0.0
      %2317 = vmatpush1.msra.mxu0 0.0
      %2318 = vmatprep.subr.mxu0 0.0
      %2319 = vmatpush1.msra.mxu0 0.0
      %2320 = vmatprep.subr.mxu0 0.0
      %2321 = vmatpush1.msra.mxu0 0.0
      %2322 = vmatprep.subr.mxu0 0.0
      %2323 = vmatpush1.msra.mxu0 0.0
      %2324 = vmatprep.subr.mxu0 0.0
      %2325 = vmatpush1.msra.mxu0 0.0
      %2326 = vmatprep.subr.mxu0 0.0
      %2327 = vmatpush1.msra.mxu0 0.0
      %2328 = vmatprep.subr.mxu0 0.0
      %2329 = vmatpush1.msra.mxu0 0.0
      %2330 = vmatprep.subr.mxu0 0.0
      %2331 = vmatpush1.msra.mxu0 0.0
      %2332 = vmatprep.subr.mxu0 0.0
      %2333 = vmatpush1.msra.mxu0 0.0
      %2334 = vmatprep.mubr.f32.mxu0 0.0
      %2335 = vmatmul.mubr.f32.gmra.mrb[0].mxu0 %v2265
      %v2336 = vpop.f32.mrb[0].mxu0
      %v2337 = vadd.f32 0.0, %v2336
      %v2338 = vpop.f32.mrb[0].mxu0
      %2339 = vmatprep.mubr.f32.mxu0 0.0
      %2340 = vmatmul.mubr.f32.gmra.mrb[0].mxu0 %v2268
      %v2341 = vpop.f32.mrb[0].mxu0
      %v2342 = vadd.f32 0.0, %v2341
      %v2343 = vpop.f32.mrb[0].mxu0
      %2344 = vdwg.mxu0
      %v2345 = vld [vmem:[%s16] sm:$0xff]
      %v2347 = vsel %vm1970, %v2345, 0
      %2349 = vmatprep.subr.mxu0 0.0
      %2350 = vmatpush1.msra.mxu0 %v1958
      %2351 = vmatprep.subr.mxu0 0.0
      %2352 = vmatpush1.msra.mxu0 %v1959
      %2353 = vmatprep.subr.mxu0 0.0
      %2354 = vmatpush1.msra.mxu0 %v1960
      %2355 = vmatprep.subr.mxu0 0.0
      %2356 = vmatpush1.msra.mxu0 %v1961
      %2357 = vmatprep.subr.mxu0 0.0
      %2358 = vmatpush1.msra.mxu0 %v1962
      %2359 = vmatprep.subr.mxu0 0.0
      %2360 = vmatpush1.msra.mxu0 %v1963
      %2361 = vmatprep.subr.mxu0 0.0
      %2362 = vmatpush1.msra.mxu0 %v1964
      %2363 = vmatprep.subr.mxu0 0.0
      %2364 = vmatpush1.msra.mxu0 %v1965
      %2365 = vmatprep.subr.mxu0 0.0
      %2366 = vmatpush1.msra.mxu0 0.0
      %2367 = vmatprep.subr.mxu0 0.0
      %2368 = vmatpush1.msra.mxu0 0.0
      %2369 = vmatprep.subr.mxu0 0.0
      %2370 = vmatpush1.msra.mxu0 0.0
      %2371 = vmatprep.subr.mxu0 0.0
      %2372 = vmatpush1.msra.mxu0 0.0
      %2373 = vmatprep.subr.mxu0 0.0
      %2374 = vmatpush1.msra.mxu0 0.0
      %2375 = vmatprep.subr.mxu0 0.0
      %2376 = vmatpush1.msra.mxu0 0.0
      %2377 = vmatprep.subr.mxu0 0.0
      %2378 = vmatpush1.msra.mxu0 0.0
      %2379 = vmatprep.subr.mxu0 0.0
      %2380 = vmatpush1.msra.mxu0 0.0
      %2381 = vmatprep.subr.mxu0 0.0
      %2382 = vmatpush1.msra.mxu0 0.0
      %2383 = vmatprep.subr.mxu0 0.0
      %2384 = vmatpush1.msra.mxu0 0.0
      %2385 = vmatprep.subr.mxu0 0.0
      %2386 = vmatpush1.msra.mxu0 0.0
      %2387 = vmatprep.subr.mxu0 0.0
      %2388 = vmatpush1.msra.mxu0 0.0
      %2389 = vmatprep.subr.mxu0 0.0
      %2390 = vmatpush1.msra.mxu0 0.0
      %2391 = vmatprep.subr.mxu0 0.0
      %2392 = vmatpush1.msra.mxu0 0.0
      %2393 = vmatprep.subr.mxu0 0.0
      %2394 = vmatpush1.msra.mxu0 0.0
      %2395 = vmatprep.subr.mxu0 0.0
      %2396 = vmatpush1.msra.mxu0 0.0
      %2397 = vmatprep.subr.mxu0 0.0
      %2398 = vmatpush1.msra.mxu0 0.0
      %2399 = vmatprep.subr.mxu0 0.0
      %2400 = vmatpush1.msra.mxu0 0.0
      %2401 = vmatprep.subr.mxu0 0.0
      %2402 = vmatpush1.msra.mxu0 0.0
      %2403 = vmatprep.subr.mxu0 0.0
      %2404 = vmatpush1.msra.mxu0 0.0
      %2405 = vmatprep.subr.mxu0 0.0
      %2406 = vmatpush1.msra.mxu0 0.0
      %2407 = vmatprep.subr.mxu0 0.0
      %2408 = vmatpush1.msra.mxu0 0.0
      %2409 = vmatprep.subr.mxu0 0.0
      %2410 = vmatpush1.msra.mxu0 0.0
      %2411 = vmatprep.subr.mxu0 0.0
      %2412 = vmatpush1.msra.mxu0 0.0
      %2413 = vmatprep.mubr.f32.mxu0 0.0
      %2414 = vmatmul.mubr.f32.gmra.mrb[0].mxu0 %v2347
      %v2415 = vpop.f32.mrb[0].mxu0
      %v2416 = vadd.f32 0.0, %v2415
      %v2417 = vpop.f32.mrb[0].mxu0
      %2418 = vdwg.mxu0
      %v2419 = vld [vmem:[%s17] sm:$0xff]
      %v2420 = vld [vmem:[%s17 + $0x8] sm:$0xff]
      %v2421 = vld [vmem:[%s17 + $0x10] sm:$0xff]
      %v2422 = vld [vmem:[%s17 + $0x18] sm:$0xff]
      %v2423 = vld [vmem:[%s17 + $0x20] sm:$0xff]
      %v2424 = vld [vmem:[%s17 + $0x28] sm:$0xff]
      %v2425 = vld [vmem:[%s17 + $0x30] sm:$0xff]
      %v2426 = vld [vmem:[%s17 + $0x38] sm:$0xff]
      %v2428 = vsel %vm1970, %v2416, 0
      %2430 = vmatprep.subr.mxu0 0.0
      %2431 = vmatpush1.msra.mxu0 %v2419
      %2432 = vmatprep.subr.mxu0 0.0
      %2433 = vmatpush1.msra.mxu0 %v2420
      %2434 = vmatprep.subr.mxu0 0.0
      %2435 = vmatpush1.msra.mxu0 %v2421
      %2436 = vmatprep.subr.mxu0 0.0
      %2437 = vmatpush1.msra.mxu0 %v2422
      %2438 = vmatprep.subr.mxu0 0.0
      %2439 = vmatpush1.msra.mxu0 %v2423
      %2440 = vmatprep.subr.mxu0 0.0
      %2441 = vmatpush1.msra.mxu0 %v2424
      %2442 = vmatprep.subr.mxu0 0.0
      %2443 = vmatpush1.msra.mxu0 %v2425
      %2444 = vmatprep.subr.mxu0 0.0
      %2445 = vmatpush1.msra.mxu0 %v2426
      %2446 = vmatprep.subr.mxu0 0.0
      %2447 = vmatpush1.msra.mxu0 0.0
      %2448 = vmatprep.subr.mxu0 0.0
      %2449 = vmatpush1.msra.mxu0 0.0
      %2450 = vmatprep.subr.mxu0 0.0
      %2451 = vmatpush1.msra.mxu0 0.0
      %2452 = vmatprep.subr.mxu0 0.0
      %2453 = vmatpush1.msra.mxu0 0.0
      %2454 = vmatprep.subr.mxu0 0.0
      %2455 = vmatpush1.msra.mxu0 0.0
      %2456 = vmatprep.subr.mxu0 0.0
      %2457 = vmatpush1.msra.mxu0 0.0
      %2458 = vmatprep.subr.mxu0 0.0
      %2459 = vmatpush1.msra.mxu0 0.0
      %2460 = vmatprep.subr.mxu0 0.0
      %2461 = vmatpush1.msra.mxu0 0.0
      %2462 = vmatprep.subr.mxu0 0.0
      %2463 = vmatpush1.msra.mxu0 0.0
      %2464 = vmatprep.subr.mxu0 0.0
      %2465 = vmatpush1.msra.mxu0 0.0
      %2466 = vmatprep.subr.mxu0 0.0
      %2467 = vmatpush1.msra.mxu0 0.0
      %2468 = vmatprep.subr.mxu0 0.0
      %2469 = vmatpush1.msra.mxu0 0.0
      %2470 = vmatprep.subr.mxu0 0.0
      %2471 = vmatpush1.msra.mxu0 0.0
      %2472 = vmatprep.subr.mxu0 0.0
      %2473 = vmatpush1.msra.mxu0 0.0
      %2474 = vmatprep.subr.mxu0 0.0
      %2475 = vmatpush1.msra.mxu0 0.0
      %2476 = vmatprep.subr.mxu0 0.0
      %2477 = vmatpush1.msra.mxu0 0.0
      %2478 = vmatprep.subr.mxu0 0.0
      %2479 = vmatpush1.msra.mxu0 0.0
      %2480 = vmatprep.subr.mxu0 0.0
      %2481 = vmatpush1.msra.mxu0 0.0
      %2482 = vmatprep.subr.mxu0 0.0
      %2483 = vmatpush1.msra.mxu0 0.0
      %2484 = vmatprep.subr.mxu0 0.0
      %2485 = vmatpush1.msra.mxu0 0.0
      %2486 = vmatprep.subr.mxu0 0.0
      %2487 = vmatpush1.msra.mxu0 0.0
      %2488 = vmatprep.subr.mxu0 0.0
      %2489 = vmatpush1.msra.mxu0 0.0
      %2490 = vmatprep.subr.mxu0 0.0
      %2491 = vmatpush1.msra.mxu0 0.0
      %2492 = vmatprep.subr.mxu0 0.0
      %2493 = vmatpush1.msra.mxu0 0.0
      %2494 = vmatprep.mubr.f32.mxu0 0.0
      %2495 = vmatmul.mubr.f32.gmra.mrb[0].mxu0 %v2428
      %v2496 = vpop.f32.mrb[0].mxu0
      %v2497 = vadd.f32 0.0, %v2496
      %v2498 = vpop.f32.mrb[0].mxu0
      %2499 = vdwg.mxu0
      %v2500 = vlaneseq
      %v2501 = vshrl.u32 %v2500, 7
      %v2502 = vsub.s32 0, %v2501
      %v2503 = vrot.slane %v2155, %v2502
      %2505 = vbcast.lane.b32.xlu0 %v2503, 256
      %v2506 = vpop.permute.xlu0 %2505
      %v2507 = vlaneseq
      %v2508 = vshrl.u32 %v2507, 7
      %v2509 = vsub.s32 1, %v2508
      %v2510 = vrot.slane %v2155, %v2509
      %2512 = vbcast.lane.b32.xlu0 %v2510, 256
      %v2513 = vpop.permute.xlu0 %2512
      %v2514 = vlaneseq
      %v2515 = vshrl.u32 %v2514, 7
      %v2516 = vsub.s32 2, %v2515
      %v2517 = vrot.slane %v2155, %v2516
      %2519 = vbcast.lane.b32.xlu0 %v2517, 256
      %v2520 = vpop.permute.xlu0 %2519
      %v2521 = vlaneseq
      %v2522 = vshrl.u32 %v2521, 7
      %v2523 = vsub.s32 3, %v2522
      %v2524 = vrot.slane %v2155, %v2523
      %2526 = vbcast.lane.b32.xlu0 %v2524, 256
      %v2527 = vpop.permute.xlu0 %2526
      %v2528 = vlaneseq
      %v2529 = vshrl.u32 %v2528, 7
      %v2530 = vsub.s32 4, %v2529
      %v2531 = vrot.slane %v2155, %v2530
      %2533 = vbcast.lane.b32.xlu0 %v2531, 256
      %v2534 = vpop.permute.xlu0 %2533
      %v2535 = vlaneseq
      %v2536 = vshrl.u32 %v2535, 7
      %v2537 = vsub.s32 5, %v2536
      %v2538 = vrot.slane %v2155, %v2537
      %2540 = vbcast.lane.b32.xlu0 %v2538, 256
      %v2541 = vpop.permute.xlu0 %2540
      %v2542 = vlaneseq
      %v2543 = vshrl.u32 %v2542, 7
      %v2544 = vsub.s32 6, %v2543
      %v2545 = vrot.slane %v2155, %v2544
      %2547 = vbcast.lane.b32.xlu0 %v2545, 256
      %v2548 = vpop.permute.xlu0 %2547
      %v2549 = vlaneseq
      %v2550 = vshrl.u32 %v2549, 7
      %v2551 = vsub.s32 7, %v2550
      %v2552 = vrot.slane %v2155, %v2551
      %2554 = vbcast.lane.b32.xlu0 %v2552, 256
      %v2555 = vpop.permute.xlu0 %2554
      %2564 = vrot.lane.b32.xlu0 %v1830, 1
      %v2565 = vpop.permute.xlu0 %2564
      %2566 = vrot.lane.b32.xlu0 %v1831, 1
      %v2567 = vpop.permute.xlu0 %2566
      %2568 = vrot.lane.b32.xlu0 %v1832, 1
      %v2569 = vpop.permute.xlu0 %2568
      %2570 = vrot.lane.b32.xlu0 %v1833, 1
      %v2571 = vpop.permute.xlu0 %2570
      %2572 = vrot.lane.b32.xlu0 %v1834, 1
      %v2573 = vpop.permute.xlu0 %2572
      %2574 = vrot.lane.b32.xlu0 %v1835, 1
      %v2575 = vpop.permute.xlu0 %2574
      %2576 = vrot.lane.b32.xlu0 %v1836, 1
      %v2577 = vpop.permute.xlu0 %2576
      %2578 = vrot.lane.b32.xlu0 %v1837, 1
      %v2579 = vpop.permute.xlu0 %2578
      %vm2588 = vcmask 7168
      %v2589 = vsel %vm2588, %v2506, %v2565
      %v2590 = vsel %vm2588, %v2513, %v2567
      %v2591 = vsel %vm2588, %v2520, %v2569
      %v2592 = vsel %vm2588, %v2527, %v2571
      %v2593 = vsel %vm2588, %v2534, %v2573
      %v2594 = vsel %vm2588, %v2541, %v2575
      %v2595 = vsel %vm2588, %v2548, %v2577
      %v2596 = vsel %vm2588, %v2555, %v2579
      %s2598 = sor.u32 256, 8
      %2599 = vbcast.lane.b32.xlu0 %v2503, %s2598
      %v2600 = vpop.permute.xlu0 %2599
      %s2602 = sor.u32 256, 8
      %2603 = vbcast.lane.b32.xlu0 %v2510, %s2602
      %v2604 = vpop.permute.xlu0 %2603
      %s2606 = sor.u32 256, 8
      %2607 = vbcast.lane.b32.xlu0 %v2517, %s2606
      %v2608 = vpop.permute.xlu0 %2607
      %s2610 = sor.u32 256, 8
      %2611 = vbcast.lane.b32.xlu0 %v2524, %s2610
      %v2612 = vpop.permute.xlu0 %2611
      %s2614 = sor.u32 256, 8
      %2615 = vbcast.lane.b32.xlu0 %v2531, %s2614
      %v2616 = vpop.permute.xlu0 %2615
      %s2618 = sor.u32 256, 8
      %2619 = vbcast.lane.b32.xlu0 %v2538, %s2618
      %v2620 = vpop.permute.xlu0 %2619
      %s2622 = sor.u32 256, 8
      %2623 = vbcast.lane.b32.xlu0 %v2545, %s2622
      %v2624 = vpop.permute.xlu0 %2623
      %s2626 = sor.u32 256, 8
      %2627 = vbcast.lane.b32.xlu0 %v2552, %s2626
      %v2628 = vpop.permute.xlu0 %2627
      %2637 = vrot.lane.b32.xlu0 %v1838, 1
      %v2638 = vpop.permute.xlu0 %2637
      %2639 = vrot.lane.b32.xlu0 %v1839, 1
      %v2640 = vpop.permute.xlu0 %2639
      %2641 = vrot.lane.b32.xlu0 %v1840, 1
      %v2642 = vpop.permute.xlu0 %2641
      %2643 = vrot.lane.b32.xlu0 %v1841, 1
      %v2644 = vpop.permute.xlu0 %2643
      %2645 = vrot.lane.b32.xlu0 %v1842, 1
      %v2646 = vpop.permute.xlu0 %2645
      %2647 = vrot.lane.b32.xlu0 %v1843, 1
      %v2648 = vpop.permute.xlu0 %2647
      %2649 = vrot.lane.b32.xlu0 %v1844, 1
      %v2650 = vpop.permute.xlu0 %2649
      %2651 = vrot.lane.b32.xlu0 %v1845, 1
      %v2652 = vpop.permute.xlu0 %2651
      %v2661 = vsel %vm2588, %v2600, %v2638
      %v2662 = vsel %vm2588, %v2604, %v2640
      %v2663 = vsel %vm2588, %v2608, %v2642
      %v2664 = vsel %vm2588, %v2612, %v2644
      %v2665 = vsel %vm2588, %v2616, %v2646
      %v2666 = vsel %vm2588, %v2620, %v2648
      %v2667 = vsel %vm2588, %v2624, %v2650
      %v2668 = vsel %vm2588, %v2628, %v2652
      %s2670 = sor.u32 256, 16
      %2671 = vbcast.lane.b32.xlu0 %v2503, %s2670
      %v2672 = vpop.permute.xlu0 %2671
      %s2674 = sor.u32 256, 16
      %2675 = vbcast.lane.b32.xlu0 %v2510, %s2674
      %v2676 = vpop.permute.xlu0 %2675
      %s2678 = sor.u32 256, 16
      %2679 = vbcast.lane.b32.xlu0 %v2517, %s2678
      %v2680 = vpop.permute.xlu0 %2679
      %s2682 = sor.u32 256, 16
      %2683 = vbcast.lane.b32.xlu0 %v2524, %s2682
      %v2684 = vpop.permute.xlu0 %2683
      %s2686 = sor.u32 256, 16
      %2687 = vbcast.lane.b32.xlu0 %v2531, %s2686
      %v2688 = vpop.permute.xlu0 %2687
      %s2690 = sor.u32 256, 16
      %2691 = vbcast.lane.b32.xlu0 %v2538, %s2690
      %v2692 = vpop.permute.xlu0 %2691
      %s2694 = sor.u32 256, 16
      %2695 = vbcast.lane.b32.xlu0 %v2545, %s2694
      %v2696 = vpop.permute.xlu0 %2695
      %s2698 = sor.u32 256, 16
      %2699 = vbcast.lane.b32.xlu0 %v2552, %s2698
      %v2700 = vpop.permute.xlu0 %2699
      %2709 = vrot.lane.b32.xlu0 %v1846, 1
      %v2710 = vpop.permute.xlu0 %2709
      %2711 = vrot.lane.b32.xlu0 %v1847, 1
      %v2712 = vpop.permute.xlu0 %2711
      %2713 = vrot.lane.b32.xlu0 %v1848, 1
      %v2714 = vpop.permute.xlu0 %2713
      %2715 = vrot.lane.b32.xlu0 %v1849, 1
      %v2716 = vpop.permute.xlu0 %2715
      %2717 = vrot.lane.b32.xlu0 %v1850, 1
      %v2718 = vpop.permute.xlu0 %2717
      %2719 = vrot.lane.b32.xlu0 %v1851, 1
      %v2720 = vpop.permute.xlu0 %2719
      %2721 = vrot.lane.b32.xlu0 %v1852, 1
      %v2722 = vpop.permute.xlu0 %2721
      %2723 = vrot.lane.b32.xlu0 %v1853, 1
      %v2724 = vpop.permute.xlu0 %2723
      %v2733 = vsel %vm2588, %v2672, %v2710
      %v2734 = vsel %vm2588, %v2676, %v2712
      %v2735 = vsel %vm2588, %v2680, %v2714
      %v2736 = vsel %vm2588, %v2684, %v2716
      %v2737 = vsel %vm2588, %v2688, %v2718
      %v2738 = vsel %vm2588, %v2692, %v2720
      %v2739 = vsel %vm2588, %v2696, %v2722
      %v2740 = vsel %vm2588, %v2700, %v2724
      %s2742 = sor.u32 256, 24
      %2743 = vbcast.lane.b32.xlu0 %v2503, %s2742
      %v2744 = vpop.permute.xlu0 %2743
      %s2746 = sor.u32 256, 24
      %2747 = vbcast.lane.b32.xlu0 %v2510, %s2746
      %v2748 = vpop.permute.xlu0 %2747
      %s2750 = sor.u32 256, 24
      %2751 = vbcast.lane.b32.xlu0 %v2517, %s2750
      %v2752 = vpop.permute.xlu0 %2751
      %s2754 = sor.u32 256, 24
      %2755 = vbcast.lane.b32.xlu0 %v2524, %s2754
      %v2756 = vpop.permute.xlu0 %2755
      %s2758 = sor.u32 256, 24
      %2759 = vbcast.lane.b32.xlu0 %v2531, %s2758
      %v2760 = vpop.permute.xlu0 %2759
      %s2762 = sor.u32 256, 24
      %2763 = vbcast.lane.b32.xlu0 %v2538, %s2762
      %v2764 = vpop.permute.xlu0 %2763
      %s2766 = sor.u32 256, 24
      %2767 = vbcast.lane.b32.xlu0 %v2545, %s2766
      %v2768 = vpop.permute.xlu0 %2767
      %s2770 = sor.u32 256, 24
      %2771 = vbcast.lane.b32.xlu0 %v2552, %s2770
      %v2772 = vpop.permute.xlu0 %2771
      %2781 = vrot.lane.b32.xlu0 %v1854, 1
      %v2782 = vpop.permute.xlu0 %2781
      %2783 = vrot.lane.b32.xlu0 %v1855, 1
      %v2784 = vpop.permute.xlu0 %2783
      %2785 = vrot.lane.b32.xlu0 %v1856, 1
      %v2786 = vpop.permute.xlu0 %2785
      %2787 = vrot.lane.b32.xlu0 %v1857, 1
      %v2788 = vpop.permute.xlu0 %2787
      %2789 = vrot.lane.b32.xlu0 %v1858, 1
      %v2790 = vpop.permute.xlu0 %2789
      %2791 = vrot.lane.b32.xlu0 %v1859, 1
      %v2792 = vpop.permute.xlu0 %2791
      %2793 = vrot.lane.b32.xlu0 %v1860, 1
      %v2794 = vpop.permute.xlu0 %2793
      %2795 = vrot.lane.b32.xlu0 %v1861, 1
      %v2796 = vpop.permute.xlu0 %2795
      %v2805 = vsel %vm2588, %v2744, %v2782
      %v2806 = vsel %vm2588, %v2748, %v2784
      %v2807 = vsel %vm2588, %v2752, %v2786
      %v2808 = vsel %vm2588, %v2756, %v2788
      %v2809 = vsel %vm2588, %v2760, %v2790
      %v2810 = vsel %vm2588, %v2764, %v2792
      %v2811 = vsel %vm2588, %v2768, %v2794
      %v2812 = vsel %vm2588, %v2772, %v2796
      %v2813 = vlaneseq
      %v2814 = vshrl.u32 %v2813, 7
      %v2815 = vsub.s32 0, %v2814
      %v2816 = vrot.slane %v2160, %v2815
      %2818 = vbcast.lane.b32.xlu0 %v2816, 256
      %v2819 = vpop.permute.xlu0 %2818
      %v2820 = vlaneseq
      %v2821 = vshrl.u32 %v2820, 7
      %v2822 = vsub.s32 1, %v2821
      %v2823 = vrot.slane %v2160, %v2822
      %2825 = vbcast.lane.b32.xlu0 %v2823, 256
      %v2826 = vpop.permute.xlu0 %2825
      %v2827 = vlaneseq
      %v2828 = vshrl.u32 %v2827, 7
      %v2829 = vsub.s32 2, %v2828
      %v2830 = vrot.slane %v2160, %v2829
      %2832 = vbcast.lane.b32.xlu0 %v2830, 256
      %v2833 = vpop.permute.xlu0 %2832
      %v2834 = vlaneseq
      %v2835 = vshrl.u32 %v2834, 7
      %v2836 = vsub.s32 3, %v2835
      %v2837 = vrot.slane %v2160, %v2836
      %2839 = vbcast.lane.b32.xlu0 %v2837, 256
      %v2840 = vpop.permute.xlu0 %2839
      %v2841 = vlaneseq
      %v2842 = vshrl.u32 %v2841, 7
      %v2843 = vsub.s32 4, %v2842
      %v2844 = vrot.slane %v2160, %v2843
      %2846 = vbcast.lane.b32.xlu0 %v2844, 256
      %v2847 = vpop.permute.xlu0 %2846
      %v2848 = vlaneseq
      %v2849 = vshrl.u32 %v2848, 7
      %v2850 = vsub.s32 5, %v2849
      %v2851 = vrot.slane %v2160, %v2850
      %2853 = vbcast.lane.b32.xlu0 %v2851, 256
      %v2854 = vpop.permute.xlu0 %2853
      %v2855 = vlaneseq
      %v2856 = vshrl.u32 %v2855, 7
      %v2857 = vsub.s32 6, %v2856
      %v2858 = vrot.slane %v2160, %v2857
      %2860 = vbcast.lane.b32.xlu0 %v2858, 256
      %v2861 = vpop.permute.xlu0 %2860
      %v2862 = vlaneseq
      %v2863 = vshrl.u32 %v2862, 7
      %v2864 = vsub.s32 7, %v2863
      %v2865 = vrot.slane %v2160, %v2864
      %2867 = vbcast.lane.b32.xlu0 %v2865, 256
      %v2868 = vpop.permute.xlu0 %2867
      %2877 = vrot.lane.b32.xlu0 %v1862, 1
      %v2878 = vpop.permute.xlu0 %2877
      %2879 = vrot.lane.b32.xlu0 %v1863, 1
      %v2880 = vpop.permute.xlu0 %2879
      %2881 = vrot.lane.b32.xlu0 %v1864, 1
      %v2882 = vpop.permute.xlu0 %2881
      %2883 = vrot.lane.b32.xlu0 %v1865, 1
      %v2884 = vpop.permute.xlu0 %2883
      %2885 = vrot.lane.b32.xlu0 %v1866, 1
      %v2886 = vpop.permute.xlu0 %2885
      %2887 = vrot.lane.b32.xlu0 %v1867, 1
      %v2888 = vpop.permute.xlu0 %2887
      %2889 = vrot.lane.b32.xlu0 %v1868, 1
      %v2890 = vpop.permute.xlu0 %2889
      %2891 = vrot.lane.b32.xlu0 %v1869, 1
      %v2892 = vpop.permute.xlu0 %2891
      %v2901 = vsel %vm2588, %v2819, %v2878
      %v2902 = vsel %vm2588, %v2826, %v2880
      %v2903 = vsel %vm2588, %v2833, %v2882
      %v2904 = vsel %vm2588, %v2840, %v2884
      %v2905 = vsel %vm2588, %v2847, %v2886
      %v2906 = vsel %vm2588, %v2854, %v2888
      %v2907 = vsel %vm2588, %v2861, %v2890
      %v2908 = vsel %vm2588, %v2868, %v2892
      %s2910 = sor.u32 256, 8
      %2911 = vbcast.lane.b32.xlu0 %v2816, %s2910
      %v2912 = vpop.permute.xlu0 %2911
      %s2914 = sor.u32 256, 8
      %2915 = vbcast.lane.b32.xlu0 %v2823, %s2914
      %v2916 = vpop.permute.xlu0 %2915
      %s2918 = sor.u32 256, 8
      %2919 = vbcast.lane.b32.xlu0 %v2830, %s2918
      %v2920 = vpop.permute.xlu0 %2919
      %s2922 = sor.u32 256, 8
      %2923 = vbcast.lane.b32.xlu0 %v2837, %s2922
      %v2924 = vpop.permute.xlu0 %2923
      %s2926 = sor.u32 256, 8
      %2927 = vbcast.lane.b32.xlu0 %v2844, %s2926
      %v2928 = vpop.permute.xlu0 %2927
      %s2930 = sor.u32 256, 8
      %2931 = vbcast.lane.b32.xlu0 %v2851, %s2930
      %v2932 = vpop.permute.xlu0 %2931
      %s2934 = sor.u32 256, 8
      %2935 = vbcast.lane.b32.xlu0 %v2858, %s2934
      %v2936 = vpop.permute.xlu0 %2935
      %s2938 = sor.u32 256, 8
      %2939 = vbcast.lane.b32.xlu0 %v2865, %s2938
      %v2940 = vpop.permute.xlu0 %2939
      %2949 = vrot.lane.b32.xlu0 %v1870, 1
      %v2950 = vpop.permute.xlu0 %2949
      %2951 = vrot.lane.b32.xlu0 %v1871, 1
      %v2952 = vpop.permute.xlu0 %2951
      %2953 = vrot.lane.b32.xlu0 %v1872, 1
      %v2954 = vpop.permute.xlu0 %2953
      %2955 = vrot.lane.b32.xlu0 %v1873, 1
      %v2956 = vpop.permute.xlu0 %2955
      %2957 = vrot.lane.b32.xlu0 %v1874, 1
      %v2958 = vpop.permute.xlu0 %2957
      %2959 = vrot.lane.b32.xlu0 %v1875, 1
      %v2960 = vpop.permute.xlu0 %2959
      %2961 = vrot.lane.b32.xlu0 %v1876, 1
      %v2962 = vpop.permute.xlu0 %2961
      %2963 = vrot.lane.b32.xlu0 %v1877, 1
      %v2964 = vpop.permute.xlu0 %2963
      %v2973 = vsel %vm2588, %v2912, %v2950
      %v2974 = vsel %vm2588, %v2916, %v2952
      %v2975 = vsel %vm2588, %v2920, %v2954
      %v2976 = vsel %vm2588, %v2924, %v2956
      %v2977 = vsel %vm2588, %v2928, %v2958
      %v2978 = vsel %vm2588, %v2932, %v2960
      %v2979 = vsel %vm2588, %v2936, %v2962
      %v2980 = vsel %vm2588, %v2940, %v2964
      %s2982 = sor.u32 256, 16
      %2983 = vbcast.lane.b32.xlu0 %v2816, %s2982
      %v2984 = vpop.permute.xlu0 %2983
      %s2986 = sor.u32 256, 16
      %2987 = vbcast.lane.b32.xlu0 %v2823, %s2986
      %v2988 = vpop.permute.xlu0 %2987
      %s2990 = sor.u32 256, 16
      %2991 = vbcast.lane.b32.xlu0 %v2830, %s2990
      %v2992 = vpop.permute.xlu0 %2991
      %s2994 = sor.u32 256, 16
      %2995 = vbcast.lane.b32.xlu0 %v2837, %s2994
      %v2996 = vpop.permute.xlu0 %2995
      %s2998 = sor.u32 256, 16
      %2999 = vbcast.lane.b32.xlu0 %v2844, %s2998
      %v3000 = vpop.permute.xlu0 %2999
      %s3002 = sor.u32 256, 16
      %3003 = vbcast.lane.b32.xlu0 %v2851, %s3002
      %v3004 = vpop.permute.xlu0 %3003
      %s3006 = sor.u32 256, 16
      %3007 = vbcast.lane.b32.xlu0 %v2858, %s3006
      %v3008 = vpop.permute.xlu0 %3007
      %s3010 = sor.u32 256, 16
      %3011 = vbcast.lane.b32.xlu0 %v2865, %s3010
      %v3012 = vpop.permute.xlu0 %3011
      %3021 = vrot.lane.b32.xlu0 %v1878, 1
      %v3022 = vpop.permute.xlu0 %3021
      %3023 = vrot.lane.b32.xlu0 %v1879, 1
      %v3024 = vpop.permute.xlu0 %3023
      %3025 = vrot.lane.b32.xlu0 %v1880, 1
      %v3026 = vpop.permute.xlu0 %3025
      %3027 = vrot.lane.b32.xlu0 %v1881, 1
      %v3028 = vpop.permute.xlu0 %3027
      %3029 = vrot.lane.b32.xlu0 %v1882, 1
      %v3030 = vpop.permute.xlu0 %3029
      %3031 = vrot.lane.b32.xlu0 %v1883, 1
      %v3032 = vpop.permute.xlu0 %3031
      %3033 = vrot.lane.b32.xlu0 %v1884, 1
      %v3034 = vpop.permute.xlu0 %3033
      %3035 = vrot.lane.b32.xlu0 %v1885, 1
      %v3036 = vpop.permute.xlu0 %3035
      %v3045 = vsel %vm2588, %v2984, %v3022
      %v3046 = vsel %vm2588, %v2988, %v3024
      %v3047 = vsel %vm2588, %v2992, %v3026
      %v3048 = vsel %vm2588, %v2996, %v3028
      %v3049 = vsel %vm2588, %v3000, %v3030
      %v3050 = vsel %vm2588, %v3004, %v3032
      %v3051 = vsel %vm2588, %v3008, %v3034
      %v3052 = vsel %vm2588, %v3012, %v3036
      %s3054 = sor.u32 256, 24
      %3055 = vbcast.lane.b32.xlu0 %v2816, %s3054
      %v3056 = vpop.permute.xlu0 %3055
      %s3058 = sor.u32 256, 24
      %3059 = vbcast.lane.b32.xlu0 %v2823, %s3058
      %v3060 = vpop.permute.xlu0 %3059
      %s3062 = sor.u32 256, 24
      %3063 = vbcast.lane.b32.xlu0 %v2830, %s3062
      %v3064 = vpop.permute.xlu0 %3063
      %s3066 = sor.u32 256, 24
      %3067 = vbcast.lane.b32.xlu0 %v2837, %s3066
      %v3068 = vpop.permute.xlu0 %3067
      %s3070 = sor.u32 256, 24
      %3071 = vbcast.lane.b32.xlu0 %v2844, %s3070
      %v3072 = vpop.permute.xlu0 %3071
      %s3074 = sor.u32 256, 24
      %3075 = vbcast.lane.b32.xlu0 %v2851, %s3074
      %v3076 = vpop.permute.xlu0 %3075
      %s3078 = sor.u32 256, 24
      %3079 = vbcast.lane.b32.xlu0 %v2858, %s3078
      %v3080 = vpop.permute.xlu0 %3079
      %s3082 = sor.u32 256, 24
      %3083 = vbcast.lane.b32.xlu0 %v2865, %s3082
      %v3084 = vpop.permute.xlu0 %3083
      %3093 = vrot.lane.b32.xlu0 %v1886, 1
      %v3094 = vpop.permute.xlu0 %3093
      %3095 = vrot.lane.b32.xlu0 %v1887, 1
      %v3096 = vpop.permute.xlu0 %3095
      %3097 = vrot.lane.b32.xlu0 %v1888, 1
      %v3098 = vpop.permute.xlu0 %3097
      %3099 = vrot.lane.b32.xlu0 %v1889, 1
      %v3100 = vpop.permute.xlu0 %3099
      %3101 = vrot.lane.b32.xlu0 %v1890, 1
      %v3102 = vpop.permute.xlu0 %3101
      %3103 = vrot.lane.b32.xlu0 %v1891, 1
      %v3104 = vpop.permute.xlu0 %3103
      %3105 = vrot.lane.b32.xlu0 %v1892, 1
      %v3106 = vpop.permute.xlu0 %3105
      %3107 = vrot.lane.b32.xlu0 %v1893, 1
      %v3108 = vpop.permute.xlu0 %3107
      %v3117 = vsel %vm2588, %v3056, %v3094
      %v3118 = vsel %vm2588, %v3060, %v3096
      %v3119 = vsel %vm2588, %v3064, %v3098
      %v3120 = vsel %vm2588, %v3068, %v3100
      %v3121 = vsel %vm2588, %v3072, %v3102
      %v3122 = vsel %vm2588, %v3076, %v3104
      %v3123 = vsel %vm2588, %v3080, %v3106
      %v3124 = vsel %vm2588, %v3084, %v3108
      %v3125 = vlaneseq
      %v3126 = vshrl.u32 %v3125, 7
      %v3127 = vsub.s32 0, %v3126
      %v3128 = vrot.slane %v2165, %v3127
      %3130 = vbcast.lane.b32.xlu0 %v3128, 256
      %v3131 = vpop.permute.xlu0 %3130
      %v3132 = vlaneseq
      %v3133 = vshrl.u32 %v3132, 7
      %v3134 = vsub.s32 1, %v3133
      %v3135 = vrot.slane %v2165, %v3134
      %3137 = vbcast.lane.b32.xlu0 %v3135, 256
      %v3138 = vpop.permute.xlu0 %3137
      %v3139 = vlaneseq
      %v3140 = vshrl.u32 %v3139, 7
      %v3141 = vsub.s32 2, %v3140
      %v3142 = vrot.slane %v2165, %v3141
      %3144 = vbcast.lane.b32.xlu0 %v3142, 256
      %v3145 = vpop.permute.xlu0 %3144
      %v3146 = vlaneseq
      %v3147 = vshrl.u32 %v3146, 7
      %v3148 = vsub.s32 3, %v3147
      %v3149 = vrot.slane %v2165, %v3148
      %3151 = vbcast.lane.b32.xlu0 %v3149, 256
      %v3152 = vpop.permute.xlu0 %3151
      %v3153 = vlaneseq
      %v3154 = vshrl.u32 %v3153, 7
      %v3155 = vsub.s32 4, %v3154
      %v3156 = vrot.slane %v2165, %v3155
      %3158 = vbcast.lane.b32.xlu0 %v3156, 256
      %v3159 = vpop.permute.xlu0 %3158
      %v3160 = vlaneseq
      %v3161 = vshrl.u32 %v3160, 7
      %v3162 = vsub.s32 5, %v3161
      %v3163 = vrot.slane %v2165, %v3162
      %3165 = vbcast.lane.b32.xlu0 %v3163, 256
      %v3166 = vpop.permute.xlu0 %3165
      %v3167 = vlaneseq
      %v3168 = vshrl.u32 %v3167, 7
      %v3169 = vsub.s32 6, %v3168
      %v3170 = vrot.slane %v2165, %v3169
      %3172 = vbcast.lane.b32.xlu0 %v3170, 256
      %v3173 = vpop.permute.xlu0 %3172
      %v3174 = vlaneseq
      %v3175 = vshrl.u32 %v3174, 7
      %v3176 = vsub.s32 7, %v3175
      %v3177 = vrot.slane %v2165, %v3176
      %3179 = vbcast.lane.b32.xlu0 %v3177, 256
      %v3180 = vpop.permute.xlu0 %3179
      %3189 = vrot.lane.b32.xlu0 %v1894, 1
      %v3190 = vpop.permute.xlu0 %3189
      %3191 = vrot.lane.b32.xlu0 %v1895, 1
      %v3192 = vpop.permute.xlu0 %3191
      %3193 = vrot.lane.b32.xlu0 %v1896, 1
      %v3194 = vpop.permute.xlu0 %3193
      %3195 = vrot.lane.b32.xlu0 %v1897, 1
      %v3196 = vpop.permute.xlu0 %3195
      %3197 = vrot.lane.b32.xlu0 %v1898, 1
      %v3198 = vpop.permute.xlu0 %3197
      %3199 = vrot.lane.b32.xlu0 %v1899, 1
      %v3200 = vpop.permute.xlu0 %3199
      %3201 = vrot.lane.b32.xlu0 %v1900, 1
      %v3202 = vpop.permute.xlu0 %3201
      %3203 = vrot.lane.b32.xlu0 %v1901, 1
      %v3204 = vpop.permute.xlu0 %3203
      %v3213 = vsel %vm2588, %v3131, %v3190
      %v3214 = vsel %vm2588, %v3138, %v3192
      %v3215 = vsel %vm2588, %v3145, %v3194
      %v3216 = vsel %vm2588, %v3152, %v3196
      %v3217 = vsel %vm2588, %v3159, %v3198
      %v3218 = vsel %vm2588, %v3166, %v3200
      %v3219 = vsel %vm2588, %v3173, %v3202
      %v3220 = vsel %vm2588, %v3180, %v3204
      %s3222 = sor.u32 256, 8
      %3223 = vbcast.lane.b32.xlu0 %v3128, %s3222
      %v3224 = vpop.permute.xlu0 %3223
      %s3226 = sor.u32 256, 8
      %3227 = vbcast.lane.b32.xlu0 %v3135, %s3226
      %v3228 = vpop.permute.xlu0 %3227
      %s3230 = sor.u32 256, 8
      %3231 = vbcast.lane.b32.xlu0 %v3142, %s3230
      %v3232 = vpop.permute.xlu0 %3231
      %s3234 = sor.u32 256, 8
      %3235 = vbcast.lane.b32.xlu0 %v3149, %s3234
      %v3236 = vpop.permute.xlu0 %3235
      %s3238 = sor.u32 256, 8
      %3239 = vbcast.lane.b32.xlu0 %v3156, %s3238
      %v3240 = vpop.permute.xlu0 %3239
      %s3242 = sor.u32 256, 8
      %3243 = vbcast.lane.b32.xlu0 %v3163, %s3242
      %v3244 = vpop.permute.xlu0 %3243
      %s3246 = sor.u32 256, 8
      %3247 = vbcast.lane.b32.xlu0 %v3170, %s3246
      %v3248 = vpop.permute.xlu0 %3247
      %s3250 = sor.u32 256, 8
      %3251 = vbcast.lane.b32.xlu0 %v3177, %s3250
      %v3252 = vpop.permute.xlu0 %3251
      %3261 = vrot.lane.b32.xlu0 %v1902, 1
      %v3262 = vpop.permute.xlu0 %3261
      %3263 = vrot.lane.b32.xlu0 %v1903, 1
      %v3264 = vpop.permute.xlu0 %3263
      %3265 = vrot.lane.b32.xlu0 %v1904, 1
      %v3266 = vpop.permute.xlu0 %3265
      %3267 = vrot.lane.b32.xlu0 %v1905, 1
      %v3268 = vpop.permute.xlu0 %3267
      %3269 = vrot.lane.b32.xlu0 %v1906, 1
      %v3270 = vpop.permute.xlu0 %3269
      %3271 = vrot.lane.b32.xlu0 %v1907, 1
      %v3272 = vpop.permute.xlu0 %3271
      %3273 = vrot.lane.b32.xlu0 %v1908, 1
      %v3274 = vpop.permute.xlu0 %3273
      %3275 = vrot.lane.b32.xlu0 %v1909, 1
      %v3276 = vpop.permute.xlu0 %3275
      %v3285 = vsel %vm2588, %v3224, %v3262
      %v3286 = vsel %vm2588, %v3228, %v3264
      %v3287 = vsel %vm2588, %v3232, %v3266
      %v3288 = vsel %vm2588, %v3236, %v3268
      %v3289 = vsel %vm2588, %v3240, %v3270
      %v3290 = vsel %vm2588, %v3244, %v3272
      %v3291 = vsel %vm2588, %v3248, %v3274
      %v3292 = vsel %vm2588, %v3252, %v3276
      %s3294 = sor.u32 256, 16
      %3295 = vbcast.lane.b32.xlu0 %v3128, %s3294
      %v3296 = vpop.permute.xlu0 %3295
      %s3298 = sor.u32 256, 16
      %3299 = vbcast.lane.b32.xlu0 %v3135, %s3298
      %v3300 = vpop.permute.xlu0 %3299
      %s3302 = sor.u32 256, 16
      %3303 = vbcast.lane.b32.xlu0 %v3142, %s3302
      %v3304 = vpop.permute.xlu0 %3303
      %s3306 = sor.u32 256, 16
      %3307 = vbcast.lane.b32.xlu0 %v3149, %s3306
      %v3308 = vpop.permute.xlu0 %3307
      %s3310 = sor.u32 256, 16
      %3311 = vbcast.lane.b32.xlu0 %v3156, %s3310
      %v3312 = vpop.permute.xlu0 %3311
      %s3314 = sor.u32 256, 16
      %3315 = vbcast.lane.b32.xlu0 %v3163, %s3314
      %v3316 = vpop.permute.xlu0 %3315
      %s3318 = sor.u32 256, 16
      %3319 = vbcast.lane.b32.xlu0 %v3170, %s3318
      %v3320 = vpop.permute.xlu0 %3319
      %s3322 = sor.u32 256, 16
      %3323 = vbcast.lane.b32.xlu0 %v3177, %s3322
      %v3324 = vpop.permute.xlu0 %3323
      %3333 = vrot.lane.b32.xlu0 %v1910, 1
      %v3334 = vpop.permute.xlu0 %3333
      %3335 = vrot.lane.b32.xlu0 %v1911, 1
      %v3336 = vpop.permute.xlu0 %3335
      %3337 = vrot.lane.b32.xlu0 %v1912, 1
      %v3338 = vpop.permute.xlu0 %3337
      %3339 = vrot.lane.b32.xlu0 %v1913, 1
      %v3340 = vpop.permute.xlu0 %3339
      %3341 = vrot.lane.b32.xlu0 %v1914, 1
      %v3342 = vpop.permute.xlu0 %3341
      %3343 = vrot.lane.b32.xlu0 %v1915, 1
      %v3344 = vpop.permute.xlu0 %3343
      %3345 = vrot.lane.b32.xlu0 %v1916, 1
      %v3346 = vpop.permute.xlu0 %3345
      %3347 = vrot.lane.b32.xlu0 %v1917, 1
      %v3348 = vpop.permute.xlu0 %3347
      %v3357 = vsel %vm2588, %v3296, %v3334
      %v3358 = vsel %vm2588, %v3300, %v3336
      %v3359 = vsel %vm2588, %v3304, %v3338
      %v3360 = vsel %vm2588, %v3308, %v3340
      %v3361 = vsel %vm2588, %v3312, %v3342
      %v3362 = vsel %vm2588, %v3316, %v3344
      %v3363 = vsel %vm2588, %v3320, %v3346
      %v3364 = vsel %vm2588, %v3324, %v3348
      %s3366 = sor.u32 256, 24
      %3367 = vbcast.lane.b32.xlu0 %v3128, %s3366
      %v3368 = vpop.permute.xlu0 %3367
      %s3370 = sor.u32 256, 24
      %3371 = vbcast.lane.b32.xlu0 %v3135, %s3370
      %v3372 = vpop.permute.xlu0 %3371
      %s3374 = sor.u32 256, 24
      %3375 = vbcast.lane.b32.xlu0 %v3142, %s3374
      %v3376 = vpop.permute.xlu0 %3375
      %s3378 = sor.u32 256, 24
      %3379 = vbcast.lane.b32.xlu0 %v3149, %s3378
      %v3380 = vpop.permute.xlu0 %3379
      %s3382 = sor.u32 256, 24
      %3383 = vbcast.lane.b32.xlu0 %v3156, %s3382
      %v3384 = vpop.permute.xlu0 %3383
      %s3386 = sor.u32 256, 24
      %3387 = vbcast.lane.b32.xlu0 %v3163, %s3386
      %v3388 = vpop.permute.xlu0 %3387
      %s3390 = sor.u32 256, 24
      %3391 = vbcast.lane.b32.xlu0 %v3170, %s3390
      %v3392 = vpop.permute.xlu0 %3391
      %s3394 = sor.u32 256, 24
      %3395 = vbcast.lane.b32.xlu0 %v3177, %s3394
      %v3396 = vpop.permute.xlu0 %3395
      %3405 = vrot.lane.b32.xlu0 %v1918, 1
      %v3406 = vpop.permute.xlu0 %3405
      %3407 = vrot.lane.b32.xlu0 %v1919, 1
      %v3408 = vpop.permute.xlu0 %3407
      %3409 = vrot.lane.b32.xlu0 %v1920, 1
      %v3410 = vpop.permute.xlu0 %3409
      %3411 = vrot.lane.b32.xlu0 %v1921, 1
      %v3412 = vpop.permute.xlu0 %3411
      %3413 = vrot.lane.b32.xlu0 %v1922, 1
      %v3414 = vpop.permute.xlu0 %3413
      %3415 = vrot.lane.b32.xlu0 %v1923, 1
      %v3416 = vpop.permute.xlu0 %3415
      %3417 = vrot.lane.b32.xlu0 %v1924, 1
      %v3418 = vpop.permute.xlu0 %3417
      %3419 = vrot.lane.b32.xlu0 %v1925, 1
      %v3420 = vpop.permute.xlu0 %3419
      %v3429 = vsel %vm2588, %v3368, %v3406
      %v3430 = vsel %vm2588, %v3372, %v3408
      %v3431 = vsel %vm2588, %v3376, %v3410
      %v3432 = vsel %vm2588, %v3380, %v3412
      %v3433 = vsel %vm2588, %v3384, %v3414
      %v3434 = vsel %vm2588, %v3388, %v3416
      %v3435 = vsel %vm2588, %v3392, %v3418
      %v3436 = vsel %vm2588, %v3396, %v3420
      %v3437 = vlaneseq
      %v3438 = vshrl.u32 %v3437, 7
      %v3439 = vsub.s32 0, %v3438
      %v3440 = vrot.slane %v2170, %v3439
      %3442 = vbcast.lane.b32.xlu0 %v3440, 256
      %v3443 = vpop.permute.xlu0 %3442
      %v3444 = vlaneseq
      %v3445 = vshrl.u32 %v3444, 7
      %v3446 = vsub.s32 1, %v3445
      %v3447 = vrot.slane %v2170, %v3446
      %3449 = vbcast.lane.b32.xlu0 %v3447, 256
      %v3450 = vpop.permute.xlu0 %3449
      %v3451 = vlaneseq
      %v3452 = vshrl.u32 %v3451, 7
      %v3453 = vsub.s32 2, %v3452
      %v3454 = vrot.slane %v2170, %v3453
      %3456 = vbcast.lane.b32.xlu0 %v3454, 256
      %v3457 = vpop.permute.xlu0 %3456
      %v3458 = vlaneseq
      %v3459 = vshrl.u32 %v3458, 7
      %v3460 = vsub.s32 3, %v3459
      %v3461 = vrot.slane %v2170, %v3460
      %3463 = vbcast.lane.b32.xlu0 %v3461, 256
      %v3464 = vpop.permute.xlu0 %3463
      %v3465 = vlaneseq
      %v3466 = vshrl.u32 %v3465, 7
      %v3467 = vsub.s32 4, %v3466
      %v3468 = vrot.slane %v2170, %v3467
      %3470 = vbcast.lane.b32.xlu0 %v3468, 256
      %v3471 = vpop.permute.xlu0 %3470
      %v3472 = vlaneseq
      %v3473 = vshrl.u32 %v3472, 7
      %v3474 = vsub.s32 5, %v3473
      %v3475 = vrot.slane %v2170, %v3474
      %3477 = vbcast.lane.b32.xlu0 %v3475, 256
      %v3478 = vpop.permute.xlu0 %3477
      %v3479 = vlaneseq
      %v3480 = vshrl.u32 %v3479, 7
      %v3481 = vsub.s32 6, %v3480
      %v3482 = vrot.slane %v2170, %v3481
      %3484 = vbcast.lane.b32.xlu0 %v3482, 256
      %v3485 = vpop.permute.xlu0 %3484
      %v3486 = vlaneseq
      %v3487 = vshrl.u32 %v3486, 7
      %v3488 = vsub.s32 7, %v3487
      %v3489 = vrot.slane %v2170, %v3488
      %3491 = vbcast.lane.b32.xlu0 %v3489, 256
      %v3492 = vpop.permute.xlu0 %3491
      %3501 = vrot.lane.b32.xlu0 %v1926, 1
      %v3502 = vpop.permute.xlu0 %3501
      %3503 = vrot.lane.b32.xlu0 %v1927, 1
      %v3504 = vpop.permute.xlu0 %3503
      %3505 = vrot.lane.b32.xlu0 %v1928, 1
      %v3506 = vpop.permute.xlu0 %3505
      %3507 = vrot.lane.b32.xlu0 %v1929, 1
      %v3508 = vpop.permute.xlu0 %3507
      %3509 = vrot.lane.b32.xlu0 %v1930, 1
      %v3510 = vpop.permute.xlu0 %3509
      %3511 = vrot.lane.b32.xlu0 %v1931, 1
      %v3512 = vpop.permute.xlu0 %3511
      %3513 = vrot.lane.b32.xlu0 %v1932, 1
      %v3514 = vpop.permute.xlu0 %3513
      %3515 = vrot.lane.b32.xlu0 %v1933, 1
      %v3516 = vpop.permute.xlu0 %3515
      %v3525 = vsel %vm2588, %v3443, %v3502
      %v3526 = vsel %vm2588, %v3450, %v3504
      %v3527 = vsel %vm2588, %v3457, %v3506
      %v3528 = vsel %vm2588, %v3464, %v3508
      %v3529 = vsel %vm2588, %v3471, %v3510
      %v3530 = vsel %vm2588, %v3478, %v3512
      %v3531 = vsel %vm2588, %v3485, %v3514
      %v3532 = vsel %vm2588, %v3492, %v3516
      %s3534 = sor.u32 256, 8
      %3535 = vbcast.lane.b32.xlu0 %v3440, %s3534
      %v3536 = vpop.permute.xlu0 %3535
      %s3538 = sor.u32 256, 8
      %3539 = vbcast.lane.b32.xlu0 %v3447, %s3538
      %v3540 = vpop.permute.xlu0 %3539
      %s3542 = sor.u32 256, 8
      %3543 = vbcast.lane.b32.xlu0 %v3454, %s3542
      %v3544 = vpop.permute.xlu0 %3543
      %s3546 = sor.u32 256, 8
      %3547 = vbcast.lane.b32.xlu0 %v3461, %s3546
      %v3548 = vpop.permute.xlu0 %3547
      %s3550 = sor.u32 256, 8
      %3551 = vbcast.lane.b32.xlu0 %v3468, %s3550
      %v3552 = vpop.permute.xlu0 %3551
      %s3554 = sor.u32 256, 8
      %3555 = vbcast.lane.b32.xlu0 %v3475, %s3554
      %v3556 = vpop.permute.xlu0 %3555
      %s3558 = sor.u32 256, 8
      %3559 = vbcast.lane.b32.xlu0 %v3482, %s3558
      %v3560 = vpop.permute.xlu0 %3559
      %s3562 = sor.u32 256, 8
      %3563 = vbcast.lane.b32.xlu0 %v3489, %s3562
      %v3564 = vpop.permute.xlu0 %3563
      %3573 = vrot.lane.b32.xlu0 %v1934, 1
      %v3574 = vpop.permute.xlu0 %3573
      %3575 = vrot.lane.b32.xlu0 %v1935, 1
      %v3576 = vpop.permute.xlu0 %3575
      %3577 = vrot.lane.b32.xlu0 %v1936, 1
      %v3578 = vpop.permute.xlu0 %3577
      %3579 = vrot.lane.b32.xlu0 %v1937, 1
      %v3580 = vpop.permute.xlu0 %3579
      %3581 = vrot.lane.b32.xlu0 %v1938, 1
      %v3582 = vpop.permute.xlu0 %3581
      %3583 = vrot.lane.b32.xlu0 %v1939, 1
      %v3584 = vpop.permute.xlu0 %3583
      %3585 = vrot.lane.b32.xlu0 %v1940, 1
      %v3586 = vpop.permute.xlu0 %3585
      %3587 = vrot.lane.b32.xlu0 %v1941, 1
      %v3588 = vpop.permute.xlu0 %3587
      %v3597 = vsel %vm2588, %v3536, %v3574
      %v3598 = vsel %vm2588, %v3540, %v3576
      %v3599 = vsel %vm2588, %v3544, %v3578
      %v3600 = vsel %vm2588, %v3548, %v3580
      %v3601 = vsel %vm2588, %v3552, %v3582
      %v3602 = vsel %vm2588, %v3556, %v3584
      %v3603 = vsel %vm2588, %v3560, %v3586
      %v3604 = vsel %vm2588, %v3564, %v3588
      %s3606 = sor.u32 256, 16
      %3607 = vbcast.lane.b32.xlu0 %v3440, %s3606
      %v3608 = vpop.permute.xlu0 %3607
      %s3610 = sor.u32 256, 16
      %3611 = vbcast.lane.b32.xlu0 %v3447, %s3610
      %v3612 = vpop.permute.xlu0 %3611
      %s3614 = sor.u32 256, 16
      %3615 = vbcast.lane.b32.xlu0 %v3454, %s3614
      %v3616 = vpop.permute.xlu0 %3615
      %s3618 = sor.u32 256, 16
      %3619 = vbcast.lane.b32.xlu0 %v3461, %s3618
      %v3620 = vpop.permute.xlu0 %3619
      %s3622 = sor.u32 256, 16
      %3623 = vbcast.lane.b32.xlu0 %v3468, %s3622
      %v3624 = vpop.permute.xlu0 %3623
      %s3626 = sor.u32 256, 16
      %3627 = vbcast.lane.b32.xlu0 %v3475, %s3626
      %v3628 = vpop.permute.xlu0 %3627
      %s3630 = sor.u32 256, 16
      %3631 = vbcast.lane.b32.xlu0 %v3482, %s3630
      %v3632 = vpop.permute.xlu0 %3631
      %s3634 = sor.u32 256, 16
      %3635 = vbcast.lane.b32.xlu0 %v3489, %s3634
      %v3636 = vpop.permute.xlu0 %3635
      %3645 = vrot.lane.b32.xlu0 %v1942, 1
      %v3646 = vpop.permute.xlu0 %3645
      %3647 = vrot.lane.b32.xlu0 %v1943, 1
      %v3648 = vpop.permute.xlu0 %3647
      %3649 = vrot.lane.b32.xlu0 %v1944, 1
      %v3650 = vpop.permute.xlu0 %3649
      %3651 = vrot.lane.b32.xlu0 %v1945, 1
      %v3652 = vpop.permute.xlu0 %3651
      %3653 = vrot.lane.b32.xlu0 %v1946, 1
      %v3654 = vpop.permute.xlu0 %3653
      %3655 = vrot.lane.b32.xlu0 %v1947, 1
      %v3656 = vpop.permute.xlu0 %3655
      %3657 = vrot.lane.b32.xlu0 %v1948, 1
      %v3658 = vpop.permute.xlu0 %3657
      %3659 = vrot.lane.b32.xlu0 %v1949, 1
      %v3660 = vpop.permute.xlu0 %3659
      %v3669 = vsel %vm2588, %v3608, %v3646
      %v3670 = vsel %vm2588, %v3612, %v3648
      %v3671 = vsel %vm2588, %v3616, %v3650
      %v3672 = vsel %vm2588, %v3620, %v3652
      %v3673 = vsel %vm2588, %v3624, %v3654
      %v3674 = vsel %vm2588, %v3628, %v3656
      %v3675 = vsel %vm2588, %v3632, %v3658
      %v3676 = vsel %vm2588, %v3636, %v3660
      %s3678 = sor.u32 256, 24
      %3679 = vbcast.lane.b32.xlu0 %v3440, %s3678
      %v3680 = vpop.permute.xlu0 %3679
      %s3682 = sor.u32 256, 24
      %3683 = vbcast.lane.b32.xlu0 %v3447, %s3682
      %v3684 = vpop.permute.xlu0 %3683
      %s3686 = sor.u32 256, 24
      %3687 = vbcast.lane.b32.xlu0 %v3454, %s3686
      %v3688 = vpop.permute.xlu0 %3687
      %s3690 = sor.u32 256, 24
      %3691 = vbcast.lane.b32.xlu0 %v3461, %s3690
      %v3692 = vpop.permute.xlu0 %3691
      %s3694 = sor.u32 256, 24
      %3695 = vbcast.lane.b32.xlu0 %v3468, %s3694
      %v3696 = vpop.permute.xlu0 %3695
      %s3698 = sor.u32 256, 24
      %3699 = vbcast.lane.b32.xlu0 %v3475, %s3698
      %v3700 = vpop.permute.xlu0 %3699
      %s3702 = sor.u32 256, 24
      %3703 = vbcast.lane.b32.xlu0 %v3482, %s3702
      %v3704 = vpop.permute.xlu0 %3703
      %s3706 = sor.u32 256, 24
      %3707 = vbcast.lane.b32.xlu0 %v3489, %s3706
      %v3708 = vpop.permute.xlu0 %3707
      %3717 = vrot.lane.b32.xlu0 %v1950, 1
      %v3718 = vpop.permute.xlu0 %3717
      %3719 = vrot.lane.b32.xlu0 %v1951, 1
      %v3720 = vpop.permute.xlu0 %3719
      %3721 = vrot.lane.b32.xlu0 %v1952, 1
      %v3722 = vpop.permute.xlu0 %3721
      %3723 = vrot.lane.b32.xlu0 %v1953, 1
      %v3724 = vpop.permute.xlu0 %3723
      %3725 = vrot.lane.b32.xlu0 %v1954, 1
      %v3726 = vpop.permute.xlu0 %3725
      %3727 = vrot.lane.b32.xlu0 %v1955, 1
      %v3728 = vpop.permute.xlu0 %3727
      %3729 = vrot.lane.b32.xlu0 %v1956, 1
      %v3730 = vpop.permute.xlu0 %3729
      %3731 = vrot.lane.b32.xlu0 %v1957, 1
      %v3732 = vpop.permute.xlu0 %3731
      %v3741 = vsel %vm2588, %v3680, %v3718
      %v3742 = vsel %vm2588, %v3684, %v3720
      %v3743 = vsel %vm2588, %v3688, %v3722
      %v3744 = vsel %vm2588, %v3692, %v3724
      %v3745 = vsel %vm2588, %v3696, %v3726
      %v3746 = vsel %vm2588, %v3700, %v3728
      %v3747 = vsel %vm2588, %v3704, %v3730
      %v3748 = vsel %vm2588, %v3708, %v3732
      %v3757 = vrot.slane %v2805, 7
      %v3758 = vrot.slane %v2806, 7
      %v3759 = vrot.slane %v2807, 7
      %v3760 = vrot.slane %v2808, 7
      %v3761 = vrot.slane %v2809, 7
      %v3762 = vrot.slane %v2810, 7
      %v3763 = vrot.slane %v2811, 7
      %v3764 = vrot.slane %v2812, 7
      %v3773 = vsel %vm1121, -inf, %v3757
      %v3774 = vsel %vm1121, -inf, %v3758
      %v3775 = vsel %vm1121, -inf, %v3759
      %v3776 = vsel %vm1121, -inf, %v3760
      %v3777 = vsel %vm1121, -inf, %v3761
      %v3778 = vsel %vm1121, -inf, %v3762
      %v3779 = vsel %vm1121, -inf, %v3763
      %v3780 = vsel %vm1121, -inf, %v3764
      %v3781 = vmax.f32 %v3773, %v2589
      %v3782 = vmax.f32 %v3774, %v2590
      %v3783 = vmax.f32 %v3775, %v2591
      %v3784 = vmax.f32 %v3776, %v2592
      %v3785 = vmax.f32 %v3777, %v2593
      %v3786 = vmax.f32 %v3778, %v2594
      %v3787 = vmax.f32 %v3779, %v2595
      %v3788 = vmax.f32 %v3780, %v2596
      %v3789 = vmax.f32 %v3781, %v2661
      %v3790 = vmax.f32 %v3782, %v2662
      %v3791 = vmax.f32 %v3783, %v2663
      %v3792 = vmax.f32 %v3784, %v2664
      %v3793 = vmax.f32 %v3785, %v2665
      %v3794 = vmax.f32 %v3786, %v2666
      %v3795 = vmax.f32 %v3787, %v2667
      %v3796 = vmax.f32 %v3788, %v2668
      %v3797 = vmax.f32 %v2661, %v2733
      %v3798 = vmax.f32 %v2662, %v2734
      %v3799 = vmax.f32 %v2663, %v2735
      %v3800 = vmax.f32 %v2664, %v2736
      %v3801 = vmax.f32 %v2665, %v2737
      %v3802 = vmax.f32 %v2666, %v2738
      %v3803 = vmax.f32 %v2667, %v2739
      %v3804 = vmax.f32 %v2668, %v2740
      %v3805 = vmax.f32 %v3797, %v2805
      %v3806 = vmax.f32 %v3798, %v2806
      %v3807 = vmax.f32 %v3799, %v2807
      %v3808 = vmax.f32 %v3800, %v2808
      %v3809 = vmax.f32 %v3801, %v2809
      %v3810 = vmax.f32 %v3802, %v2810
      %v3811 = vmax.f32 %v3803, %v2811
      %v3812 = vmax.f32 %v3804, %v2812
      %v3821 = vrot.slane %v3117, 7
      %v3822 = vrot.slane %v3118, 7
      %v3823 = vrot.slane %v3119, 7
      %v3824 = vrot.slane %v3120, 7
      %v3825 = vrot.slane %v3121, 7
      %v3826 = vrot.slane %v3122, 7
      %v3827 = vrot.slane %v3123, 7
      %v3828 = vrot.slane %v3124, 7
      %v3837 = vsel %vm1121, -inf, %v3821
      %v3838 = vsel %vm1121, -inf, %v3822
      %v3839 = vsel %vm1121, -inf, %v3823
      %v3840 = vsel %vm1121, -inf, %v3824
      %v3841 = vsel %vm1121, -inf, %v3825
      %v3842 = vsel %vm1121, -inf, %v3826
      %v3843 = vsel %vm1121, -inf, %v3827
      %v3844 = vsel %vm1121, -inf, %v3828
      %v3845 = vmax.f32 %v3837, %v2901
      %v3846 = vmax.f32 %v3838, %v2902
      %v3847 = vmax.f32 %v3839, %v2903
      %v3848 = vmax.f32 %v3840, %v2904
      %v3849 = vmax.f32 %v3841, %v2905
      %v3850 = vmax.f32 %v3842, %v2906
      %v3851 = vmax.f32 %v3843, %v2907
      %v3852 = vmax.f32 %v3844, %v2908
      %v3853 = vmax.f32 %v3845, %v2973
      %v3854 = vmax.f32 %v3846, %v2974
      %v3855 = vmax.f32 %v3847, %v2975
      %v3856 = vmax.f32 %v3848, %v2976
      %v3857 = vmax.f32 %v3849, %v2977
      %v3858 = vmax.f32 %v3850, %v2978
      %v3859 = vmax.f32 %v3851, %v2979
      %v3860 = vmax.f32 %v3852, %v2980
      %v3861 = vmax.f32 %v2973, %v3045
      %v3862 = vmax.f32 %v2974, %v3046
      %v3863 = vmax.f32 %v2975, %v3047
      %v3864 = vmax.f32 %v2976, %v3048
      %v3865 = vmax.f32 %v2977, %v3049
      %v3866 = vmax.f32 %v2978, %v3050
      %v3867 = vmax.f32 %v2979, %v3051
      %v3868 = vmax.f32 %v2980, %v3052
      %v3869 = vmax.f32 %v3861, %v3117
      %v3870 = vmax.f32 %v3862, %v3118
      %v3871 = vmax.f32 %v3863, %v3119
      %v3872 = vmax.f32 %v3864, %v3120
      %v3873 = vmax.f32 %v3865, %v3121
      %v3874 = vmax.f32 %v3866, %v3122
      %v3875 = vmax.f32 %v3867, %v3123
      %v3876 = vmax.f32 %v3868, %v3124
      %v3885 = vrot.slane %v3429, 7
      %v3886 = vrot.slane %v3430, 7
      %v3887 = vrot.slane %v3431, 7
      %v3888 = vrot.slane %v3432, 7
      %v3889 = vrot.slane %v3433, 7
      %v3890 = vrot.slane %v3434, 7
      %v3891 = vrot.slane %v3435, 7
      %v3892 = vrot.slane %v3436, 7
      %v3901 = vsel %vm1121, -inf, %v3885
      %v3902 = vsel %vm1121, -inf, %v3886
      %v3903 = vsel %vm1121, -inf, %v3887
      %v3904 = vsel %vm1121, -inf, %v3888
      %v3905 = vsel %vm1121, -inf, %v3889
      %v3906 = vsel %vm1121, -inf, %v3890
      %v3907 = vsel %vm1121, -inf, %v3891
      %v3908 = vsel %vm1121, -inf, %v3892
      %v3909 = vmax.f32 %v3901, %v3213
      %v3910 = vmax.f32 %v3902, %v3214
      %v3911 = vmax.f32 %v3903, %v3215
      %v3912 = vmax.f32 %v3904, %v3216
      %v3913 = vmax.f32 %v3905, %v3217
      %v3914 = vmax.f32 %v3906, %v3218
      %v3915 = vmax.f32 %v3907, %v3219
      %v3916 = vmax.f32 %v3908, %v3220
      %v3917 = vmax.f32 %v3909, %v3285
      %v3918 = vmax.f32 %v3910, %v3286
      %v3919 = vmax.f32 %v3911, %v3287
      %v3920 = vmax.f32 %v3912, %v3288
      %v3921 = vmax.f32 %v3913, %v3289
      %v3922 = vmax.f32 %v3914, %v3290
      %v3923 = vmax.f32 %v3915, %v3291
      %v3924 = vmax.f32 %v3916, %v3292
      %v3925 = vmax.f32 %v3285, %v3357
      %v3926 = vmax.f32 %v3286, %v3358
      %v3927 = vmax.f32 %v3287, %v3359
      %v3928 = vmax.f32 %v3288, %v3360
      %v3929 = vmax.f32 %v3289, %v3361
      %v3930 = vmax.f32 %v3290, %v3362
      %v3931 = vmax.f32 %v3291, %v3363
      %v3932 = vmax.f32 %v3292, %v3364
      %v3933 = vmax.f32 %v3925, %v3429
      %v3934 = vmax.f32 %v3926, %v3430
      %v3935 = vmax.f32 %v3927, %v3431
      %v3936 = vmax.f32 %v3928, %v3432
      %v3937 = vmax.f32 %v3929, %v3433
      %v3938 = vmax.f32 %v3930, %v3434
      %v3939 = vmax.f32 %v3931, %v3435
      %v3940 = vmax.f32 %v3932, %v3436
      %v3949 = vrot.slane %v3741, 7
      %v3950 = vrot.slane %v3742, 7
      %v3951 = vrot.slane %v3743, 7
      %v3952 = vrot.slane %v3744, 7
      %v3953 = vrot.slane %v3745, 7
      %v3954 = vrot.slane %v3746, 7
      %v3955 = vrot.slane %v3747, 7
      %v3956 = vrot.slane %v3748, 7
      %v3965 = vsel %vm1121, -inf, %v3949
      %v3966 = vsel %vm1121, -inf, %v3950
      %v3967 = vsel %vm1121, -inf, %v3951
      %v3968 = vsel %vm1121, -inf, %v3952
      %v3969 = vsel %vm1121, -inf, %v3953
      %v3970 = vsel %vm1121, -inf, %v3954
      %v3971 = vsel %vm1121, -inf, %v3955
      %v3972 = vsel %vm1121, -inf, %v3956
      %v3973 = vmax.f32 %v3965, %v3525
      %v3974 = vmax.f32 %v3966, %v3526
      %v3975 = vmax.f32 %v3967, %v3527
      %v3976 = vmax.f32 %v3968, %v3528
      %v3977 = vmax.f32 %v3969, %v3529
      %v3978 = vmax.f32 %v3970, %v3530
      %v3979 = vmax.f32 %v3971, %v3531
      %v3980 = vmax.f32 %v3972, %v3532
      %v3981 = vmax.f32 %v3973, %v3597
      %v3982 = vmax.f32 %v3974, %v3598
      %v3983 = vmax.f32 %v3975, %v3599
      %v3984 = vmax.f32 %v3976, %v3600
      %v3985 = vmax.f32 %v3977, %v3601
      %v3986 = vmax.f32 %v3978, %v3602
      %v3987 = vmax.f32 %v3979, %v3603
      %v3988 = vmax.f32 %v3980, %v3604
      %v3989 = vmax.f32 %v3597, %v3669
      %v3990 = vmax.f32 %v3598, %v3670
      %v3991 = vmax.f32 %v3599, %v3671
      %v3992 = vmax.f32 %v3600, %v3672
      %v3993 = vmax.f32 %v3601, %v3673
      %v3994 = vmax.f32 %v3602, %v3674
      %v3995 = vmax.f32 %v3603, %v3675
      %v3996 = vmax.f32 %v3604, %v3676
      %v3997 = vmax.f32 %v3989, %v3741
      %v3998 = vmax.f32 %v3990, %v3742
      %v3999 = vmax.f32 %v3991, %v3743
      %v4000 = vmax.f32 %v3992, %v3744
      %v4001 = vmax.f32 %v3993, %v3745
      %v4002 = vmax.f32 %v3994, %v3746
      %v4003 = vmax.f32 %v3995, %v3747
      %v4004 = vmax.f32 %v3996, %v3748
      %v4005 = vmax.f32 %v3981, %v3790
      %v4006 = vmax.f32 %v3982, %v3791
      %v4007 = vmax.f32 %v3983, %v3792
      %v4008 = vmax.f32 %v3984, %v3793
      %v4009 = vmax.f32 %v3985, %v3794
      %v4010 = vmax.f32 %v3986, %v3795
      %v4011 = vmax.f32 %v3987, %v3796
      %v4012 = vmax.f32 %v3789, %v3853
      %v4013 = vmax.f32 %v4005, %v3854
      %v4014 = vmax.f32 %v4006, %v3855
      %v4015 = vmax.f32 %v4007, %v3856
      %v4016 = vmax.f32 %v4008, %v3857
      %v4017 = vmax.f32 %v4009, %v3858
      %v4018 = vmax.f32 %v4010, %v3859
      %v4019 = vmax.f32 %v4011, %v3860
      %v4020 = vmax.f32 %v3853, %v3917
      %v4021 = vmax.f32 %v3854, %v3918
      %v4022 = vmax.f32 %v3855, %v3919
      %v4023 = vmax.f32 %v3856, %v3920
      %v4024 = vmax.f32 %v3857, %v3921
      %v4025 = vmax.f32 %v3858, %v3922
      %v4026 = vmax.f32 %v3859, %v3923
      %v4027 = vmax.f32 %v3860, %v3924
      %v4028 = vmax.f32 %v4020, %v3981
      %v4029 = vmax.f32 %v4021, %v3982
      %v4030 = vmax.f32 %v4022, %v3983
      %v4031 = vmax.f32 %v4023, %v3984
      %v4032 = vmax.f32 %v4024, %v3985
      %v4033 = vmax.f32 %v4025, %v3986
      %v4034 = vmax.f32 %v4026, %v3987
      %v4035 = vmax.f32 %v4027, %v3988
      %v4036 = vmax.f32 %v3997, %v3806
      %v4037 = vmax.f32 %v3998, %v3807
      %v4038 = vmax.f32 %v3999, %v3808
      %v4039 = vmax.f32 %v4000, %v3809
      %v4040 = vmax.f32 %v4001, %v3810
      %v4041 = vmax.f32 %v4002, %v3811
      %v4042 = vmax.f32 %v4003, %v3812
      %v4043 = vmax.f32 %v3805, %v3869
      %v4044 = vmax.f32 %v4036, %v3870
      %v4045 = vmax.f32 %v4037, %v3871
      %v4046 = vmax.f32 %v4038, %v3872
      %v4047 = vmax.f32 %v4039, %v3873
      %v4048 = vmax.f32 %v4040, %v3874
      %v4049 = vmax.f32 %v4041, %v3875
      %v4050 = vmax.f32 %v4042, %v3876
      %v4051 = vmax.f32 %v3869, %v3933
      %v4052 = vmax.f32 %v3870, %v3934
      %v4053 = vmax.f32 %v3871, %v3935
      %v4054 = vmax.f32 %v3872, %v3936
      %v4055 = vmax.f32 %v3873, %v3937
      %v4056 = vmax.f32 %v3874, %v3938
      %v4057 = vmax.f32 %v3875, %v3939
      %v4058 = vmax.f32 %v3876, %v3940
      %v4059 = vmax.f32 %v4051, %v3997
      %v4060 = vmax.f32 %v4052, %v3998
      %v4061 = vmax.f32 %v4053, %v3999
      %v4062 = vmax.f32 %v4054, %v4000
      %v4063 = vmax.f32 %v4055, %v4001
      %v4064 = vmax.f32 %v4056, %v4002
      %v4065 = vmax.f32 %v4057, %v4003
      %v4066 = vmax.f32 %v4058, %v4004
      %v4067 = vrot.slane %v1854, 7
      %v4068 = vrot.slane %v1855, 7
      %v4069 = vrot.slane %v1856, 7
      %v4070 = vrot.slane %v1857, 7
      %v4071 = vrot.slane %v1858, 7
      %v4072 = vrot.slane %v1859, 7
      %v4073 = vrot.slane %v1860, 7
      %v4074 = vrot.slane %v1861, 7
      %v4083 = vsel %vm1121, %v1830, %v4067
      %v4084 = vsel %vm1121, %v1831, %v4068
      %v4085 = vsel %vm1121, %v1832, %v4069
      %v4086 = vsel %vm1121, %v1833, %v4070
      %v4087 = vsel %vm1121, %v1834, %v4071
      %v4088 = vsel %vm1121, %v1835, %v4072
      %v4089 = vsel %vm1121, %v1836, %v4073
      %v4090 = vsel %vm1121, %v1837, %v4074
      %v4091 = vmul.f32 %v4083, -0.09375
      %v4092 = vmul.f32 %v4084, -0.09375
      %v4093 = vmul.f32 %v4085, -0.09375
      %v4094 = vmul.f32 %v4086, -0.09375
      %v4095 = vmul.f32 %v4087, -0.09375
      %v4096 = vmul.f32 %v4088, -0.09375
      %v4097 = vmul.f32 %v4089, -0.09375
      %v4098 = vmul.f32 %v4090, -0.09375
      %v4099 = vmul.f32 %v1830, 0.59375
      %v4100 = vmul.f32 %v1831, 0.59375
      %v4101 = vmul.f32 %v1832, 0.59375
      %v4102 = vmul.f32 %v1833, 0.59375
      %v4103 = vmul.f32 %v1834, 0.59375
      %v4104 = vmul.f32 %v1835, 0.59375
      %v4105 = vmul.f32 %v1836, 0.59375
      %v4106 = vmul.f32 %v1837, 0.59375
      %v4107 = vadd.f32 %v4091, %v4099
      %v4108 = vadd.f32 %v4092, %v4100
      %v4109 = vadd.f32 %v4093, %v4101
      %v4110 = vadd.f32 %v4094, %v4102
      %v4111 = vadd.f32 %v4095, %v4103
      %v4112 = vadd.f32 %v4096, %v4104
      %v4113 = vadd.f32 %v4097, %v4105
      %v4114 = vadd.f32 %v4098, %v4106
      %v4115 = vmul.f32 %v1838, 0.59375
      %v4116 = vmul.f32 %v1839, 0.59375
      %v4117 = vmul.f32 %v1840, 0.59375
      %v4118 = vmul.f32 %v1841, 0.59375
      %v4119 = vmul.f32 %v1842, 0.59375
      %v4120 = vmul.f32 %v1843, 0.59375
      %v4121 = vmul.f32 %v1844, 0.59375
      %v4122 = vmul.f32 %v1845, 0.59375
      %v4123 = vadd.f32 %v4107, %v4115
      %v4124 = vadd.f32 %v4108, %v4116
      %v4125 = vadd.f32 %v4109, %v4117
      %v4126 = vadd.f32 %v4110, %v4118
      %v4127 = vadd.f32 %v4111, %v4119
      %v4128 = vadd.f32 %v4112, %v4120
      %v4129 = vadd.f32 %v4113, %v4121
      %v4130 = vadd.f32 %v4114, %v4122
      %v4131 = vmul.f32 %v1846, -0.09375
      %v4132 = vmul.f32 %v1847, -0.09375
      %v4133 = vmul.f32 %v1848, -0.09375
      %v4134 = vmul.f32 %v1849, -0.09375
      %v4135 = vmul.f32 %v1850, -0.09375
      %v4136 = vmul.f32 %v1851, -0.09375
      %v4137 = vmul.f32 %v1852, -0.09375
      %v4138 = vmul.f32 %v1853, -0.09375
      %v4139 = vadd.f32 %v4123, %v4131
      %v4140 = vadd.f32 %v4124, %v4132
      %v4141 = vadd.f32 %v4125, %v4133
      %v4142 = vadd.f32 %v4126, %v4134
      %v4143 = vadd.f32 %v4127, %v4135
      %v4144 = vadd.f32 %v4128, %v4136
      %v4145 = vadd.f32 %v4129, %v4137
      %v4146 = vadd.f32 %v4130, %v4138
      %v4147 = vmul.f32 %v1838, -0.09375
      %v4148 = vmul.f32 %v1839, -0.09375
      %v4149 = vmul.f32 %v1840, -0.09375
      %v4150 = vmul.f32 %v1841, -0.09375
      %v4151 = vmul.f32 %v1842, -0.09375
      %v4152 = vmul.f32 %v1843, -0.09375
      %v4153 = vmul.f32 %v1844, -0.09375
      %v4154 = vmul.f32 %v1845, -0.09375
      %v4155 = vmul.f32 %v1846, 0.59375
      %v4156 = vmul.f32 %v1847, 0.59375
      %v4157 = vmul.f32 %v1848, 0.59375
      %v4158 = vmul.f32 %v1849, 0.59375
      %v4159 = vmul.f32 %v1850, 0.59375
      %v4160 = vmul.f32 %v1851, 0.59375
      %v4161 = vmul.f32 %v1852, 0.59375
      %v4162 = vmul.f32 %v1853, 0.59375
      %v4163 = vadd.f32 %v4147, %v4155
      %v4164 = vadd.f32 %v4148, %v4156
      %v4165 = vadd.f32 %v4149, %v4157
      %v4166 = vadd.f32 %v4150, %v4158
      %v4167 = vadd.f32 %v4151, %v4159
      %v4168 = vadd.f32 %v4152, %v4160
      %v4169 = vadd.f32 %v4153, %v4161
      %v4170 = vadd.f32 %v4154, %v4162
      %v4171 = vmul.f32 %v1854, 0.59375
      %v4172 = vmul.f32 %v1855, 0.59375
      %v4173 = vmul.f32 %v1856, 0.59375
      %v4174 = vmul.f32 %v1857, 0.59375
      %v4175 = vmul.f32 %v1858, 0.59375
      %v4176 = vmul.f32 %v1859, 0.59375
      %v4177 = vmul.f32 %v1860, 0.59375
      %v4178 = vmul.f32 %v1861, 0.59375
      %v4179 = vadd.f32 %v4163, %v4171
      %v4180 = vadd.f32 %v4164, %v4172
      %v4181 = vadd.f32 %v4165, %v4173
      %v4182 = vadd.f32 %v4166, %v4174
      %v4183 = vadd.f32 %v4167, %v4175
      %v4184 = vadd.f32 %v4168, %v4176
      %v4185 = vadd.f32 %v4169, %v4177
      %v4186 = vadd.f32 %v4170, %v4178
      %v4187 = vrot.slane %v1830, 1
      %v4188 = vrot.slane %v1831, 1
      %v4189 = vrot.slane %v1832, 1
      %v4190 = vrot.slane %v1833, 1
      %v4191 = vrot.slane %v1834, 1
      %v4192 = vrot.slane %v1835, 1
      %v4193 = vrot.slane %v1836, 1
      %v4194 = vrot.slane %v1837, 1
      %vm4203 = vcmask 1046528
      %v4204 = vsel %vm4203, %v4187, %v1854
      %v4205 = vsel %vm4203, %v4188, %v1855
      %v4206 = vsel %vm4203, %v4189, %v1856
      %v4207 = vsel %vm4203, %v4190, %v1857
      %v4208 = vsel %vm4203, %v4191, %v1858
      %v4209 = vsel %vm4203, %v4192, %v1859
      %v4210 = vsel %vm4203, %v4193, %v1860
      %v4211 = vsel %vm4203, %v4194, %v1861
      %v4212 = vmul.f32 %v4204, -0.09375
      %v4213 = vmul.f32 %v4205, -0.09375
      %v4214 = vmul.f32 %v4206, -0.09375
      %v4215 = vmul.f32 %v4207, -0.09375
      %v4216 = vmul.f32 %v4208, -0.09375
      %v4217 = vmul.f32 %v4209, -0.09375
      %v4218 = vmul.f32 %v4210, -0.09375
      %v4219 = vmul.f32 %v4211, -0.09375
      %v4220 = vadd.f32 %v4179, %v4212
      %v4221 = vadd.f32 %v4180, %v4213
      %v4222 = vadd.f32 %v4181, %v4214
      %v4223 = vadd.f32 %v4182, %v4215
      %v4224 = vadd.f32 %v4183, %v4216
      %v4225 = vadd.f32 %v4184, %v4217
      %v4226 = vadd.f32 %v4185, %v4218
      %v4227 = vadd.f32 %v4186, %v4219
      %v4228 = vrot.slane %v1886, 7
      %v4229 = vrot.slane %v1887, 7
      %v4230 = vrot.slane %v1888, 7
      %v4231 = vrot.slane %v1889, 7
      %v4232 = vrot.slane %v1890, 7
      %v4233 = vrot.slane %v1891, 7
      %v4234 = vrot.slane %v1892, 7
      %v4235 = vrot.slane %v1893, 7
      %v4244 = vsel %vm1121, %v1862, %v4228
      %v4245 = vsel %vm1121, %v1863, %v4229
      %v4246 = vsel %vm1121, %v1864, %v4230
      %v4247 = vsel %vm1121, %v1865, %v4231
      %v4248 = vsel %vm1121, %v1866, %v4232
      %v4249 = vsel %vm1121, %v1867, %v4233
      %v4250 = vsel %vm1121, %v1868, %v4234
      %v4251 = vsel %vm1121, %v1869, %v4235
      %v4252 = vmul.f32 %v4244, -0.09375
      %v4253 = vmul.f32 %v4245, -0.09375
      %v4254 = vmul.f32 %v4246, -0.09375
      %v4255 = vmul.f32 %v4247, -0.09375
      %v4256 = vmul.f32 %v4248, -0.09375
      %v4257 = vmul.f32 %v4249, -0.09375
      %v4258 = vmul.f32 %v4250, -0.09375
      %v4259 = vmul.f32 %v4251, -0.09375
      %v4260 = vmul.f32 %v1862, 0.59375
      %v4261 = vmul.f32 %v1863, 0.59375
      %v4262 = vmul.f32 %v1864, 0.59375
      %v4263 = vmul.f32 %v1865, 0.59375
      %v4264 = vmul.f32 %v1866, 0.59375
      %v4265 = vmul.f32 %v1867, 0.59375
      %v4266 = vmul.f32 %v1868, 0.59375
      %v4267 = vmul.f32 %v1869, 0.59375
      %v4268 = vadd.f32 %v4252, %v4260
      %v4269 = vadd.f32 %v4253, %v4261
      %v4270 = vadd.f32 %v4254, %v4262
      %v4271 = vadd.f32 %v4255, %v4263
      %v4272 = vadd.f32 %v4256, %v4264
      %v4273 = vadd.f32 %v4257, %v4265
      %v4274 = vadd.f32 %v4258, %v4266
      %v4275 = vadd.f32 %v4259, %v4267
      %v4276 = vmul.f32 %v1870, 0.59375
      %v4277 = vmul.f32 %v1871, 0.59375
      %v4278 = vmul.f32 %v1872, 0.59375
      %v4279 = vmul.f32 %v1873, 0.59375
      %v4280 = vmul.f32 %v1874, 0.59375
      %v4281 = vmul.f32 %v1875, 0.59375
      %v4282 = vmul.f32 %v1876, 0.59375
      %v4283 = vmul.f32 %v1877, 0.59375
      %v4284 = vadd.f32 %v4268, %v4276
      %v4285 = vadd.f32 %v4269, %v4277
      %v4286 = vadd.f32 %v4270, %v4278
      %v4287 = vadd.f32 %v4271, %v4279
      %v4288 = vadd.f32 %v4272, %v4280
      %v4289 = vadd.f32 %v4273, %v4281
      %v4290 = vadd.f32 %v4274, %v4282
      %v4291 = vadd.f32 %v4275, %v4283
      %v4292 = vmul.f32 %v1878, -0.09375
      %v4293 = vmul.f32 %v1879, -0.09375
      %v4294 = vmul.f32 %v1880, -0.09375
      %v4295 = vmul.f32 %v1881, -0.09375
      %v4296 = vmul.f32 %v1882, -0.09375
      %v4297 = vmul.f32 %v1883, -0.09375
      %v4298 = vmul.f32 %v1884, -0.09375
      %v4299 = vmul.f32 %v1885, -0.09375
      %v4300 = vadd.f32 %v4284, %v4292
      %v4301 = vadd.f32 %v4285, %v4293
      %v4302 = vadd.f32 %v4286, %v4294
      %v4303 = vadd.f32 %v4287, %v4295
      %v4304 = vadd.f32 %v4288, %v4296
      %v4305 = vadd.f32 %v4289, %v4297
      %v4306 = vadd.f32 %v4290, %v4298
      %v4307 = vadd.f32 %v4291, %v4299
      %v4308 = vmul.f32 %v1870, -0.09375
      %v4309 = vmul.f32 %v1871, -0.09375
      %v4310 = vmul.f32 %v1872, -0.09375
      %v4311 = vmul.f32 %v1873, -0.09375
      %v4312 = vmul.f32 %v1874, -0.09375
      %v4313 = vmul.f32 %v1875, -0.09375
      %v4314 = vmul.f32 %v1876, -0.09375
      %v4315 = vmul.f32 %v1877, -0.09375
      %v4316 = vmul.f32 %v1878, 0.59375
      %v4317 = vmul.f32 %v1879, 0.59375
      %v4318 = vmul.f32 %v1880, 0.59375
      %v4319 = vmul.f32 %v1881, 0.59375
      %v4320 = vmul.f32 %v1882, 0.59375
      %v4321 = vmul.f32 %v1883, 0.59375
      %v4322 = vmul.f32 %v1884, 0.59375
      %v4323 = vmul.f32 %v1885, 0.59375
      %v4324 = vadd.f32 %v4308, %v4316
      %v4325 = vadd.f32 %v4309, %v4317
      %v4326 = vadd.f32 %v4310, %v4318
      %v4327 = vadd.f32 %v4311, %v4319
      %v4328 = vadd.f32 %v4312, %v4320
      %v4329 = vadd.f32 %v4313, %v4321
      %v4330 = vadd.f32 %v4314, %v4322
      %v4331 = vadd.f32 %v4315, %v4323
      %v4332 = vmul.f32 %v1886, 0.59375
      %v4333 = vmul.f32 %v1887, 0.59375
      %v4334 = vmul.f32 %v1888, 0.59375
      %v4335 = vmul.f32 %v1889, 0.59375
      %v4336 = vmul.f32 %v1890, 0.59375
      %v4337 = vmul.f32 %v1891, 0.59375
      %v4338 = vmul.f32 %v1892, 0.59375
      %v4339 = vmul.f32 %v1893, 0.59375
      %v4340 = vadd.f32 %v4324, %v4332
      %v4341 = vadd.f32 %v4325, %v4333
      %v4342 = vadd.f32 %v4326, %v4334
      %v4343 = vadd.f32 %v4327, %v4335
      %v4344 = vadd.f32 %v4328, %v4336
      %v4345 = vadd.f32 %v4329, %v4337
      %v4346 = vadd.f32 %v4330, %v4338
      %v4347 = vadd.f32 %v4331, %v4339
      %v4348 = vrot.slane %v1862, 1
      %v4349 = vrot.slane %v1863, 1
      %v4350 = vrot.slane %v1864, 1
      %v4351 = vrot.slane %v1865, 1
      %v4352 = vrot.slane %v1866, 1
      %v4353 = vrot.slane %v1867, 1
      %v4354 = vrot.slane %v1868, 1
      %v4355 = vrot.slane %v1869, 1
      %v4364 = vsel %vm4203, %v4348, %v1886
      %v4365 = vsel %vm4203, %v4349, %v1887
      %v4366 = vsel %vm4203, %v4350, %v1888
      %v4367 = vsel %vm4203, %v4351, %v1889
      %v4368 = vsel %vm4203, %v4352, %v1890
      %v4369 = vsel %vm4203, %v4353, %v1891
      %v4370 = vsel %vm4203, %v4354, %v1892
      %v4371 = vsel %vm4203, %v4355, %v1893
      %v4372 = vmul.f32 %v4364, -0.09375
      %v4373 = vmul.f32 %v4365, -0.09375
      %v4374 = vmul.f32 %v4366, -0.09375
      %v4375 = vmul.f32 %v4367, -0.09375
      %v4376 = vmul.f32 %v4368, -0.09375
      %v4377 = vmul.f32 %v4369, -0.09375
      %v4378 = vmul.f32 %v4370, -0.09375
      %v4379 = vmul.f32 %v4371, -0.09375
      %v4380 = vadd.f32 %v4340, %v4372
      %v4381 = vadd.f32 %v4341, %v4373
      %v4382 = vadd.f32 %v4342, %v4374
      %v4383 = vadd.f32 %v4343, %v4375
      %v4384 = vadd.f32 %v4344, %v4376
      %v4385 = vadd.f32 %v4345, %v4377
      %v4386 = vadd.f32 %v4346, %v4378
      %v4387 = vadd.f32 %v4347, %v4379
      %v4388 = vrot.slane %v1918, 7
      %v4389 = vrot.slane %v1919, 7
      %v4390 = vrot.slane %v1920, 7
      %v4391 = vrot.slane %v1921, 7
      %v4392 = vrot.slane %v1922, 7
      %v4393 = vrot.slane %v1923, 7
      %v4394 = vrot.slane %v1924, 7
      %v4395 = vrot.slane %v1925, 7
      %v4404 = vsel %vm1121, %v1894, %v4388
      %v4405 = vsel %vm1121, %v1895, %v4389
      %v4406 = vsel %vm1121, %v1896, %v4390
      %v4407 = vsel %vm1121, %v1897, %v4391
      %v4408 = vsel %vm1121, %v1898, %v4392
      %v4409 = vsel %vm1121, %v1899, %v4393
      %v4410 = vsel %vm1121, %v1900, %v4394
      %v4411 = vsel %vm1121, %v1901, %v4395
      %v4412 = vmul.f32 %v4404, -0.09375
      %v4413 = vmul.f32 %v4405, -0.09375
      %v4414 = vmul.f32 %v4406, -0.09375
      %v4415 = vmul.f32 %v4407, -0.09375
      %v4416 = vmul.f32 %v4408, -0.09375
      %v4417 = vmul.f32 %v4409, -0.09375
      %v4418 = vmul.f32 %v4410, -0.09375
      %v4419 = vmul.f32 %v4411, -0.09375
      %v4420 = vmul.f32 %v1894, 0.59375
      %v4421 = vmul.f32 %v1895, 0.59375
      %v4422 = vmul.f32 %v1896, 0.59375
      %v4423 = vmul.f32 %v1897, 0.59375
      %v4424 = vmul.f32 %v1898, 0.59375
      %v4425 = vmul.f32 %v1899, 0.59375
      %v4426 = vmul.f32 %v1900, 0.59375
      %v4427 = vmul.f32 %v1901, 0.59375
      %v4428 = vadd.f32 %v4412, %v4420
      %v4429 = vadd.f32 %v4413, %v4421
      %v4430 = vadd.f32 %v4414, %v4422
      %v4431 = vadd.f32 %v4415, %v4423
      %v4432 = vadd.f32 %v4416, %v4424
      %v4433 = vadd.f32 %v4417, %v4425
      %v4434 = vadd.f32 %v4418, %v4426
      %v4435 = vadd.f32 %v4419, %v4427
      %v4436 = vmul.f32 %v1902, 0.59375
      %v4437 = vmul.f32 %v1903, 0.59375
      %v4438 = vmul.f32 %v1904, 0.59375
      %v4439 = vmul.f32 %v1905, 0.59375
      %v4440 = vmul.f32 %v1906, 0.59375
      %v4441 = vmul.f32 %v1907, 0.59375
      %v4442 = vmul.f32 %v1908, 0.59375
      %v4443 = vmul.f32 %v1909, 0.59375
      %v4444 = vadd.f32 %v4428, %v4436
      %v4445 = vadd.f32 %v4429, %v4437
      %v4446 = vadd.f32 %v4430, %v4438
      %v4447 = vadd.f32 %v4431, %v4439
      %v4448 = vadd.f32 %v4432, %v4440
      %v4449 = vadd.f32 %v4433, %v4441
      %v4450 = vadd.f32 %v4434, %v4442
      %v4451 = vadd.f32 %v4435, %v4443
      %v4452 = vmul.f32 %v1910, -0.09375
      %v4453 = vmul.f32 %v1911, -0.09375
      %v4454 = vmul.f32 %v1912, -0.09375
      %v4455 = vmul.f32 %v1913, -0.09375
      %v4456 = vmul.f32 %v1914, -0.09375
      %v4457 = vmul.f32 %v1915, -0.09375
      %v4458 = vmul.f32 %v1916, -0.09375
      %v4459 = vmul.f32 %v1917, -0.09375
      %v4460 = vadd.f32 %v4444, %v4452
      %v4461 = vadd.f32 %v4445, %v4453
      %v4462 = vadd.f32 %v4446, %v4454
      %v4463 = vadd.f32 %v4447, %v4455
      %v4464 = vadd.f32 %v4448, %v4456
      %v4465 = vadd.f32 %v4449, %v4457
      %v4466 = vadd.f32 %v4450, %v4458
      %v4467 = vadd.f32 %v4451, %v4459
      %v4468 = vmul.f32 %v1902, -0.09375
      %v4469 = vmul.f32 %v1903, -0.09375
      %v4470 = vmul.f32 %v1904, -0.09375
      %v4471 = vmul.f32 %v1905, -0.09375
      %v4472 = vmul.f32 %v1906, -0.09375
      %v4473 = vmul.f32 %v1907, -0.09375
      %v4474 = vmul.f32 %v1908, -0.09375
      %v4475 = vmul.f32 %v1909, -0.09375
      %v4476 = vmul.f32 %v1910, 0.59375
      %v4477 = vmul.f32 %v1911, 0.59375
      %v4478 = vmul.f32 %v1912, 0.59375
      %v4479 = vmul.f32 %v1913, 0.59375
      %v4480 = vmul.f32 %v1914, 0.59375
      %v4481 = vmul.f32 %v1915, 0.59375
      %v4482 = vmul.f32 %v1916, 0.59375
      %v4483 = vmul.f32 %v1917, 0.59375
      %v4484 = vadd.f32 %v4468, %v4476
      %v4485 = vadd.f32 %v4469, %v4477
      %v4486 = vadd.f32 %v4470, %v4478
      %v4487 = vadd.f32 %v4471, %v4479
      %v4488 = vadd.f32 %v4472, %v4480
      %v4489 = vadd.f32 %v4473, %v4481
      %v4490 = vadd.f32 %v4474, %v4482
      %v4491 = vadd.f32 %v4475, %v4483
      %v4492 = vmul.f32 %v1918, 0.59375
      %v4493 = vmul.f32 %v1919, 0.59375
      %v4494 = vmul.f32 %v1920, 0.59375
      %v4495 = vmul.f32 %v1921, 0.59375
      %v4496 = vmul.f32 %v1922, 0.59375
      %v4497 = vmul.f32 %v1923, 0.59375
      %v4498 = vmul.f32 %v1924, 0.59375
      %v4499 = vmul.f32 %v1925, 0.59375
      %v4500 = vadd.f32 %v4484, %v4492
      %v4501 = vadd.f32 %v4485, %v4493
      %v4502 = vadd.f32 %v4486, %v4494
      %v4503 = vadd.f32 %v4487, %v4495
      %v4504 = vadd.f32 %v4488, %v4496
      %v4505 = vadd.f32 %v4489, %v4497
      %v4506 = vadd.f32 %v4490, %v4498
      %v4507 = vadd.f32 %v4491, %v4499
      %v4508 = vrot.slane %v1894, 1
      %v4509 = vrot.slane %v1895, 1
      %v4510 = vrot.slane %v1896, 1
      %v4511 = vrot.slane %v1897, 1
      %v4512 = vrot.slane %v1898, 1
      %v4513 = vrot.slane %v1899, 1
      %v4514 = vrot.slane %v1900, 1
      %v4515 = vrot.slane %v1901, 1
      %v4524 = vsel %vm4203, %v4508, %v1918
      %v4525 = vsel %vm4203, %v4509, %v1919
      %v4526 = vsel %vm4203, %v4510, %v1920
      %v4527 = vsel %vm4203, %v4511, %v1921
      %v4528 = vsel %vm4203, %v4512, %v1922
      %v4529 = vsel %vm4203, %v4513, %v1923
      %v4530 = vsel %vm4203, %v4514, %v1924
      %v4531 = vsel %vm4203, %v4515, %v1925
      %v4532 = vmul.f32 %v4524, -0.09375
      %v4533 = vmul.f32 %v4525, -0.09375
      %v4534 = vmul.f32 %v4526, -0.09375
      %v4535 = vmul.f32 %v4527, -0.09375
      %v4536 = vmul.f32 %v4528, -0.09375
      %v4537 = vmul.f32 %v4529, -0.09375
      %v4538 = vmul.f32 %v4530, -0.09375
      %v4539 = vmul.f32 %v4531, -0.09375
      %v4540 = vadd.f32 %v4500, %v4532
      %v4541 = vadd.f32 %v4501, %v4533
      %v4542 = vadd.f32 %v4502, %v4534
      %v4543 = vadd.f32 %v4503, %v4535
      %v4544 = vadd.f32 %v4504, %v4536
      %v4545 = vadd.f32 %v4505, %v4537
      %v4546 = vadd.f32 %v4506, %v4538
      %v4547 = vadd.f32 %v4507, %v4539
      %v4548 = vrot.slane %v1950, 7
      %v4549 = vrot.slane %v1951, 7
      %v4550 = vrot.slane %v1952, 7
      %v4551 = vrot.slane %v1953, 7
      %v4552 = vrot.slane %v1954, 7
      %v4553 = vrot.slane %v1955, 7
      %v4554 = vrot.slane %v1956, 7
      %v4555 = vrot.slane %v1957, 7
      %v4564 = vsel %vm1121, %v1926, %v4548
      %v4565 = vsel %vm1121, %v1927, %v4549
      %v4566 = vsel %vm1121, %v1928, %v4550
      %v4567 = vsel %vm1121, %v1929, %v4551
      %v4568 = vsel %vm1121, %v1930, %v4552
      %v4569 = vsel %vm1121, %v1931, %v4553
      %v4570 = vsel %vm1121, %v1932, %v4554
      %v4571 = vsel %vm1121, %v1933, %v4555
      %v4572 = vmul.f32 %v4564, -0.09375
      %v4573 = vmul.f32 %v4565, -0.09375
      %v4574 = vmul.f32 %v4566, -0.09375
      %v4575 = vmul.f32 %v4567, -0.09375
      %v4576 = vmul.f32 %v4568, -0.09375
      %v4577 = vmul.f32 %v4569, -0.09375
      %v4578 = vmul.f32 %v4570, -0.09375
      %v4579 = vmul.f32 %v4571, -0.09375
      %v4580 = vmul.f32 %v1926, 0.59375
      %v4581 = vmul.f32 %v1927, 0.59375
      %v4582 = vmul.f32 %v1928, 0.59375
      %v4583 = vmul.f32 %v1929, 0.59375
      %v4584 = vmul.f32 %v1930, 0.59375
      %v4585 = vmul.f32 %v1931, 0.59375
      %v4586 = vmul.f32 %v1932, 0.59375
      %v4587 = vmul.f32 %v1933, 0.59375
      %v4588 = vadd.f32 %v4572, %v4580
      %v4589 = vadd.f32 %v4573, %v4581
      %v4590 = vadd.f32 %v4574, %v4582
      %v4591 = vadd.f32 %v4575, %v4583
      %v4592 = vadd.f32 %v4576, %v4584
      %v4593 = vadd.f32 %v4577, %v4585
      %v4594 = vadd.f32 %v4578, %v4586
      %v4595 = vadd.f32 %v4579, %v4587
      %v4596 = vmul.f32 %v1934, 0.59375
      %v4597 = vmul.f32 %v1935, 0.59375
      %v4598 = vmul.f32 %v1936, 0.59375
      %v4599 = vmul.f32 %v1937, 0.59375
      %v4600 = vmul.f32 %v1938, 0.59375
      %v4601 = vmul.f32 %v1939, 0.59375
      %v4602 = vmul.f32 %v1940, 0.59375
      %v4603 = vmul.f32 %v1941, 0.59375
      %v4604 = vadd.f32 %v4588, %v4596
      %v4605 = vadd.f32 %v4589, %v4597
      %v4606 = vadd.f32 %v4590, %v4598
      %v4607 = vadd.f32 %v4591, %v4599
      %v4608 = vadd.f32 %v4592, %v4600
      %v4609 = vadd.f32 %v4593, %v4601
      %v4610 = vadd.f32 %v4594, %v4602
      %v4611 = vadd.f32 %v4595, %v4603
      %v4612 = vmul.f32 %v1942, -0.09375
      %v4613 = vmul.f32 %v1943, -0.09375
      %v4614 = vmul.f32 %v1944, -0.09375
      %v4615 = vmul.f32 %v1945, -0.09375
      %v4616 = vmul.f32 %v1946, -0.09375
      %v4617 = vmul.f32 %v1947, -0.09375
      %v4618 = vmul.f32 %v1948, -0.09375
      %v4619 = vmul.f32 %v1949, -0.09375
      %v4620 = vadd.f32 %v4604, %v4612
      %v4621 = vadd.f32 %v4605, %v4613
      %v4622 = vadd.f32 %v4606, %v4614
      %v4623 = vadd.f32 %v4607, %v4615
      %v4624 = vadd.f32 %v4608, %v4616
      %v4625 = vadd.f32 %v4609, %v4617
      %v4626 = vadd.f32 %v4610, %v4618
      %v4627 = vadd.f32 %v4611, %v4619
      %v4628 = vmul.f32 %v1934, -0.09375
      %v4629 = vmul.f32 %v1935, -0.09375
      %v4630 = vmul.f32 %v1936, -0.09375
      %v4631 = vmul.f32 %v1937, -0.09375
      %v4632 = vmul.f32 %v1938, -0.09375
      %v4633 = vmul.f32 %v1939, -0.09375
      %v4634 = vmul.f32 %v1940, -0.09375
      %v4635 = vmul.f32 %v1941, -0.09375
      %v4636 = vmul.f32 %v1942, 0.59375
      %v4637 = vmul.f32 %v1943, 0.59375
      %v4638 = vmul.f32 %v1944, 0.59375
      %v4639 = vmul.f32 %v1945, 0.59375
      %v4640 = vmul.f32 %v1946, 0.59375
      %v4641 = vmul.f32 %v1947, 0.59375
      %v4642 = vmul.f32 %v1948, 0.59375
      %v4643 = vmul.f32 %v1949, 0.59375
      %v4644 = vadd.f32 %v4628, %v4636
      %v4645 = vadd.f32 %v4629, %v4637
      %v4646 = vadd.f32 %v4630, %v4638
      %v4647 = vadd.f32 %v4631, %v4639
      %v4648 = vadd.f32 %v4632, %v4640
      %v4649 = vadd.f32 %v4633, %v4641
      %v4650 = vadd.f32 %v4634, %v4642
      %v4651 = vadd.f32 %v4635, %v4643
      %v4652 = vmul.f32 %v1950, 0.59375
      %v4653 = vmul.f32 %v1951, 0.59375
      %v4654 = vmul.f32 %v1952, 0.59375
      %v4655 = vmul.f32 %v1953, 0.59375
      %v4656 = vmul.f32 %v1954, 0.59375
      %v4657 = vmul.f32 %v1955, 0.59375
      %v4658 = vmul.f32 %v1956, 0.59375
      %v4659 = vmul.f32 %v1957, 0.59375
      %v4660 = vadd.f32 %v4644, %v4652
      %v4661 = vadd.f32 %v4645, %v4653
      %v4662 = vadd.f32 %v4646, %v4654
      %v4663 = vadd.f32 %v4647, %v4655
      %v4664 = vadd.f32 %v4648, %v4656
      %v4665 = vadd.f32 %v4649, %v4657
      %v4666 = vadd.f32 %v4650, %v4658
      %v4667 = vadd.f32 %v4651, %v4659
      %v4668 = vrot.slane %v1926, 1
      %v4669 = vrot.slane %v1927, 1
      %v4670 = vrot.slane %v1928, 1
      %v4671 = vrot.slane %v1929, 1
      %v4672 = vrot.slane %v1930, 1
      %v4673 = vrot.slane %v1931, 1
      %v4674 = vrot.slane %v1932, 1
      %v4675 = vrot.slane %v1933, 1
      %v4684 = vsel %vm4203, %v4668, %v1950
      %v4685 = vsel %vm4203, %v4669, %v1951
      %v4686 = vsel %vm4203, %v4670, %v1952
      %v4687 = vsel %vm4203, %v4671, %v1953
      %v4688 = vsel %vm4203, %v4672, %v1954
      %v4689 = vsel %vm4203, %v4673, %v1955
      %v4690 = vsel %vm4203, %v4674, %v1956
      %v4691 = vsel %vm4203, %v4675, %v1957
      %v4692 = vmul.f32 %v4684, -0.09375
      %v4693 = vmul.f32 %v4685, -0.09375
      %v4694 = vmul.f32 %v4686, -0.09375
      %v4695 = vmul.f32 %v4687, -0.09375
      %v4696 = vmul.f32 %v4688, -0.09375
      %v4697 = vmul.f32 %v4689, -0.09375
      %v4698 = vmul.f32 %v4690, -0.09375
      %v4699 = vmul.f32 %v4691, -0.09375
      %v4700 = vadd.f32 %v4660, %v4692
      %v4701 = vadd.f32 %v4661, %v4693
      %v4702 = vadd.f32 %v4662, %v4694
      %v4703 = vadd.f32 %v4663, %v4695
      %v4704 = vadd.f32 %v4664, %v4696
      %v4705 = vadd.f32 %v4665, %v4697
      %v4706 = vadd.f32 %v4666, %v4698
      %v4707 = vadd.f32 %v4667, %v4699
      %v4708 = vmul.f32 %v4139, -0.09375
      %v4709 = vmul.f32 %v4620, -0.09375
      %v4710 = vmul.f32 %v4621, -0.09375
      %v4711 = vmul.f32 %v4622, -0.09375
      %v4712 = vmul.f32 %v4623, -0.09375
      %v4713 = vmul.f32 %v4624, -0.09375
      %v4714 = vmul.f32 %v4625, -0.09375
      %v4715 = vmul.f32 %v4626, -0.09375
      %v4716 = vmul.f32 %v4139, 0.59375
      %v4717 = vmul.f32 %v4140, 0.59375
      %v4718 = vmul.f32 %v4141, 0.59375
      %v4719 = vmul.f32 %v4142, 0.59375
      %v4720 = vmul.f32 %v4143, 0.59375
      %v4721 = vmul.f32 %v4144, 0.59375
      %v4722 = vmul.f32 %v4145, 0.59375
      %v4723 = vmul.f32 %v4146, 0.59375
      %v4724 = vadd.f32 %v4708, %v4716
      %v4725 = vadd.f32 %v4709, %v4717
      %v4726 = vadd.f32 %v4710, %v4718
      %v4727 = vadd.f32 %v4711, %v4719
      %v4728 = vadd.f32 %v4712, %v4720
      %v4729 = vadd.f32 %v4713, %v4721
      %v4730 = vadd.f32 %v4714, %v4722
      %v4731 = vadd.f32 %v4715, %v4723
      %v4732 = vmul.f32 %v4300, 0.59375
      %v4733 = vmul.f32 %v4301, 0.59375
      %v4734 = vmul.f32 %v4302, 0.59375
      %v4735 = vmul.f32 %v4303, 0.59375
      %v4736 = vmul.f32 %v4304, 0.59375
      %v4737 = vmul.f32 %v4305, 0.59375
      %v4738 = vmul.f32 %v4306, 0.59375
      %v4739 = vmul.f32 %v4307, 0.59375
      %v4740 = vadd.f32 %v4724, %v4732
      %v4741 = vadd.f32 %v4725, %v4733
      %v4742 = vadd.f32 %v4726, %v4734
      %v4743 = vadd.f32 %v4727, %v4735
      %v4744 = vadd.f32 %v4728, %v4736
      %v4745 = vadd.f32 %v4729, %v4737
      %v4746 = vadd.f32 %v4730, %v4738
      %v4747 = vadd.f32 %v4731, %v4739
      %v4748 = vmul.f32 %v4460, -0.09375
      %v4749 = vmul.f32 %v4461, -0.09375
      %v4750 = vmul.f32 %v4462, -0.09375
      %v4751 = vmul.f32 %v4463, -0.09375
      %v4752 = vmul.f32 %v4464, -0.09375
      %v4753 = vmul.f32 %v4465, -0.09375
      %v4754 = vmul.f32 %v4466, -0.09375
      %v4755 = vmul.f32 %v4467, -0.09375
      %v4756 = vadd.f32 %v4740, %v4748
      %v4757 = vadd.f32 %v4741, %v4749
      %v4758 = vadd.f32 %v4742, %v4750
      %v4759 = vadd.f32 %v4743, %v4751
      %v4760 = vadd.f32 %v4744, %v4752
      %v4761 = vadd.f32 %v4745, %v4753
      %v4762 = vadd.f32 %v4746, %v4754
      %v4763 = vadd.f32 %v4747, %v4755
      %v4764 = vmul.f32 %v4300, -0.09375
      %v4765 = vmul.f32 %v4301, -0.09375
      %v4766 = vmul.f32 %v4302, -0.09375
      %v4767 = vmul.f32 %v4303, -0.09375
      %v4768 = vmul.f32 %v4304, -0.09375
      %v4769 = vmul.f32 %v4305, -0.09375
      %v4770 = vmul.f32 %v4306, -0.09375
      %v4771 = vmul.f32 %v4307, -0.09375
      %v4772 = vmul.f32 %v4460, 0.59375
      %v4773 = vmul.f32 %v4461, 0.59375
      %v4774 = vmul.f32 %v4462, 0.59375
      %v4775 = vmul.f32 %v4463, 0.59375
      %v4776 = vmul.f32 %v4464, 0.59375
      %v4777 = vmul.f32 %v4465, 0.59375
      %v4778 = vmul.f32 %v4466, 0.59375
      %v4779 = vmul.f32 %v4467, 0.59375
      %v4780 = vadd.f32 %v4764, %v4772
      %v4781 = vadd.f32 %v4765, %v4773
      %v4782 = vadd.f32 %v4766, %v4774
      %v4783 = vadd.f32 %v4767, %v4775
      %v4784 = vadd.f32 %v4768, %v4776
      %v4785 = vadd.f32 %v4769, %v4777
      %v4786 = vadd.f32 %v4770, %v4778
      %v4787 = vadd.f32 %v4771, %v4779
      %v4788 = vmul.f32 %v4620, 0.59375
      %v4789 = vmul.f32 %v4621, 0.59375
      %v4790 = vmul.f32 %v4622, 0.59375
      %v4791 = vmul.f32 %v4623, 0.59375
      %v4792 = vmul.f32 %v4624, 0.59375
      %v4793 = vmul.f32 %v4625, 0.59375
      %v4794 = vmul.f32 %v4626, 0.59375
      %v4795 = vmul.f32 %v4627, 0.59375
      %v4796 = vadd.f32 %v4780, %v4788
      %v4797 = vadd.f32 %v4781, %v4789
      %v4798 = vadd.f32 %v4782, %v4790
      %v4799 = vadd.f32 %v4783, %v4791
      %v4800 = vadd.f32 %v4784, %v4792
      %v4801 = vadd.f32 %v4785, %v4793
      %v4802 = vadd.f32 %v4786, %v4794
      %v4803 = vadd.f32 %v4787, %v4795
      %v4804 = vmul.f32 %v4140, -0.09375
      %v4805 = vmul.f32 %v4141, -0.09375
      %v4806 = vmul.f32 %v4142, -0.09375
      %v4807 = vmul.f32 %v4143, -0.09375
      %v4808 = vmul.f32 %v4144, -0.09375
      %v4809 = vmul.f32 %v4145, -0.09375
      %v4810 = vmul.f32 %v4146, -0.09375
      %v4811 = vmul.f32 %v4627, -0.09375
      %v4812 = vadd.f32 %v4796, %v4804
      %v4813 = vadd.f32 %v4797, %v4805
      %v4814 = vadd.f32 %v4798, %v4806
      %v4815 = vadd.f32 %v4799, %v4807
      %v4816 = vadd.f32 %v4800, %v4808
      %v4817 = vadd.f32 %v4801, %v4809
      %v4818 = vadd.f32 %v4802, %v4810
      %v4819 = vadd.f32 %v4803, %v4811
      %v4820 = vmul.f32 %v4220, -0.09375
      %v4821 = vmul.f32 %v4700, -0.09375
      %v4822 = vmul.f32 %v4701, -0.09375
      %v4823 = vmul.f32 %v4702, -0.09375
      %v4824 = vmul.f32 %v4703, -0.09375
      %v4825 = vmul.f32 %v4704, -0.09375
      %v4826 = vmul.f32 %v4705, -0.09375
      %v4827 = vmul.f32 %v4706, -0.09375
      %v4828 = vmul.f32 %v4220, 0.59375
      %v4829 = vmul.f32 %v4221, 0.59375
      %v4830 = vmul.f32 %v4222, 0.59375
      %v4831 = vmul.f32 %v4223, 0.59375
      %v4832 = vmul.f32 %v4224, 0.59375
      %v4833 = vmul.f32 %v4225, 0.59375
      %v4834 = vmul.f32 %v4226, 0.59375
      %v4835 = vmul.f32 %v4227, 0.59375
      %v4836 = vadd.f32 %v4820, %v4828
      %v4837 = vadd.f32 %v4821, %v4829
      %v4838 = vadd.f32 %v4822, %v4830
      %v4839 = vadd.f32 %v4823, %v4831
      %v4840 = vadd.f32 %v4824, %v4832
      %v4841 = vadd.f32 %v4825, %v4833
      %v4842 = vadd.f32 %v4826, %v4834
      %v4843 = vadd.f32 %v4827, %v4835
      %v4844 = vmul.f32 %v4380, 0.59375
      %v4845 = vmul.f32 %v4381, 0.59375
      %v4846 = vmul.f32 %v4382, 0.59375
      %v4847 = vmul.f32 %v4383, 0.59375
      %v4848 = vmul.f32 %v4384, 0.59375
      %v4849 = vmul.f32 %v4385, 0.59375
      %v4850 = vmul.f32 %v4386, 0.59375
      %v4851 = vmul.f32 %v4387, 0.59375
      %v4852 = vadd.f32 %v4836, %v4844
      %v4853 = vadd.f32 %v4837, %v4845
      %v4854 = vadd.f32 %v4838, %v4846
      %v4855 = vadd.f32 %v4839, %v4847
      %v4856 = vadd.f32 %v4840, %v4848
      %v4857 = vadd.f32 %v4841, %v4849
      %v4858 = vadd.f32 %v4842, %v4850
      %v4859 = vadd.f32 %v4843, %v4851
      %v4860 = vmul.f32 %v4540, -0.09375
      %v4861 = vmul.f32 %v4541, -0.09375
      %v4862 = vmul.f32 %v4542, -0.09375
      %v4863 = vmul.f32 %v4543, -0.09375
      %v4864 = vmul.f32 %v4544, -0.09375
      %v4865 = vmul.f32 %v4545, -0.09375
      %v4866 = vmul.f32 %v4546, -0.09375
      %v4867 = vmul.f32 %v4547, -0.09375
      %v4868 = vadd.f32 %v4852, %v4860
      %v4869 = vadd.f32 %v4853, %v4861
      %v4870 = vadd.f32 %v4854, %v4862
      %v4871 = vadd.f32 %v4855, %v4863
      %v4872 = vadd.f32 %v4856, %v4864
      %v4873 = vadd.f32 %v4857, %v4865
      %v4874 = vadd.f32 %v4858, %v4866
      %v4875 = vadd.f32 %v4859, %v4867
      %v4876 = vmul.f32 %v4380, -0.09375
      %v4877 = vmul.f32 %v4381, -0.09375
      %v4878 = vmul.f32 %v4382, -0.09375
      %v4879 = vmul.f32 %v4383, -0.09375
      %v4880 = vmul.f32 %v4384, -0.09375
      %v4881 = vmul.f32 %v4385, -0.09375
      %v4882 = vmul.f32 %v4386, -0.09375
      %v4883 = vmul.f32 %v4387, -0.09375
      %v4884 = vmul.f32 %v4540, 0.59375
      %v4885 = vmul.f32 %v4541, 0.59375
      %v4886 = vmul.f32 %v4542, 0.59375
      %v4887 = vmul.f32 %v4543, 0.59375
      %v4888 = vmul.f32 %v4544, 0.59375
      %v4889 = vmul.f32 %v4545, 0.59375
      %v4890 = vmul.f32 %v4546, 0.59375
      %v4891 = vmul.f32 %v4547, 0.59375
      %v4892 = vadd.f32 %v4876, %v4884
      %v4893 = vadd.f32 %v4877, %v4885
      %v4894 = vadd.f32 %v4878, %v4886
      %v4895 = vadd.f32 %v4879, %v4887
      %v4896 = vadd.f32 %v4880, %v4888
      %v4897 = vadd.f32 %v4881, %v4889
      %v4898 = vadd.f32 %v4882, %v4890
      %v4899 = vadd.f32 %v4883, %v4891
      %v4900 = vmul.f32 %v4700, 0.59375
      %v4901 = vmul.f32 %v4701, 0.59375
      %v4902 = vmul.f32 %v4702, 0.59375
      %v4903 = vmul.f32 %v4703, 0.59375
      %v4904 = vmul.f32 %v4704, 0.59375
      %v4905 = vmul.f32 %v4705, 0.59375
      %v4906 = vmul.f32 %v4706, 0.59375
      %v4907 = vmul.f32 %v4707, 0.59375
      %v4908 = vadd.f32 %v4892, %v4900
      %v4909 = vadd.f32 %v4893, %v4901
      %v4910 = vadd.f32 %v4894, %v4902
      %v4911 = vadd.f32 %v4895, %v4903
      %v4912 = vadd.f32 %v4896, %v4904
      %v4913 = vadd.f32 %v4897, %v4905
      %v4914 = vadd.f32 %v4898, %v4906
      %v4915 = vadd.f32 %v4899, %v4907
      %v4916 = vmul.f32 %v4221, -0.09375
      %v4917 = vmul.f32 %v4222, -0.09375
      %v4918 = vmul.f32 %v4223, -0.09375
      %v4919 = vmul.f32 %v4224, -0.09375
      %v4920 = vmul.f32 %v4225, -0.09375
      %v4921 = vmul.f32 %v4226, -0.09375
      %v4922 = vmul.f32 %v4227, -0.09375
      %v4923 = vmul.f32 %v4707, -0.09375
      %v4924 = vadd.f32 %v4908, %v4916
      %v4925 = vadd.f32 %v4909, %v4917
      %v4926 = vadd.f32 %v4910, %v4918
      %v4927 = vadd.f32 %v4911, %v4919
      %v4928 = vadd.f32 %v4912, %v4920
      %v4929 = vadd.f32 %v4913, %v4921
      %v4930 = vadd.f32 %v4914, %v4922
      %v4931 = vadd.f32 %v4915, %v4923
      %v4932 = vlaneseq
      %v4933 = vshrl.u32 %v4932, 7
      %v4934 = vsub.s32 0, %v4933
      %v4935 = vrot.slane %v2337, %v4934
      %4937 = vbcast.lane.b32.xlu0 %v4935, 256
      %v4938 = vpop.permute.xlu0 %4937
      %v4939 = vlaneseq
      %v4940 = vshrl.u32 %v4939, 7
      %v4941 = vsub.s32 1, %v4940
      %v4942 = vrot.slane %v2337, %v4941
      %4944 = vbcast.lane.b32.xlu0 %v4942, 256
      %v4945 = vpop.permute.xlu0 %4944
      %v4946 = vlaneseq
      %v4947 = vshrl.u32 %v4946, 7
      %v4948 = vsub.s32 2, %v4947
      %v4949 = vrot.slane %v2337, %v4948
      %4951 = vbcast.lane.b32.xlu0 %v4949, 256
      %v4952 = vpop.permute.xlu0 %4951
      %v4953 = vlaneseq
      %v4954 = vshrl.u32 %v4953, 7
      %v4955 = vsub.s32 3, %v4954
      %v4956 = vrot.slane %v2337, %v4955
      %4958 = vbcast.lane.b32.xlu0 %v4956, 256
      %v4959 = vpop.permute.xlu0 %4958
      %v4960 = vlaneseq
      %v4961 = vshrl.u32 %v4960, 7
      %v4962 = vsub.s32 4, %v4961
      %v4963 = vrot.slane %v2337, %v4962
      %4965 = vbcast.lane.b32.xlu0 %v4963, 256
      %v4966 = vpop.permute.xlu0 %4965
      %v4967 = vlaneseq
      %v4968 = vshrl.u32 %v4967, 7
      %v4969 = vsub.s32 5, %v4968
      %v4970 = vrot.slane %v2337, %v4969
      %4972 = vbcast.lane.b32.xlu0 %v4970, 256
      %v4973 = vpop.permute.xlu0 %4972
      %v4974 = vlaneseq
      %v4975 = vshrl.u32 %v4974, 7
      %v4976 = vsub.s32 6, %v4975
      %v4977 = vrot.slane %v2337, %v4976
      %4979 = vbcast.lane.b32.xlu0 %v4977, 256
      %v4980 = vpop.permute.xlu0 %4979
      %v4981 = vlaneseq
      %v4982 = vshrl.u32 %v4981, 7
      %v4983 = vsub.s32 7, %v4982
      %v4984 = vrot.slane %v2337, %v4983
      %4986 = vbcast.lane.b32.xlu0 %v4984, 256
      %v4987 = vpop.permute.xlu0 %4986
      %4996 = vrot.lane.b32.xlu0 %v4756, 1
      %v4997 = vpop.permute.xlu0 %4996
      %4998 = vrot.lane.b32.xlu0 %v4757, 1
      %v4999 = vpop.permute.xlu0 %4998
      %5000 = vrot.lane.b32.xlu0 %v4758, 1
      %v5001 = vpop.permute.xlu0 %5000
      %5002 = vrot.lane.b32.xlu0 %v4759, 1
      %v5003 = vpop.permute.xlu0 %5002
      %5004 = vrot.lane.b32.xlu0 %v4760, 1
      %v5005 = vpop.permute.xlu0 %5004
      %5006 = vrot.lane.b32.xlu0 %v4761, 1
      %v5007 = vpop.permute.xlu0 %5006
      %5008 = vrot.lane.b32.xlu0 %v4762, 1
      %v5009 = vpop.permute.xlu0 %5008
      %5010 = vrot.lane.b32.xlu0 %v4763, 1
      %v5011 = vpop.permute.xlu0 %5010
      %5028 = vrot.lane.b32.xlu0 %v4012, 32
      %v5029 = vpop.permute.xlu0 %5028
      %5030 = vrot.lane.b32.xlu0 %v4013, 32
      %v5031 = vpop.permute.xlu0 %5030
      %5032 = vrot.lane.b32.xlu0 %v4014, 32
      %v5033 = vpop.permute.xlu0 %5032
      %5034 = vrot.lane.b32.xlu0 %v4015, 32
      %v5035 = vpop.permute.xlu0 %5034
      %5036 = vrot.lane.b32.xlu0 %v4016, 32
      %v5037 = vpop.permute.xlu0 %5036
      %5038 = vrot.lane.b32.xlu0 %v4017, 32
      %v5039 = vpop.permute.xlu0 %5038
      %5040 = vrot.lane.b32.xlu0 %v4018, 32
      %v5041 = vpop.permute.xlu0 %5040
      %5042 = vrot.lane.b32.xlu0 %v4019, 32
      %v5043 = vpop.permute.xlu0 %5042
      %v5052 = vsel %vm2588, %v4938, %v4997
      %v5053 = vsel %vm2588, %v4945, %v4999
      %v5054 = vsel %vm2588, %v4952, %v5001
      %v5055 = vsel %vm2588, %v4959, %v5003
      %v5056 = vsel %vm2588, %v4966, %v5005
      %v5057 = vsel %vm2588, %v4973, %v5007
      %v5058 = vsel %vm2588, %v4980, %v5009
      %v5059 = vsel %vm2588, %v4987, %v5011
      %vm5060 = vcmask 261120
      %v5061 = vsel %vm5060, %v5052, %v5029
      %v5062 = vsel %vm5060, %v5053, %v5031
      %v5063 = vsel %vm5060, %v5054, %v5033
      %v5064 = vsel %vm5060, %v5055, %v5035
      %v5065 = vsel %vm5060, %v5056, %v5037
      %v5066 = vsel %vm5060, %v5057, %v5039
      %v5067 = vsel %vm5060, %v5058, %v5041
      %v5068 = vsel %vm5060, %v5059, %v5043
      %s5070 = sor.u32 256, 8
      %5071 = vbcast.lane.b32.xlu0 %v4935, %s5070
      %v5072 = vpop.permute.xlu0 %5071
      %s5074 = sor.u32 256, 8
      %5075 = vbcast.lane.b32.xlu0 %v4942, %s5074
      %v5076 = vpop.permute.xlu0 %5075
      %s5078 = sor.u32 256, 8
      %5079 = vbcast.lane.b32.xlu0 %v4949, %s5078
      %v5080 = vpop.permute.xlu0 %5079
      %s5082 = sor.u32 256, 8
      %5083 = vbcast.lane.b32.xlu0 %v4956, %s5082
      %v5084 = vpop.permute.xlu0 %5083
      %s5086 = sor.u32 256, 8
      %5087 = vbcast.lane.b32.xlu0 %v4963, %s5086
      %v5088 = vpop.permute.xlu0 %5087
      %s5090 = sor.u32 256, 8
      %5091 = vbcast.lane.b32.xlu0 %v4970, %s5090
      %v5092 = vpop.permute.xlu0 %5091
      %s5094 = sor.u32 256, 8
      %5095 = vbcast.lane.b32.xlu0 %v4977, %s5094
      %v5096 = vpop.permute.xlu0 %5095
      %s5098 = sor.u32 256, 8
      %5099 = vbcast.lane.b32.xlu0 %v4984, %s5098
      %v5100 = vpop.permute.xlu0 %5099
      %5109 = vrot.lane.b32.xlu0 %v4868, 1
      %v5110 = vpop.permute.xlu0 %5109
      %5111 = vrot.lane.b32.xlu0 %v4869, 1
      %v5112 = vpop.permute.xlu0 %5111
      %5113 = vrot.lane.b32.xlu0 %v4870, 1
      %v5114 = vpop.permute.xlu0 %5113
      %5115 = vrot.lane.b32.xlu0 %v4871, 1
      %v5116 = vpop.permute.xlu0 %5115
      %5117 = vrot.lane.b32.xlu0 %v4872, 1
      %v5118 = vpop.permute.xlu0 %5117
      %5119 = vrot.lane.b32.xlu0 %v4873, 1
      %v5120 = vpop.permute.xlu0 %5119
      %5121 = vrot.lane.b32.xlu0 %v4874, 1
      %v5122 = vpop.permute.xlu0 %5121
      %5123 = vrot.lane.b32.xlu0 %v4875, 1
      %v5124 = vpop.permute.xlu0 %5123
      %5141 = vrot.lane.b32.xlu0 %v4043, 32
      %v5142 = vpop.permute.xlu0 %5141
      %5143 = vrot.lane.b32.xlu0 %v4044, 32
      %v5144 = vpop.permute.xlu0 %5143
      %5145 = vrot.lane.b32.xlu0 %v4045, 32
      %v5146 = vpop.permute.xlu0 %5145
      %5147 = vrot.lane.b32.xlu0 %v4046, 32
      %v5148 = vpop.permute.xlu0 %5147
      %5149 = vrot.lane.b32.xlu0 %v4047, 32
      %v5150 = vpop.permute.xlu0 %5149
      %5151 = vrot.lane.b32.xlu0 %v4048, 32
      %v5152 = vpop.permute.xlu0 %5151
      %5153 = vrot.lane.b32.xlu0 %v4049, 32
      %v5154 = vpop.permute.xlu0 %5153
      %5155 = vrot.lane.b32.xlu0 %v4050, 32
      %v5156 = vpop.permute.xlu0 %5155
      %v5165 = vsel %vm2588, %v5072, %v5110
      %v5166 = vsel %vm2588, %v5076, %v5112
      %v5167 = vsel %vm2588, %v5080, %v5114
      %v5168 = vsel %vm2588, %v5084, %v5116
      %v5169 = vsel %vm2588, %v5088, %v5118
      %v5170 = vsel %vm2588, %v5092, %v5120
      %v5171 = vsel %vm2588, %v5096, %v5122
      %v5172 = vsel %vm2588, %v5100, %v5124
      %v5173 = vsel %vm5060, %v5165, %v5142
      %v5174 = vsel %vm5060, %v5166, %v5144
      %v5175 = vsel %vm5060, %v5167, %v5146
      %v5176 = vsel %vm5060, %v5168, %v5148
      %v5177 = vsel %vm5060, %v5169, %v5150
      %v5178 = vsel %vm5060, %v5170, %v5152
      %v5179 = vsel %vm5060, %v5171, %v5154
      %v5180 = vsel %vm5060, %v5172, %v5156
      %v5181 = vlaneseq
      %v5182 = vshrl.u32 %v5181, 7
      %v5183 = vsub.s32 0, %v5182
      %v5184 = vrot.slane %v2342, %v5183
      %5186 = vbcast.lane.b32.xlu0 %v5184, 256
      %v5187 = vpop.permute.xlu0 %5186
      %v5188 = vlaneseq
      %v5189 = vshrl.u32 %v5188, 7
      %v5190 = vsub.s32 1, %v5189
      %v5191 = vrot.slane %v2342, %v5190
      %5193 = vbcast.lane.b32.xlu0 %v5191, 256
      %v5194 = vpop.permute.xlu0 %5193
      %v5195 = vlaneseq
      %v5196 = vshrl.u32 %v5195, 7
      %v5197 = vsub.s32 2, %v5196
      %v5198 = vrot.slane %v2342, %v5197
      %5200 = vbcast.lane.b32.xlu0 %v5198, 256
      %v5201 = vpop.permute.xlu0 %5200
      %v5202 = vlaneseq
      %v5203 = vshrl.u32 %v5202, 7
      %v5204 = vsub.s32 3, %v5203
      %v5205 = vrot.slane %v2342, %v5204
      %5207 = vbcast.lane.b32.xlu0 %v5205, 256
      %v5208 = vpop.permute.xlu0 %5207
      %v5209 = vlaneseq
      %v5210 = vshrl.u32 %v5209, 7
      %v5211 = vsub.s32 4, %v5210
      %v5212 = vrot.slane %v2342, %v5211
      %5214 = vbcast.lane.b32.xlu0 %v5212, 256
      %v5215 = vpop.permute.xlu0 %5214
      %v5216 = vlaneseq
      %v5217 = vshrl.u32 %v5216, 7
      %v5218 = vsub.s32 5, %v5217
      %v5219 = vrot.slane %v2342, %v5218
      %5221 = vbcast.lane.b32.xlu0 %v5219, 256
      %v5222 = vpop.permute.xlu0 %5221
      %v5223 = vlaneseq
      %v5224 = vshrl.u32 %v5223, 7
      %v5225 = vsub.s32 6, %v5224
      %v5226 = vrot.slane %v2342, %v5225
      %5228 = vbcast.lane.b32.xlu0 %v5226, 256
      %v5229 = vpop.permute.xlu0 %5228
      %v5230 = vlaneseq
      %v5231 = vshrl.u32 %v5230, 7
      %v5232 = vsub.s32 7, %v5231
      %v5233 = vrot.slane %v2342, %v5232
      %5235 = vbcast.lane.b32.xlu0 %v5233, 256
      %v5236 = vpop.permute.xlu0 %5235
      %5245 = vrot.lane.b32.xlu0 %v4812, 1
      %v5246 = vpop.permute.xlu0 %5245
      %5247 = vrot.lane.b32.xlu0 %v4813, 1
      %v5248 = vpop.permute.xlu0 %5247
      %5249 = vrot.lane.b32.xlu0 %v4814, 1
      %v5250 = vpop.permute.xlu0 %5249
      %5251 = vrot.lane.b32.xlu0 %v4815, 1
      %v5252 = vpop.permute.xlu0 %5251
      %5253 = vrot.lane.b32.xlu0 %v4816, 1
      %v5254 = vpop.permute.xlu0 %5253
      %5255 = vrot.lane.b32.xlu0 %v4817, 1
      %v5256 = vpop.permute.xlu0 %5255
      %5257 = vrot.lane.b32.xlu0 %v4818, 1
      %v5258 = vpop.permute.xlu0 %5257
      %5259 = vrot.lane.b32.xlu0 %v4819, 1
      %v5260 = vpop.permute.xlu0 %5259
      %5277 = vrot.lane.b32.xlu0 %v4028, 32
      %v5278 = vpop.permute.xlu0 %5277
      %5279 = vrot.lane.b32.xlu0 %v4029, 32
      %v5280 = vpop.permute.xlu0 %5279
      %5281 = vrot.lane.b32.xlu0 %v4030, 32
      %v5282 = vpop.permute.xlu0 %5281
      %5283 = vrot.lane.b32.xlu0 %v4031, 32
      %v5284 = vpop.permute.xlu0 %5283
      %5285 = vrot.lane.b32.xlu0 %v4032, 32
      %v5286 = vpop.permute.xlu0 %5285
      %5287 = vrot.lane.b32.xlu0 %v4033, 32
      %v5288 = vpop.permute.xlu0 %5287
      %5289 = vrot.lane.b32.xlu0 %v4034, 32
      %v5290 = vpop.permute.xlu0 %5289
      %5291 = vrot.lane.b32.xlu0 %v4035, 32
      %v5292 = vpop.permute.xlu0 %5291
      %v5301 = vsel %vm2588, %v5187, %v5246
      %v5302 = vsel %vm2588, %v5194, %v5248
      %v5303 = vsel %vm2588, %v5201, %v5250
      %v5304 = vsel %vm2588, %v5208, %v5252
      %v5305 = vsel %vm2588, %v5215, %v5254
      %v5306 = vsel %vm2588, %v5222, %v5256
      %v5307 = vsel %vm2588, %v5229, %v5258
      %v5308 = vsel %vm2588, %v5236, %v5260
      %v5309 = vsel %vm5060, %v5301, %v5278
      %v5310 = vsel %vm5060, %v5302, %v5280
      %v5311 = vsel %vm5060, %v5303, %v5282
      %v5312 = vsel %vm5060, %v5304, %v5284
      %v5313 = vsel %vm5060, %v5305, %v5286
      %v5314 = vsel %vm5060, %v5306, %v5288
      %v5315 = vsel %vm5060, %v5307, %v5290
      %v5316 = vsel %vm5060, %v5308, %v5292
      %s5318 = sor.u32 256, 8
      %5319 = vbcast.lane.b32.xlu0 %v5184, %s5318
      %v5320 = vpop.permute.xlu0 %5319
      %s5322 = sor.u32 256, 8
      %5323 = vbcast.lane.b32.xlu0 %v5191, %s5322
      %v5324 = vpop.permute.xlu0 %5323
      %s5326 = sor.u32 256, 8
      %5327 = vbcast.lane.b32.xlu0 %v5198, %s5326
      %v5328 = vpop.permute.xlu0 %5327
      %s5330 = sor.u32 256, 8
      %5331 = vbcast.lane.b32.xlu0 %v5205, %s5330
      %v5332 = vpop.permute.xlu0 %5331
      %s5334 = sor.u32 256, 8
      %5335 = vbcast.lane.b32.xlu0 %v5212, %s5334
      %v5336 = vpop.permute.xlu0 %5335
      %s5338 = sor.u32 256, 8
      %5339 = vbcast.lane.b32.xlu0 %v5219, %s5338
      %v5340 = vpop.permute.xlu0 %5339
      %s5342 = sor.u32 256, 8
      %5343 = vbcast.lane.b32.xlu0 %v5226, %s5342
      %v5344 = vpop.permute.xlu0 %5343
      %s5346 = sor.u32 256, 8
      %5347 = vbcast.lane.b32.xlu0 %v5233, %s5346
      %v5348 = vpop.permute.xlu0 %5347
      %5357 = vrot.lane.b32.xlu0 %v4924, 1
      %v5358 = vpop.permute.xlu0 %5357
      %5359 = vrot.lane.b32.xlu0 %v4925, 1
      %v5360 = vpop.permute.xlu0 %5359
      %5361 = vrot.lane.b32.xlu0 %v4926, 1
      %v5362 = vpop.permute.xlu0 %5361
      %5363 = vrot.lane.b32.xlu0 %v4927, 1
      %v5364 = vpop.permute.xlu0 %5363
      %5365 = vrot.lane.b32.xlu0 %v4928, 1
      %v5366 = vpop.permute.xlu0 %5365
      %5367 = vrot.lane.b32.xlu0 %v4929, 1
      %v5368 = vpop.permute.xlu0 %5367
      %5369 = vrot.lane.b32.xlu0 %v4930, 1
      %v5370 = vpop.permute.xlu0 %5369
      %5371 = vrot.lane.b32.xlu0 %v4931, 1
      %v5372 = vpop.permute.xlu0 %5371
      %5389 = vrot.lane.b32.xlu0 %v4059, 32
      %v5390 = vpop.permute.xlu0 %5389
      %5391 = vrot.lane.b32.xlu0 %v4060, 32
      %v5392 = vpop.permute.xlu0 %5391
      %5393 = vrot.lane.b32.xlu0 %v4061, 32
      %v5394 = vpop.permute.xlu0 %5393
      %5395 = vrot.lane.b32.xlu0 %v4062, 32
      %v5396 = vpop.permute.xlu0 %5395
      %5397 = vrot.lane.b32.xlu0 %v4063, 32
      %v5398 = vpop.permute.xlu0 %5397
      %5399 = vrot.lane.b32.xlu0 %v4064, 32
      %v5400 = vpop.permute.xlu0 %5399
      %5401 = vrot.lane.b32.xlu0 %v4065, 32
      %v5402 = vpop.permute.xlu0 %5401
      %5403 = vrot.lane.b32.xlu0 %v4066, 32
      %v5404 = vpop.permute.xlu0 %5403
      %v5413 = vsel %vm2588, %v5320, %v5358
      %v5414 = vsel %vm2588, %v5324, %v5360
      %v5415 = vsel %vm2588, %v5328, %v5362
      %v5416 = vsel %vm2588, %v5332, %v5364
      %v5417 = vsel %vm2588, %v5336, %v5366
      %v5418 = vsel %vm2588, %v5340, %v5368
      %v5419 = vsel %vm2588, %v5344, %v5370
      %v5420 = vsel %vm2588, %v5348, %v5372
      %v5421 = vsel %vm5060, %v5413, %v5390
      %v5422 = vsel %vm5060, %v5414, %v5392
      %v5423 = vsel %vm5060, %v5415, %v5394
      %v5424 = vsel %vm5060, %v5416, %v5396
      %v5425 = vsel %vm5060, %v5417, %v5398
      %v5426 = vsel %vm5060, %v5418, %v5400
      %v5427 = vsel %vm5060, %v5419, %v5402
      %v5428 = vsel %vm5060, %v5420, %v5404
      %v5437 = vrot.slane %v5421, 6
      %v5438 = vrot.slane %v5422, 6
      %v5439 = vrot.slane %v5423, 6
      %v5440 = vrot.slane %v5424, 6
      %v5441 = vrot.slane %v5425, 6
      %v5442 = vrot.slane %v5426, 6
      %v5443 = vrot.slane %v5427, 6
      %v5444 = vrot.slane %v5428, 6
      %vm5453 = vcmask 1041408
      %v5454 = vsel %vm5453, 0.0, %v5437
      %v5455 = vsel %vm5453, 0.0, %v5438
      %v5456 = vsel %vm5453, 0.0, %v5439
      %v5457 = vsel %vm5453, 0.0, %v5440
      %v5458 = vsel %vm5453, 0.0, %v5441
      %v5459 = vsel %vm5453, 0.0, %v5442
      %v5460 = vsel %vm5453, 0.0, %v5443
      %v5461 = vsel %vm5453, 0.0, %v5444
      %v5462 = vsel %vm5453, %v5437, 0.0
      %v5463 = vsel %vm5453, %v5438, 0.0
      %v5464 = vsel %vm5453, %v5439, 0.0
      %v5465 = vsel %vm5453, %v5440, 0.0
      %v5466 = vsel %vm5453, %v5441, 0.0
      %v5467 = vsel %vm5453, %v5442, 0.0
      %v5468 = vsel %vm5453, %v5443, 0.0
      %v5469 = vsel %vm5453, %v5444, 0.0
      %v5478 = vrot.slane %v5309, 7
      %v5479 = vrot.slane %v5310, 7
      %v5480 = vrot.slane %v5311, 7
      %v5481 = vrot.slane %v5312, 7
      %v5482 = vrot.slane %v5313, 7
      %v5483 = vrot.slane %v5314, 7
      %v5484 = vrot.slane %v5315, 7
      %v5485 = vrot.slane %v5316, 7
      %v5494 = vsel %vm1121, 0.0, %v5478
      %v5495 = vsel %vm1121, 0.0, %v5479
      %v5496 = vsel %vm1121, 0.0, %v5480
      %v5497 = vsel %vm1121, 0.0, %v5481
      %v5498 = vsel %vm1121, 0.0, %v5482
      %v5499 = vsel %vm1121, 0.0, %v5483
      %v5500 = vsel %vm1121, 0.0, %v5484
      %v5501 = vsel %vm1121, 0.0, %v5485
      %v5502 = vsel %vm1121, %v5478, 0.0
      %v5503 = vsel %vm1121, %v5479, 0.0
      %v5504 = vsel %vm1121, %v5480, 0.0
      %v5505 = vsel %vm1121, %v5481, 0.0
      %v5506 = vsel %vm1121, %v5482, 0.0
      %v5507 = vsel %vm1121, %v5483, 0.0
      %v5508 = vsel %vm1121, %v5484, 0.0
      %v5509 = vsel %vm1121, %v5485, 0.0
      %v5518 = vrot.slane %v5173, 6
      %v5519 = vrot.slane %v5174, 6
      %v5520 = vrot.slane %v5175, 6
      %v5521 = vrot.slane %v5176, 6
      %v5522 = vrot.slane %v5177, 6
      %v5523 = vrot.slane %v5178, 6
      %v5524 = vrot.slane %v5179, 6
      %v5525 = vrot.slane %v5180, 6
      %v5534 = vsel %vm5453, 0.0, %v5518
      %v5535 = vsel %vm5453, 0.0, %v5519
      %v5536 = vsel %vm5453, 0.0, %v5520
      %v5537 = vsel %vm5453, 0.0, %v5521
      %v5538 = vsel %vm5453, 0.0, %v5522
      %v5539 = vsel %vm5453, 0.0, %v5523
      %v5540 = vsel %vm5453, 0.0, %v5524
      %v5541 = vsel %vm5453, 0.0, %v5525
      %v5542 = vsel %vm5453, %v5518, 0.0
      %v5543 = vsel %vm5453, %v5519, 0.0
      %v5544 = vsel %vm5453, %v5520, 0.0
      %v5545 = vsel %vm5453, %v5521, 0.0
      %v5546 = vsel %vm5453, %v5522, 0.0
      %v5547 = vsel %vm5453, %v5523, 0.0
      %v5548 = vsel %vm5453, %v5524, 0.0
      %v5549 = vsel %vm5453, %v5525, 0.0
      %v5558 = vrot.slane %v5061, 7
      %v5559 = vrot.slane %v5062, 7
      %v5560 = vrot.slane %v5063, 7
      %v5561 = vrot.slane %v5064, 7
      %v5562 = vrot.slane %v5065, 7
      %v5563 = vrot.slane %v5066, 7
      %v5564 = vrot.slane %v5067, 7
      %v5565 = vrot.slane %v5068, 7
      %v5574 = vsel %vm1121, 0.0, %v5558
      %v5575 = vsel %vm1121, 0.0, %v5559
      %v5576 = vsel %vm1121, 0.0, %v5560
      %v5577 = vsel %vm1121, 0.0, %v5561
      %v5578 = vsel %vm1121, 0.0, %v5562
      %v5579 = vsel %vm1121, 0.0, %v5563
      %v5580 = vsel %vm1121, 0.0, %v5564
      %v5581 = vsel %vm1121, 0.0, %v5565
      %v5582 = vsel %vm1121, %v5558, 0.0
      %v5583 = vsel %vm1121, %v5559, 0.0
      %v5584 = vsel %vm1121, %v5560, 0.0
      %v5585 = vsel %vm1121, %v5561, 0.0
      %v5586 = vsel %vm1121, %v5562, 0.0
      %v5587 = vsel %vm1121, %v5563, 0.0
      %v5588 = vsel %vm1121, %v5564, 0.0
      %v5589 = vsel %vm1121, %v5565, 0.0
      %v5590 = vld [vmem:[%s5] sm:$0x1]
      %v5592 = vlaneseq
      %v5593 = vshrl.u32 %v5592, 7
      %v5594 = vsub.s32 0, %v5593
      %v5595 = vrot.slane %v5590, %v5594
      %v5597 = vadd.f32 %v5595, 0.0
      %v5598 = vld [vmem:[%s4] sm:$0x1]
      %v5599 = vlaneseq
      %v5600 = vshrl.u32 %v5599, 7
      %v5601 = vsub.s32 0, %v5600
      %v5602 = vrot.slane %v5598, %v5601
      %v5603 = vmul.f32 %v5602, 0.0
      %v5604 = vmul.f32 %v5454, %v5602
      %v5605 = vmul.f32 %v5455, %v5602
      %v5606 = vmul.f32 %v5456, %v5602
      %v5607 = vmul.f32 %v5457, %v5602
      %v5608 = vmul.f32 %v5458, %v5602
      %v5609 = vmul.f32 %v5459, %v5602
      %v5610 = vadd.f32 %v5597, %v5603
      %v5611 = vadd.f32 %v5597, %v5604
      %v5612 = vadd.f32 %v5597, %v5605
      %v5613 = vadd.f32 %v5597, %v5606
      %v5614 = vadd.f32 %v5597, %v5607
      %v5615 = vadd.f32 %v5597, %v5608
      %v5616 = vadd.f32 %v5597, %v5609
      %v5617 = vld [vmem:[%s4 + $0x1] sm:$0x1]
      %v5618 = vlaneseq
      %v5619 = vshrl.u32 %v5618, 7
      %v5620 = vsub.s32 0, %v5619
      %v5621 = vrot.slane %v5617, %v5620
      %v5622 = vmul.f32 %v5621, 0.0
      %v5623 = vmul.f32 %v5494, %v5621
      %v5624 = vmul.f32 %v5495, %v5621
      %v5625 = vmul.f32 %v5496, %v5621
      %v5626 = vmul.f32 %v5497, %v5621
      %v5627 = vmul.f32 %v5498, %v5621
      %v5628 = vmul.f32 %v5499, %v5621
      %v5629 = vadd.f32 %v5610, %v5622
      %v5630 = vadd.f32 %v5611, %v5623
      %v5631 = vadd.f32 %v5612, %v5624
      %v5632 = vadd.f32 %v5613, %v5625
      %v5633 = vadd.f32 %v5614, %v5626
      %v5634 = vadd.f32 %v5615, %v5627
      %v5635 = vadd.f32 %v5616, %v5628
      %v5636 = vld [vmem:[%s4 + $0x2] sm:$0x1]
      %v5637 = vlaneseq
      %v5638 = vshrl.u32 %v5637, 7
      %v5639 = vsub.s32 0, %v5638
      %v5640 = vrot.slane %v5636, %v5639
      %v5641 = vmul.f32 %v5640, 0.0
      %v5642 = vmul.f32 %v5454, %v5640
      %v5643 = vmul.f32 %v5462, %v5640
      %v5644 = vmul.f32 %v5455, %v5640
      %v5645 = vmul.f32 %v5463, %v5640
      %v5646 = vmul.f32 %v5456, %v5640
      %v5647 = vmul.f32 %v5464, %v5640
      %v5648 = vmul.f32 %v5457, %v5640
      %v5649 = vmul.f32 %v5465, %v5640
      %v5650 = vmul.f32 %v5458, %v5640
      %v5651 = vmul.f32 %v5466, %v5640
      %v5652 = vmul.f32 %v5459, %v5640
      %v5653 = vmul.f32 %v5467, %v5640
      %v5667 = vrot.slane %v5641, 1
      %v5668 = vsel %vm4203, %v5667, %v5667
      %v5669 = vrot.slane %v5642, 1
      %v5670 = vrot.slane %v5643, 1
      %v5671 = vsel %vm4203, %v5669, %v5670
      %v5672 = vrot.slane %v5644, 1
      %v5673 = vrot.slane %v5645, 1
      %v5674 = vsel %vm4203, %v5672, %v5673
      %v5675 = vrot.slane %v5646, 1
      %v5676 = vrot.slane %v5647, 1
      %v5677 = vsel %vm4203, %v5675, %v5676
      %v5678 = vrot.slane %v5648, 1
      %v5679 = vrot.slane %v5649, 1
      %v5680 = vsel %vm4203, %v5678, %v5679
      %v5681 = vrot.slane %v5650, 1
      %v5682 = vrot.slane %v5651, 1
      %v5683 = vsel %vm4203, %v5681, %v5682
      %v5684 = vrot.slane %v5652, 1
      %v5685 = vrot.slane %v5653, 1
      %v5686 = vsel %vm4203, %v5684, %v5685
      %v5694 = vadd.f32 %v5629, %v5668
      %v5695 = vadd.f32 %v5630, %v5671
      %v5696 = vadd.f32 %v5631, %v5674
      %v5697 = vadd.f32 %v5632, %v5677
      %v5698 = vadd.f32 %v5633, %v5680
      %v5699 = vadd.f32 %v5634, %v5683
      %v5700 = vadd.f32 %v5635, %v5686
      %v5701 = vld [vmem:[%s4 + $0x3] sm:$0x1]
      %v5702 = vlaneseq
      %v5703 = vshrl.u32 %v5702, 7
      %v5704 = vsub.s32 0, %v5703
      %v5705 = vrot.slane %v5701, %v5704
      %v5706 = vmul.f32 %v5705, 0.0
      %v5707 = vmul.f32 %v5494, %v5705
      %v5708 = vmul.f32 %v5502, %v5705
      %v5709 = vmul.f32 %v5495, %v5705
      %v5710 = vmul.f32 %v5503, %v5705
      %v5711 = vmul.f32 %v5496, %v5705
      %v5712 = vmul.f32 %v5504, %v5705
      %v5713 = vmul.f32 %v5497, %v5705
      %v5714 = vmul.f32 %v5505, %v5705
      %v5715 = vmul.f32 %v5498, %v5705
      %v5716 = vmul.f32 %v5506, %v5705
      %v5717 = vmul.f32 %v5499, %v5705
      %v5718 = vmul.f32 %v5507, %v5705
      %v5732 = vrot.slane %v5706, 1
      %v5733 = vsel %vm4203, %v5732, %v5732
      %v5734 = vrot.slane %v5707, 1
      %v5735 = vrot.slane %v5708, 1
      %v5736 = vsel %vm4203, %v5734, %v5735
      %v5737 = vrot.slane %v5709, 1
      %v5738 = vrot.slane %v5710, 1
      %v5739 = vsel %vm4203, %v5737, %v5738
      %v5740 = vrot.slane %v5711, 1
      %v5741 = vrot.slane %v5712, 1
      %v5742 = vsel %vm4203, %v5740, %v5741
      %v5743 = vrot.slane %v5713, 1
      %v5744 = vrot.slane %v5714, 1
      %v5745 = vsel %vm4203, %v5743, %v5744
      %v5746 = vrot.slane %v5715, 1
      %v5747 = vrot.slane %v5716, 1
      %v5748 = vsel %vm4203, %v5746, %v5747
      %v5749 = vrot.slane %v5717, 1
      %v5750 = vrot.slane %v5718, 1
      %v5751 = vsel %vm4203, %v5749, %v5750
      %v5759 = vadd.f32 %v5694, %v5733
      %v5760 = vadd.f32 %v5695, %v5736
      %v5761 = vadd.f32 %v5696, %v5739
      %v5762 = vadd.f32 %v5697, %v5742
      %v5763 = vadd.f32 %v5698, %v5745
      %v5764 = vadd.f32 %v5699, %v5748
      %v5765 = vadd.f32 %v5700, %v5751
      %v5766 = vld [vmem:[%s4 + $0x4] sm:$0x1]
      %v5767 = vlaneseq
      %v5768 = vshrl.u32 %v5767, 7
      %v5769 = vsub.s32 0, %v5768
      %v5770 = vrot.slane %v5766, %v5769
      %v5771 = vmul.f32 %v5770, 0.0
      %v5772 = vmul.f32 %v5454, %v5770
      %v5773 = vmul.f32 %v5462, %v5770
      %v5774 = vmul.f32 %v5455, %v5770
      %v5775 = vmul.f32 %v5463, %v5770
      %v5776 = vmul.f32 %v5456, %v5770
      %v5777 = vmul.f32 %v5464, %v5770
      %v5778 = vmul.f32 %v5457, %v5770
      %v5779 = vmul.f32 %v5465, %v5770
      %v5780 = vmul.f32 %v5458, %v5770
      %v5781 = vmul.f32 %v5466, %v5770
      %v5782 = vmul.f32 %v5459, %v5770
      %v5783 = vmul.f32 %v5467, %v5770
      %vm5797 = vcmask 1045504
      %v5798 = vrot.slane %v5771, 2
      %v5799 = vsel %vm5797, %v5798, %v5798
      %v5800 = vrot.slane %v5772, 2
      %v5801 = vrot.slane %v5773, 2
      %v5802 = vsel %vm5797, %v5800, %v5801
      %v5803 = vrot.slane %v5774, 2
      %v5804 = vrot.slane %v5775, 2
      %v5805 = vsel %vm5797, %v5803, %v5804
      %v5806 = vrot.slane %v5776, 2
      %v5807 = vrot.slane %v5777, 2
      %v5808 = vsel %vm5797, %v5806, %v5807
      %v5809 = vrot.slane %v5778, 2
      %v5810 = vrot.slane %v5779, 2
      %v5811 = vsel %vm5797, %v5809, %v5810
      %v5812 = vrot.slane %v5780, 2
      %v5813 = vrot.slane %v5781, 2
      %v5814 = vsel %vm5797, %v5812, %v5813
      %v5815 = vrot.slane %v5782, 2
      %v5816 = vrot.slane %v5783, 2
      %v5817 = vsel %vm5797, %v5815, %v5816
      %v5825 = vadd.f32 %v5759, %v5799
      %v5826 = vadd.f32 %v5760, %v5802
      %v5827 = vadd.f32 %v5761, %v5805
      %v5828 = vadd.f32 %v5762, %v5808
      %v5829 = vadd.f32 %v5763, %v5811
      %v5830 = vadd.f32 %v5764, %v5814
      %v5831 = vadd.f32 %v5765, %v5817
      %v5832 = vld [vmem:[%s4 + $0x5] sm:$0x1]
      %v5833 = vlaneseq
      %v5834 = vshrl.u32 %v5833, 7
      %v5835 = vsub.s32 0, %v5834
      %v5836 = vrot.slane %v5832, %v5835
      %v5837 = vmul.f32 %v5836, 0.0
      %v5838 = vmul.f32 %v5494, %v5836
      %v5839 = vmul.f32 %v5502, %v5836
      %v5840 = vmul.f32 %v5495, %v5836
      %v5841 = vmul.f32 %v5503, %v5836
      %v5842 = vmul.f32 %v5496, %v5836
      %v5843 = vmul.f32 %v5504, %v5836
      %v5844 = vmul.f32 %v5497, %v5836
      %v5845 = vmul.f32 %v5505, %v5836
      %v5846 = vmul.f32 %v5498, %v5836
      %v5847 = vmul.f32 %v5506, %v5836
      %v5848 = vmul.f32 %v5499, %v5836
      %v5849 = vmul.f32 %v5507, %v5836
      %v5863 = vrot.slane %v5837, 2
      %v5864 = vsel %vm5797, %v5863, %v5863
      %v5865 = vrot.slane %v5838, 2
      %v5866 = vrot.slane %v5839, 2
      %v5867 = vsel %vm5797, %v5865, %v5866
      %v5868 = vrot.slane %v5840, 2
      %v5869 = vrot.slane %v5841, 2
      %v5870 = vsel %vm5797, %v5868, %v5869
      %v5871 = vrot.slane %v5842, 2
      %v5872 = vrot.slane %v5843, 2
      %v5873 = vsel %vm5797, %v5871, %v5872
      %v5874 = vrot.slane %v5844, 2
      %v5875 = vrot.slane %v5845, 2
      %v5876 = vsel %vm5797, %v5874, %v5875
      %v5877 = vrot.slane %v5846, 2
      %v5878 = vrot.slane %v5847, 2
      %v5879 = vsel %vm5797, %v5877, %v5878
      %v5880 = vrot.slane %v5848, 2
      %v5881 = vrot.slane %v5849, 2
      %v5882 = vsel %vm5797, %v5880, %v5881
      %v5890 = vadd.f32 %v5825, %v5864
      %v5891 = vadd.f32 %v5826, %v5867
      %v5892 = vadd.f32 %v5827, %v5870
      %v5893 = vadd.f32 %v5828, %v5873
      %v5894 = vadd.f32 %v5829, %v5876
      %v5895 = vadd.f32 %v5830, %v5879
      %v5896 = vadd.f32 %v5831, %v5882
      %v5897 = vld [vmem:[%s4 + $0x6] sm:$0x1]
      %v5898 = vlaneseq
      %v5899 = vshrl.u32 %v5898, 7
      %v5900 = vsub.s32 0, %v5899
      %v5901 = vrot.slane %v5897, %v5900
      %v5902 = vmul.f32 %v5901, 0.0
      %v5903 = vmul.f32 %v5454, %v5901
      %v5904 = vmul.f32 %v5462, %v5901
      %v5905 = vmul.f32 %v5455, %v5901
      %v5906 = vmul.f32 %v5463, %v5901
      %v5907 = vmul.f32 %v5456, %v5901
      %v5908 = vmul.f32 %v5464, %v5901
      %v5909 = vmul.f32 %v5457, %v5901
      %v5910 = vmul.f32 %v5465, %v5901
      %v5911 = vmul.f32 %v5458, %v5901
      %v5912 = vmul.f32 %v5466, %v5901
      %v5913 = vmul.f32 %v5459, %v5901
      %v5914 = vmul.f32 %v5467, %v5901
      %vm5928 = vcmask 1044480
      %v5929 = vrot.slane %v5902, 3
      %v5930 = vsel %vm5928, %v5929, %v5929
      %v5931 = vrot.slane %v5903, 3
      %v5932 = vrot.slane %v5904, 3
      %v5933 = vsel %vm5928, %v5931, %v5932
      %v5934 = vrot.slane %v5905, 3
      %v5935 = vrot.slane %v5906, 3
      %v5936 = vsel %vm5928, %v5934, %v5935
      %v5937 = vrot.slane %v5907, 3
      %v5938 = vrot.slane %v5908, 3
      %v5939 = vsel %vm5928, %v5937, %v5938
      %v5940 = vrot.slane %v5909, 3
      %v5941 = vrot.slane %v5910, 3
      %v5942 = vsel %vm5928, %v5940, %v5941
      %v5943 = vrot.slane %v5911, 3
      %v5944 = vrot.slane %v5912, 3
      %v5945 = vsel %vm5928, %v5943, %v5944
      %v5946 = vrot.slane %v5913, 3
      %v5947 = vrot.slane %v5914, 3
      %v5948 = vsel %vm5928, %v5946, %v5947
      %v5956 = vadd.f32 %v5890, %v5930
      %v5957 = vadd.f32 %v5891, %v5933
      %v5958 = vadd.f32 %v5892, %v5936
      %v5959 = vadd.f32 %v5893, %v5939
      %v5960 = vadd.f32 %v5894, %v5942
      %v5961 = vadd.f32 %v5895, %v5945
      %v5962 = vadd.f32 %v5896, %v5948
      %v5963 = vld [vmem:[%s4 + $0x7] sm:$0x1]
      %v5964 = vlaneseq
      %v5965 = vshrl.u32 %v5964, 7
      %v5966 = vsub.s32 0, %v5965
      %v5967 = vrot.slane %v5963, %v5966
      %v5968 = vmul.f32 %v5967, 0.0
      %v5969 = vmul.f32 %v5534, %v5967
      %v5970 = vmul.f32 %v5535, %v5967
      %v5971 = vmul.f32 %v5536, %v5967
      %v5972 = vmul.f32 %v5537, %v5967
      %v5973 = vmul.f32 %v5538, %v5967
      %v5974 = vmul.f32 %v5539, %v5967
      %v5975 = vmul.f32 %v5540, %v5967
      %v5976 = vadd.f32 %v5956, %v5968
      %v5977 = vadd.f32 %v5956, %v5969
      %v5978 = vadd.f32 %v5957, %v5970
      %v5979 = vadd.f32 %v5958, %v5971
      %v5980 = vadd.f32 %v5959, %v5972
      %v5981 = vadd.f32 %v5960, %v5973
      %v5982 = vadd.f32 %v5961, %v5974
      %v5983 = vadd.f32 %v5962, %v5975
      %v5984 = vld [vmem:[%s4 + $0x8] sm:$0x1]
      %v5985 = vlaneseq
      %v5986 = vshrl.u32 %v5985, 7
      %v5987 = vsub.s32 0, %v5986
      %v5988 = vrot.slane %v5984, %v5987
      %v5989 = vmul.f32 %v5988, 0.0
      %v5990 = vmul.f32 %v5574, %v5988
      %v5991 = vmul.f32 %v5575, %v5988
      %v5992 = vmul.f32 %v5576, %v5988
      %v5993 = vmul.f32 %v5577, %v5988
      %v5994 = vmul.f32 %v5578, %v5988
      %v5995 = vmul.f32 %v5579, %v5988
      %v5996 = vmul.f32 %v5580, %v5988
      %v5997 = vadd.f32 %v5976, %v5989
      %v5998 = vadd.f32 %v5977, %v5990
      %v5999 = vadd.f32 %v5978, %v5991
      %v6000 = vadd.f32 %v5979, %v5992
      %v6001 = vadd.f32 %v5980, %v5993
      %v6002 = vadd.f32 %v5981, %v5994
      %v6003 = vadd.f32 %v5982, %v5995
      %v6004 = vadd.f32 %v5983, %v5996
      %v6005 = vld [vmem:[%s4 + $0x9] sm:$0x1]
      %v6006 = vlaneseq
      %v6007 = vshrl.u32 %v6006, 7
      %v6008 = vsub.s32 0, %v6007
      %v6009 = vrot.slane %v6005, %v6008
      %v6010 = vmul.f32 %v6009, 0.0
      %v6011 = vmul.f32 %v5534, %v6009
      %v6012 = vmul.f32 %v5542, %v6009
      %v6013 = vmul.f32 %v5535, %v6009
      %v6014 = vmul.f32 %v5543, %v6009
      %v6015 = vmul.f32 %v5536, %v6009
      %v6016 = vmul.f32 %v5544, %v6009
      %v6017 = vmul.f32 %v5537, %v6009
      %v6018 = vmul.f32 %v5545, %v6009
      %v6019 = vmul.f32 %v5538, %v6009
      %v6020 = vmul.f32 %v5546, %v6009
      %v6021 = vmul.f32 %v5539, %v6009
      %v6022 = vmul.f32 %v5547, %v6009
      %v6023 = vmul.f32 %v5540, %v6009
      %v6024 = vmul.f32 %v5548, %v6009
      %v6040 = vrot.slane %v6010, 1
      %v6041 = vsel %vm4203, %v6040, %v6040
      %v6042 = vrot.slane %v6011, 1
      %v6043 = vrot.slane %v6012, 1
      %v6044 = vsel %vm4203, %v6042, %v6043
      %v6045 = vrot.slane %v6013, 1
      %v6046 = vrot.slane %v6014, 1
      %v6047 = vsel %vm4203, %v6045, %v6046
      %v6048 = vrot.slane %v6015, 1
      %v6049 = vrot.slane %v6016, 1
      %v6050 = vsel %vm4203, %v6048, %v6049
      %v6051 = vrot.slane %v6017, 1
      %v6052 = vrot.slane %v6018, 1
      %v6053 = vsel %vm4203, %v6051, %v6052
      %v6054 = vrot.slane %v6019, 1
      %v6055 = vrot.slane %v6020, 1
      %v6056 = vsel %vm4203, %v6054, %v6055
      %v6057 = vrot.slane %v6021, 1
      %v6058 = vrot.slane %v6022, 1
      %v6059 = vsel %vm4203, %v6057, %v6058
      %v6060 = vrot.slane %v6023, 1
      %v6061 = vrot.slane %v6024, 1
      %v6062 = vsel %vm4203, %v6060, %v6061
      %v6071 = vadd.f32 %v5997, %v6041
      %v6072 = vadd.f32 %v5998, %v6044
      %v6073 = vadd.f32 %v5999, %v6047
      %v6074 = vadd.f32 %v6000, %v6050
      %v6075 = vadd.f32 %v6001, %v6053
      %v6076 = vadd.f32 %v6002, %v6056
      %v6077 = vadd.f32 %v6003, %v6059
      %v6078 = vadd.f32 %v6004, %v6062
      %v6079 = vld [vmem:[%s4 + $0xa] sm:$0x1]
      %v6080 = vlaneseq
      %v6081 = vshrl.u32 %v6080, 7
      %v6082 = vsub.s32 0, %v6081
      %v6083 = vrot.slane %v6079, %v6082
      %v6084 = vmul.f32 %v6083, 0.0
      %v6085 = vmul.f32 %v5574, %v6083
      %v6086 = vmul.f32 %v5582, %v6083
      %v6087 = vmul.f32 %v5575, %v6083
      %v6088 = vmul.f32 %v5583, %v6083
      %v6089 = vmul.f32 %v5576, %v6083
      %v6090 = vmul.f32 %v5584, %v6083
      %v6091 = vmul.f32 %v5577, %v6083
      %v6092 = vmul.f32 %v5585, %v6083
      %v6093 = vmul.f32 %v5578, %v6083
      %v6094 = vmul.f32 %v5586, %v6083
      %v6095 = vmul.f32 %v5579, %v6083
      %v6096 = vmul.f32 %v5587, %v6083
      %v6097 = vmul.f32 %v5580, %v6083
      %v6098 = vmul.f32 %v5588, %v6083
      %v6114 = vrot.slane %v6084, 1
      %v6115 = vsel %vm4203, %v6114, %v6114
      %v6116 = vrot.slane %v6085, 1
      %v6117 = vrot.slane %v6086, 1
      %v6118 = vsel %vm4203, %v6116, %v6117
      %v6119 = vrot.slane %v6087, 1
      %v6120 = vrot.slane %v6088, 1
      %v6121 = vsel %vm4203, %v6119, %v6120
      %v6122 = vrot.slane %v6089, 1
      %v6123 = vrot.slane %v6090, 1
      %v6124 = vsel %vm4203, %v6122, %v6123
      %v6125 = vrot.slane %v6091, 1
      %v6126 = vrot.slane %v6092, 1
      %v6127 = vsel %vm4203, %v6125, %v6126
      %v6128 = vrot.slane %v6093, 1
      %v6129 = vrot.slane %v6094, 1
      %v6130 = vsel %vm4203, %v6128, %v6129
      %v6131 = vrot.slane %v6095, 1
      %v6132 = vrot.slane %v6096, 1
      %v6133 = vsel %vm4203, %v6131, %v6132
      %v6134 = vrot.slane %v6097, 1
      %v6135 = vrot.slane %v6098, 1
      %v6136 = vsel %vm4203, %v6134, %v6135
      %v6145 = vadd.f32 %v6071, %v6115
      %v6146 = vadd.f32 %v6072, %v6118
      %v6147 = vadd.f32 %v6073, %v6121
      %v6148 = vadd.f32 %v6074, %v6124
      %v6149 = vadd.f32 %v6075, %v6127
      %v6150 = vadd.f32 %v6076, %v6130
      %v6151 = vadd.f32 %v6077, %v6133
      %v6152 = vadd.f32 %v6078, %v6136
      %v6153 = vld [vmem:[%s4 + $0xb] sm:$0x1]
      %v6154 = vlaneseq
      %v6155 = vshrl.u32 %v6154, 7
      %v6156 = vsub.s32 0, %v6155
      %v6157 = vrot.slane %v6153, %v6156
      %v6158 = vmul.f32 %v6157, 0.0
      %v6159 = vmul.f32 %v5534, %v6157
      %v6160 = vmul.f32 %v5542, %v6157
      %v6161 = vmul.f32 %v5535, %v6157
      %v6162 = vmul.f32 %v5543, %v6157
      %v6163 = vmul.f32 %v5536, %v6157
      %v6164 = vmul.f32 %v5544, %v6157
      %v6165 = vmul.f32 %v5537, %v6157
      %v6166 = vmul.f32 %v5545, %v6157
      %v6167 = vmul.f32 %v5538, %v6157
      %v6168 = vmul.f32 %v5546, %v6157
      %v6169 = vmul.f32 %v5539, %v6157
      %v6170 = vmul.f32 %v5547, %v6157
      %v6171 = vmul.f32 %v5540, %v6157
      %v6172 = vmul.f32 %v5548, %v6157
      %v6188 = vrot.slane %v6158, 2
      %v6189 = vsel %vm5797, %v6188, %v6188
      %v6190 = vrot.slane %v6159, 2
      %v6191 = vrot.slane %v6160, 2
      %v6192 = vsel %vm5797, %v6190, %v6191
      %v6193 = vrot.slane %v6161, 2
      %v6194 = vrot.slane %v6162, 2
      %v6195 = vsel %vm5797, %v6193, %v6194
      %v6196 = vrot.slane %v6163, 2
      %v6197 = vrot.slane %v6164, 2
      %v6198 = vsel %vm5797, %v6196, %v6197
      %v6199 = vrot.slane %v6165, 2
      %v6200 = vrot.slane %v6166, 2
      %v6201 = vsel %vm5797, %v6199, %v6200
      %v6202 = vrot.slane %v6167, 2
      %v6203 = vrot.slane %v6168, 2
      %v6204 = vsel %vm5797, %v6202, %v6203
      %v6205 = vrot.slane %v6169, 2
      %v6206 = vrot.slane %v6170, 2
      %v6207 = vsel %vm5797, %v6205, %v6206
      %v6208 = vrot.slane %v6171, 2
      %v6209 = vrot.slane %v6172, 2
      %v6210 = vsel %vm5797, %v6208, %v6209
      %v6219 = vadd.f32 %v6145, %v6189
      %v6220 = vadd.f32 %v6146, %v6192
      %v6221 = vadd.f32 %v6147, %v6195
      %v6222 = vadd.f32 %v6148, %v6198
      %v6223 = vadd.f32 %v6149, %v6201
      %v6224 = vadd.f32 %v6150, %v6204
      %v6225 = vadd.f32 %v6151, %v6207
      %v6226 = vadd.f32 %v6152, %v6210
      %v6227 = vld [vmem:[%s4 + $0xc] sm:$0x1]
      %v6228 = vlaneseq
      %v6229 = vshrl.u32 %v6228, 7
      %v6230 = vsub.s32 0, %v6229
      %v6231 = vrot.slane %v6227, %v6230
      %v6232 = vmul.f32 %v6231, 0.0
      %v6233 = vmul.f32 %v5574, %v6231
      %v6234 = vmul.f32 %v5582, %v6231
      %v6235 = vmul.f32 %v5575, %v6231
      %v6236 = vmul.f32 %v5583, %v6231
      %v6237 = vmul.f32 %v5576, %v6231
      %v6238 = vmul.f32 %v5584, %v6231
      %v6239 = vmul.f32 %v5577, %v6231
      %v6240 = vmul.f32 %v5585, %v6231
      %v6241 = vmul.f32 %v5578, %v6231
      %v6242 = vmul.f32 %v5586, %v6231
      %v6243 = vmul.f32 %v5579, %v6231
      %v6244 = vmul.f32 %v5587, %v6231
      %v6245 = vmul.f32 %v5580, %v6231
      %v6246 = vmul.f32 %v5588, %v6231
      %v6262 = vrot.slane %v6232, 2
      %v6263 = vsel %vm5797, %v6262, %v6262
      %v6264 = vrot.slane %v6233, 2
      %v6265 = vrot.slane %v6234, 2
      %v6266 = vsel %vm5797, %v6264, %v6265
      %v6267 = vrot.slane %v6235, 2
      %v6268 = vrot.slane %v6236, 2
      %v6269 = vsel %vm5797, %v6267, %v6268
      %v6270 = vrot.slane %v6237, 2
      %v6271 = vrot.slane %v6238, 2
      %v6272 = vsel %vm5797, %v6270, %v6271
      %v6273 = vrot.slane %v6239, 2
      %v6274 = vrot.slane %v6240, 2
      %v6275 = vsel %vm5797, %v6273, %v6274
      %v6276 = vrot.slane %v6241, 2
      %v6277 = vrot.slane %v6242, 2
      %v6278 = vsel %vm5797, %v6276, %v6277
      %v6279 = vrot.slane %v6243, 2
      %v6280 = vrot.slane %v6244, 2
      %v6281 = vsel %vm5797, %v6279, %v6280
      %v6282 = vrot.slane %v6245, 2
      %v6283 = vrot.slane %v6246, 2
      %v6284 = vsel %vm5797, %v6282, %v6283
      %v6293 = vadd.f32 %v6219, %v6263
      %v6294 = vadd.f32 %v6220, %v6266
      %v6295 = vadd.f32 %v6221, %v6269
      %v6296 = vadd.f32 %v6222, %v6272
      %v6297 = vadd.f32 %v6223, %v6275
      %v6298 = vadd.f32 %v6224, %v6278
      %v6299 = vadd.f32 %v6225, %v6281
      %v6300 = vadd.f32 %v6226, %v6284
      %v6301 = vld [vmem:[%s4 + $0xd] sm:$0x1]
      %v6302 = vlaneseq
      %v6303 = vshrl.u32 %v6302, 7
      %v6304 = vsub.s32 0, %v6303
      %v6305 = vrot.slane %v6301, %v6304
      %v6306 = vmul.f32 %v6305, 0.0
      %v6307 = vmul.f32 %v5534, %v6305
      %v6308 = vmul.f32 %v5542, %v6305
      %v6309 = vmul.f32 %v5535, %v6305
      %v6310 = vmul.f32 %v5543, %v6305
      %v6311 = vmul.f32 %v5536, %v6305
      %v6312 = vmul.f32 %v5544, %v6305
      %v6313 = vmul.f32 %v5537, %v6305
      %v6314 = vmul.f32 %v5545, %v6305
      %v6315 = vmul.f32 %v5538, %v6305
      %v6316 = vmul.f32 %v5546, %v6305
      %v6317 = vmul.f32 %v5539, %v6305
      %v6318 = vmul.f32 %v5547, %v6305
      %v6319 = vmul.f32 %v5540, %v6305
      %v6320 = vmul.f32 %v5548, %v6305
      %v6336 = vrot.slane %v6306, 3
      %v6337 = vsel %vm5928, %v6336, %v6336
      %v6338 = vrot.slane %v6307, 3
      %v6339 = vrot.slane %v6308, 3
      %v6340 = vsel %vm5928, %v6338, %v6339
      %v6341 = vrot.slane %v6309, 3
      %v6342 = vrot.slane %v6310, 3
      %v6343 = vsel %vm5928, %v6341, %v6342
      %v6344 = vrot.slane %v6311, 3
      %v6345 = vrot.slane %v6312, 3
      %v6346 = vsel %vm5928, %v6344, %v6345
      %v6347 = vrot.slane %v6313, 3
      %v6348 = vrot.slane %v6314, 3
      %v6349 = vsel %vm5928, %v6347, %v6348
      %v6350 = vrot.slane %v6315, 3
      %v6351 = vrot.slane %v6316, 3
      %v6352 = vsel %vm5928, %v6350, %v6351
      %v6353 = vrot.slane %v6317, 3
      %v6354 = vrot.slane %v6318, 3
      %v6355 = vsel %vm5928, %v6353, %v6354
      %v6356 = vrot.slane %v6319, 3
      %v6357 = vrot.slane %v6320, 3
      %v6358 = vsel %vm5928, %v6356, %v6357
      %v6367 = vadd.f32 %v6293, %v6337
      %v6368 = vadd.f32 %v6294, %v6340
      %v6369 = vadd.f32 %v6295, %v6343
      %v6370 = vadd.f32 %v6296, %v6346
      %v6371 = vadd.f32 %v6297, %v6349
      %v6372 = vadd.f32 %v6298, %v6352
      %v6373 = vadd.f32 %v6299, %v6355
      %v6374 = vadd.f32 %v6300, %v6358
      %v6375 = vld [vmem:[%s4 + $0xe] sm:$0x1]
      %v6376 = vlaneseq
      %v6377 = vshrl.u32 %v6376, 7
      %v6378 = vsub.s32 0, %v6377
      %v6379 = vrot.slane %v6375, %v6378
      %v6380 = vmul.f32 %v6379, 0.0
      %v6381 = vmul.f32 %v5454, %v6379
      %v6382 = vmul.f32 %v5455, %v6379
      %v6383 = vmul.f32 %v5456, %v6379
      %v6384 = vmul.f32 %v5457, %v6379
      %v6385 = vmul.f32 %v5458, %v6379
      %v6386 = vmul.f32 %v5459, %v6379
      %v6387 = vmul.f32 %v5460, %v6379
      %v6388 = vadd.f32 %v6367, %v6380
      %v6389 = vadd.f32 %v6368, %v6381
      %v6390 = vadd.f32 %v6369, %v6382
      %v6391 = vadd.f32 %v6370, %v6383
      %v6392 = vadd.f32 %v6371, %v6384
      %v6393 = vadd.f32 %v6372, %v6385
      %v6394 = vadd.f32 %v6373, %v6386
      %v6395 = vadd.f32 %v6374, %v6387
      %v6396 = vld [vmem:[%s4 + $0xf] sm:$0x1]
      %v6397 = vlaneseq
      %v6398 = vshrl.u32 %v6397, 7
      %v6399 = vsub.s32 0, %v6398
      %v6400 = vrot.slane %v6396, %v6399
      %v6401 = vmul.f32 %v6400, 0.0
      %v6402 = vmul.f32 %v5494, %v6400
      %v6403 = vmul.f32 %v5495, %v6400
      %v6404 = vmul.f32 %v5496, %v6400
      %v6405 = vmul.f32 %v5497, %v6400
      %v6406 = vmul.f32 %v5498, %v6400
      %v6407 = vmul.f32 %v5499, %v6400
      %v6408 = vmul.f32 %v5500, %v6400
      %v6409 = vadd.f32 %v6388, %v6401
      %v6410 = vadd.f32 %v6389, %v6402
      %v6411 = vadd.f32 %v6390, %v6403
      %v6412 = vadd.f32 %v6391, %v6404
      %v6413 = vadd.f32 %v6392, %v6405
      %v6414 = vadd.f32 %v6393, %v6406
      %v6415 = vadd.f32 %v6394, %v6407
      %v6416 = vadd.f32 %v6395, %v6408
      %v6417 = vld [vmem:[%s4 + $0x10] sm:$0x1]
      %v6418 = vlaneseq
      %v6419 = vshrl.u32 %v6418, 7
      %v6420 = vsub.s32 0, %v6419
      %v6421 = vrot.slane %v6417, %v6420
      %v6422 = vmul.f32 %v6421, 0.0
      %v6423 = vmul.f32 %v5454, %v6421
      %v6424 = vmul.f32 %v5462, %v6421
      %v6425 = vmul.f32 %v5455, %v6421
      %v6426 = vmul.f32 %v5463, %v6421
      %v6427 = vmul.f32 %v5456, %v6421
      %v6428 = vmul.f32 %v5464, %v6421
      %v6429 = vmul.f32 %v5457, %v6421
      %v6430 = vmul.f32 %v5465, %v6421
      %v6431 = vmul.f32 %v5458, %v6421
      %v6432 = vmul.f32 %v5466, %v6421
      %v6433 = vmul.f32 %v5459, %v6421
      %v6434 = vmul.f32 %v5467, %v6421
      %v6435 = vmul.f32 %v5460, %v6421
      %v6436 = vmul.f32 %v5468, %v6421
      %v6452 = vrot.slane %v6422, 1
      %v6453 = vsel %vm4203, %v6452, %v6452
      %v6454 = vrot.slane %v6423, 1
      %v6455 = vrot.slane %v6424, 1
      %v6456 = vsel %vm4203, %v6454, %v6455
      %v6457 = vrot.slane %v6425, 1
      %v6458 = vrot.slane %v6426, 1
      %v6459 = vsel %vm4203, %v6457, %v6458
      %v6460 = vrot.slane %v6427, 1
      %v6461 = vrot.slane %v6428, 1
      %v6462 = vsel %vm4203, %v6460, %v6461
      %v6463 = vrot.slane %v6429, 1
      %v6464 = vrot.slane %v6430, 1
      %v6465 = vsel %vm4203, %v6463, %v6464
      %v6466 = vrot.slane %v6431, 1
      %v6467 = vrot.slane %v6432, 1
      %v6468 = vsel %vm4203, %v6466, %v6467
      %v6469 = vrot.slane %v6433, 1
      %v6470 = vrot.slane %v6434, 1
      %v6471 = vsel %vm4203, %v6469, %v6470
      %v6472 = vrot.slane %v6435, 1
      %v6473 = vrot.slane %v6436, 1
      %v6474 = vsel %vm4203, %v6472, %v6473
      %v6483 = vadd.f32 %v6409, %v6453
      %v6484 = vadd.f32 %v6410, %v6456
      %v6485 = vadd.f32 %v6411, %v6459
      %v6486 = vadd.f32 %v6412, %v6462
      %v6487 = vadd.f32 %v6413, %v6465
      %v6488 = vadd.f32 %v6414, %v6468
      %v6489 = vadd.f32 %v6415, %v6471
      %v6490 = vadd.f32 %v6416, %v6474
      %v6491 = vld [vmem:[%s4 + $0x11] sm:$0x1]
      %v6492 = vlaneseq
      %v6493 = vshrl.u32 %v6492, 7
      %v6494 = vsub.s32 0, %v6493
      %v6495 = vrot.slane %v6491, %v6494
      %v6496 = vmul.f32 %v6495, 0.0
      %v6497 = vmul.f32 %v5494, %v6495
      %v6498 = vmul.f32 %v5502, %v6495
      %v6499 = vmul.f32 %v5495, %v6495
      %v6500 = vmul.f32 %v5503, %v6495
      %v6501 = vmul.f32 %v5496, %v6495
      %v6502 = vmul.f32 %v5504, %v6495
      %v6503 = vmul.f32 %v5497, %v6495
      %v6504 = vmul.f32 %v5505, %v6495
      %v6505 = vmul.f32 %v5498, %v6495
      %v6506 = vmul.f32 %v5506, %v6495
      %v6507 = vmul.f32 %v5499, %v6495
      %v6508 = vmul.f32 %v5507, %v6495
      %v6509 = vmul.f32 %v5500, %v6495
      %v6510 = vmul.f32 %v5508, %v6495
      %v6526 = vrot.slane %v6496, 1
      %v6527 = vsel %vm4203, %v6526, %v6526
      %v6528 = vrot.slane %v6497, 1
      %v6529 = vrot.slane %v6498, 1
      %v6530 = vsel %vm4203, %v6528, %v6529
      %v6531 = vrot.slane %v6499, 1
      %v6532 = vrot.slane %v6500, 1
      %v6533 = vsel %vm4203, %v6531, %v6532
      %v6534 = vrot.slane %v6501, 1
      %v6535 = vrot.slane %v6502, 1
      %v6536 = vsel %vm4203, %v6534, %v6535
      %v6537 = vrot.slane %v6503, 1
      %v6538 = vrot.slane %v6504, 1
      %v6539 = vsel %vm4203, %v6537, %v6538
      %v6540 = vrot.slane %v6505, 1
      %v6541 = vrot.slane %v6506, 1
      %v6542 = vsel %vm4203, %v6540, %v6541
      %v6543 = vrot.slane %v6507, 1
      %v6544 = vrot.slane %v6508, 1
      %v6545 = vsel %vm4203, %v6543, %v6544
      %v6546 = vrot.slane %v6509, 1
      %v6547 = vrot.slane %v6510, 1
      %v6548 = vsel %vm4203, %v6546, %v6547
      %v6557 = vadd.f32 %v6483, %v6527
      %v6558 = vadd.f32 %v6484, %v6530
      %v6559 = vadd.f32 %v6485, %v6533
      %v6560 = vadd.f32 %v6486, %v6536
      %v6561 = vadd.f32 %v6487, %v6539
      %v6562 = vadd.f32 %v6488, %v6542
      %v6563 = vadd.f32 %v6489, %v6545
      %v6564 = vadd.f32 %v6490, %v6548
      %v6565 = vld [vmem:[%s4 + $0x12] sm:$0x1]
      %v6566 = vlaneseq
      %v6567 = vshrl.u32 %v6566, 7
      %v6568 = vsub.s32 0, %v6567
      %v6569 = vrot.slane %v6565, %v6568
      %v6570 = vmul.f32 %v6569, 0.0
      %v6571 = vmul.f32 %v5454, %v6569
      %v6572 = vmul.f32 %v5462, %v6569
      %v6573 = vmul.f32 %v5455, %v6569
      %v6574 = vmul.f32 %v5463, %v6569
      %v6575 = vmul.f32 %v5456, %v6569
      %v6576 = vmul.f32 %v5464, %v6569
      %v6577 = vmul.f32 %v5457, %v6569
      %v6578 = vmul.f32 %v5465, %v6569
      %v6579 = vmul.f32 %v5458, %v6569
      %v6580 = vmul.f32 %v5466, %v6569
      %v6581 = vmul.f32 %v5459, %v6569
      %v6582 = vmul.f32 %v5467, %v6569
      %v6583 = vmul.f32 %v5460, %v6569
      %v6584 = vmul.f32 %v5468, %v6569
      %v6600 = vrot.slane %v6570, 2
      %v6601 = vsel %vm5797, %v6600, %v6600
      %v6602 = vrot.slane %v6571, 2
      %v6603 = vrot.slane %v6572, 2
      %v6604 = vsel %vm5797, %v6602, %v6603
      %v6605 = vrot.slane %v6573, 2
      %v6606 = vrot.slane %v6574, 2
      %v6607 = vsel %vm5797, %v6605, %v6606
      %v6608 = vrot.slane %v6575, 2
      %v6609 = vrot.slane %v6576, 2
      %v6610 = vsel %vm5797, %v6608, %v6609
      %v6611 = vrot.slane %v6577, 2
      %v6612 = vrot.slane %v6578, 2
      %v6613 = vsel %vm5797, %v6611, %v6612
      %v6614 = vrot.slane %v6579, 2
      %v6615 = vrot.slane %v6580, 2
      %v6616 = vsel %vm5797, %v6614, %v6615
      %v6617 = vrot.slane %v6581, 2
      %v6618 = vrot.slane %v6582, 2
      %v6619 = vsel %vm5797, %v6617, %v6618
      %v6620 = vrot.slane %v6583, 2
      %v6621 = vrot.slane %v6584, 2
      %v6622 = vsel %vm5797, %v6620, %v6621
      %v6631 = vadd.f32 %v6557, %v6601
      %v6632 = vadd.f32 %v6558, %v6604
      %v6633 = vadd.f32 %v6559, %v6607
      %v6634 = vadd.f32 %v6560, %v6610
      %v6635 = vadd.f32 %v6561, %v6613
      %v6636 = vadd.f32 %v6562, %v6616
      %v6637 = vadd.f32 %v6563, %v6619
      %v6638 = vadd.f32 %v6564, %v6622
      %v6639 = vld [vmem:[%s4 + $0x13] sm:$0x1]
      %v6640 = vlaneseq
      %v6641 = vshrl.u32 %v6640, 7
      %v6642 = vsub.s32 0, %v6641
      %v6643 = vrot.slane %v6639, %v6642
      %v6644 = vmul.f32 %v6643, 0.0
      %v6645 = vmul.f32 %v5494, %v6643
      %v6646 = vmul.f32 %v5502, %v6643
      %v6647 = vmul.f32 %v5495, %v6643
      %v6648 = vmul.f32 %v5503, %v6643
      %v6649 = vmul.f32 %v5496, %v6643
      %v6650 = vmul.f32 %v5504, %v6643
      %v6651 = vmul.f32 %v5497, %v6643
      %v6652 = vmul.f32 %v5505, %v6643
      %v6653 = vmul.f32 %v5498, %v6643
      %v6654 = vmul.f32 %v5506, %v6643
      %v6655 = vmul.f32 %v5499, %v6643
      %v6656 = vmul.f32 %v5507, %v6643
      %v6657 = vmul.f32 %v5500, %v6643
      %v6658 = vmul.f32 %v5508, %v6643
      %v6674 = vrot.slane %v6644, 2
      %v6675 = vsel %vm5797, %v6674, %v6674
      %v6676 = vrot.slane %v6645, 2
      %v6677 = vrot.slane %v6646, 2
      %v6678 = vsel %vm5797, %v6676, %v6677
      %v6679 = vrot.slane %v6647, 2
      %v6680 = vrot.slane %v6648, 2
      %v6681 = vsel %vm5797, %v6679, %v6680
      %v6682 = vrot.slane %v6649, 2
      %v6683 = vrot.slane %v6650, 2
      %v6684 = vsel %vm5797, %v6682, %v6683
      %v6685 = vrot.slane %v6651, 2
      %v6686 = vrot.slane %v6652, 2
      %v6687 = vsel %vm5797, %v6685, %v6686
      %v6688 = vrot.slane %v6653, 2
      %v6689 = vrot.slane %v6654, 2
      %v6690 = vsel %vm5797, %v6688, %v6689
      %v6691 = vrot.slane %v6655, 2
      %v6692 = vrot.slane %v6656, 2
      %v6693 = vsel %vm5797, %v6691, %v6692
      %v6694 = vrot.slane %v6657, 2
      %v6695 = vrot.slane %v6658, 2
      %v6696 = vsel %vm5797, %v6694, %v6695
      %v6705 = vadd.f32 %v6631, %v6675
      %v6706 = vadd.f32 %v6632, %v6678
      %v6707 = vadd.f32 %v6633, %v6681
      %v6708 = vadd.f32 %v6634, %v6684
      %v6709 = vadd.f32 %v6635, %v6687
      %v6710 = vadd.f32 %v6636, %v6690
      %v6711 = vadd.f32 %v6637, %v6693
      %v6712 = vadd.f32 %v6638, %v6696
      %v6713 = vld [vmem:[%s4 + $0x14] sm:$0x1]
      %v6714 = vlaneseq
      %v6715 = vshrl.u32 %v6714, 7
      %v6716 = vsub.s32 0, %v6715
      %v6717 = vrot.slane %v6713, %v6716
      %v6718 = vmul.f32 %v6717, 0.0
      %v6719 = vmul.f32 %v5454, %v6717
      %v6720 = vmul.f32 %v5462, %v6717
      %v6721 = vmul.f32 %v5455, %v6717
      %v6722 = vmul.f32 %v5463, %v6717
      %v6723 = vmul.f32 %v5456, %v6717
      %v6724 = vmul.f32 %v5464, %v6717
      %v6725 = vmul.f32 %v5457, %v6717
      %v6726 = vmul.f32 %v5465, %v6717
      %v6727 = vmul.f32 %v5458, %v6717
      %v6728 = vmul.f32 %v5466, %v6717
      %v6729 = vmul.f32 %v5459, %v6717
      %v6730 = vmul.f32 %v5467, %v6717
      %v6731 = vmul.f32 %v5460, %v6717
      %v6732 = vmul.f32 %v5468, %v6717
      %v6748 = vrot.slane %v6718, 3
      %v6749 = vsel %vm5928, %v6748, %v6748
      %v6750 = vrot.slane %v6719, 3
      %v6751 = vrot.slane %v6720, 3
      %v6752 = vsel %vm5928, %v6750, %v6751
      %v6753 = vrot.slane %v6721, 3
      %v6754 = vrot.slane %v6722, 3
      %v6755 = vsel %vm5928, %v6753, %v6754
      %v6756 = vrot.slane %v6723, 3
      %v6757 = vrot.slane %v6724, 3
      %v6758 = vsel %vm5928, %v6756, %v6757
      %v6759 = vrot.slane %v6725, 3
      %v6760 = vrot.slane %v6726, 3
      %v6761 = vsel %vm5928, %v6759, %v6760
      %v6762 = vrot.slane %v6727, 3
      %v6763 = vrot.slane %v6728, 3
      %v6764 = vsel %vm5928, %v6762, %v6763
      %v6765 = vrot.slane %v6729, 3
      %v6766 = vrot.slane %v6730, 3
      %v6767 = vsel %vm5928, %v6765, %v6766
      %v6768 = vrot.slane %v6731, 3
      %v6769 = vrot.slane %v6732, 3
      %v6770 = vsel %vm5928, %v6768, %v6769
      %v6779 = vadd.f32 %v6705, %v6749
      %v6780 = vadd.f32 %v6706, %v6752
      %v6781 = vadd.f32 %v6707, %v6755
      %v6782 = vadd.f32 %v6708, %v6758
      %v6783 = vadd.f32 %v6709, %v6761
      %v6784 = vadd.f32 %v6710, %v6764
      %v6785 = vadd.f32 %v6711, %v6767
      %v6786 = vadd.f32 %v6712, %v6770
      %v6787 = vld [vmem:[%s4 + $0x15] sm:$0x1]
      %v6788 = vlaneseq
      %v6789 = vshrl.u32 %v6788, 7
      %v6790 = vsub.s32 0, %v6789
      %v6791 = vrot.slane %v6787, %v6790
      %v6792 = vmul.f32 %v5534, %v6791
      %v6793 = vmul.f32 %v5535, %v6791
      %v6794 = vmul.f32 %v5536, %v6791
      %v6795 = vmul.f32 %v5537, %v6791
      %v6796 = vmul.f32 %v5538, %v6791
      %v6797 = vmul.f32 %v5539, %v6791
      %v6798 = vmul.f32 %v5540, %v6791
      %v6799 = vmul.f32 %v5541, %v6791
      %v6800 = vadd.f32 %v6779, %v6792
      %v6801 = vadd.f32 %v6780, %v6793
      %v6802 = vadd.f32 %v6781, %v6794
      %v6803 = vadd.f32 %v6782, %v6795
      %v6804 = vadd.f32 %v6783, %v6796
      %v6805 = vadd.f32 %v6784, %v6797
      %v6806 = vadd.f32 %v6785, %v6798
      %v6807 = vadd.f32 %v6786, %v6799
      %v6808 = vld [vmem:[%s4 + $0x16] sm:$0x1]
      %v6809 = vlaneseq
      %v6810 = vshrl.u32 %v6809, 7
      %v6811 = vsub.s32 0, %v6810
      %v6812 = vrot.slane %v6808, %v6811
      %v6813 = vmul.f32 %v5574, %v6812
      %v6814 = vmul.f32 %v5575, %v6812
      %v6815 = vmul.f32 %v5576, %v6812
      %v6816 = vmul.f32 %v5577, %v6812
      %v6817 = vmul.f32 %v5578, %v6812
      %v6818 = vmul.f32 %v5579, %v6812
      %v6819 = vmul.f32 %v5580, %v6812
      %v6820 = vmul.f32 %v5581, %v6812
      %v6821 = vadd.f32 %v6800, %v6813
      %v6822 = vadd.f32 %v6801, %v6814
      %v6823 = vadd.f32 %v6802, %v6815
      %v6824 = vadd.f32 %v6803, %v6816
      %v6825 = vadd.f32 %v6804, %v6817
      %v6826 = vadd.f32 %v6805, %v6818
      %v6827 = vadd.f32 %v6806, %v6819
      %v6828 = vadd.f32 %v6807, %v6820
      %v6829 = vld [vmem:[%s4 + $0x17] sm:$0x1]
      %v6830 = vlaneseq
      %v6831 = vshrl.u32 %v6830, 7
      %v6832 = vsub.s32 0, %v6831
      %v6833 = vrot.slane %v6829, %v6832
      %v6834 = vmul.f32 %v5534, %v6833
      %v6835 = vmul.f32 %v5542, %v6833
      %v6836 = vmul.f32 %v5535, %v6833
      %v6837 = vmul.f32 %v5543, %v6833
      %v6838 = vmul.f32 %v5536, %v6833
      %v6839 = vmul.f32 %v5544, %v6833
      %v6840 = vmul.f32 %v5537, %v6833
      %v6841 = vmul.f32 %v5545, %v6833
      %v6842 = vmul.f32 %v5538, %v6833
      %v6843 = vmul.f32 %v5546, %v6833
      %v6844 = vmul.f32 %v5539, %v6833
      %v6845 = vmul.f32 %v5547, %v6833
      %v6846 = vmul.f32 %v5540, %v6833
      %v6847 = vmul.f32 %v5548, %v6833
      %v6848 = vmul.f32 %v5541, %v6833
      %v6849 = vmul.f32 %v5549, %v6833
      %v6866 = vrot.slane %v6834, 1
      %v6867 = vrot.slane %v6835, 1
      %v6868 = vsel %vm4203, %v6866, %v6867
      %v6869 = vrot.slane %v6836, 1
      %v6870 = vrot.slane %v6837, 1
      %v6871 = vsel %vm4203, %v6869, %v6870
      %v6872 = vrot.slane %v6838, 1
      %v6873 = vrot.slane %v6839, 1
      %v6874 = vsel %vm4203, %v6872, %v6873
      %v6875 = vrot.slane %v6840, 1
      %v6876 = vrot.slane %v6841, 1
      %v6877 = vsel %vm4203, %v6875, %v6876
      %v6878 = vrot.slane %v6842, 1
      %v6879 = vrot.slane %v6843, 1
      %v6880 = vsel %vm4203, %v6878, %v6879
      %v6881 = vrot.slane %v6844, 1
      %v6882 = vrot.slane %v6845, 1
      %v6883 = vsel %vm4203, %v6881, %v6882
      %v6884 = vrot.slane %v6846, 1
      %v6885 = vrot.slane %v6847, 1
      %v6886 = vsel %vm4203, %v6884, %v6885
      %v6887 = vrot.slane %v6848, 1
      %v6888 = vrot.slane %v6849, 1
      %v6889 = vsel %vm4203, %v6887, %v6888
      %v6898 = vadd.f32 %v6821, %v6868
      %v6899 = vadd.f32 %v6822, %v6871
      %v6900 = vadd.f32 %v6823, %v6874
      %v6901 = vadd.f32 %v6824, %v6877
      %v6902 = vadd.f32 %v6825, %v6880
      %v6903 = vadd.f32 %v6826, %v6883
      %v6904 = vadd.f32 %v6827, %v6886
      %v6905 = vadd.f32 %v6828, %v6889
      %v6906 = vld [vmem:[%s4 + $0x18] sm:$0x1]
      %v6907 = vlaneseq
      %v6908 = vshrl.u32 %v6907, 7
      %v6909 = vsub.s32 0, %v6908
      %v6910 = vrot.slane %v6906, %v6909
      %v6911 = vmul.f32 %v5574, %v6910
      %v6912 = vmul.f32 %v5582, %v6910
      %v6913 = vmul.f32 %v5575, %v6910
      %v6914 = vmul.f32 %v5583, %v6910
      %v6915 = vmul.f32 %v5576, %v6910
      %v6916 = vmul.f32 %v5584, %v6910
      %v6917 = vmul.f32 %v5577, %v6910
      %v6918 = vmul.f32 %v5585, %v6910
      %v6919 = vmul.f32 %v5578, %v6910
      %v6920 = vmul.f32 %v5586, %v6910
      %v6921 = vmul.f32 %v5579, %v6910
      %v6922 = vmul.f32 %v5587, %v6910
      %v6923 = vmul.f32 %v5580, %v6910
      %v6924 = vmul.f32 %v5588, %v6910
      %v6925 = vmul.f32 %v5581, %v6910
      %v6926 = vmul.f32 %v5589, %v6910
      %v6943 = vrot.slane %v6911, 1
      %v6944 = vrot.slane %v6912, 1
      %v6945 = vsel %vm4203, %v6943, %v6944
      %v6946 = vrot.slane %v6913, 1
      %v6947 = vrot.slane %v6914, 1
      %v6948 = vsel %vm4203, %v6946, %v6947
      %v6949 = vrot.slane %v6915, 1
      %v6950 = vrot.slane %v6916, 1
      %v6951 = vsel %vm4203, %v6949, %v6950
      %v6952 = vrot.slane %v6917, 1
      %v6953 = vrot.slane %v6918, 1
      %v6954 = vsel %vm4203, %v6952, %v6953
      %v6955 = vrot.slane %v6919, 1
      %v6956 = vrot.slane %v6920, 1
      %v6957 = vsel %vm4203, %v6955, %v6956
      %v6958 = vrot.slane %v6921, 1
      %v6959 = vrot.slane %v6922, 1
      %v6960 = vsel %vm4203, %v6958, %v6959
      %v6961 = vrot.slane %v6923, 1
      %v6962 = vrot.slane %v6924, 1
      %v6963 = vsel %vm4203, %v6961, %v6962
      %v6964 = vrot.slane %v6925, 1
      %v6965 = vrot.slane %v6926, 1
      %v6966 = vsel %vm4203, %v6964, %v6965
      %v6975 = vadd.f32 %v6898, %v6945
      %v6976 = vadd.f32 %v6899, %v6948
      %v6977 = vadd.f32 %v6900, %v6951
      %v6978 = vadd.f32 %v6901, %v6954
      %v6979 = vadd.f32 %v6902, %v6957
      %v6980 = vadd.f32 %v6903, %v6960
      %v6981 = vadd.f32 %v6904, %v6963
      %v6982 = vadd.f32 %v6905, %v6966
      %v6983 = vld [vmem:[%s4 + $0x19] sm:$0x1]
      %v6984 = vlaneseq
      %v6985 = vshrl.u32 %v6984, 7
      %v6986 = vsub.s32 0, %v6985
      %v6987 = vrot.slane %v6983, %v6986
      %v6988 = vmul.f32 %v5534, %v6987
      %v6989 = vmul.f32 %v5542, %v6987
      %v6990 = vmul.f32 %v5535, %v6987
      %v6991 = vmul.f32 %v5543, %v6987
      %v6992 = vmul.f32 %v5536, %v6987
      %v6993 = vmul.f32 %v5544, %v6987
      %v6994 = vmul.f32 %v5537, %v6987
      %v6995 = vmul.f32 %v5545, %v6987
      %v6996 = vmul.f32 %v5538, %v6987
      %v6997 = vmul.f32 %v5546, %v6987
      %v6998 = vmul.f32 %v5539, %v6987
      %v6999 = vmul.f32 %v5547, %v6987
      %v7000 = vmul.f32 %v5540, %v6987
      %v7001 = vmul.f32 %v5548, %v6987
      %v7002 = vmul.f32 %v5541, %v6987
      %v7003 = vmul.f32 %v5549, %v6987
      %v7020 = vrot.slane %v6988, 2
      %v7021 = vrot.slane %v6989, 2
      %v7022 = vsel %vm5797, %v7020, %v7021
      %v7023 = vrot.slane %v6990, 2
      %v7024 = vrot.slane %v6991, 2
      %v7025 = vsel %vm5797, %v7023, %v7024
      %v7026 = vrot.slane %v6992, 2
      %v7027 = vrot.slane %v6993, 2
      %v7028 = vsel %vm5797, %v7026, %v7027
      %v7029 = vrot.slane %v6994, 2
      %v7030 = vrot.slane %v6995, 2
      %v7031 = vsel %vm5797, %v7029, %v7030
      %v7032 = vrot.slane %v6996, 2
      %v7033 = vrot.slane %v6997, 2
      %v7034 = vsel %vm5797, %v7032, %v7033
      %v7035 = vrot.slane %v6998, 2
      %v7036 = vrot.slane %v6999, 2
      %v7037 = vsel %vm5797, %v7035, %v7036
      %v7038 = vrot.slane %v7000, 2
      %v7039 = vrot.slane %v7001, 2
      %v7040 = vsel %vm5797, %v7038, %v7039
      %v7041 = vrot.slane %v7002, 2
      %v7042 = vrot.slane %v7003, 2
      %v7043 = vsel %vm5797, %v7041, %v7042
      %v7052 = vadd.f32 %v6975, %v7022
      %v7053 = vadd.f32 %v6976, %v7025
      %v7054 = vadd.f32 %v6977, %v7028
      %v7055 = vadd.f32 %v6978, %v7031
      %v7056 = vadd.f32 %v6979, %v7034
      %v7057 = vadd.f32 %v6980, %v7037
      %v7058 = vadd.f32 %v6981, %v7040
      %v7059 = vadd.f32 %v6982, %v7043
      %v7060 = vld [vmem:[%s4 + $0x1a] sm:$0x1]
      %v7061 = vlaneseq
      %v7062 = vshrl.u32 %v7061, 7
      %v7063 = vsub.s32 0, %v7062
      %v7064 = vrot.slane %v7060, %v7063
      %v7065 = vmul.f32 %v5574, %v7064
      %v7066 = vmul.f32 %v5582, %v7064
      %v7067 = vmul.f32 %v5575, %v7064
      %v7068 = vmul.f32 %v5583, %v7064
      %v7069 = vmul.f32 %v5576, %v7064
      %v7070 = vmul.f32 %v5584, %v7064
      %v7071 = vmul.f32 %v5577, %v7064
      %v7072 = vmul.f32 %v5585, %v7064
      %v7073 = vmul.f32 %v5578, %v7064
      %v7074 = vmul.f32 %v5586, %v7064
      %v7075 = vmul.f32 %v5579, %v7064
      %v7076 = vmul.f32 %v5587, %v7064
      %v7077 = vmul.f32 %v5580, %v7064
      %v7078 = vmul.f32 %v5588, %v7064
      %v7079 = vmul.f32 %v5581, %v7064
      %v7080 = vmul.f32 %v5589, %v7064
      %v7097 = vrot.slane %v7065, 2
      %v7098 = vrot.slane %v7066, 2
      %v7099 = vsel %vm5797, %v7097, %v7098
      %v7100 = vrot.slane %v7067, 2
      %v7101 = vrot.slane %v7068, 2
      %v7102 = vsel %vm5797, %v7100, %v7101
      %v7103 = vrot.slane %v7069, 2
      %v7104 = vrot.slane %v7070, 2
      %v7105 = vsel %vm5797, %v7103, %v7104
      %v7106 = vrot.slane %v7071, 2
      %v7107 = vrot.slane %v7072, 2
      %v7108 = vsel %vm5797, %v7106, %v7107
      %v7109 = vrot.slane %v7073, 2
      %v7110 = vrot.slane %v7074, 2
      %v7111 = vsel %vm5797, %v7109, %v7110
      %v7112 = vrot.slane %v7075, 2
      %v7113 = vrot.slane %v7076, 2
      %v7114 = vsel %vm5797, %v7112, %v7113
      %v7115 = vrot.slane %v7077, 2
      %v7116 = vrot.slane %v7078, 2
      %v7117 = vsel %vm5797, %v7115, %v7116
      %v7118 = vrot.slane %v7079, 2
      %v7119 = vrot.slane %v7080, 2
      %v7120 = vsel %vm5797, %v7118, %v7119
      %v7129 = vadd.f32 %v7052, %v7099
      %v7130 = vadd.f32 %v7053, %v7102
      %v7131 = vadd.f32 %v7054, %v7105
      %v7132 = vadd.f32 %v7055, %v7108
      %v7133 = vadd.f32 %v7056, %v7111
      %v7134 = vadd.f32 %v7057, %v7114
      %v7135 = vadd.f32 %v7058, %v7117
      %v7136 = vadd.f32 %v7059, %v7120
      %v7137 = vld [vmem:[%s4 + $0x1b] sm:$0x1]
      %v7138 = vlaneseq
      %v7139 = vshrl.u32 %v7138, 7
      %v7140 = vsub.s32 0, %v7139
      %v7141 = vrot.slane %v7137, %v7140
      %v7142 = vmul.f32 %v5534, %v7141
      %v7143 = vmul.f32 %v5542, %v7141
      %v7144 = vmul.f32 %v5535, %v7141
      %v7145 = vmul.f32 %v5543, %v7141
      %v7146 = vmul.f32 %v5536, %v7141
      %v7147 = vmul.f32 %v5544, %v7141
      %v7148 = vmul.f32 %v5537, %v7141
      %v7149 = vmul.f32 %v5545, %v7141
      %v7150 = vmul.f32 %v5538, %v7141
      %v7151 = vmul.f32 %v5546, %v7141
      %v7152 = vmul.f32 %v5539, %v7141
      %v7153 = vmul.f32 %v5547, %v7141
      %v7154 = vmul.f32 %v5540, %v7141
      %v7155 = vmul.f32 %v5548, %v7141
      %v7156 = vmul.f32 %v5541, %v7141
      %v7157 = vmul.f32 %v5549, %v7141
      %v7174 = vrot.slane %v7142, 3
      %v7175 = vrot.slane %v7143, 3
      %v7176 = vsel %vm5928, %v7174, %v7175
      %v7177 = vrot.slane %v7144, 3
      %v7178 = vrot.slane %v7145, 3
      %v7179 = vsel %vm5928, %v7177, %v7178
      %v7180 = vrot.slane %v7146, 3
      %v7181 = vrot.slane %v7147, 3
      %v7182 = vsel %vm5928, %v7180, %v7181
      %v7183 = vrot.slane %v7148, 3
      %v7184 = vrot.slane %v7149, 3
      %v7185 = vsel %vm5928, %v7183, %v7184
      %v7186 = vrot.slane %v7150, 3
      %v7187 = vrot.slane %v7151, 3
      %v7188 = vsel %vm5928, %v7186, %v7187
      %v7189 = vrot.slane %v7152, 3
      %v7190 = vrot.slane %v7153, 3
      %v7191 = vsel %vm5928, %v7189, %v7190
      %v7192 = vrot.slane %v7154, 3
      %v7193 = vrot.slane %v7155, 3
      %v7194 = vsel %vm5928, %v7192, %v7193
      %v7195 = vrot.slane %v7156, 3
      %v7196 = vrot.slane %v7157, 3
      %v7197 = vsel %vm5928, %v7195, %v7196
      %v7206 = vadd.f32 %v7129, %v7176
      %v7207 = vadd.f32 %v7130, %v7179
      %v7208 = vadd.f32 %v7131, %v7182
      %v7209 = vadd.f32 %v7132, %v7185
      %v7210 = vadd.f32 %v7133, %v7188
      %v7211 = vadd.f32 %v7134, %v7191
      %v7212 = vadd.f32 %v7135, %v7194
      %v7213 = vadd.f32 %v7136, %v7197
      %v7214 = vld [vmem:[%s4 + $0x1c] sm:$0x1]
      %v7215 = vlaneseq
      %v7216 = vshrl.u32 %v7215, 7
      %v7217 = vsub.s32 0, %v7216
      %v7218 = vrot.slane %v7214, %v7217
      %v7219 = vmul.f32 %v5454, %v7218
      %v7220 = vmul.f32 %v5455, %v7218
      %v7221 = vmul.f32 %v5456, %v7218
      %v7222 = vmul.f32 %v5457, %v7218
      %v7223 = vmul.f32 %v5458, %v7218
      %v7224 = vmul.f32 %v5459, %v7218
      %v7225 = vmul.f32 %v5460, %v7218
      %v7226 = vmul.f32 %v5461, %v7218
      %v7227 = vadd.f32 %v7206, %v7219
      %v7228 = vadd.f32 %v7207, %v7220
      %v7229 = vadd.f32 %v7208, %v7221
      %v7230 = vadd.f32 %v7209, %v7222
      %v7231 = vadd.f32 %v7210, %v7223
      %v7232 = vadd.f32 %v7211, %v7224
      %v7233 = vadd.f32 %v7212, %v7225
      %v7234 = vadd.f32 %v7213, %v7226
      %v7235 = vld [vmem:[%s4 + $0x1d] sm:$0x1]
      %v7236 = vlaneseq
      %v7237 = vshrl.u32 %v7236, 7
      %v7238 = vsub.s32 0, %v7237
      %v7239 = vrot.slane %v7235, %v7238
      %v7240 = vmul.f32 %v5494, %v7239
      %v7241 = vmul.f32 %v5495, %v7239
      %v7242 = vmul.f32 %v5496, %v7239
      %v7243 = vmul.f32 %v5497, %v7239
      %v7244 = vmul.f32 %v5498, %v7239
      %v7245 = vmul.f32 %v5499, %v7239
      %v7246 = vmul.f32 %v5500, %v7239
      %v7247 = vmul.f32 %v5501, %v7239
      %v7248 = vadd.f32 %v7227, %v7240
      %v7249 = vadd.f32 %v7228, %v7241
      %v7250 = vadd.f32 %v7229, %v7242
      %v7251 = vadd.f32 %v7230, %v7243
      %v7252 = vadd.f32 %v7231, %v7244
      %v7253 = vadd.f32 %v7232, %v7245
      %v7254 = vadd.f32 %v7233, %v7246
      %v7255 = vadd.f32 %v7234, %v7247
      %v7256 = vld [vmem:[%s4 + $0x1e] sm:$0x1]
      %v7257 = vlaneseq
      %v7258 = vshrl.u32 %v7257, 7
      %v7259 = vsub.s32 0, %v7258
      %v7260 = vrot.slane %v7256, %v7259
      %v7261 = vmul.f32 %v5454, %v7260
      %v7262 = vmul.f32 %v5462, %v7260
      %v7263 = vmul.f32 %v5455, %v7260
      %v7264 = vmul.f32 %v5463, %v7260
      %v7265 = vmul.f32 %v5456, %v7260
      %v7266 = vmul.f32 %v5464, %v7260
      %v7267 = vmul.f32 %v5457, %v7260
      %v7268 = vmul.f32 %v5465, %v7260
      %v7269 = vmul.f32 %v5458, %v7260
      %v7270 = vmul.f32 %v5466, %v7260
      %v7271 = vmul.f32 %v5459, %v7260
      %v7272 = vmul.f32 %v5467, %v7260
      %v7273 = vmul.f32 %v5460, %v7260
      %v7274 = vmul.f32 %v5468, %v7260
      %v7275 = vmul.f32 %v5461, %v7260
      %v7276 = vmul.f32 %v5469, %v7260
      %v7293 = vrot.slane %v7261, 1
      %v7294 = vrot.slane %v7262, 1
      %v7295 = vsel %vm4203, %v7293, %v7294
      %v7296 = vrot.slane %v7263, 1
      %v7297 = vrot.slane %v7264, 1
      %v7298 = vsel %vm4203, %v7296, %v7297
      %v7299 = vrot.slane %v7265, 1
      %v7300 = vrot.slane %v7266, 1
      %v7301 = vsel %vm4203, %v7299, %v7300
      %v7302 = vrot.slane %v7267, 1
      %v7303 = vrot.slane %v7268, 1
      %v7304 = vsel %vm4203, %v7302, %v7303
      %v7305 = vrot.slane %v7269, 1
      %v7306 = vrot.slane %v7270, 1
      %v7307 = vsel %vm4203, %v7305, %v7306
      %v7308 = vrot.slane %v7271, 1
      %v7309 = vrot.slane %v7272, 1
      %v7310 = vsel %vm4203, %v7308, %v7309
      %v7311 = vrot.slane %v7273, 1
      %v7312 = vrot.slane %v7274, 1
      %v7313 = vsel %vm4203, %v7311, %v7312
      %v7314 = vrot.slane %v7275, 1
      %v7315 = vrot.slane %v7276, 1
      %v7316 = vsel %vm4203, %v7314, %v7315
      %v7325 = vadd.f32 %v7248, %v7295
      %v7326 = vadd.f32 %v7249, %v7298
      %v7327 = vadd.f32 %v7250, %v7301
      %v7328 = vadd.f32 %v7251, %v7304
      %v7329 = vadd.f32 %v7252, %v7307
      %v7330 = vadd.f32 %v7253, %v7310
      %v7331 = vadd.f32 %v7254, %v7313
      %v7332 = vadd.f32 %v7255, %v7316
      %v7333 = vld [vmem:[%s4 + $0x1f] sm:$0x1]
      %v7334 = vlaneseq
      %v7335 = vshrl.u32 %v7334, 7
      %v7336 = vsub.s32 0, %v7335
      %v7337 = vrot.slane %v7333, %v7336
      %v7338 = vmul.f32 %v5494, %v7337
      %v7339 = vmul.f32 %v5502, %v7337
      %v7340 = vmul.f32 %v5495, %v7337
      %v7341 = vmul.f32 %v5503, %v7337
      %v7342 = vmul.f32 %v5496, %v7337
      %v7343 = vmul.f32 %v5504, %v7337
      %v7344 = vmul.f32 %v5497, %v7337
      %v7345 = vmul.f32 %v5505, %v7337
      %v7346 = vmul.f32 %v5498, %v7337
      %v7347 = vmul.f32 %v5506, %v7337
      %v7348 = vmul.f32 %v5499, %v7337
      %v7349 = vmul.f32 %v5507, %v7337
      %v7350 = vmul.f32 %v5500, %v7337
      %v7351 = vmul.f32 %v5508, %v7337
      %v7352 = vmul.f32 %v5501, %v7337
      %v7353 = vmul.f32 %v5509, %v7337
      %v7370 = vrot.slane %v7338, 1
      %v7371 = vrot.slane %v7339, 1
      %v7372 = vsel %vm4203, %v7370, %v7371
      %v7373 = vrot.slane %v7340, 1
      %v7374 = vrot.slane %v7341, 1
      %v7375 = vsel %vm4203, %v7373, %v7374
      %v7376 = vrot.slane %v7342, 1
      %v7377 = vrot.slane %v7343, 1
      %v7378 = vsel %vm4203, %v7376, %v7377
      %v7379 = vrot.slane %v7344, 1
      %v7380 = vrot.slane %v7345, 1
      %v7381 = vsel %vm4203, %v7379, %v7380
      %v7382 = vrot.slane %v7346, 1
      %v7383 = vrot.slane %v7347, 1
      %v7384 = vsel %vm4203, %v7382, %v7383
      %v7385 = vrot.slane %v7348, 1
      %v7386 = vrot.slane %v7349, 1
      %v7387 = vsel %vm4203, %v7385, %v7386
      %v7388 = vrot.slane %v7350, 1
      %v7389 = vrot.slane %v7351, 1
      %v7390 = vsel %vm4203, %v7388, %v7389
      %v7391 = vrot.slane %v7352, 1
      %v7392 = vrot.slane %v7353, 1
      %v7393 = vsel %vm4203, %v7391, %v7392
      %v7402 = vadd.f32 %v7325, %v7372
      %v7403 = vadd.f32 %v7326, %v7375
      %v7404 = vadd.f32 %v7327, %v7378
      %v7405 = vadd.f32 %v7328, %v7381
      %v7406 = vadd.f32 %v7329, %v7384
      %v7407 = vadd.f32 %v7330, %v7387
      %v7408 = vadd.f32 %v7331, %v7390
      %v7409 = vadd.f32 %v7332, %v7393
      %v7410 = vld [vmem:[%s4 + $0x20] sm:$0x1]
      %v7411 = vlaneseq
      %v7412 = vshrl.u32 %v7411, 7
      %v7413 = vsub.s32 0, %v7412
      %v7414 = vrot.slane %v7410, %v7413
      %v7415 = vmul.f32 %v5454, %v7414
      %v7416 = vmul.f32 %v5462, %v7414
      %v7417 = vmul.f32 %v5455, %v7414
      %v7418 = vmul.f32 %v5463, %v7414
      %v7419 = vmul.f32 %v5456, %v7414
      %v7420 = vmul.f32 %v5464, %v7414
      %v7421 = vmul.f32 %v5457, %v7414
      %v7422 = vmul.f32 %v5465, %v7414
      %v7423 = vmul.f32 %v5458, %v7414
      %v7424 = vmul.f32 %v5466, %v7414
      %v7425 = vmul.f32 %v5459, %v7414
      %v7426 = vmul.f32 %v5467, %v7414
      %v7427 = vmul.f32 %v5460, %v7414
      %v7428 = vmul.f32 %v5468, %v7414
      %v7429 = vmul.f32 %v5461, %v7414
      %v7430 = vmul.f32 %v5469, %v7414
      %v7447 = vrot.slane %v7415, 2
      %v7448 = vrot.slane %v7416, 2
      %v7449 = vsel %vm5797, %v7447, %v7448
      %v7450 = vrot.slane %v7417, 2
      %v7451 = vrot.slane %v7418, 2
      %v7452 = vsel %vm5797, %v7450, %v7451
      %v7453 = vrot.slane %v7419, 2
      %v7454 = vrot.slane %v7420, 2
      %v7455 = vsel %vm5797, %v7453, %v7454
      %v7456 = vrot.slane %v7421, 2
      %v7457 = vrot.slane %v7422, 2
      %v7458 = vsel %vm5797, %v7456, %v7457
      %v7459 = vrot.slane %v7423, 2
      %v7460 = vrot.slane %v7424, 2
      %v7461 = vsel %vm5797, %v7459, %v7460
      %v7462 = vrot.slane %v7425, 2
      %v7463 = vrot.slane %v7426, 2
      %v7464 = vsel %vm5797, %v7462, %v7463
      %v7465 = vrot.slane %v7427, 2
      %v7466 = vrot.slane %v7428, 2
      %v7467 = vsel %vm5797, %v7465, %v7466
      %v7468 = vrot.slane %v7429, 2
      %v7469 = vrot.slane %v7430, 2
      %v7470 = vsel %vm5797, %v7468, %v7469
      %v7479 = vadd.f32 %v7402, %v7449
      %v7480 = vadd.f32 %v7403, %v7452
      %v7481 = vadd.f32 %v7404, %v7455
      %v7482 = vadd.f32 %v7405, %v7458
      %v7483 = vadd.f32 %v7406, %v7461
      %v7484 = vadd.f32 %v7407, %v7464
      %v7485 = vadd.f32 %v7408, %v7467
      %v7486 = vadd.f32 %v7409, %v7470
      %v7487 = vld [vmem:[%s4 + $0x21] sm:$0x1]
      %v7488 = vlaneseq
      %v7489 = vshrl.u32 %v7488, 7
      %v7490 = vsub.s32 0, %v7489
      %v7491 = vrot.slane %v7487, %v7490
      %v7492 = vmul.f32 %v5494, %v7491
      %v7493 = vmul.f32 %v5502, %v7491
      %v7494 = vmul.f32 %v5495, %v7491
      %v7495 = vmul.f32 %v5503, %v7491
      %v7496 = vmul.f32 %v5496, %v7491
      %v7497 = vmul.f32 %v5504, %v7491
      %v7498 = vmul.f32 %v5497, %v7491
      %v7499 = vmul.f32 %v5505, %v7491
      %v7500 = vmul.f32 %v5498, %v7491
      %v7501 = vmul.f32 %v5506, %v7491
      %v7502 = vmul.f32 %v5499, %v7491
      %v7503 = vmul.f32 %v5507, %v7491
      %v7504 = vmul.f32 %v5500, %v7491
      %v7505 = vmul.f32 %v5508, %v7491
      %v7506 = vmul.f32 %v5501, %v7491
      %v7507 = vmul.f32 %v5509, %v7491
      %v7524 = vrot.slane %v7492, 2
      %v7525 = vrot.slane %v7493, 2
      %v7526 = vsel %vm5797, %v7524, %v7525
      %v7527 = vrot.slane %v7494, 2
      %v7528 = vrot.slane %v7495, 2
      %v7529 = vsel %vm5797, %v7527, %v7528
      %v7530 = vrot.slane %v7496, 2
      %v7531 = vrot.slane %v7497, 2
      %v7532 = vsel %vm5797, %v7530, %v7531
      %v7533 = vrot.slane %v7498, 2
      %v7534 = vrot.slane %v7499, 2
      %v7535 = vsel %vm5797, %v7533, %v7534
      %v7536 = vrot.slane %v7500, 2
      %v7537 = vrot.slane %v7501, 2
      %v7538 = vsel %vm5797, %v7536, %v7537
      %v7539 = vrot.slane %v7502, 2
      %v7540 = vrot.slane %v7503, 2
      %v7541 = vsel %vm5797, %v7539, %v7540
      %v7542 = vrot.slane %v7504, 2
      %v7543 = vrot.slane %v7505, 2
      %v7544 = vsel %vm5797, %v7542, %v7543
      %v7545 = vrot.slane %v7506, 2
      %v7546 = vrot.slane %v7507, 2
      %v7547 = vsel %vm5797, %v7545, %v7546
      %v7556 = vadd.f32 %v7479, %v7526
      %v7557 = vadd.f32 %v7480, %v7529
      %v7558 = vadd.f32 %v7481, %v7532
      %v7559 = vadd.f32 %v7482, %v7535
      %v7560 = vadd.f32 %v7483, %v7538
      %v7561 = vadd.f32 %v7484, %v7541
      %v7562 = vadd.f32 %v7485, %v7544
      %v7563 = vadd.f32 %v7486, %v7547
      %v7564 = vld [vmem:[%s4 + $0x22] sm:$0x1]
      %v7565 = vlaneseq
      %v7566 = vshrl.u32 %v7565, 7
      %v7567 = vsub.s32 0, %v7566
      %v7568 = vrot.slane %v7564, %v7567
      %v7569 = vmul.f32 %v5454, %v7568
      %v7570 = vmul.f32 %v5462, %v7568
      %v7571 = vmul.f32 %v5455, %v7568
      %v7572 = vmul.f32 %v5463, %v7568
      %v7573 = vmul.f32 %v5456, %v7568
      %v7574 = vmul.f32 %v5464, %v7568
      %v7575 = vmul.f32 %v5457, %v7568
      %v7576 = vmul.f32 %v5465, %v7568
      %v7577 = vmul.f32 %v5458, %v7568
      %v7578 = vmul.f32 %v5466, %v7568
      %v7579 = vmul.f32 %v5459, %v7568
      %v7580 = vmul.f32 %v5467, %v7568
      %v7581 = vmul.f32 %v5460, %v7568
      %v7582 = vmul.f32 %v5468, %v7568
      %v7583 = vmul.f32 %v5461, %v7568
      %v7584 = vmul.f32 %v5469, %v7568
      %v7601 = vrot.slane %v7569, 3
      %v7602 = vrot.slane %v7570, 3
      %v7603 = vsel %vm5928, %v7601, %v7602
      %v7604 = vrot.slane %v7571, 3
      %v7605 = vrot.slane %v7572, 3
      %v7606 = vsel %vm5928, %v7604, %v7605
      %v7607 = vrot.slane %v7573, 3
      %v7608 = vrot.slane %v7574, 3
      %v7609 = vsel %vm5928, %v7607, %v7608
      %v7610 = vrot.slane %v7575, 3
      %v7611 = vrot.slane %v7576, 3
      %v7612 = vsel %vm5928, %v7610, %v7611
      %v7613 = vrot.slane %v7577, 3
      %v7614 = vrot.slane %v7578, 3
      %v7615 = vsel %vm5928, %v7613, %v7614
      %v7616 = vrot.slane %v7579, 3
      %v7617 = vrot.slane %v7580, 3
      %v7618 = vsel %vm5928, %v7616, %v7617
      %v7619 = vrot.slane %v7581, 3
      %v7620 = vrot.slane %v7582, 3
      %v7621 = vsel %vm5928, %v7619, %v7620
      %v7622 = vrot.slane %v7583, 3
      %v7623 = vrot.slane %v7584, 3
      %v7624 = vsel %vm5928, %v7622, %v7623
      %v7633 = vadd.f32 %v7556, %v7603
      %v7634 = vadd.f32 %v7557, %v7606
      %v7635 = vadd.f32 %v7558, %v7609
      %v7636 = vadd.f32 %v7559, %v7612
      %v7637 = vadd.f32 %v7560, %v7615
      %v7638 = vadd.f32 %v7561, %v7618
      %v7639 = vadd.f32 %v7562, %v7621
      %v7640 = vadd.f32 %v7563, %v7624
      %v7641 = vld [vmem:[%s4 + $0x23] sm:$0x1]
      %v7642 = vlaneseq
      %v7643 = vshrl.u32 %v7642, 7
      %v7644 = vsub.s32 0, %v7643
      %v7645 = vrot.slane %v7641, %v7644
      %v7646 = vmul.f32 %v5535, %v7645
      %v7647 = vmul.f32 %v5536, %v7645
      %v7648 = vmul.f32 %v5537, %v7645
      %v7649 = vmul.f32 %v5538, %v7645
      %v7650 = vmul.f32 %v5539, %v7645
      %v7651 = vmul.f32 %v5540, %v7645
      %v7652 = vmul.f32 %v5541, %v7645
      %v7653 = vmul.f32 %v7645, 0.0
      %v7654 = vadd.f32 %v7633, %v7646
      %v7655 = vadd.f32 %v7634, %v7647
      %v7656 = vadd.f32 %v7635, %v7648
      %v7657 = vadd.f32 %v7636, %v7649
      %v7658 = vadd.f32 %v7637, %v7650
      %v7659 = vadd.f32 %v7638, %v7651
      %v7660 = vadd.f32 %v7639, %v7652
      %v7661 = vadd.f32 %v7640, %v7653
      %v7662 = vld [vmem:[%s4 + $0x24] sm:$0x1]
      %v7663 = vlaneseq
      %v7664 = vshrl.u32 %v7663, 7
      %v7665 = vsub.s32 0, %v7664
      %v7666 = vrot.slane %v7662, %v7665
      %v7667 = vmul.f32 %v5575, %v7666
      %v7668 = vmul.f32 %v5576, %v7666
      %v7669 = vmul.f32 %v5577, %v7666
      %v7670 = vmul.f32 %v5578, %v7666
      %v7671 = vmul.f32 %v5579, %v7666
      %v7672 = vmul.f32 %v5580, %v7666
      %v7673 = vmul.f32 %v5581, %v7666
      %v7674 = vmul.f32 %v7666, 0.0
      %v7675 = vadd.f32 %v7654, %v7667
      %v7676 = vadd.f32 %v7655, %v7668
      %v7677 = vadd.f32 %v7656, %v7669
      %v7678 = vadd.f32 %v7657, %v7670
      %v7679 = vadd.f32 %v7658, %v7671
      %v7680 = vadd.f32 %v7659, %v7672
      %v7681 = vadd.f32 %v7660, %v7673
      %v7682 = vadd.f32 %v7661, %v7674
      %v7683 = vld [vmem:[%s4 + $0x25] sm:$0x1]
      %v7684 = vlaneseq
      %v7685 = vshrl.u32 %v7684, 7
      %v7686 = vsub.s32 0, %v7685
      %v7687 = vrot.slane %v7683, %v7686
      %v7688 = vmul.f32 %v5535, %v7687
      %v7689 = vmul.f32 %v5543, %v7687
      %v7690 = vmul.f32 %v5536, %v7687
      %v7691 = vmul.f32 %v5544, %v7687
      %v7692 = vmul.f32 %v5537, %v7687
      %v7693 = vmul.f32 %v5545, %v7687
      %v7694 = vmul.f32 %v5538, %v7687
      %v7695 = vmul.f32 %v5546, %v7687
      %v7696 = vmul.f32 %v5539, %v7687
      %v7697 = vmul.f32 %v5547, %v7687
      %v7698 = vmul.f32 %v5540, %v7687
      %v7699 = vmul.f32 %v5548, %v7687
      %v7700 = vmul.f32 %v5541, %v7687
      %v7701 = vmul.f32 %v5549, %v7687
      %v7702 = vmul.f32 %v7687, 0.0
      %v7718 = vrot.slane %v7688, 1
      %v7719 = vrot.slane %v7689, 1
      %v7720 = vsel %vm4203, %v7718, %v7719
      %v7721 = vrot.slane %v7690, 1
      %v7722 = vrot.slane %v7691, 1
      %v7723 = vsel %vm4203, %v7721, %v7722
      %v7724 = vrot.slane %v7692, 1
      %v7725 = vrot.slane %v7693, 1
      %v7726 = vsel %vm4203, %v7724, %v7725
      %v7727 = vrot.slane %v7694, 1
      %v7728 = vrot.slane %v7695, 1
      %v7729 = vsel %vm4203, %v7727, %v7728
      %v7730 = vrot.slane %v7696, 1
      %v7731 = vrot.slane %v7697, 1
      %v7732 = vsel %vm4203, %v7730, %v7731
      %v7733 = vrot.slane %v7698, 1
      %v7734 = vrot.slane %v7699, 1
      %v7735 = vsel %vm4203, %v7733, %v7734
      %v7736 = vrot.slane %v7700, 1
      %v7737 = vrot.slane %v7701, 1
      %v7738 = vsel %vm4203, %v7736, %v7737
      %v7739 = vrot.slane %v7702, 1
      %v7740 = vsel %vm4203, %v7739, %v7739
      %v7749 = vadd.f32 %v7675, %v7720
      %v7750 = vadd.f32 %v7676, %v7723
      %v7751 = vadd.f32 %v7677, %v7726
      %v7752 = vadd.f32 %v7678, %v7729
      %v7753 = vadd.f32 %v7679, %v7732
      %v7754 = vadd.f32 %v7680, %v7735
      %v7755 = vadd.f32 %v7681, %v7738
      %v7756 = vadd.f32 %v7682, %v7740
      %v7757 = vld [vmem:[%s4 + $0x26] sm:$0x1]
      %v7758 = vlaneseq
      %v7759 = vshrl.u32 %v7758, 7
      %v7760 = vsub.s32 0, %v7759
      %v7761 = vrot.slane %v7757, %v7760
      %v7762 = vmul.f32 %v5575, %v7761
      %v7763 = vmul.f32 %v5583, %v7761
      %v7764 = vmul.f32 %v5576, %v7761
      %v7765 = vmul.f32 %v5584, %v7761
      %v7766 = vmul.f32 %v5577, %v7761
      %v7767 = vmul.f32 %v5585, %v7761
      %v7768 = vmul.f32 %v5578, %v7761
      %v7769 = vmul.f32 %v5586, %v7761
      %v7770 = vmul.f32 %v5579, %v7761
      %v7771 = vmul.f32 %v5587, %v7761
      %v7772 = vmul.f32 %v5580, %v7761
      %v7773 = vmul.f32 %v5588, %v7761
      %v7774 = vmul.f32 %v5581, %v7761
      %v7775 = vmul.f32 %v5589, %v7761
      %v7776 = vmul.f32 %v7761, 0.0
      %v7792 = vrot.slane %v7762, 1
      %v7793 = vrot.slane %v7763, 1
      %v7794 = vsel %vm4203, %v7792, %v7793
      %v7795 = vrot.slane %v7764, 1
      %v7796 = vrot.slane %v7765, 1
      %v7797 = vsel %vm4203, %v7795, %v7796
      %v7798 = vrot.slane %v7766, 1
      %v7799 = vrot.slane %v7767, 1
      %v7800 = vsel %vm4203, %v7798, %v7799
      %v7801 = vrot.slane %v7768, 1
      %v7802 = vrot.slane %v7769, 1
      %v7803 = vsel %vm4203, %v7801, %v7802
      %v7804 = vrot.slane %v7770, 1
      %v7805 = vrot.slane %v7771, 1
      %v7806 = vsel %vm4203, %v7804, %v7805
      %v7807 = vrot.slane %v7772, 1
      %v7808 = vrot.slane %v7773, 1
      %v7809 = vsel %vm4203, %v7807, %v7808
      %v7810 = vrot.slane %v7774, 1
      %v7811 = vrot.slane %v7775, 1
      %v7812 = vsel %vm4203, %v7810, %v7811
      %v7813 = vrot.slane %v7776, 1
      %v7814 = vsel %vm4203, %v7813, %v7813
      %v7823 = vadd.f32 %v7749, %v7794
      %v7824 = vadd.f32 %v7750, %v7797
      %v7825 = vadd.f32 %v7751, %v7800
      %v7826 = vadd.f32 %v7752, %v7803
      %v7827 = vadd.f32 %v7753, %v7806
      %v7828 = vadd.f32 %v7754, %v7809
      %v7829 = vadd.f32 %v7755, %v7812
      %v7830 = vadd.f32 %v7756, %v7814
      %v7831 = vld [vmem:[%s4 + $0x27] sm:$0x1]
      %v7832 = vlaneseq
      %v7833 = vshrl.u32 %v7832, 7
      %v7834 = vsub.s32 0, %v7833
      %v7835 = vrot.slane %v7831, %v7834
      %v7836 = vmul.f32 %v5535, %v7835
      %v7837 = vmul.f32 %v5543, %v7835
      %v7838 = vmul.f32 %v5536, %v7835
      %v7839 = vmul.f32 %v5544, %v7835
      %v7840 = vmul.f32 %v5537, %v7835
      %v7841 = vmul.f32 %v5545, %v7835
      %v7842 = vmul.f32 %v5538, %v7835
      %v7843 = vmul.f32 %v5546, %v7835
      %v7844 = vmul.f32 %v5539, %v7835
      %v7845 = vmul.f32 %v5547, %v7835
      %v7846 = vmul.f32 %v5540, %v7835
      %v7847 = vmul.f32 %v5548, %v7835
      %v7848 = vmul.f32 %v5541, %v7835
      %v7849 = vmul.f32 %v5549, %v7835
      %v7850 = vmul.f32 %v7835, 0.0
      %v7866 = vrot.slane %v7836, 2
      %v7867 = vrot.slane %v7837, 2
      %v7868 = vsel %vm5797, %v7866, %v7867
      %v7869 = vrot.slane %v7838, 2
      %v7870 = vrot.slane %v7839, 2
      %v7871 = vsel %vm5797, %v7869, %v7870
      %v7872 = vrot.slane %v7840, 2
      %v7873 = vrot.slane %v7841, 2
      %v7874 = vsel %vm5797, %v7872, %v7873
      %v7875 = vrot.slane %v7842, 2
      %v7876 = vrot.slane %v7843, 2
      %v7877 = vsel %vm5797, %v7875, %v7876
      %v7878 = vrot.slane %v7844, 2
      %v7879 = vrot.slane %v7845, 2
      %v7880 = vsel %vm5797, %v7878, %v7879
      %v7881 = vrot.slane %v7846, 2
      %v7882 = vrot.slane %v7847, 2
      %v7883 = vsel %vm5797, %v7881, %v7882
      %v7884 = vrot.slane %v7848, 2
      %v7885 = vrot.slane %v7849, 2
      %v7886 = vsel %vm5797, %v7884, %v7885
      %v7887 = vrot.slane %v7850, 2
      %v7888 = vsel %vm5797, %v7887, %v7887
      %v7897 = vadd.f32 %v7823, %v7868
      %v7898 = vadd.f32 %v7824, %v7871
      %v7899 = vadd.f32 %v7825, %v7874
      %v7900 = vadd.f32 %v7826, %v7877
      %v7901 = vadd.f32 %v7827, %v7880
      %v7902 = vadd.f32 %v7828, %v7883
      %v7903 = vadd.f32 %v7829, %v7886
      %v7904 = vadd.f32 %v7830, %v7888
      %v7905 = vld [vmem:[%s4 + $0x28] sm:$0x1]
      %v7906 = vlaneseq
      %v7907 = vshrl.u32 %v7906, 7
      %v7908 = vsub.s32 0, %v7907
      %v7909 = vrot.slane %v7905, %v7908
      %v7910 = vmul.f32 %v5575, %v7909
      %v7911 = vmul.f32 %v5583, %v7909
      %v7912 = vmul.f32 %v5576, %v7909
      %v7913 = vmul.f32 %v5584, %v7909
      %v7914 = vmul.f32 %v5577, %v7909
      %v7915 = vmul.f32 %v5585, %v7909
      %v7916 = vmul.f32 %v5578, %v7909
      %v7917 = vmul.f32 %v5586, %v7909
      %v7918 = vmul.f32 %v5579, %v7909
      %v7919 = vmul.f32 %v5587, %v7909
      %v7920 = vmul.f32 %v5580, %v7909
      %v7921 = vmul.f32 %v5588, %v7909
      %v7922 = vmul.f32 %v5581, %v7909
      %v7923 = vmul.f32 %v5589, %v7909
      %v7924 = vmul.f32 %v7909, 0.0
      %v7940 = vrot.slane %v7910, 2
      %v7941 = vrot.slane %v7911, 2
      %v7942 = vsel %vm5797, %v7940, %v7941
      %v7943 = vrot.slane %v7912, 2
      %v7944 = vrot.slane %v7913, 2
      %v7945 = vsel %vm5797, %v7943, %v7944
      %v7946 = vrot.slane %v7914, 2
      %v7947 = vrot.slane %v7915, 2
      %v7948 = vsel %vm5797, %v7946, %v7947
      %v7949 = vrot.slane %v7916, 2
      %v7950 = vrot.slane %v7917, 2
      %v7951 = vsel %vm5797, %v7949, %v7950
      %v7952 = vrot.slane %v7918, 2
      %v7953 = vrot.slane %v7919, 2
      %v7954 = vsel %vm5797, %v7952, %v7953
      %v7955 = vrot.slane %v7920, 2
      %v7956 = vrot.slane %v7921, 2
      %v7957 = vsel %vm5797, %v7955, %v7956
      %v7958 = vrot.slane %v7922, 2
      %v7959 = vrot.slane %v7923, 2
      %v7960 = vsel %vm5797, %v7958, %v7959
      %v7961 = vrot.slane %v7924, 2
      %v7962 = vsel %vm5797, %v7961, %v7961
      %v7971 = vadd.f32 %v7897, %v7942
      %v7972 = vadd.f32 %v7898, %v7945
      %v7973 = vadd.f32 %v7899, %v7948
      %v7974 = vadd.f32 %v7900, %v7951
      %v7975 = vadd.f32 %v7901, %v7954
      %v7976 = vadd.f32 %v7902, %v7957
      %v7977 = vadd.f32 %v7903, %v7960
      %v7978 = vadd.f32 %v7904, %v7962
      %v7979 = vld [vmem:[%s4 + $0x29] sm:$0x1]
      %v7980 = vlaneseq
      %v7981 = vshrl.u32 %v7980, 7
      %v7982 = vsub.s32 0, %v7981
      %v7983 = vrot.slane %v7979, %v7982
      %v7984 = vmul.f32 %v5535, %v7983
      %v7985 = vmul.f32 %v5543, %v7983
      %v7986 = vmul.f32 %v5536, %v7983
      %v7987 = vmul.f32 %v5544, %v7983
      %v7988 = vmul.f32 %v5537, %v7983
      %v7989 = vmul.f32 %v5545, %v7983
      %v7990 = vmul.f32 %v5538, %v7983
      %v7991 = vmul.f32 %v5546, %v7983
      %v7992 = vmul.f32 %v5539, %v7983
      %v7993 = vmul.f32 %v5547, %v7983
      %v7994 = vmul.f32 %v5540, %v7983
      %v7995 = vmul.f32 %v5548, %v7983
      %v7996 = vmul.f32 %v5541, %v7983
      %v7997 = vmul.f32 %v5549, %v7983
      %v7998 = vmul.f32 %v7983, 0.0
      %v8014 = vrot.slane %v7984, 3
      %v8015 = vrot.slane %v7985, 3
      %v8016 = vsel %vm5928, %v8014, %v8015
      %v8017 = vrot.slane %v7986, 3
      %v8018 = vrot.slane %v7987, 3
      %v8019 = vsel %vm5928, %v8017, %v8018
      %v8020 = vrot.slane %v7988, 3
      %v8021 = vrot.slane %v7989, 3
      %v8022 = vsel %vm5928, %v8020, %v8021
      %v8023 = vrot.slane %v7990, 3
      %v8024 = vrot.slane %v7991, 3
      %v8025 = vsel %vm5928, %v8023, %v8024
      %v8026 = vrot.slane %v7992, 3
      %v8027 = vrot.slane %v7993, 3
      %v8028 = vsel %vm5928, %v8026, %v8027
      %v8029 = vrot.slane %v7994, 3
      %v8030 = vrot.slane %v7995, 3
      %v8031 = vsel %vm5928, %v8029, %v8030
      %v8032 = vrot.slane %v7996, 3
      %v8033 = vrot.slane %v7997, 3
      %v8034 = vsel %vm5928, %v8032, %v8033
      %v8035 = vrot.slane %v7998, 3
      %v8036 = vsel %vm5928, %v8035, %v8035
      %v8045 = vadd.f32 %v7971, %v8016
      %v8046 = vadd.f32 %v7972, %v8019
      %v8047 = vadd.f32 %v7973, %v8022
      %v8048 = vadd.f32 %v7974, %v8025
      %v8049 = vadd.f32 %v7975, %v8028
      %v8050 = vadd.f32 %v7976, %v8031
      %v8051 = vadd.f32 %v7977, %v8034
      %v8052 = vadd.f32 %v7978, %v8036
      %v8053 = vld [vmem:[%s4 + $0x2a] sm:$0x1]
      %v8054 = vlaneseq
      %v8055 = vshrl.u32 %v8054, 7
      %v8056 = vsub.s32 0, %v8055
      %v8057 = vrot.slane %v8053, %v8056
      %v8058 = vmul.f32 %v5455, %v8057
      %v8059 = vmul.f32 %v5456, %v8057
      %v8060 = vmul.f32 %v5457, %v8057
      %v8061 = vmul.f32 %v5458, %v8057
      %v8062 = vmul.f32 %v5459, %v8057
      %v8063 = vmul.f32 %v5460, %v8057
      %v8064 = vmul.f32 %v5461, %v8057
      %v8065 = vmul.f32 %v8057, 0.0
      %v8066 = vadd.f32 %v8045, %v8058
      %v8067 = vadd.f32 %v8046, %v8059
      %v8068 = vadd.f32 %v8047, %v8060
      %v8069 = vadd.f32 %v8048, %v8061
      %v8070 = vadd.f32 %v8049, %v8062
      %v8071 = vadd.f32 %v8050, %v8063
      %v8072 = vadd.f32 %v8051, %v8064
      %v8073 = vadd.f32 %v8052, %v8065
      %v8074 = vld [vmem:[%s4 + $0x2b] sm:$0x1]
      %v8075 = vlaneseq
      %v8076 = vshrl.u32 %v8075, 7
      %v8077 = vsub.s32 0, %v8076
      %v8078 = vrot.slane %v8074, %v8077
      %v8079 = vmul.f32 %v5495, %v8078
      %v8080 = vmul.f32 %v5496, %v8078
      %v8081 = vmul.f32 %v5497, %v8078
      %v8082 = vmul.f32 %v5498, %v8078
      %v8083 = vmul.f32 %v5499, %v8078
      %v8084 = vmul.f32 %v5500, %v8078
      %v8085 = vmul.f32 %v5501, %v8078
      %v8086 = vmul.f32 %v8078, 0.0
      %v8087 = vadd.f32 %v8066, %v8079
      %v8088 = vadd.f32 %v8067, %v8080
      %v8089 = vadd.f32 %v8068, %v8081
      %v8090 = vadd.f32 %v8069, %v8082
      %v8091 = vadd.f32 %v8070, %v8083
      %v8092 = vadd.f32 %v8071, %v8084
      %v8093 = vadd.f32 %v8072, %v8085
      %v8094 = vadd.f32 %v8073, %v8086
      %v8095 = vld [vmem:[%s4 + $0x2c] sm:$0x1]
      %v8096 = vlaneseq
      %v8097 = vshrl.u32 %v8096, 7
      %v8098 = vsub.s32 0, %v8097
      %v8099 = vrot.slane %v8095, %v8098
      %v8100 = vmul.f32 %v5455, %v8099
      %v8101 = vmul.f32 %v5463, %v8099
      %v8102 = vmul.f32 %v5456, %v8099
      %v8103 = vmul.f32 %v5464, %v8099
      %v8104 = vmul.f32 %v5457, %v8099
      %v8105 = vmul.f32 %v5465, %v8099
      %v8106 = vmul.f32 %v5458, %v8099
      %v8107 = vmul.f32 %v5466, %v8099
      %v8108 = vmul.f32 %v5459, %v8099
      %v8109 = vmul.f32 %v5467, %v8099
      %v8110 = vmul.f32 %v5460, %v8099
      %v8111 = vmul.f32 %v5468, %v8099
      %v8112 = vmul.f32 %v5461, %v8099
      %v8113 = vmul.f32 %v5469, %v8099
      %v8114 = vmul.f32 %v8099, 0.0
      %v8130 = vrot.slane %v8100, 1
      %v8131 = vrot.slane %v8101, 1
      %v8132 = vsel %vm4203, %v8130, %v8131
      %v8133 = vrot.slane %v8102, 1
      %v8134 = vrot.slane %v8103, 1
      %v8135 = vsel %vm4203, %v8133, %v8134
      %v8136 = vrot.slane %v8104, 1
      %v8137 = vrot.slane %v8105, 1
      %v8138 = vsel %vm4203, %v8136, %v8137
      %v8139 = vrot.slane %v8106, 1
      %v8140 = vrot.slane %v8107, 1
      %v8141 = vsel %vm4203, %v8139, %v8140
      %v8142 = vrot.slane %v8108, 1
      %v8143 = vrot.slane %v8109, 1
      %v8144 = vsel %vm4203, %v8142, %v8143
      %v8145 = vrot.slane %v8110, 1
      %v8146 = vrot.slane %v8111, 1
      %v8147 = vsel %vm4203, %v8145, %v8146
      %v8148 = vrot.slane %v8112, 1
      %v8149 = vrot.slane %v8113, 1
      %v8150 = vsel %vm4203, %v8148, %v8149
      %v8151 = vrot.slane %v8114, 1
      %v8152 = vsel %vm4203, %v8151, %v8151
      %v8161 = vadd.f32 %v8087, %v8132
      %v8162 = vadd.f32 %v8088, %v8135
      %v8163 = vadd.f32 %v8089, %v8138
      %v8164 = vadd.f32 %v8090, %v8141
      %v8165 = vadd.f32 %v8091, %v8144
      %v8166 = vadd.f32 %v8092, %v8147
      %v8167 = vadd.f32 %v8093, %v8150
      %v8168 = vadd.f32 %v8094, %v8152
      %v8169 = vld [vmem:[%s4 + $0x2d] sm:$0x1]
      %v8170 = vlaneseq
      %v8171 = vshrl.u32 %v8170, 7
      %v8172 = vsub.s32 0, %v8171
      %v8173 = vrot.slane %v8169, %v8172
      %v8174 = vmul.f32 %v5495, %v8173
      %v8175 = vmul.f32 %v5503, %v8173
      %v8176 = vmul.f32 %v5496, %v8173
      %v8177 = vmul.f32 %v5504, %v8173
      %v8178 = vmul.f32 %v5497, %v8173
      %v8179 = vmul.f32 %v5505, %v8173
      %v8180 = vmul.f32 %v5498, %v8173
      %v8181 = vmul.f32 %v5506, %v8173
      %v8182 = vmul.f32 %v5499, %v8173
      %v8183 = vmul.f32 %v5507, %v8173
      %v8184 = vmul.f32 %v5500, %v8173
      %v8185 = vmul.f32 %v5508, %v8173
      %v8186 = vmul.f32 %v5501, %v8173
      %v8187 = vmul.f32 %v5509, %v8173
      %v8188 = vmul.f32 %v8173, 0.0
      %v8204 = vrot.slane %v8174, 1
      %v8205 = vrot.slane %v8175, 1
      %v8206 = vsel %vm4203, %v8204, %v8205
      %v8207 = vrot.slane %v8176, 1
      %v8208 = vrot.slane %v8177, 1
      %v8209 = vsel %vm4203, %v8207, %v8208
      %v8210 = vrot.slane %v8178, 1
      %v8211 = vrot.slane %v8179, 1
      %v8212 = vsel %vm4203, %v8210, %v8211
      %v8213 = vrot.slane %v8180, 1
      %v8214 = vrot.slane %v8181, 1
      %v8215 = vsel %vm4203, %v8213, %v8214
      %v8216 = vrot.slane %v8182, 1
      %v8217 = vrot.slane %v8183, 1
      %v8218 = vsel %vm4203, %v8216, %v8217
      %v8219 = vrot.slane %v8184, 1
      %v8220 = vrot.slane %v8185, 1
      %v8221 = vsel %vm4203, %v8219, %v8220
      %v8222 = vrot.slane %v8186, 1
      %v8223 = vrot.slane %v8187, 1
      %v8224 = vsel %vm4203, %v8222, %v8223
      %v8225 = vrot.slane %v8188, 1
      %v8226 = vsel %vm4203, %v8225, %v8225
      %v8235 = vadd.f32 %v8161, %v8206
      %v8236 = vadd.f32 %v8162, %v8209
      %v8237 = vadd.f32 %v8163, %v8212
      %v8238 = vadd.f32 %v8164, %v8215
      %v8239 = vadd.f32 %v8165, %v8218
      %v8240 = vadd.f32 %v8166, %v8221
      %v8241 = vadd.f32 %v8167, %v8224
      %v8242 = vadd.f32 %v8168, %v8226
      %v8243 = vld [vmem:[%s4 + $0x2e] sm:$0x1]
      %v8244 = vlaneseq
      %v8245 = vshrl.u32 %v8244, 7
      %v8246 = vsub.s32 0, %v8245
      %v8247 = vrot.slane %v8243, %v8246
      %v8248 = vmul.f32 %v5455, %v8247
      %v8249 = vmul.f32 %v5463, %v8247
      %v8250 = vmul.f32 %v5456, %v8247
      %v8251 = vmul.f32 %v5464, %v8247
      %v8252 = vmul.f32 %v5457, %v8247
      %v8253 = vmul.f32 %v5465, %v8247
      %v8254 = vmul.f32 %v5458, %v8247
      %v8255 = vmul.f32 %v5466, %v8247
      %v8256 = vmul.f32 %v5459, %v8247
      %v8257 = vmul.f32 %v5467, %v8247
      %v8258 = vmul.f32 %v5460, %v8247
      %v8259 = vmul.f32 %v5468, %v8247
      %v8260 = vmul.f32 %v5461, %v8247
      %v8261 = vmul.f32 %v5469, %v8247
      %v8262 = vmul.f32 %v8247, 0.0
      %v8278 = vrot.slane %v8248, 2
      %v8279 = vrot.slane %v8249, 2
      %v8280 = vsel %vm5797, %v8278, %v8279
      %v8281 = vrot.slane %v8250, 2
      %v8282 = vrot.slane %v8251, 2
      %v8283 = vsel %vm5797, %v8281, %v8282
      %v8284 = vrot.slane %v8252, 2
      %v8285 = vrot.slane %v8253, 2
      %v8286 = vsel %vm5797, %v8284, %v8285
      %v8287 = vrot.slane %v8254, 2
      %v8288 = vrot.slane %v8255, 2
      %v8289 = vsel %vm5797, %v8287, %v8288
      %v8290 = vrot.slane %v8256, 2
      %v8291 = vrot.slane %v8257, 2
      %v8292 = vsel %vm5797, %v8290, %v8291
      %v8293 = vrot.slane %v8258, 2
      %v8294 = vrot.slane %v8259, 2
      %v8295 = vsel %vm5797, %v8293, %v8294
      %v8296 = vrot.slane %v8260, 2
      %v8297 = vrot.slane %v8261, 2
      %v8298 = vsel %vm5797, %v8296, %v8297
      %v8299 = vrot.slane %v8262, 2
      %v8300 = vsel %vm5797, %v8299, %v8299
      %v8309 = vadd.f32 %v8235, %v8280
      %v8310 = vadd.f32 %v8236, %v8283
      %v8311 = vadd.f32 %v8237, %v8286
      %v8312 = vadd.f32 %v8238, %v8289
      %v8313 = vadd.f32 %v8239, %v8292
      %v8314 = vadd.f32 %v8240, %v8295
      %v8315 = vadd.f32 %v8241, %v8298
      %v8316 = vadd.f32 %v8242, %v8300
      %v8317 = vld [vmem:[%s4 + $0x2f] sm:$0x1]
      %v8318 = vlaneseq
      %v8319 = vshrl.u32 %v8318, 7
      %v8320 = vsub.s32 0, %v8319
      %v8321 = vrot.slane %v8317, %v8320
      %v8322 = vmul.f32 %v5495, %v8321
      %v8323 = vmul.f32 %v5503, %v8321
      %v8324 = vmul.f32 %v5496, %v8321
      %v8325 = vmul.f32 %v5504, %v8321
      %v8326 = vmul.f32 %v5497, %v8321
      %v8327 = vmul.f32 %v5505, %v8321
      %v8328 = vmul.f32 %v5498, %v8321
      %v8329 = vmul.f32 %v5506, %v8321
      %v8330 = vmul.f32 %v5499, %v8321
      %v8331 = vmul.f32 %v5507, %v8321
      %v8332 = vmul.f32 %v5500, %v8321
      %v8333 = vmul.f32 %v5508, %v8321
      %v8334 = vmul.f32 %v5501, %v8321
      %v8335 = vmul.f32 %v5509, %v8321
      %v8336 = vmul.f32 %v8321, 0.0
      %v8352 = vrot.slane %v8322, 2
      %v8353 = vrot.slane %v8323, 2
      %v8354 = vsel %vm5797, %v8352, %v8353
      %v8355 = vrot.slane %v8324, 2
      %v8356 = vrot.slane %v8325, 2
      %v8357 = vsel %vm5797, %v8355, %v8356
      %v8358 = vrot.slane %v8326, 2
      %v8359 = vrot.slane %v8327, 2
      %v8360 = vsel %vm5797, %v8358, %v8359
      %v8361 = vrot.slane %v8328, 2
      %v8362 = vrot.slane %v8329, 2
      %v8363 = vsel %vm5797, %v8361, %v8362
      %v8364 = vrot.slane %v8330, 2
      %v8365 = vrot.slane %v8331, 2
      %v8366 = vsel %vm5797, %v8364, %v8365
      %v8367 = vrot.slane %v8332, 2
      %v8368 = vrot.slane %v8333, 2
      %v8369 = vsel %vm5797, %v8367, %v8368
      %v8370 = vrot.slane %v8334, 2
      %v8371 = vrot.slane %v8335, 2
      %v8372 = vsel %vm5797, %v8370, %v8371
      %v8373 = vrot.slane %v8336, 2
      %v8374 = vsel %vm5797, %v8373, %v8373
      %v8383 = vadd.f32 %v8309, %v8354
      %v8384 = vadd.f32 %v8310, %v8357
      %v8385 = vadd.f32 %v8311, %v8360
      %v8386 = vadd.f32 %v8312, %v8363
      %v8387 = vadd.f32 %v8313, %v8366
      %v8388 = vadd.f32 %v8314, %v8369
      %v8389 = vadd.f32 %v8315, %v8372
      %v8390 = vadd.f32 %v8316, %v8374
      %v8391 = vld [vmem:[%s4 + $0x30] sm:$0x1]
      %v8392 = vlaneseq
      %v8393 = vshrl.u32 %v8392, 7
      %v8394 = vsub.s32 0, %v8393
      %v8395 = vrot.slane %v8391, %v8394
      %v8396 = vmul.f32 %v5455, %v8395
      %v8397 = vmul.f32 %v5463, %v8395
      %v8398 = vmul.f32 %v5456, %v8395
      %v8399 = vmul.f32 %v5464, %v8395
      %v8400 = vmul.f32 %v5457, %v8395
      %v8401 = vmul.f32 %v5465, %v8395
      %v8402 = vmul.f32 %v5458, %v8395
      %v8403 = vmul.f32 %v5466, %v8395
      %v8404 = vmul.f32 %v5459, %v8395
      %v8405 = vmul.f32 %v5467, %v8395
      %v8406 = vmul.f32 %v5460, %v8395
      %v8407 = vmul.f32 %v5468, %v8395
      %v8408 = vmul.f32 %v5461, %v8395
      %v8409 = vmul.f32 %v5469, %v8395
      %v8410 = vmul.f32 %v8395, 0.0
      %v8426 = vrot.slane %v8396, 3
      %v8427 = vrot.slane %v8397, 3
      %v8428 = vsel %vm5928, %v8426, %v8427
      %v8429 = vrot.slane %v8398, 3
      %v8430 = vrot.slane %v8399, 3
      %v8431 = vsel %vm5928, %v8429, %v8430
      %v8432 = vrot.slane %v8400, 3
      %v8433 = vrot.slane %v8401, 3
      %v8434 = vsel %vm5928, %v8432, %v8433
      %v8435 = vrot.slane %v8402, 3
      %v8436 = vrot.slane %v8403, 3
      %v8437 = vsel %vm5928, %v8435, %v8436
      %v8438 = vrot.slane %v8404, 3
      %v8439 = vrot.slane %v8405, 3
      %v8440 = vsel %vm5928, %v8438, %v8439
      %v8441 = vrot.slane %v8406, 3
      %v8442 = vrot.slane %v8407, 3
      %v8443 = vsel %vm5928, %v8441, %v8442
      %v8444 = vrot.slane %v8408, 3
      %v8445 = vrot.slane %v8409, 3
      %v8446 = vsel %vm5928, %v8444, %v8445
      %v8447 = vrot.slane %v8410, 3
      %v8448 = vsel %vm5928, %v8447, %v8447
      %v8457 = vadd.f32 %v8383, %v8428
      %v8458 = vadd.f32 %v8384, %v8431
      %v8459 = vadd.f32 %v8385, %v8434
      %v8460 = vadd.f32 %v8386, %v8437
      %v8461 = vadd.f32 %v8387, %v8440
      %v8462 = vadd.f32 %v8388, %v8443
      %v8463 = vadd.f32 %v8389, %v8446
      %v8464 = vadd.f32 %v8390, %v8448
      %v8465 = vld [vmem:[%s6] sm:$0xff]
      %v8466 = vld [vmem:[%s6 + $0x8] sm:$0xff]
      %v8467 = vld [vmem:[%s6 + $0x10] sm:$0xff]
      %v8468 = vld [vmem:[%s6 + $0x18] sm:$0xff]
      %v8469 = vld [vmem:[%s6 + $0x20] sm:$0xff]
      %v8470 = vld [vmem:[%s6 + $0x28] sm:$0xff]
      %v8471 = vld [vmem:[%s6 + $0x30] sm:$0xff]
      %v8472 = vld [vmem:[%s6 + $0x38] sm:$0xff]
      %v8473 = vld [vmem:[%s7] sm:$0x1]
      %v8475 = vlaneseq
      %v8476 = vshrl.u32 %v8475, 7
      %v8477 = vsub.s32 0, %v8476
      %v8478 = vrot.slane %v8473, %v8477
      %v8481 = vsel %vm1970, %v8457, 0
      %v8484 = vsel %vm1970, %v8458, 0
      %v8487 = vsel %vm1970, %v8459, 0
      %v8490 = vsel %vm1970, %v8460, 0
      %v8493 = vsel %vm1970, %v8461, 0
      %v8496 = vsel %vm1970, %v8462, 0
      %v8499 = vsel %vm1970, %v8463, 0
      %v8502 = vsel %vm1970, %v8464, 0
      %8504 = vmatprep.subr.mxu0 0.0
      %8505 = vmatpush1.msra.mxu0 %v8465
      %8506 = vmatprep.subr.mxu0 0.0
      %8507 = vmatpush1.msra.mxu0 %v8466
      %8508 = vmatprep.subr.mxu0 0.0
      %8509 = vmatpush1.msra.mxu0 %v8467
      %8510 = vmatprep.subr.mxu0 0.0
      %8511 = vmatpush1.msra.mxu0 %v8468
      %8512 = vmatprep.subr.mxu0 0.0
      %8513 = vmatpush1.msra.mxu0 %v8469
      %8514 = vmatprep.subr.mxu0 0.0
      %8515 = vmatpush1.msra.mxu0 %v8470
      %8516 = vmatprep.subr.mxu0 0.0
      %8517 = vmatpush1.msra.mxu0 %v8471
      %8518 = vmatprep.subr.mxu0 0.0
      %8519 = vmatpush1.msra.mxu0 %v8472
      %8520 = vmatprep.subr.mxu0 0.0
      %8521 = vmatpush1.msra.mxu0 0.0
      %8522 = vmatprep.subr.mxu0 0.0
      %8523 = vmatpush1.msra.mxu0 0.0
      %8524 = vmatprep.subr.mxu0 0.0
      %8525 = vmatpush1.msra.mxu0 0.0
      %8526 = vmatprep.subr.mxu0 0.0
      %8527 = vmatpush1.msra.mxu0 0.0
      %8528 = vmatprep.subr.mxu0 0.0
      %8529 = vmatpush1.msra.mxu0 0.0
      %8530 = vmatprep.subr.mxu0 0.0
      %8531 = vmatpush1.msra.mxu0 0.0
      %8532 = vmatprep.subr.mxu0 0.0
      %8533 = vmatpush1.msra.mxu0 0.0
      %8534 = vmatprep.subr.mxu0 0.0
      %8535 = vmatpush1.msra.mxu0 0.0
      %8536 = vmatprep.subr.mxu0 0.0
      %8537 = vmatpush1.msra.mxu0 0.0
      %8538 = vmatprep.subr.mxu0 0.0
      %8539 = vmatpush1.msra.mxu0 0.0
      %8540 = vmatprep.subr.mxu0 0.0
      %8541 = vmatpush1.msra.mxu0 0.0
      %8542 = vmatprep.subr.mxu0 0.0
      %8543 = vmatpush1.msra.mxu0 0.0
      %8544 = vmatprep.subr.mxu0 0.0
      %8545 = vmatpush1.msra.mxu0 0.0
      %8546 = vmatprep.subr.mxu0 0.0
      %8547 = vmatpush1.msra.mxu0 0.0
      %8548 = vmatprep.subr.mxu0 0.0
      %8549 = vmatpush1.msra.mxu0 0.0
      %8550 = vmatprep.subr.mxu0 0.0
      %8551 = vmatpush1.msra.mxu0 0.0
      %8552 = vmatprep.subr.mxu0 0.0
      %8553 = vmatpush1.msra.mxu0 0.0
      %8554 = vmatprep.subr.mxu0 0.0
      %8555 = vmatpush1.msra.mxu0 0.0
      %8556 = vmatprep.subr.mxu0 0.0
      %8557 = vmatpush1.msra.mxu0 0.0
      %8558 = vmatprep.subr.mxu0 0.0
      %8559 = vmatpush1.msra.mxu0 0.0
      %8560 = vmatprep.subr.mxu0 0.0
      %8561 = vmatpush1.msra.mxu0 0.0
      %8562 = vmatprep.subr.mxu0 0.0
      %8563 = vmatpush1.msra.mxu0 0.0
      %8564 = vmatprep.subr.mxu0 0.0
      %8565 = vmatpush1.msra.mxu0 0.0
      %8566 = vmatprep.subr.mxu0 0.0
      %8567 = vmatpush1.msra.mxu0 0.0
      %8568 = vmatprep.mubr.f32.mxu0 0.0
      %8569 = vmatmul.mubr.f32.gmra.mrb[0].mxu0 %v8481
      %v8570 = vpop.f32.mrb[0].mxu0
      %v8571 = vadd.f32 %v8478, %v8570
      %v8572 = vpop.f32.mrb[0].mxu0
      %8573 = vmatprep.mubr.f32.mxu0 0.0
      %8574 = vmatmul.mubr.f32.gmra.mrb[0].mxu0 %v8484
      %v8575 = vpop.f32.mrb[0].mxu0
      %v8576 = vadd.f32 %v8478, %v8575
      %v8577 = vpop.f32.mrb[0].mxu0
      %8578 = vmatprep.mubr.f32.mxu0 0.0
      %8579 = vmatmul.mubr.f32.gmra.mrb[0].mxu0 %v8487
      %v8580 = vpop.f32.mrb[0].mxu0
      %v8581 = vadd.f32 %v8478, %v8580
      %v8582 = vpop.f32.mrb[0].mxu0
      %8583 = vmatprep.mubr.f32.mxu0 0.0
      %8584 = vmatmul.mubr.f32.gmra.mrb[0].mxu0 %v8490
      %v8585 = vpop.f32.mrb[0].mxu0
      %v8586 = vadd.f32 %v8478, %v8585
      %v8587 = vpop.f32.mrb[0].mxu0
      %8588 = vmatprep.mubr.f32.mxu0 0.0
      %8589 = vmatmul.mubr.f32.gmra.mrb[0].mxu0 %v8493
      %v8590 = vpop.f32.mrb[0].mxu0
      %v8591 = vadd.f32 %v8478, %v8590
      %v8592 = vpop.f32.mrb[0].mxu0
      %8593 = vmatprep.mubr.f32.mxu0 0.0
      %8594 = vmatmul.mubr.f32.gmra.mrb[0].mxu0 %v8496
      %v8595 = vpop.f32.mrb[0].mxu0
      %v8596 = vadd.f32 %v8478, %v8595
      %v8597 = vpop.f32.mrb[0].mxu0
      %8598 = vmatprep.mubr.f32.mxu0 0.0
      %8599 = vmatmul.mubr.f32.gmra.mrb[0].mxu0 %v8499
      %v8600 = vpop.f32.mrb[0].mxu0
      %v8601 = vadd.f32 %v8478, %v8600
      %v8602 = vpop.f32.mrb[0].mxu0
      %8603 = vmatprep.mubr.f32.mxu0 0.0
      %8604 = vmatmul.mubr.f32.gmra.mrb[0].mxu0 %v8502
      %v8605 = vpop.f32.mrb[0].mxu0
      %v8606 = vpop.f32.mrb[0].mxu0
      %8607 = vdwg.mxu0
      %v8608 = vmax.f32 %v8571, 0.0
      %v8609 = vmax.f32 %v8576, 0.0
      %v8610 = vmax.f32 %v8581, 0.0
      %v8611 = vmax.f32 %v8586, 0.0
      %v8612 = vmax.f32 %v8591, 0.0
      %v8613 = vmax.f32 %v8596, 0.0
      %v8614 = vmax.f32 %v8601, 0.0
      %v8615 = vmul.f32 %v1830, -0.09375
      %v8616 = vmul.f32 %v1831, -0.09375
      %v8617 = vmul.f32 %v1832, -0.09375
      %v8618 = vmul.f32 %v1833, -0.09375
      %v8619 = vmul.f32 %v1834, -0.09375
      %v8620 = vmul.f32 %v1835, -0.09375
      %v8621 = vmul.f32 %v1836, -0.09375
      %v8622 = vadd.f32 %v8615, %v4115
      %v8623 = vadd.f32 %v8616, %v4116
      %v8624 = vadd.f32 %v8617, %v4117
      %v8625 = vadd.f32 %v8618, %v4118
      %v8626 = vadd.f32 %v8619, %v4119
      %v8627 = vadd.f32 %v8620, %v4120
      %v8628 = vadd.f32 %v8621, %v4121
      %v8629 = vadd.f32 %v8622, %v4155
      %v8630 = vadd.f32 %v8623, %v4156
      %v8631 = vadd.f32 %v8624, %v4157
      %v8632 = vadd.f32 %v8625, %v4158
      %v8633 = vadd.f32 %v8626, %v4159
      %v8634 = vadd.f32 %v8627, %v4160
      %v8635 = vadd.f32 %v8628, %v4161
      %v8636 = vmul.f32 %v1854, -0.09375
      %v8637 = vmul.f32 %v1855, -0.09375
      %v8638 = vmul.f32 %v1856, -0.09375
      %v8639 = vmul.f32 %v1857, -0.09375
      %v8640 = vmul.f32 %v1858, -0.09375
      %v8641 = vmul.f32 %v1859, -0.09375
      %v8642 = vmul.f32 %v1860, -0.09375
      %v8643 = vadd.f32 %v8629, %v8636
      %v8644 = vadd.f32 %v8630, %v8637
      %v8645 = vadd.f32 %v8631, %v8638
      %v8646 = vadd.f32 %v8632, %v8639
      %v8647 = vadd.f32 %v8633, %v8640
      %v8648 = vadd.f32 %v8634, %v8641
      %v8649 = vadd.f32 %v8635, %v8642
      %v8650 = vmul.f32 %v1862, -0.09375
      %v8651 = vmul.f32 %v1863, -0.09375
      %v8652 = vmul.f32 %v1864, -0.09375
      %v8653 = vmul.f32 %v1865, -0.09375
      %v8654 = vmul.f32 %v1866, -0.09375
      %v8655 = vmul.f32 %v1867, -0.09375
      %v8656 = vmul.f32 %v1868, -0.09375
      %v8657 = vadd.f32 %v8650, %v4276
      %v8658 = vadd.f32 %v8651, %v4277
      %v8659 = vadd.f32 %v8652, %v4278
      %v8660 = vadd.f32 %v8653, %v4279
      %v8661 = vadd.f32 %v8654, %v4280
      %v8662 = vadd.f32 %v8655, %v4281
      %v8663 = vadd.f32 %v8656, %v4282
      %v8664 = vadd.f32 %v8657, %v4316
      %v8665 = vadd.f32 %v8658, %v4317
      %v8666 = vadd.f32 %v8659, %v4318
      %v8667 = vadd.f32 %v8660, %v4319
      %v8668 = vadd.f32 %v8661, %v4320
      %v8669 = vadd.f32 %v8662, %v4321
      %v8670 = vadd.f32 %v8663, %v4322
      %v8671 = vmul.f32 %v1886, -0.09375
      %v8672 = vmul.f32 %v1887, -0.09375
      %v8673 = vmul.f32 %v1888, -0.09375
      %v8674 = vmul.f32 %v1889, -0.09375
      %v8675 = vmul.f32 %v1890, -0.09375
      %v8676 = vmul.f32 %v1891, -0.09375
      %v8677 = vmul.f32 %v1892, -0.09375
      %v8678 = vadd.f32 %v8664, %v8671
      %v8679 = vadd.f32 %v8665, %v8672
      %v8680 = vadd.f32 %v8666, %v8673
      %v8681 = vadd.f32 %v8667, %v8674
      %v8682 = vadd.f32 %v8668, %v8675
      %v8683 = vadd.f32 %v8669, %v8676
      %v8684 = vadd.f32 %v8670, %v8677
      %v8685 = vmul.f32 %v1894, -0.09375
      %v8686 = vmul.f32 %v1895, -0.09375
      %v8687 = vmul.f32 %v1896, -0.09375
      %v8688 = vmul.f32 %v1897, -0.09375
      %v8689 = vmul.f32 %v1898, -0.09375
      %v8690 = vmul.f32 %v1899, -0.09375
      %v8691 = vmul.f32 %v1900, -0.09375
      %v8692 = vadd.f32 %v8685, %v4436
      %v8693 = vadd.f32 %v8686, %v4437
      %v8694 = vadd.f32 %v8687, %v4438
      %v8695 = vadd.f32 %v8688, %v4439
      %v8696 = vadd.f32 %v8689, %v4440
      %v8697 = vadd.f32 %v8690, %v4441
      %v8698 = vadd.f32 %v8691, %v4442
      %v8699 = vadd.f32 %v8692, %v4476
      %v8700 = vadd.f32 %v8693, %v4477
      %v8701 = vadd.f32 %v8694, %v4478
      %v8702 = vadd.f32 %v8695, %v4479
      %v8703 = vadd.f32 %v8696, %v4480
      %v8704 = vadd.f32 %v8697, %v4481
      %v8705 = vadd.f32 %v8698, %v4482
      %v8706 = vmul.f32 %v1918, -0.09375
      %v8707 = vmul.f32 %v1919, -0.09375
      %v8708 = vmul.f32 %v1920, -0.09375
      %v8709 = vmul.f32 %v1921, -0.09375
      %v8710 = vmul.f32 %v1922, -0.09375
      %v8711 = vmul.f32 %v1923, -0.09375
      %v8712 = vmul.f32 %v1924, -0.09375
      %v8713 = vadd.f32 %v8699, %v8706
      %v8714 = vadd.f32 %v8700, %v8707
      %v8715 = vadd.f32 %v8701, %v8708
      %v8716 = vadd.f32 %v8702, %v8709
      %v8717 = vadd.f32 %v8703, %v8710
      %v8718 = vadd.f32 %v8704, %v8711
      %v8719 = vadd.f32 %v8705, %v8712
      %v8720 = vmul.f32 %v1926, -0.09375
      %v8721 = vmul.f32 %v1927, -0.09375
      %v8722 = vmul.f32 %v1928, -0.09375
      %v8723 = vmul.f32 %v1929, -0.09375
      %v8724 = vmul.f32 %v1930, -0.09375
      %v8725 = vmul.f32 %v1931, -0.09375
      %v8726 = vmul.f32 %v1932, -0.09375
      %v8727 = vadd.f32 %v8720, %v4596
      %v8728 = vadd.f32 %v8721, %v4597
      %v8729 = vadd.f32 %v8722, %v4598
      %v8730 = vadd.f32 %v8723, %v4599
      %v8731 = vadd.f32 %v8724, %v4600
      %v8732 = vadd.f32 %v8725, %v4601
      %v8733 = vadd.f32 %v8726, %v4602
      %v8734 = vadd.f32 %v8727, %v4636
      %v8735 = vadd.f32 %v8728, %v4637
      %v8736 = vadd.f32 %v8729, %v4638
      %v8737 = vadd.f32 %v8730, %v4639
      %v8738 = vadd.f32 %v8731, %v4640
      %v8739 = vadd.f32 %v8732, %v4641
      %v8740 = vadd.f32 %v8733, %v4642
      %v8741 = vmul.f32 %v1950, -0.09375
      %v8742 = vmul.f32 %v1951, -0.09375
      %v8743 = vmul.f32 %v1952, -0.09375
      %v8744 = vmul.f32 %v1953, -0.09375
      %v8745 = vmul.f32 %v1954, -0.09375
      %v8746 = vmul.f32 %v1955, -0.09375
      %v8747 = vmul.f32 %v1956, -0.09375
      %v8748 = vadd.f32 %v8734, %v8741
      %v8749 = vadd.f32 %v8735, %v8742
      %v8750 = vadd.f32 %v8736, %v8743
      %v8751 = vadd.f32 %v8737, %v8744
      %v8752 = vadd.f32 %v8738, %v8745
      %v8753 = vadd.f32 %v8739, %v8746
      %v8754 = vadd.f32 %v8740, %v8747
      %v8755 = vmul.f32 %v8643, -0.09375
      %v8756 = vmul.f32 %v8644, -0.09375
      %v8757 = vmul.f32 %v8645, -0.09375
      %v8758 = vmul.f32 %v8646, -0.09375
      %v8759 = vmul.f32 %v8647, -0.09375
      %v8760 = vmul.f32 %v8648, -0.09375
      %v8761 = vmul.f32 %v8649, -0.09375
      %v8762 = vmul.f32 %v8678, 0.59375
      %v8763 = vmul.f32 %v8679, 0.59375
      %v8764 = vmul.f32 %v8680, 0.59375
      %v8765 = vmul.f32 %v8681, 0.59375
      %v8766 = vmul.f32 %v8682, 0.59375
      %v8767 = vmul.f32 %v8683, 0.59375
      %v8768 = vmul.f32 %v8684, 0.59375
      %v8769 = vadd.f32 %v8755, %v8762
      %v8770 = vadd.f32 %v8756, %v8763
      %v8771 = vadd.f32 %v8757, %v8764
      %v8772 = vadd.f32 %v8758, %v8765
      %v8773 = vadd.f32 %v8759, %v8766
      %v8774 = vadd.f32 %v8760, %v8767
      %v8775 = vadd.f32 %v8761, %v8768
      %v8776 = vmul.f32 %v8713, 0.59375
      %v8777 = vmul.f32 %v8714, 0.59375
      %v8778 = vmul.f32 %v8715, 0.59375
      %v8779 = vmul.f32 %v8716, 0.59375
      %v8780 = vmul.f32 %v8717, 0.59375
      %v8781 = vmul.f32 %v8718, 0.59375
      %v8782 = vmul.f32 %v8719, 0.59375
      %v8783 = vadd.f32 %v8769, %v8776
      %v8784 = vadd.f32 %v8770, %v8777
      %v8785 = vadd.f32 %v8771, %v8778
      %v8786 = vadd.f32 %v8772, %v8779
      %v8787 = vadd.f32 %v8773, %v8780
      %v8788 = vadd.f32 %v8774, %v8781
      %v8789 = vadd.f32 %v8775, %v8782
      %v8790 = vmul.f32 %v8748, -0.09375
      %v8791 = vmul.f32 %v8749, -0.09375
      %v8792 = vmul.f32 %v8750, -0.09375
      %v8793 = vmul.f32 %v8751, -0.09375
      %v8794 = vmul.f32 %v8752, -0.09375
      %v8795 = vmul.f32 %v8753, -0.09375
      %v8796 = vmul.f32 %v8754, -0.09375
      %v8797 = vadd.f32 %v8783, %v8790
      %v8798 = vadd.f32 %v8784, %v8791
      %v8799 = vadd.f32 %v8785, %v8792
      %v8800 = vadd.f32 %v8786, %v8793
      %v8801 = vadd.f32 %v8787, %v8794
      %v8802 = vadd.f32 %v8788, %v8795
      %v8803 = vadd.f32 %v8789, %v8796
      %v8804 = vrot.slane %v4043, 7
      %v8805 = vrot.slane %v4044, 7
      %v8806 = vrot.slane %v4045, 7
      %v8807 = vrot.slane %v4046, 7
      %v8808 = vrot.slane %v4047, 7
      %v8809 = vrot.slane %v4048, 7
      %v8810 = vrot.slane %v4049, 7
      %v8811 = vrot.slane %v4050, 7
      %v8820 = vsel %vm1121, %v4012, %v8804
      %v8821 = vsel %vm1121, %v4013, %v8805
      %v8822 = vsel %vm1121, %v4014, %v8806
      %v8823 = vsel %vm1121, %v4015, %v8807
      %v8824 = vsel %vm1121, %v4016, %v8808
      %v8825 = vsel %vm1121, %v4017, %v8809
      %v8826 = vsel %vm1121, %v4018, %v8810
      %v8827 = vsel %vm1121, %v4019, %v8811
      %v8828 = vmul.f32 %v8820, -0.09375
      %v8829 = vmul.f32 %v8821, -0.09375
      %v8830 = vmul.f32 %v8822, -0.09375
      %v8831 = vmul.f32 %v8823, -0.09375
      %v8832 = vmul.f32 %v8824, -0.09375
      %v8833 = vmul.f32 %v8825, -0.09375
      %v8834 = vmul.f32 %v8826, -0.09375
      %v8835 = vmul.f32 %v8827, -0.09375
      %v8836 = vmul.f32 %v4012, 0.59375
      %v8837 = vmul.f32 %v4013, 0.59375
      %v8838 = vmul.f32 %v4014, 0.59375
      %v8839 = vmul.f32 %v4015, 0.59375
      %v8840 = vmul.f32 %v4016, 0.59375
      %v8841 = vmul.f32 %v4017, 0.59375
      %v8842 = vmul.f32 %v4018, 0.59375
      %v8843 = vmul.f32 %v4019, 0.59375
      %v8844 = vadd.f32 %v8828, %v8836
      %v8845 = vadd.f32 %v8829, %v8837
      %v8846 = vadd.f32 %v8830, %v8838
      %v8847 = vadd.f32 %v8831, %v8839
      %v8848 = vadd.f32 %v8832, %v8840
      %v8849 = vadd.f32 %v8833, %v8841
      %v8850 = vadd.f32 %v8834, %v8842
      %v8851 = vadd.f32 %v8835, %v8843
      %v8852 = vmul.f32 %v4043, 0.59375
      %v8853 = vmul.f32 %v4044, 0.59375
      %v8854 = vmul.f32 %v4045, 0.59375
      %v8855 = vmul.f32 %v4046, 0.59375
      %v8856 = vmul.f32 %v4047, 0.59375
      %v8857 = vmul.f32 %v4048, 0.59375
      %v8858 = vmul.f32 %v4049, 0.59375
      %v8859 = vmul.f32 %v4050, 0.59375
      %v8860 = vadd.f32 %v8844, %v8852
      %v8861 = vadd.f32 %v8845, %v8853
      %v8862 = vadd.f32 %v8846, %v8854
      %v8863 = vadd.f32 %v8847, %v8855
      %v8864 = vadd.f32 %v8848, %v8856
      %v8865 = vadd.f32 %v8849, %v8857
      %v8866 = vadd.f32 %v8850, %v8858
      %v8867 = vadd.f32 %v8851, %v8859
      %v8868 = vrot.slane %v4012, 1
      %v8869 = vrot.slane %v4013, 1
      %v8870 = vrot.slane %v4014, 1
      %v8871 = vrot.slane %v4015, 1
      %v8872 = vrot.slane %v4016, 1
      %v8873 = vrot.slane %v4017, 1
      %v8874 = vrot.slane %v4018, 1
      %v8875 = vrot.slane %v4019, 1
      %v8884 = vsel %vm4203, %v8868, %v4043
      %v8885 = vsel %vm4203, %v8869, %v4044
      %v8886 = vsel %vm4203, %v8870, %v4045
      %v8887 = vsel %vm4203, %v8871, %v4046
      %v8888 = vsel %vm4203, %v8872, %v4047
      %v8889 = vsel %vm4203, %v8873, %v4048
      %v8890 = vsel %vm4203, %v8874, %v4049
      %v8891 = vsel %vm4203, %v8875, %v4050
      %v8892 = vmul.f32 %v8884, -0.09375
      %v8893 = vmul.f32 %v8885, -0.09375
      %v8894 = vmul.f32 %v8886, -0.09375
      %v8895 = vmul.f32 %v8887, -0.09375
      %v8896 = vmul.f32 %v8888, -0.09375
      %v8897 = vmul.f32 %v8889, -0.09375
      %v8898 = vmul.f32 %v8890, -0.09375
      %v8899 = vmul.f32 %v8891, -0.09375
      %v8900 = vadd.f32 %v8860, %v8892
      %v8901 = vadd.f32 %v8861, %v8893
      %v8902 = vadd.f32 %v8862, %v8894
      %v8903 = vadd.f32 %v8863, %v8895
      %v8904 = vadd.f32 %v8864, %v8896
      %v8905 = vadd.f32 %v8865, %v8897
      %v8906 = vadd.f32 %v8866, %v8898
      %v8907 = vadd.f32 %v8867, %v8899
      %v8908 = vrot.slane %v4059, 7
      %v8909 = vrot.slane %v4060, 7
      %v8910 = vrot.slane %v4061, 7
      %v8911 = vrot.slane %v4062, 7
      %v8912 = vrot.slane %v4063, 7
      %v8913 = vrot.slane %v4064, 7
      %v8914 = vrot.slane %v4065, 7
      %v8922 = vsel %vm1121, %v4028, %v8908
      %v8923 = vsel %vm1121, %v4029, %v8909
      %v8924 = vsel %vm1121, %v4030, %v8910
      %v8925 = vsel %vm1121, %v4031, %v8911
      %v8926 = vsel %vm1121, %v4032, %v8912
      %v8927 = vsel %vm1121, %v4033, %v8913
      %v8928 = vsel %vm1121, %v4034, %v8914
      %v8929 = vmul.f32 %v8922, -0.09375
      %v8930 = vmul.f32 %v8923, -0.09375
      %v8931 = vmul.f32 %v8924, -0.09375
      %v8932 = vmul.f32 %v8925, -0.09375
      %v8933 = vmul.f32 %v8926, -0.09375
      %v8934 = vmul.f32 %v8927, -0.09375
      %v8935 = vmul.f32 %v8928, -0.09375
      %v8936 = vmul.f32 %v4028, 0.59375
      %v8937 = vmul.f32 %v4029, 0.59375
      %v8938 = vmul.f32 %v4030, 0.59375
      %v8939 = vmul.f32 %v4031, 0.59375
      %v8940 = vmul.f32 %v4032, 0.59375
      %v8941 = vmul.f32 %v4033, 0.59375
      %v8942 = vmul.f32 %v4034, 0.59375
      %v8943 = vadd.f32 %v8929, %v8936
      %v8944 = vadd.f32 %v8930, %v8937
      %v8945 = vadd.f32 %v8931, %v8938
      %v8946 = vadd.f32 %v8932, %v8939
      %v8947 = vadd.f32 %v8933, %v8940
      %v8948 = vadd.f32 %v8934, %v8941
      %v8949 = vadd.f32 %v8935, %v8942
      %v8950 = vmul.f32 %v4059, 0.59375
      %v8951 = vmul.f32 %v4060, 0.59375
      %v8952 = vmul.f32 %v4061, 0.59375
      %v8953 = vmul.f32 %v4062, 0.59375
      %v8954 = vmul.f32 %v4063, 0.59375
      %v8955 = vmul.f32 %v4064, 0.59375
      %v8956 = vmul.f32 %v4065, 0.59375
      %v8957 = vadd.f32 %v8943, %v8950
      %v8958 = vadd.f32 %v8944, %v8951
      %v8959 = vadd.f32 %v8945, %v8952
      %v8960 = vadd.f32 %v8946, %v8953
      %v8961 = vadd.f32 %v8947, %v8954
      %v8962 = vadd.f32 %v8948, %v8955
      %v8963 = vadd.f32 %v8949, %v8956
      %v8964 = vrot.slane %v4028, 1
      %v8965 = vrot.slane %v4029, 1
      %v8966 = vrot.slane %v4030, 1
      %v8967 = vrot.slane %v4031, 1
      %v8968 = vrot.slane %v4032, 1
      %v8969 = vrot.slane %v4033, 1
      %v8970 = vrot.slane %v4034, 1
      %v8978 = vsel %vm4203, %v8964, %v4059
      %v8979 = vsel %vm4203, %v8965, %v4060
      %v8980 = vsel %vm4203, %v8966, %v4061
      %v8981 = vsel %vm4203, %v8967, %v4062
      %v8982 = vsel %vm4203, %v8968, %v4063
      %v8983 = vsel %vm4203, %v8969, %v4064
      %v8984 = vsel %vm4203, %v8970, %v4065
      %v8985 = vmul.f32 %v8978, -0.09375
      %v8986 = vmul.f32 %v8979, -0.09375
      %v8987 = vmul.f32 %v8980, -0.09375
      %v8988 = vmul.f32 %v8981, -0.09375
      %v8989 = vmul.f32 %v8982, -0.09375
      %v8990 = vmul.f32 %v8983, -0.09375
      %v8991 = vmul.f32 %v8984, -0.09375
      %v8992 = vadd.f32 %v8957, %v8985
      %v8993 = vadd.f32 %v8958, %v8986
      %v8994 = vadd.f32 %v8959, %v8987
      %v8995 = vadd.f32 %v8960, %v8988
      %v8996 = vadd.f32 %v8961, %v8989
      %v8997 = vadd.f32 %v8962, %v8990
      %v8998 = vadd.f32 %v8963, %v8991
      %v8999 = vmul.f32 %v8900, -0.09375
      %v9000 = vmul.f32 %v8992, -0.09375
      %v9001 = vmul.f32 %v8993, -0.09375
      %v9002 = vmul.f32 %v8994, -0.09375
      %v9003 = vmul.f32 %v8995, -0.09375
      %v9004 = vmul.f32 %v8996, -0.09375
      %v9005 = vmul.f32 %v8997, -0.09375
      %v9006 = vmul.f32 %v8900, 0.59375
      %v9007 = vmul.f32 %v8901, 0.59375
      %v9008 = vmul.f32 %v8902, 0.59375
      %v9009 = vmul.f32 %v8903, 0.59375
      %v9010 = vmul.f32 %v8904, 0.59375
      %v9011 = vmul.f32 %v8905, 0.59375
      %v9012 = vmul.f32 %v8906, 0.59375
      %v9013 = vadd.f32 %v8999, %v9006
      %v9014 = vadd.f32 %v9000, %v9007
      %v9015 = vadd.f32 %v9001, %v9008
      %v9016 = vadd.f32 %v9002, %v9009
      %v9017 = vadd.f32 %v9003, %v9010
      %v9018 = vadd.f32 %v9004, %v9011
      %v9019 = vadd.f32 %v9005, %v9012
      %v9020 = vmul.f32 %v8992, 0.59375
      %v9021 = vmul.f32 %v8993, 0.59375
      %v9022 = vmul.f32 %v8994, 0.59375
      %v9023 = vmul.f32 %v8995, 0.59375
      %v9024 = vmul.f32 %v8996, 0.59375
      %v9025 = vmul.f32 %v8997, 0.59375
      %v9026 = vmul.f32 %v8998, 0.59375
      %v9027 = vadd.f32 %v9013, %v9020
      %v9028 = vadd.f32 %v9014, %v9021
      %v9029 = vadd.f32 %v9015, %v9022
      %v9030 = vadd.f32 %v9016, %v9023
      %v9031 = vadd.f32 %v9017, %v9024
      %v9032 = vadd.f32 %v9018, %v9025
      %v9033 = vadd.f32 %v9019, %v9026
      %v9034 = vmul.f32 %v8901, -0.09375
      %v9035 = vmul.f32 %v8902, -0.09375
      %v9036 = vmul.f32 %v8903, -0.09375
      %v9037 = vmul.f32 %v8904, -0.09375
      %v9038 = vmul.f32 %v8905, -0.09375
      %v9039 = vmul.f32 %v8906, -0.09375
      %v9040 = vmul.f32 %v8907, -0.09375
      %v9041 = vadd.f32 %v9027, %v9034
      %v9042 = vadd.f32 %v9028, %v9035
      %v9043 = vadd.f32 %v9029, %v9036
      %v9044 = vadd.f32 %v9030, %v9037
      %v9045 = vadd.f32 %v9031, %v9038
      %v9046 = vadd.f32 %v9032, %v9039
      %v9047 = vadd.f32 %v9033, %v9040
      %v9048 = vlaneseq
      %v9049 = vshrl.u32 %v9048, 7
      %v9050 = vsub.s32 0, %v9049
      %v9051 = vrot.slane %v2497, %v9050
      %9053 = vbcast.lane.b32.xlu0 %v9051, 256
      %v9054 = vpop.permute.xlu0 %9053
      %v9055 = vlaneseq
      %v9056 = vshrl.u32 %v9055, 7
      %v9057 = vsub.s32 1, %v9056
      %v9058 = vrot.slane %v2497, %v9057
      %9060 = vbcast.lane.b32.xlu0 %v9058, 256
      %v9061 = vpop.permute.xlu0 %9060
      %v9062 = vlaneseq
      %v9063 = vshrl.u32 %v9062, 7
      %v9064 = vsub.s32 2, %v9063
      %v9065 = vrot.slane %v2497, %v9064
      %9067 = vbcast.lane.b32.xlu0 %v9065, 256
      %v9068 = vpop.permute.xlu0 %9067
      %v9069 = vlaneseq
      %v9070 = vshrl.u32 %v9069, 7
      %v9071 = vsub.s32 3, %v9070
      %v9072 = vrot.slane %v2497, %v9071
      %9074 = vbcast.lane.b32.xlu0 %v9072, 256
      %v9075 = vpop.permute.xlu0 %9074
      %v9076 = vlaneseq
      %v9077 = vshrl.u32 %v9076, 7
      %v9078 = vsub.s32 4, %v9077
      %v9079 = vrot.slane %v2497, %v9078
      %9081 = vbcast.lane.b32.xlu0 %v9079, 256
      %v9082 = vpop.permute.xlu0 %9081
      %v9083 = vlaneseq
      %v9084 = vshrl.u32 %v9083, 7
      %v9085 = vsub.s32 5, %v9084
      %v9086 = vrot.slane %v2497, %v9085
      %9088 = vbcast.lane.b32.xlu0 %v9086, 256
      %v9089 = vpop.permute.xlu0 %9088
      %v9090 = vlaneseq
      %v9091 = vshrl.u32 %v9090, 7
      %v9092 = vsub.s32 6, %v9091
      %v9093 = vrot.slane %v2497, %v9092
      %9095 = vbcast.lane.b32.xlu0 %v9093, 256
      %v9096 = vpop.permute.xlu0 %9095
      %9104 = vrot.lane.b32.xlu0 %v8797, 1
      %v9105 = vpop.permute.xlu0 %9104
      %9106 = vrot.lane.b32.xlu0 %v8798, 1
      %v9107 = vpop.permute.xlu0 %9106
      %9108 = vrot.lane.b32.xlu0 %v8799, 1
      %v9109 = vpop.permute.xlu0 %9108
      %9110 = vrot.lane.b32.xlu0 %v8800, 1
      %v9111 = vpop.permute.xlu0 %9110
      %9112 = vrot.lane.b32.xlu0 %v8801, 1
      %v9113 = vpop.permute.xlu0 %9112
      %9114 = vrot.lane.b32.xlu0 %v8802, 1
      %v9115 = vpop.permute.xlu0 %9114
      %9116 = vrot.lane.b32.xlu0 %v8803, 1
      %v9117 = vpop.permute.xlu0 %9116
      %9132 = vrot.lane.b32.xlu0 %v9041, 32
      %v9133 = vpop.permute.xlu0 %9132
      %9134 = vrot.lane.b32.xlu0 %v9042, 32
      %v9135 = vpop.permute.xlu0 %9134
      %9136 = vrot.lane.b32.xlu0 %v9043, 32
      %v9137 = vpop.permute.xlu0 %9136
      %9138 = vrot.lane.b32.xlu0 %v9044, 32
      %v9139 = vpop.permute.xlu0 %9138
      %9140 = vrot.lane.b32.xlu0 %v9045, 32
      %v9141 = vpop.permute.xlu0 %9140
      %9142 = vrot.lane.b32.xlu0 %v9046, 32
      %v9143 = vpop.permute.xlu0 %9142
      %9144 = vrot.lane.b32.xlu0 %v9047, 32
      %v9145 = vpop.permute.xlu0 %9144
      %9160 = vrot.lane.b32.xlu0 %v8608, 64
      %v9161 = vpop.permute.xlu0 %9160
      %9162 = vrot.lane.b32.xlu0 %v8609, 64
      %v9163 = vpop.permute.xlu0 %9162
      %9164 = vrot.lane.b32.xlu0 %v8610, 64
      %v9165 = vpop.permute.xlu0 %9164
      %9166 = vrot.lane.b32.xlu0 %v8611, 64
      %v9167 = vpop.permute.xlu0 %9166
      %9168 = vrot.lane.b32.xlu0 %v8612, 64
      %v9169 = vpop.permute.xlu0 %9168
      %9170 = vrot.lane.b32.xlu0 %v8613, 64
      %v9171 = vpop.permute.xlu0 %9170
      %9172 = vrot.lane.b32.xlu0 %v8614, 64
      %v9173 = vpop.permute.xlu0 %9172
      %v9181 = vsel %vm2588, %v9054, %v9105
      %v9182 = vsel %vm2588, %v9061, %v9107
      %v9183 = vsel %vm2588, %v9068, %v9109
      %v9184 = vsel %vm2588, %v9075, %v9111
      %v9185 = vsel %vm2588, %v9082, %v9113
      %v9186 = vsel %vm2588, %v9089, %v9115
      %v9187 = vsel %vm2588, %v9096, %v9117
      %v9188 = vsel %vm5060, %v9181, %v9133
      %v9189 = vsel %vm5060, %v9182, %v9135
      %v9190 = vsel %vm5060, %v9183, %v9137
      %v9191 = vsel %vm5060, %v9184, %v9139
      %v9192 = vsel %vm5060, %v9185, %v9141
      %v9193 = vsel %vm5060, %v9186, %v9143
      %v9194 = vsel %vm5060, %v9187, %v9145
      %v9195 = vsel %vm1970, %v9188, %v9161
      %v9196 = vsel %vm1970, %v9189, %v9163
      %v9197 = vsel %vm1970, %v9190, %v9165
      %v9198 = vsel %vm1970, %v9191, %v9167
      %v9199 = vsel %vm1970, %v9192, %v9169
      %v9200 = vsel %vm1970, %v9193, %v9171
      %v9201 = vsel %vm1970, %v9194, %v9173
      %v9202 = vld [vmem:[%s8] sm:$0x7f]
      %v9203 = vld [vmem:[%s8 + $0x8] sm:$0x7f]
      %v9204 = vld [vmem:[%s8 + $0x10] sm:$0x7f]
      %v9205 = vld [vmem:[%s8 + $0x18] sm:$0x7f]
      %v9206 = vld [vmem:[%s8 + $0x20] sm:$0x7f]
      %v9207 = vld [vmem:[%s8 + $0x28] sm:$0x7f]
      %v9208 = vld [vmem:[%s8 + $0x30] sm:$0x7f]
      %v9209 = vld [vmem:[%s8 + $0x38] sm:$0x7f]
      %v9210 = vld [vmem:[%s8 + $0x40] sm:$0x7f]
      %v9211 = vld [vmem:[%s8 + $0x48] sm:$0x7f]
      %v9212 = vld [vmem:[%s8 + $0x50] sm:$0x7f]
      %v9213 = vld [vmem:[%s8 + $0x58] sm:$0x7f]
      %v9214 = vld [vmem:[%s8 + $0x60] sm:$0x7f]
      %v9215 = vld [vmem:[%s8 + $0x68] sm:$0x7f]
      %v9216 = vmul.f32 %v9195, %v9202
      %v9217 = vmul.f32 %v9161, %v9203
      %v9218 = vmul.f32 %v9196, %v9204
      %v9219 = vmul.f32 %v9163, %v9205
      %v9220 = vmul.f32 %v9197, %v9206
      %v9221 = vmul.f32 %v9165, %v9207
      %v9222 = vmul.f32 %v9198, %v9208
      %v9223 = vmul.f32 %v9167, %v9209
      %v9224 = vmul.f32 %v9199, %v9210
      %v9225 = vmul.f32 %v9169, %v9211
      %v9226 = vmul.f32 %v9200, %v9212
      %v9227 = vmul.f32 %v9171, %v9213
      %v9228 = vmul.f32 %v9201, %v9214
      %v9229 = vmul.f32 %v9173, %v9215
      %v9230 = vsel %vm4203, %v9216, 0.0
      %v9231 = vsel %vm4203, %v9218, 0.0
      %v9232 = vadd.f32 %v9230, %v9231
      %v9233 = vsel %vm4203, %v9220, 0.0
      %v9234 = vadd.f32 %v9232, %v9233
      %v9235 = vsel %vm4203, %v9222, 0.0
      %v9236 = vadd.f32 %v9234, %v9235
      %v9237 = vsel %vm4203, %v9224, 0.0
      %v9238 = vadd.f32 %v9236, %v9237
      %v9239 = vsel %vm4203, %v9226, 0.0
      %v9240 = vadd.f32 %v9238, %v9239
      %v9241 = vsel %vm4203, %v9228, 0.0
      %v9242 = vadd.f32 %v9240, %v9241
      %vm9243 = vcmask 522240
      %v9244 = vsel %vm9243, %v9217, 0.0
      %v9245 = vsel %vm9243, %v9219, 0.0
      %v9246 = vadd.f32 %v9244, %v9245
      %v9247 = vsel %vm9243, %v9221, 0.0
      %v9248 = vadd.f32 %v9246, %v9247
      %v9249 = vsel %vm9243, %v9223, 0.0
      %v9250 = vadd.f32 %v9248, %v9249
      %v9251 = vsel %vm9243, %v9225, 0.0
      %v9252 = vadd.f32 %v9250, %v9251
      %v9253 = vsel %vm9243, %v9227, 0.0
      %v9254 = vadd.f32 %v9252, %v9253
      %v9255 = vsel %vm9243, %v9229, 0.0
      %v9256 = vadd.f32 %v9254, %v9255
      %v9257 = vsel %vm4203, %v9242, 0.0
      %v9258 = vrot.slane %v9257, 4
      %v9259 = vadd.f32 %v9257, %v9258
      %v9260 = vrot.slane %v9259, 2
      %v9261 = vadd.f32 %v9259, %v9260
      %v9262 = vrot.slane %v9261, 1
      %v9263 = vadd.f32 %v9261, %v9262
      %v9264 = vsel %vm9243, %v9256, 0.0
      %v9265 = vrot.slane %v9264, 4
      %v9266 = vadd.f32 %v9264, %v9265
      %v9267 = vrot.slane %v9266, 2
      %v9268 = vadd.f32 %v9266, %v9267
      %v9269 = vrot.slane %v9268, 1
      %v9270 = vadd.f32 %v9268, %v9269
      %v9271 = vld [vmem:[%s9] sm:$0x3]
      %v9273 = vlaneseq
      %v9274 = vshrl.u32 %v9273, 7
      %v9275 = vsub.s32 0, %v9274
      %v9276 = vrot.slane %v9271, %v9275
      %v9277 = vlaneseq
      %v9278 = vshrl.u32 %v9277, 7
      %v9279 = vsub.s32 1, %v9278
      %v9280 = vrot.slane %v9271, %v9279
      %v9283 = vadd.f32 %v9263, %v9276
      %v9284 = vadd.f32 %v9270, %v9280
      %v9285 = vld [vmem:[%s10] sm:$0xff]
      %v9286 = vld [vmem:[%s10 + $0x8] sm:$0xff]
      %v9287 = vld [vmem:[%s10 + $0x10] sm:$0xff]
      %v9288 = vld [vmem:[%s10 + $0x18] sm:$0xff]
      %v9289 = vld [vmem:[%s10 + $0x20] sm:$0xff]
      %v9290 = vld [vmem:[%s10 + $0x28] sm:$0xff]
      %v9291 = vld [vmem:[%s10 + $0x30] sm:$0xff]
      %v9292 = vld [vmem:[%s10 + $0x38] sm:$0xff]
      %v9293 = vld [vmem:[%s10 + $0x40] sm:$0xff]
      %v9294 = vld [vmem:[%s10 + $0x48] sm:$0xff]
      %v9295 = vld [vmem:[%s10 + $0x50] sm:$0xff]
      %v9296 = vld [vmem:[%s10 + $0x58] sm:$0xff]
      %v9297 = vld [vmem:[%s10 + $0x60] sm:$0xff]
      %v9298 = vld [vmem:[%s10 + $0x68] sm:$0xff]
      %v9299 = vld [vmem:[%s10 + $0x70] sm:$0xff]
      %v9300 = vld [vmem:[%s10 + $0x78] sm:$0xff]
      %v9301 = vld [vmem:[%s10 + $0x80] sm:$0xff]
      %v9302 = vld [vmem:[%s10 + $0x88] sm:$0xff]
      %v9303 = vld [vmem:[%s10 + $0x90] sm:$0xff]
      %v9304 = vld [vmem:[%s10 + $0x98] sm:$0xff]
      %v9305 = vld [vmem:[%s10 + $0xa0] sm:$0xff]
      %v9306 = vld [vmem:[%s10 + $0xa8] sm:$0xff]
      %v9307 = vld [vmem:[%s10 + $0xb0] sm:$0xff]
      %v9308 = vld [vmem:[%s10 + $0xb8] sm:$0xff]
      %v9309 = vld [vmem:[%s10 + $0xc0] sm:$0xff]
      %v9310 = vld [vmem:[%s10 + $0xc8] sm:$0xff]
      %v9311 = vld [vmem:[%s10 + $0xd0] sm:$0xff]
      %v9312 = vld [vmem:[%s10 + $0xd8] sm:$0xff]
      %v9313 = vld [vmem:[%s10 + $0xe0] sm:$0xff]
      %v9314 = vld [vmem:[%s10 + $0xe8] sm:$0xff]
      %v9315 = vld [vmem:[%s10 + $0xf0] sm:$0xff]
      %v9316 = vld [vmem:[%s10 + $0xf8] sm:$0xff]
      %v9317 = vld [vmem:[%s10 + $0x100] sm:$0xff]
      %v9318 = vld [vmem:[%s10 + $0x108] sm:$0xff]
      %v9319 = vld [vmem:[%s10 + $0x110] sm:$0xff]
      %v9320 = vld [vmem:[%s10 + $0x118] sm:$0xff]
      %v9321 = vld [vmem:[%s10 + $0x120] sm:$0xff]
      %v9322 = vld [vmem:[%s10 + $0x128] sm:$0xff]
      %v9323 = vld [vmem:[%s10 + $0x130] sm:$0xff]
      %v9324 = vld [vmem:[%s10 + $0x138] sm:$0xff]
      %v9325 = vld [vmem:[%s10 + $0x140] sm:$0xff]
      %v9326 = vld [vmem:[%s10 + $0x148] sm:$0xff]
      %v9327 = vld [vmem:[%s10 + $0x150] sm:$0xff]
      %v9328 = vld [vmem:[%s10 + $0x158] sm:$0xff]
      %v9329 = vld [vmem:[%s10 + $0x160] sm:$0xff]
      %v9330 = vld [vmem:[%s10 + $0x168] sm:$0xff]
      %v9331 = vld [vmem:[%s10 + $0x170] sm:$0xff]
      %v9332 = vld [vmem:[%s10 + $0x178] sm:$0xff]
      %v9333 = vld [vmem:[%s11] sm:$0x3]
      %v9335 = vlaneseq
      %v9336 = vshrl.u32 %v9335, 7
      %v9337 = vsub.s32 0, %v9336
      %v9338 = vrot.slane %v9333, %v9337
      %v9339 = vlaneseq
      %v9340 = vshrl.u32 %v9339, 7
      %v9341 = vsub.s32 1, %v9340
      %v9342 = vrot.slane %v9333, %v9341
      %v9346 = vsel %vm1970, %v9284, 0
      %9348 = vmatprep.subr.mxu0 %v9286
      %9349 = vmatpush1.msra.mxu0 %v9285
      %9350 = vmatprep.subr.mxu0 %v9288
      %9351 = vmatpush1.msra.mxu0 %v9287
      %9352 = vmatprep.subr.mxu0 %v9290
      %9353 = vmatpush1.msra.mxu0 %v9289
      %9354 = vmatprep.subr.mxu0 %v9292
      %9355 = vmatpush1.msra.mxu0 %v9291
      %9356 = vmatprep.subr.mxu0 %v9294
      %9357 = vmatpush1.msra.mxu0 %v9293
      %9358 = vmatprep.subr.mxu0 %v9296
      %9359 = vmatpush1.msra.mxu0 %v9295
      %9360 = vmatprep.subr.mxu0 %v9298
      %9361 = vmatpush1.msra.mxu0 %v9297
      %9362 = vmatprep.subr.mxu0 %v9300
      %9363 = vmatpush1.msra.mxu0 %v9299
      %9364 = vmatprep.subr.mxu0 %v9302
      %9365 = vmatpush1.msra.mxu0 %v9301
      %9366 = vmatprep.subr.mxu0 %v9304
      %9367 = vmatpush1.msra.mxu0 %v9303
      %9368 = vmatprep.subr.mxu0 %v9306
      %9369 = vmatpush1.msra.mxu0 %v9305
      %9370 = vmatprep.subr.mxu0 %v9308
      %9371 = vmatpush1.msra.mxu0 %v9307
      %9372 = vmatprep.subr.mxu0 %v9310
      %9373 = vmatpush1.msra.mxu0 %v9309
      %9374 = vmatprep.subr.mxu0 %v9312
      %9375 = vmatpush1.msra.mxu0 %v9311
      %9376 = vmatprep.subr.mxu0 %v9314
      %9377 = vmatpush1.msra.mxu0 %v9313
      %9378 = vmatprep.subr.mxu0 %v9316
      %9379 = vmatpush1.msra.mxu0 %v9315
      %9380 = vmatprep.subr.mxu0 %v9318
      %9381 = vmatpush1.msra.mxu0 %v9317
      %9382 = vmatprep.subr.mxu0 %v9320
      %9383 = vmatpush1.msra.mxu0 %v9319
      %9384 = vmatprep.subr.mxu0 %v9322
      %9385 = vmatpush1.msra.mxu0 %v9321
      %9386 = vmatprep.subr.mxu0 %v9324
      %9387 = vmatpush1.msra.mxu0 %v9323
      %9388 = vmatprep.subr.mxu0 %v9326
      %9389 = vmatpush1.msra.mxu0 %v9325
      %9390 = vmatprep.subr.mxu0 %v9328
      %9391 = vmatpush1.msra.mxu0 %v9327
      %9392 = vmatprep.subr.mxu0 %v9330
      %9393 = vmatpush1.msra.mxu0 %v9329
      %9394 = vmatprep.subr.mxu0 %v9332
      %9395 = vmatpush1.msra.mxu0 %v9331
      %9396 = vmatprep.subr.mxu0 0.0
      %9397 = vmatpush1.msra.mxu0 0.0
      %9398 = vmatprep.subr.mxu0 0.0
      %9399 = vmatpush1.msra.mxu0 0.0
      %9400 = vmatprep.subr.mxu0 0.0
      %9401 = vmatpush1.msra.mxu0 0.0
      %9402 = vmatprep.subr.mxu0 0.0
      %9403 = vmatpush1.msra.mxu0 0.0
      %9404 = vmatprep.subr.mxu0 0.0
      %9405 = vmatpush1.msra.mxu0 0.0
      %9406 = vmatprep.subr.mxu0 0.0
      %9407 = vmatpush1.msra.mxu0 0.0
      %9408 = vmatprep.subr.mxu0 0.0
      %9409 = vmatpush1.msra.mxu0 0.0
      %9410 = vmatprep.subr.mxu0 0.0
      %9411 = vmatpush1.msra.mxu0 0.0
      %9412 = vmatprep.mubr.f32.mxu0 %v9346
      %9413 = vmatmul.mubr.f32.gmra.mrb[0].mxu0 %v9283
      %v9414 = vpop.f32.mrb[0].mxu0
      %v9415 = vadd.f32 %v9338, %v9414
      %v9416 = vpop.f32.mrb[0].mxu0
      %v9417 = vadd.f32 %v9342, %v9416
      %9418 = vdwg.mxu0
      %v9419 = vmax.f32 %v9415, 0.0
      %v9420 = vmax.f32 %v9417, 0.0
      %v9423 = vcombine.low %v9419, %v9420
      %v9425 = vunpack.c.l.s4 1966171168
      %v9426 = vunpack.c.0.s8 %v9425
      %v9427 = vlaneseq
      %v9428 = vshrl.u32 %v9427, 7
      %v9429 = vsub.s32 %v9426, %v9428
      %v9430 = vrot.slane %v9423, %v9429
      %v9432 = vunpack.c.l.s4 1966171168
      %v9433 = vunpack.c.0.s8 %v9432
      %v9434 = vlaneseq
      %v9435 = vshrl.u32 %v9434, 7
      %v9436 = vsub.s32 %v9433, %v9435
      %v9437 = vrot.slane %v9430, %v9436
      %v9439 = vlaneseq
      %vm9440 = vcmp.ge.s32.totalorder %v9439, 0
      %vm9441 = vcmp.lt.s32.totalorder %v9439, 256
      %vm9442 = vmand %vm9440, %vm9441
      %9443 = vst.msk [vmem:[%s593] sm:$0x3] %vm9442, %v9437
      %p9444 = scmp.lt.s32.totalorder %s29, 7
      %s9445 = scalar_select %p9444, %s29, 7
      %s9446 = smul.addr %s9445, 2
      %s9447 = scalar_lea.vmem %s18, %s9446
      // Predicated region
      $region93: #{dsnet_forward.1} parent=91 // pred_check
        %p9448 = pneg %p435
      $region94: #{dsnet_forward.1} parent=91 // pred_check_branch
        %9450 = sbr.rel (%p9448) target = $region96
      $region95: #{dsnet_forward.1} parent=91 // pred_region
        _
      $region96: #{dsnet_forward.1} parent=91 // pred_fallthru
        _
    $region92: #{dsnet_forward.1} parent=5 // pred_fallthru
      _
    %p9451 = scmp.le.s32.totalorder 2, %s24
    // Predicated region
    $region97: #{dsnet_forward.1} parent=5 // pred_check
      %p9452 = pneg %p9451
    $region98: #{dsnet_forward.1} parent=5 // pred_check_branch
      %9454 = sbr.rel (%p9452) target = $region100
    $region99: #{dsnet_forward.1} parent=5 // pred_region
      %s9455 = ssub.s32 %s24, 2
      // Predicated region
      $region101: #{dsnet_forward.1} parent=99 // pred_check
        %p9456 = pneg %p441
      $region102: #{dsnet_forward.1} parent=99 // pred_check_branch
        %9458 = sbr.rel (%p9456) target = $region104
      $region103: #{dsnet_forward.1} parent=99 // pred_region
        %p9459 = scmp.lt.s32.totalorder %s30, 7
        %s9460 = scalar_select %p9459, %s30, 7
        %s9461 = smul.addr %s9460, 2
        %s9462 = scalar_lea.vmem %s18, %s9461
      $region104: #{dsnet_forward.1} parent=99 // pred_fallthru
        _
    $region100: #{dsnet_forward.1} parent=5 // pred_fallthru
      _
  $region6: #{dsnet_forward.1} parent=0 // loop_footer
    %s28 = sadd.s32 1, %s24
  $region7: #{dsnet_forward.1} parent=0 // loop_footer_branch
    %23 = sbr.rel target = $region3
  $region8: #{dsnet_forward.1} parent=0 // loop_exit
    _

</llo_original>
